<compile_context>
chip_gen: v6e
topology: v6e:2x2x1
jax: 0.10.0
libtpu: 0.0.40
codegen_flags: <defaults>
</compile_context>

<pallas_src>
import math
from functools import partial

import jax
import jax.numpy as jnp
from jax.experimental import pallas as pl
from jax.experimental.pallas import tpu as pltpu

VMEM_LIMIT = 32 * 1024 * 1024


def _round_up(x, m):
    return ((x + m - 1) // m) * m


def _rows_tile(M, D):
    """Row tile bounded by a ~2 MiB per-buffer VMEM budget (review: norm sizing)."""
    budget = 2 * 1024 * 1024
    tm = (budget // (4 * max(D, 128))) // 8 * 8
    tm = max(8, min(512, tm))
    return min(tm, _round_up(M, 8))


# ----------------------- fused, gridded matmul kernel ----------------------- #

def _fused_matmul_kernel(*refs, n_k, activation, has_bias, has_residual):
    x_ref, w_ref = refs[0], refs[1]
    idx = 2
    b_ref = r_ref = None
    if has_bias:
        b_ref = refs[idx]
        idx += 1
    if has_residual:
        r_ref = refs[idx]
        idx += 1
    o_ref, acc_ref = refs[idx], refs[idx + 1]

    k = pl.program_id(2)
    d = jnp.dot(x_ref[...], w_ref[...], preferred_element_type=jnp.float32)

    @pl.when(k == 0)
    def _():
        acc_ref[...] = d                 # skip zero-init (review)

    @pl.when(k > 0)
    def _():
        acc_ref[...] = acc_ref[...] + d

    @pl.when(k == n_k - 1)
    def _():
        y = acc_ref[...]
        if has_bias:
            y = y + b_ref[...]
        if activation == "silu":
            y = y * jax.nn.sigmoid(y)
        elif activation == "gelu":
            y = jax.nn.gelu(y, approximate=True)
        if has_residual:
            y = y + r_ref[...].astype(jnp.float32)
        o_ref[...] = y.astype(o_ref.dtype)


def fused_linear(x, w, b=None, residual=None, activation=None,
                 out_dtype=jnp.bfloat16):
    """act(x @ w + b) + residual via a tiled, pipelined Pallas matmul (bf16 out)."""
    orig = x.shape
    x2 = x.reshape(-1, orig[-1])
    M, K = x2.shape
    K2, N = w.shape
    assert K == K2
    tm = min(512, _round_up(M, 8))
    tn = min(512, _round_up(N, 128))
    tk = min(512, _round_up(K, 128))
    Mp, Np, Kp = _round_up(M, tm), _round_up(N, tn), _round_up(K, tk)

    xp = x2.astype(jnp.bfloat16)
    if (Mp, Kp) != (M, K):
        xp = jnp.pad(xp, ((0, Mp - M), (0, Kp - K)))
    wp = w.astype(jnp.bfloat16)
    if (Kp, Np) != (K, N):
        wp = jnp.pad(wp, ((0, Kp - K), (0, Np - N)))
    inputs = [xp, wp]
    in_specs = [pl.BlockSpec((tm, tk), lambda i, j, k: (i, k)),
                pl.BlockSpec((tk, tn), lambda i, j, k: (k, j))]

    has_bias = b is not None
    if has_bias:
        bp = b.astype(jnp.float32).reshape(1, N)
        if Np != N:
            bp = jnp.pad(bp, ((0, 0), (0, Np - N)))
        inputs.append(bp)
        in_specs.append(pl.BlockSpec((1, tn), lambda i, j, k: (0, j)))

    has_res = residual is not None
    if has_res:
        rp = residual.reshape(-1, N).astype(jnp.bfloat16)   # bf16 residual (review)
        if (Mp, Np) != (M, N):
            rp = jnp.pad(rp, ((0, Mp - M), (0, Np - N)))
        inputs.append(rp)
        in_specs.append(pl.BlockSpec((tm, tn), lambda i, j, k: (i, j)))

    grid = (Mp // tm, Np // tn, Kp // tk)
    out = pl.pallas_call(
        partial(_fused_matmul_kernel, n_k=grid[2], activation=activation,
                has_bias=has_bias, has_residual=has_res),
        out_shape=jax.ShapeDtypeStruct((Mp, Np), out_dtype),
        grid_spec=pltpu.PrefetchScalarGridSpec(
            num_scalar_prefetch=0,
            grid=grid,
            in_specs=in_specs,
            out_specs=pl.BlockSpec((tm, tn), lambda i, j, k: (i, j)),
            scratch_shapes=[pltpu.VMEM((tm, tn), jnp.float32)]),
        compiler_params=pltpu.CompilerParams(
            dimension_semantics=("parallel", "parallel", "arbitrary"),
            vmem_limit_bytes=VMEM_LIMIT),
    )(*inputs)
    return out[:M, :N].reshape(orig[:-1] + (N,))


# ----------------------- Pallas-native NHWC convolution ---------------------- #

def _conv_tap_kernel(x_ref, w_ref, o_ref, acc_ref, *, kw, stride, wo, n_kh):
    ki = pl.program_id(2)
    part = None
    for kj in range(kw):                      # static tap loop along the kernel width
        q, bj = kj % stride, kj // stride
        win = x_ref[0, q, bj:bj + wo, :]      # (Wo, C) shifted window, input read once
        d = jnp.dot(win, w_ref[0, kj], preferred_element_type=jnp.float32)
        part = d if part is None else part + d

    @pl.when(ki == 0)
    def _():
        acc_ref[...] = part

    @pl.when(ki > 0)
    def _():
        acc_ref[...] = acc_ref[...] + part

    @pl.when(ki == n_kh - 1)
    def _():
        o_ref[0, 0] = acc_ref[...].astype(o_ref.dtype)


def conv2d_nhwc(x, w_t, stride, padding, out_dtype=jnp.bfloat16):
    """NHWC conv (no bias).  kh is a reduction grid axis, kw a static in-kernel
    loop; no im2col duplication.  Strided convs use a width-phase decomposition
    so every in-kernel slice is static."""
    B, H, W, C = x.shape
    kh, kw, Cw, O = w_t.shape
    assert Cw == C
    s = stride
    Hp, Wp = H + 2 * padding, W + 2 * padding
    Ho = (Hp - kh) // s + 1
    Wo = (Wp - kw) // s + 1
    Wp_pad = _round_up(Wp, s)
    xp = jnp.pad(x.astype(jnp.bfloat16),
                 ((0, 0), (padding, padding),
                  (padding, padding + (Wp_pad - Wp)), (0, 0)))
    Wph = Wp_pad // s
    xph = xp.reshape(B, Hp, Wph, s, C)
    xph = jnp.transpose(xph, (0, 1, 3, 2, 4)).reshape(B, Hp * s, Wph, C)

    grid = (B, Ho, kh)
    out = pl.pallas_call(
        partial(_conv_tap_kernel, kw=kw, stride=s, wo=Wo, n_kh=kh),
        out_shape=jax.ShapeDtypeStruct((B, Ho, Wo, O), out_dtype),
        grid_spec=pltpu.PrefetchScalarGridSpec(
            num_scalar_prefetch=0,
            grid=grid,
            in_specs=[pl.BlockSpec((1, s, Wph, C),
                                   lambda b, ho, ki: (b, ho * s + ki, 0, 0)),
                      pl.BlockSpec((1, kw, C, O),
                                   lambda b, ho, ki: (ki, 0, 0, 0))],
            out_specs=pl.BlockSpec((1, 1, Wo, O),
                                   lambda b, ho, ki: (b, ho, 0, 0)),
            scratch_shapes=[pltpu.VMEM((Wo, O), jnp.float32)]),
        compiler_params=pltpu.CompilerParams(
            dimension_semantics=("parallel", "parallel", "arbitrary"),
            vmem_limit_bytes=VMEM_LIMIT),
    )(xph, w_t.astype(jnp.bfloat16))
    return out


# ------------------------------ norm kernels --------------------------------- #

def _rownorm_kernel(*refs, eps, has_affine):
    if has_affine:
        x_ref, g_ref, b_ref, o_ref = refs
    else:
        x_ref, o_ref = refs
        g_ref = b_ref = None
    x = x_ref[...].astype(jnp.float32)
    mu = jnp.mean(x, axis=-1, keepdims=True)
    var = jnp.mean(jnp.square(x - mu), axis=-1, keepdims=True)
    y = (x - mu) * jax.lax.rsqrt(var + eps)
    if has_affine:
        y = y * g_ref[...] + b_ref[...]
    o_ref[...] = y.astype(o_ref.dtype)


def pallas_rownorm(x2d, eps, gamma=None, beta=None, out_dtype=jnp.bfloat16):
    M, D = x2d.shape
    tm = _rows_tile(M, D)
    Mp = _round_up(M, tm)
    xp = x2d if Mp == M else jnp.pad(x2d, ((0, Mp - M), (0, 0)))
    inputs = [xp]
    in_specs = [pl.BlockSpec((tm, D), lambda i: (i, 0))]
    has_affine = gamma is not None
    if has_affine:
        inputs += [gamma.reshape(1, D).astype(jnp.float32),
                   beta.reshape(1, D).astype(jnp.float32)]
        in_specs += [pl.BlockSpec((1, D), lambda i: (0, 0))] * 2
    out = pl.pallas_call(
        partial(_rownorm_kernel, eps=eps, has_affine=has_affine),
        out_shape=jax.ShapeDtypeStruct((Mp, D), out_dtype),
        grid=(Mp // tm,),
        in_specs=in_specs,
        out_specs=pl.BlockSpec((tm, D), lambda i: (i, 0)),
        compiler_params=pltpu.CompilerParams(
            dimension_semantics=("parallel",), vmem_limit_bytes=VMEM_LIMIT),
    )(*inputs)
    return out[:M]


def _col_affine_kernel(x_ref, s_ref, t_ref, o_ref):
    x = x_ref[...].astype(jnp.float32)
    o_ref[...] = (x * s_ref[...] + t_ref[...]).astype(o_ref.dtype)


def pallas_col_affine(x2d, scale, shift, out_dtype=jnp.bfloat16):
    M, D = x2d.shape
    tm = _rows_tile(M, D)
    Mp = _round_up(M, tm)
    xp = x2d if Mp == M else jnp.pad(x2d, ((0, Mp - M), (0, 0)))
    out = pl.pallas_call(
        _col_affine_kernel,
        out_shape=jax.ShapeDtypeStruct((Mp, D), out_dtype),
        grid=(Mp // tm,),
        in_specs=[pl.BlockSpec((tm, D), lambda i: (i, 0)),
                  pl.BlockSpec((1, D), lambda i: (0, 0)),
                  pl.BlockSpec((1, D), lambda i: (0, 0))],
        out_specs=pl.BlockSpec((tm, D), lambda i: (i, 0)),
        compiler_params=pltpu.CompilerParams(
            dimension_semantics=("parallel",), vmem_limit_bytes=VMEM_LIMIT),
    )(xp, scale.reshape(1, D).astype(jnp.float32),
      shift.reshape(1, D).astype(jnp.float32))
    return out[:M]


def batchnorm_nhwc(x, gamma, beta, eps=1e-5):
    """BatchNorm2d (train-mode batch stats) on NHWC: XLA stats reduce + Pallas
    per-channel affine apply.  No NCHW<->NHWC transposes (review)."""
    B, H, W, C = x.shape
    x2 = x.reshape(B * H * W, C)
    xf = x2.astype(jnp.float32)
    mean = jnp.mean(xf, axis=0)
    var = jnp.var(xf, axis=0)                       # biased, as BatchNorm uses
    scale = gamma * jax.lax.rsqrt(var + eps)
    shift = beta - mean * scale
    return pallas_col_affine(x2, scale, shift).reshape(B, H, W, C)


def _silu_inorm_kernel(x_ref, o_ref, *, eps):
    x = x_ref[0].astype(jnp.float32)               # (H*W, C)
    x = x * jax.nn.sigmoid(x)                      # fused SiLU pre-activation
    mu = jnp.mean(x, axis=0, keepdims=True)
    var = jnp.mean(jnp.square(x - mu), axis=0, keepdims=True)
    o_ref[0] = ((x - mu) * jax.lax.rsqrt(var + eps)).astype(o_ref.dtype)


def silu_instancenorm_nhwc(x, eps=1e-5):
    # TODO(synk): for large spatial sizes this should be tiled with two-pass stats.
    B, H, W, C = x.shape
    x3 = x.reshape(B, H * W, C)
    out = pl.pallas_call(
        partial(_silu_inorm_kernel, eps=eps),
        out_shape=jax.ShapeDtypeStruct((B, H * W, C), jnp.bfloat16),
        grid=(B,),
        in_specs=[pl.BlockSpec((1, H * W, C), lambda i: (i, 0, 0))],
        out_specs=pl.BlockSpec((1, H * W, C), lambda i: (i, 0, 0)),
        compiler_params=pltpu.CompilerParams(
            dimension_semantics=("parallel",), vmem_limit_bytes=VMEM_LIMIT),
    )(x3)
    return out.reshape(B, H, W, C)


# -------------------------------- attention --------------------------------- #

def _mha_kernel(q_ref, kv_ref, o_ref, *, heads, d, scale, q_off, k_off, v_off):
    # q_ref: (1, tq, Dq) packed queries; kv_ref: (1, M, Dkv) packed keys/values.
    # Heads are split with in-kernel lane slices; each head's (tq, d) result is
    # stored directly into its lane slice of the lane-dense output block.
    for h in range(heads):
        qh = q_ref[0, :, q_off + h * d:q_off + (h + 1) * d]
        kh = kv_ref[0, :, k_off + h * d:k_off + (h + 1) * d]
        vh = kv_ref[0, :, v_off + h * d:v_off + (h + 1) * d]
        s = jax.lax.dot_general(qh, kh, (((1,), (1,)), ((), ())),
                                preferred_element_type=jnp.float32) * scale
        s = s - jnp.max(s, axis=-1, keepdims=True)
        p = jnp.exp(s)
        p = p * pl.reciprocal(jnp.sum(p, axis=-1, keepdims=True), approx=True)
        oh = jnp.dot(p.astype(vh.dtype), vh, preferred_element_type=jnp.float32)
        o_ref[0, :, h * d:(h + 1) * d] = oh.astype(o_ref.dtype)


def pallas_mha(q_src, kv_src, *, heads, d, q_off, k_off, v_off):
    """q_src: (B, N, Dq) packed projection output (q at lane offset q_off);
    kv_src: (B, M, Dkv) packed (k at k_off, v at v_off).  Returns (B, N, H*d)."""
    B, N, Dq = q_src.shape
    M, Dkv = kv_src.shape[1], kv_src.shape[2]
    D = heads * d
    Np = _round_up(N, 8)
    tq = Np if Np <= 128 else 128
    Np = _round_up(Np, tq)
    qp = q_src.astype(jnp.bfloat16)
    if Np != N:
        qp = jnp.pad(qp, ((0, 0), (0, Np - N), (0, 0)))
    kvp = kv_src.astype(jnp.bfloat16)
    # TODO(synk): for long KV sequences add a KV grid axis with online-softmax
    # (flash) scratch so the (tq, M) score tile stays bounded on v7x's 64 MiB VMEM.
    out = pl.pallas_call(
        partial(_mha_kernel, heads=heads, d=d, scale=1.0 / math.sqrt(d),
                q_off=q_off, k_off=k_off, v_off=v_off),
        out_shape=jax.ShapeDtypeStruct((B, Np, D), jnp.bfloat16),
        grid=(B, Np // tq),
        in_specs=[pl.BlockSpec((1, tq, Dq), lambda b, qi: (b, qi, 0)),
                  pl.BlockSpec((1, M, Dkv), lambda b, qi: (b, 0, 0))],
        out_specs=pl.BlockSpec((1, tq, D), lambda b, qi: (b, qi, 0)),
        compiler_params=pltpu.CompilerParams(
            dimension_semantics=("parallel", "parallel"),
            vmem_limit_bytes=VMEM_LIMIT),
    )(qp, kvp)
    return out[:, :N, :]


# ------------------------------- glue helpers -------------------------------- #

def layernorm(x, gamma=None, beta=None, eps=1e-5):
    shp = x.shape
    y = pallas_rownorm(x.reshape(-1, shp[-1]), eps, gamma, beta)
    return y.reshape(shp)


def pixel_shuffle_nhwc(x, r):
    B, H, W, Cr2 = x.shape
    C = Cr2 // (r * r)
    x = x.reshape(B, H, W, C, r, r)
    x = jnp.transpose(x, (0, 1, 4, 2, 5, 3))
    return x.reshape(B, H * r, W * r, C)


# ------------------------------ model components ----------------------------- #

def timestep_embedder(t, fc_w, fc_b, dim):
    t = t.reshape(-1)
    half = dim // 2
    freq = jnp.exp(jnp.arange(half, dtype=jnp.float32)
                   * -(math.log(10000.0) / (half - 1)))
    emb = t.astype(jnp.float32)[:, None] * freq[None, :]
    emb = jnp.concatenate([jnp.sin(emb), jnp.cos(emb)], axis=1)     # (B, dim)
    return fused_linear(emb, fc_w, fc_b, activation="silu")         # fc + SiLU fused


def latent_encoder(p, x, t, patch_size, expand_size, out_dim):
    B, C, H, W = x.shape
    x = jnp.transpose(x, (0, 2, 3, 1))                     # NCHW -> NHWC once
    pad_h, pad_w = -H % patch_size, -W % patch_size
    if pad_h or pad_w:
        x = jnp.pad(x, ((0, 0), (0, pad_h), (0, pad_w), (0, 0)))
    H2, W2 = H + pad_h, W + pad_w
    x = batchnorm_nhwc(x, p['in_norm_g'], p['in_norm_b'])
    x = conv2d_nhwc(x, p['conv_w'], stride=patch_size, padding=expand_size)
    x = batchnorm_nhwc(x, p['out_norm_g'], p['out_norm_b'])  # (B, Hp, Wp, D) bf16
    Hp, Wp = H2 // patch_size, W2 // patch_size

    temb = timestep_embedder(t, p['temb_w'], p['temb_b'], out_dim)

    # vectorized token assembly: [temb, soi, row0.., nl, row1.., nl, ..., eoi]
    nl_col = jnp.broadcast_to(p['nl'].reshape(1, 1, 1, out_dim), (B, Hp, 1, out_dim))
    grid_tok = jnp.concatenate([x, nl_col], axis=2).reshape(B, Hp * (Wp + 1), out_dim)
    grid_tok = grid_tok[:, :-1, :]                         # drop trailing nl
    toks = jnp.concatenate([
        temb[:, None, :],
        jnp.broadcast_to(p['soi'].reshape(1, 1, out_dim), (B, 1, out_dim)),
        grid_tok,
        jnp.broadcast_to(p['eoi'].reshape(1, 1, out_dim), (B, 1, out_dim)),
    ], axis=1)
    return toks                                            # (B, T, D) bf16


def self_attention(x, p, heads):
    B, N, D = x.shape
    d = D // heads
    qkv = fused_linear(x, p['w_qkv'], p['b_qkv'])          # fused QKV projection (bf16)
    o = pallas_mha(qkv, qkv, heads=heads, d=d, q_off=0, k_off=D, v_off=2 * D)
    return fused_linear(o, p['wo'], p['bo'], residual=x)   # out-proj + residual fused


def cross_attention(x, context, p, heads):
    B, N, D = x.shape
    d = D // heads
    q = fused_linear(x, p['wq'], p['bq'])
    kv = fused_linear(context, p['w_kv'], p['b_kv'])       # fused KV projection
    o = pallas_mha(q, kv, heads=heads, d=d, q_off=0, k_off=0, v_off=D)
    return fused_linear(o, p['wo'], p['bo'], residual=x)


def bit_feedforward(x, p):
    h = fused_linear(x, p['w1'], p['b1'], activation="gelu")   # matmul + GELU fused
    return fused_linear(h, p['w2'], p['b2'], residual=x)        # matmul + residual fused


def bitnet_decoder(p, x, context, heads):
    B, N, D = x.shape
    pos = p['pos_emb'][:N] * (D ** -0.5)                   # scaled learned pos-emb
    x = x + pos[None, :, :]
    for layer in p['layers']:
        x = self_attention(x, layer['attn'], heads)                 # includes +x
        x = layernorm(x, layer['ln1_g'], layer['ln1_b'])
        x = cross_attention(x, context, layer['cross'], heads)      # includes +x
        x = layernorm(x, layer['ln2_g'], layer['ln2_b'])
        x = bit_feedforward(x, layer['ffn'])                        # includes +x
        x = layernorm(x, layer['ln3_g'], layer['ln3_b'])
    return x


def latent_decoder(p, x, size, patch_size):
    h, w = size
    eh = math.ceil(h / patch_size)
    ew = math.ceil(w / patch_size)
    B, T, D = x.shape
    x = x[:, 2:, :]                                        # drop temb + soi tokens
    y = x.reshape(B, eh, ew + 1, D)[:, :, :ew, :]          # strip nl/eoi column -> NHWC
    y = silu_instancenorm_nhwc(y)                          # fused SiLU + InstanceNorm
    y = conv2d_nhwc(y, p['conv1_w'], stride=1, padding=1)
    y = pixel_shuffle_nhwc(y, patch_size)
    y = conv2d_nhwc(y, p['conv2_w'], stride=1, padding=2, out_dtype=jnp.float32)
    y = y[:, :h, :w, :]
    return jnp.transpose(y, (0, 3, 1, 2))                  # NCHW model output


def stage_c_forward(params, x, r, text_emb, cfg):
    B, C, W, H = x.shape
    emb = fused_linear(text_emb, params['text_proj_w'], params['text_proj_b'])
    # dropout1d(p=0.0) -> identity
    emb = layernorm(emb, eps=1e-6)                         # owl_norm: no affine
    patches = latent_encoder(params['embedder'], x, r,
                             cfg['patch_size'], cfg['expand'], cfg['hidden'])
    patches = bitnet_decoder(params['decoder'], patches, emb, cfg['heads'])
    return latent_decoder(params['final'], patches, (W, H), cfg['patch_size'])


# -------------------------------- initialization ------------------------------ #

def init_params(key, cfg):
    hidden, in_dim = cfg['hidden'], cfg['in_dim']
    text_dim, ps, ex = cfg['text_dim'], cfg['patch_size'], cfg['expand']
    depth, ff_mult = cfg['depth'], 2
    max_seq_len = cfg['max_size'] ** 2 + 2
    keys = iter(jax.random.split(key, 256))

    def nrm(shape, scale=0.02, dtype=jnp.bfloat16):
        # weights are pre-cast to bf16 (and convs pre-laid-out as (kh,kw,Cin,Cout),
        # i.e. PyTorch's (O,C,kh,kw).transpose(2,3,1,0)) once at init (review).
        return (scale * jax.random.normal(next(keys), shape, jnp.float32)).astype(dtype)

    def zeros(n):
        return jnp.zeros((n,), jnp.float32)

    k_conv = ps + 2 * ex
    params = {
        'text_proj_w': nrm((text_dim, hidden)),
        'text_proj_b': zeros(hidden),
        'embedder': {
            'soi': nrm((hidden,), 1.0),
            'nl': nrm((hidden,), 1.0),
            'eoi': nrm((hidden,), 1.0),
            'in_norm_g': jnp.ones((in_dim,), jnp.float32),
            'in_norm_b': zeros(in_dim),
            'conv_w': nrm((k_conv, k_conv, in_dim, hidden)),
            'out_norm_g': jnp.ones((hidden,), jnp.float32),
            'out_norm_b': zeros(hidden),
            'temb_w': nrm((hidden, hidden)),
            'temb_b': zeros(hidden),
        },
        'decoder': {'pos_emb': nrm((max_seq_len, hidden), 1.0), 'layers': []},
        'final': {
            'conv1_w': nrm((3, 3, hidden, hidden * ps * ps)),
            'conv2_w': nrm((5, 5, hidden, in_dim)),
        },
    }

    def self_attn_block():
        return {'w_qkv': nrm((hidden, 3 * hidden)), 'b_qkv': zeros(3 * hidden),
                'wo': nrm((hidden, hidden)), 'bo': zeros(hidden)}

    def cross_attn_block():
        return {'wq': nrm((hidden, hidden)), 'bq': zeros(hidden),
                'w_kv': nrm((hidden, 2 * hidden)), 'b_kv': zeros(2 * hidden),
                'wo': nrm((hidden, hidden)), 'bo': zeros(hidden)}

    for _ in range(depth):
        params['decoder']['layers'].append({
            'attn': self_attn_block(),
            'cross': cross_attn_block(),
            'ln1_g': jnp.ones((hidden,), jnp.float32), 'ln1_b': zeros(hidden),
            'ln2_g': jnp.ones((hidden,), jnp.float32), 'ln2_b': zeros(hidden),
            'ln3_g': jnp.ones((hidden,), jnp.float32), 'ln3_b': zeros(hidden),
            'ffn': {
                'w1': nrm((hidden, hidden * ff_mult)), 'b1': zeros(hidden * ff_mult),
                'w2': nrm((hidden * ff_mult, hidden)), 'b2': zeros(hidden),
            },
        })
    return params


# ------------------------------------- main ------------------------------------ #

if __name__ == "__main__":
    cfg = dict(in_dim=4, hidden=32, text_dim=16, patch_size=2, expand=1,
               max_size=8, depth=2, heads=4)

    key = jax.random.PRNGKey(0)
    kp, kx, kt, kr = jax.random.split(key, 4)
    params = init_params(kp, cfg)

    B, H = 2, 8
    x = jax.random.normal(kx, (B, cfg['in_dim'], H, H), dtype=jnp.float32)
    r = jnp.abs(jax.random.normal(kr, (B,), dtype=jnp.float32)) * 10.0   # timesteps
    text_emb = jax.random.normal(kt, (B, 5, cfg['text_dim']), dtype=jnp.float32)

    fwd = jax.jit(lambda p, x_, r_, te_: stage_c_forward(p, x_, r_, te_, cfg))
    out = fwd(params, x, r, text_emb)
    out = jax.block_until_ready(out)

    assert out.shape == (B, cfg['in_dim'], H, H), out.shape
    assert bool(jnp.all(jnp.isfinite(out)))
    print("KERNEL_OK")
</pallas_src>

<mosaic_0001>
module attributes {stable_mosaic.version = 11 : i64} {
  func.func @_col_affine_kernel(%arg0: i32, %arg1: memref<128x4xf32, #tpu.memory_space<vmem>>, %arg2: memref<1x4xf32, #tpu.memory_space<vmem>>, %arg3: memref<1x4xf32, #tpu.memory_space<vmem>>, %arg4: memref<128x4xbf16, #tpu.memory_space<vmem>>) attributes {dimension_semantics = [#tpu.dimension_semantics<parallel>], iteration_bounds = array<i64: 1>, scalar_prefetch = 0 : i64, scratch_operands = 0 : i64, tpu.core_type = #tpu.core_type<tc>, window_params = [{transform_indices = @transform_0, window_bounds = array<i64: 128, 4>}, {pipeline_mode = #tpu.pipeline_mode<synchronous>, transform_indices = @transform_1, window_bounds = array<i64: 1, 4>}, {pipeline_mode = #tpu.pipeline_mode<synchronous>, transform_indices = @transform_2, window_bounds = array<i64: 1, 4>}, {transform_indices = @transform_3, window_bounds = array<i64: 128, 4>}]} {
    %c0 = arith.constant 0 : index
    %c0_0 = arith.constant 0 : index
    %0 = vector.load %arg1[%c0, %c0_0] : memref<128x4xf32, #tpu.memory_space<vmem>>, vector<128x4xf32>
    %c0_1 = arith.constant 0 : index
    %c0_2 = arith.constant 0 : index
    %1 = vector.load %arg2[%c0_1, %c0_2] : memref<1x4xf32, #tpu.memory_space<vmem>>, vector<1x4xf32>
    %2 = vector.broadcast %1 : vector<1x4xf32> to vector<128x4xf32>
    %3 = arith.mulf %0, %2 : vector<128x4xf32>
    %c0_3 = arith.constant 0 : index
    %c0_4 = arith.constant 0 : index
    %4 = vector.load %arg3[%c0_3, %c0_4] : memref<1x4xf32, #tpu.memory_space<vmem>>, vector<1x4xf32>
    %5 = vector.broadcast %4 : vector<1x4xf32> to vector<128x4xf32>
    %6 = arith.addf %3, %5 : vector<128x4xf32>
    %7 = arith.truncf %6 : vector<128x4xf32> to vector<128x4xbf16>
    %c0_5 = arith.constant 0 : index
    %c0_6 = arith.constant 0 : index
    %8 = vector.load %arg4[%c0_5, %c0_6] : memref<128x4xbf16, #tpu.memory_space<vmem>>, vector<128x4xbf16>
    tpu.vector_store %arg4[%c0_5, %c0_6], %7 {strides = array<i32>} : memref<128x4xbf16, #tpu.memory_space<vmem>>, vector<128x4xbf16>,
    return
  }
  func.func @transform_0(%arg0: i32) -> (i32, i32) {
    %c0_i32 = arith.constant 0 : i32
    %c0_i32_0 = arith.constant 0 : i32
    return %arg0, %c0_i32 : i32, i32
  }
  func.func @transform_1(%arg0: i32) -> (i32, i32) {
    %c0_i32 = arith.constant 0 : i32
    %c0_i32_0 = arith.constant 0 : i32
    %c0_i32_1 = arith.constant 0 : i32
    return %c0_i32, %c0_i32_0 : i32, i32
  }
  func.func @transform_2(%arg0: i32) -> (i32, i32) {
    %c0_i32 = arith.constant 0 : i32
    %c0_i32_0 = arith.constant 0 : i32
    %c0_i32_1 = arith.constant 0 : i32
    return %c0_i32, %c0_i32_0 : i32, i32
  }
  func.func @transform_3(%arg0: i32) -> (i32, i32) {
    %c0_i32 = arith.constant 0 : i32
    %c0_i32_0 = arith.constant 0 : i32
    return %arg0, %c0_i32 : i32, i32
  }
}

module attributes {stable_mosaic.version = 11 : i64} {
  func.func @_conv_tap_kernel(%arg0: i32, %arg1: i32, %arg2: i32, %arg3: memref<1x2x5x4xbf16, #tpu.memory_space<vmem>>, %arg4: memref<1x4x4x32xbf16, #tpu.memory_space<vmem>>, %arg5: memref<1x1x4x32xbf16, #tpu.memory_space<vmem>>, %arg6: memref<4x32xf32, #tpu.memory_space<vmem>>) attributes {dimension_semantics = [#tpu.dimension_semantics<parallel>, #tpu.dimension_semantics<parallel>, #tpu.dimension_semantics<arbitrary>], iteration_bounds = array<i64: 2, 4, 4>, scalar_prefetch = 0 : i64, scratch_operands = 1 : i64, tpu.core_type = #tpu.core_type<tc>, window_params = [{transform_indices = @transform_0, window_bounds = array<i64: 1, 2, 5, 4>}, {transform_indices = @transform_1, window_bounds = array<i64: 1, 4, 4, 32>}, {transform_indices = @transform_2, window_bounds = array<i64: 1, 1, 4, 32>}]} {
    %c0 = arith.constant 0 : index
    %c0_0 = arith.constant 0 : index
    %c0_1 = arith.constant 0 : index
    %c0_2 = arith.constant 0 : index
    %0 = vector.load %arg3[%c0, %c0_0, %c0_1, %c0_2] : memref<1x2x5x4xbf16, #tpu.memory_space<vmem>>, vector<1x1x4x4xbf16>
    %1 = vector.shape_cast %0 : vector<1x1x4x4xbf16> to vector<4x4xbf16>
    %c0_3 = arith.constant 0 : index
    %c0_4 = arith.constant 0 : index
    %c0_5 = arith.constant 0 : index
    %c0_6 = arith.constant 0 : index
    %2 = vector.load %arg4[%c0_3, %c0_4, %c0_5, %c0_6] : memref<1x4x4x32xbf16, #tpu.memory_space<vmem>>, vector<1x1x4x32xbf16>
    %3 = vector.shape_cast %2 : vector<1x1x4x32xbf16> to vector<4x32xbf16>
    %cst = arith.constant dense<0.000000e+00> : vector<4x32xf32>
    %4 = tpu.matmul %1, %3, %cst {dimension_numbers = #tpu.dot_dimension_numbers<[1], [0], [0], [1], [0, 0, 1, 1], [], []>} : vector<4x4xbf16>, vector<4x32xbf16>, vector<4x32xf32> -> vector<4x32xf32>
    %c0_7 = arith.constant 0 : index
    %c1 = arith.constant 1 : index
    %c0_8 = arith.constant 0 : index
    %c0_9 = arith.constant 0 : index
    %5 = vector.load %arg3[%c0_7, %c1, %c0_8, %c0_9] : memref<1x2x5x4xbf16, #tpu.memory_space<vmem>>, vector<1x1x4x4xbf16>
    %6 = vector.shape_cast %5 : vector<1x1x4x4xbf16> to vector<4x4xbf16>
    %c0_10 = arith.constant 0 : index
    %c1_11 = arith.constant 1 : index
    %c0_12 = arith.constant 0 : index
    %c0_13 = arith.constant 0 : index
    %7 = vector.load %arg4[%c0_10, %c1_11, %c0_12, %c0_13] : memref<1x4x4x32xbf16, #tpu.memory_space<vmem>>, vector<1x1x4x32xbf16>
    %8 = vector.shape_cast %7 : vector<1x1x4x32xbf16> to vector<4x32xbf16>
    %cst_14 = arith.constant dense<0.000000e+00> : vector<4x32xf32>
    %9 = tpu.matmul %6, %8, %cst_14 {dimension_numbers = #tpu.dot_dimension_numbers<[1], [0], [0], [1], [0, 0, 1, 1], [], []>} : vector<4x4xbf16>, vector<4x32xbf16>, vector<4x32xf32> -> vector<4x32xf32>
    %10 = arith.addf %4, %9 : vector<4x32xf32>
    %c0_15 = arith.constant 0 : index
    %c0_16 = arith.constant 0 : index
    %c1_17 = arith.constant 1 : index
    %c0_18 = arith.constant 0 : index
    %11 = vector.load %arg3[%c0_15, %c0_16, %c1_17, %c0_18] : memref<1x2x5x4xbf16, #tpu.memory_space<vmem>>, vector<1x1x4x4xbf16>
    %12 = vector.shape_cast %11 : vector<1x1x4x4xbf16> to vector<4x4xbf16>
    %c0_19 = arith.constant 0 : index
    %c2 = arith.constant 2 : index
    %c0_20 = arith.constant 0 : index
    %c0_21 = arith.constant 0 : index
    %13 = vector.load %arg4[%c0_19, %c2, %c0_20, %c0_21] : memref<1x4x4x32xbf16, #tpu.memory_space<vmem>>, vector<1x1x4x32xbf16>
    %14 = vector.shape_cast %13 : vector<1x1x4x32xbf16> to vector<4x32xbf16>
    %cst_22 = arith.constant dense<0.000000e+00> : vector<4x32xf32>
    %15 = tpu.matmul %12, %14, %cst_22 {dimension_numbers = #tpu.dot_dimension_numbers<[1], [0], [0], [1], [0, 0, 1, 1], [], []>} : vector<4x4xbf16>, vector<4x32xbf16>, vector<4x32xf32> -> vector<4x32xf32>
    %16 = arith.addf %10, %15 : vector<4x32xf32>
    %c0_23 = arith.constant 0 : index
    %c1_24 = arith.constant 1 : index
    %c1_25 = arith.constant 1 : index
    %c0_26 = arith.constant 0 : index
    %17 = vector.load %arg3[%c0_23, %c1_24, %c1_25, %c0_26] : memref<1x2x5x4xbf16, #tpu.memory_space<vmem>>, vector<1x1x4x4xbf16>
    %18 = vector.shape_cast %17 : vector<1x1x4x4xbf16> to vector<4x4xbf16>
    %c0_27 = arith.constant 0 : index
    %c3 = arith.constant 3 : index
    %c0_28 = arith.constant 0 : index
    %c0_29 = arith.constant 0 : index
    %19 = vector.load %arg4[%c0_27, %c3, %c0_28, %c0_29] : memref<1x4x4x32xbf16, #tpu.memory_space<vmem>>, vector<1x1x4x32xbf16>
    %20 = vector.shape_cast %19 : vector<1x1x4x32xbf16> to vector<4x32xbf16>
    %cst_30 = arith.constant dense<0.000000e+00> : vector<4x32xf32>
    %21 = tpu.matmul %18, %20, %cst_30 {dimension_numbers = #tpu.dot_dimension_numbers<[1], [0], [0], [1], [0, 0, 1, 1], [], []>} : vector<4x4xbf16>, vector<4x32xbf16>, vector<4x32xf32> -> vector<4x32xf32>
    %22 = arith.addf %16, %21 : vector<4x32xf32>
    %c0_i32 = arith.constant 0 : i32
    %23 = arith.cmpi eq, %arg2, %c0_i32 : i32
    %24 = arith.extui %23 : i1 to i32
    %c0_i32_31 = arith.constant 0 : i32
    %25 = arith.cmpi ne, %24, %c0_i32_31 : i32
    scf.if %25 {
      %c0_35 = arith.constant 0 : index
      %c0_36 = arith.constant 0 : index
      %32 = vector.load %arg6[%c0_35, %c0_36] : memref<4x32xf32, #tpu.memory_space<vmem>>, vector<4x32xf32>
      tpu.vector_store %arg6[%c0_35, %c0_36], %22 {strides = array<i32>} : memref<4x32xf32, #tpu.memory_space<vmem>>, vector<4x32xf32>,
    } else {
    }
    %c0_i32_32 = arith.constant 0 : i32
    %26 = arith.cmpi sgt, %arg2, %c0_i32_32 : i32
    %27 = arith.extui %26 : i1 to i32
    %c0_i32_33 = arith.constant 0 : i32
    %28 = arith.cmpi ne, %27, %c0_i32_33 : i32
    scf.if %28 {
      %c0_35 = arith.constant 0 : index
      %c0_36 = arith.constant 0 : index
      %32 = vector.load %arg6[%c0_35, %c0_36] : memref<4x32xf32, #tpu.memory_space<vmem>>, vector<4x32xf32>
      %33 = arith.addf %32, %22 : vector<4x32xf32>
      %c0_37 = arith.constant 0 : index
      %c0_38 = arith.constant 0 : index
      %34 = vector.load %arg6[%c0_37, %c0_38] : memref<4x32xf32, #tpu.memory_space<vmem>>, vector<4x32xf32>
      tpu.vector_store %arg6[%c0_37, %c0_38], %33 {strides = array<i32>} : memref<4x32xf32, #tpu.memory_space<vmem>>, vector<4x32xf32>,
    } else {
    }
    %c3_i32 = arith.constant 3 : i32
    %29 = arith.cmpi eq, %arg2, %c3_i32 : i32
    %30 = arith.extui %29 : i1 to i32
    %c0_i32_34 = arith.constant 0 : i32
    %31 = arith.cmpi ne, %30, %c0_i32_34 : i32
    scf.if %31 {
      %c0_35 = arith.constant 0 : index
      %c0_36 = arith.constant 0 : index
      %32 = vector.load %arg6[%c0_35, %c0_36] : memref<4x32xf32, #tpu.memory_space<vmem>>, vector<4x32xf32>
      %33 = arith.truncf %32 : vector<4x32xf32> to vector<4x32xbf16>
      %c0_37 = arith.constant 0 : index
      %c0_38 = arith.constant 0 : index
      %c0_39 = arith.constant 0 : index
      %c0_40 = arith.constant 0 : index
      %34 = vector.load %arg5[%c0_37, %c0_38, %c0_39, %c0_40] : memref<1x1x4x32xbf16, #tpu.memory_space<vmem>>, vector<1x1x4x32xbf16>
      %35 = vector.shape_cast %34 : vector<1x1x4x32xbf16> to vector<4x32xbf16>
      %36 = vector.shape_cast %33 : vector<4x32xbf16> to vector<1x1x4x32xbf16>
      tpu.vector_store %arg5[%c0_37, %c0_38, %c0_39, %c0_40], %36 {strides = array<i32>} : memref<1x1x4x32xbf16, #tpu.memory_space<vmem>>, vector<1x1x4x32xbf16>,
    } else {
    }
    return
  }
  func.func @transform_0(%arg0: i32, %arg1: i32, %arg2: i32) -> (i32, i32, i32, i32) {
    %c2_i32 = arith.constant 2 : i32
    %0 = arith.muli %arg1, %c2_i32 : i32
    %1 = arith.addi %0, %arg2 : i32
    %c0_i32 = arith.constant 0 : i32
    %c0_i32_0 = arith.constant 0 : i32
    %c0_i32_1 = arith.constant 0 : i32
    return %arg0, %1, %c0_i32, %c0_i32_0 : i32, i32, i32, i32
  }
  func.func @transform_1(%arg0: i32, %arg1: i32, %arg2: i32) -> (i32, i32, i32, i32) {
    %c0_i32 = arith.constant 0 : i32
    %c0_i32_0 = arith.constant 0 : i32
    %c0_i32_1 = arith.constant 0 : i32
    %c0_i32_2 = arith.constant 0 : i32
    return %arg2, %c0_i32, %c0_i32_0, %c0_i32_1 : i32, i32, i32, i32
  }
  func.func @transform_2(%arg0: i32, %arg1: i32, %arg2: i32) -> (i32, i32, i32, i32) {
    %c0_i32 = arith.constant 0 : i32
    %c0_i32_0 = arith.constant 0 : i32
    %c0_i32_1 = arith.constant 0 : i32
    return %arg0, %arg1, %c0_i32, %c0_i32_0 : i32, i32, i32, i32
  }
}

module attributes {stable_mosaic.version = 11 : i64} {
  func.func @_col_affine_kernel(%arg0: i32, %arg1: memref<32x32xbf16, #tpu.memory_space<vmem>>, %arg2: memref<1x32xf32, #tpu.memory_space<vmem>>, %arg3: memref<1x32xf32, #tpu.memory_space<vmem>>, %arg4: memref<32x32xbf16, #tpu.memory_space<vmem>>) attributes {dimension_semantics = [#tpu.dimension_semantics<parallel>], iteration_bounds = array<i64: 1>, scalar_prefetch = 0 : i64, scratch_operands = 0 : i64, tpu.core_type = #tpu.core_type<tc>, window_params = [{transform_indices = @transform_0, window_bounds = array<i64: 32, 32>}, {pipeline_mode = #tpu.pipeline_mode<synchronous>, transform_indices = @transform_1, window_bounds = array<i64: 1, 32>}, {pipeline_mode = #tpu.pipeline_mode<synchronous>, transform_indices = @transform_2, window_bounds = array<i64: 1, 32>}, {transform_indices = @transform_3, window_bounds = array<i64: 32, 32>}]} {
    %c0 = arith.constant 0 : index
    %c0_0 = arith.constant 0 : index
    %0 = vector.load %arg1[%c0, %c0_0] : memref<32x32xbf16, #tpu.memory_space<vmem>>, vector<32x32xbf16>
    %1 = arith.extf %0 : vector<32x32xbf16> to vector<32x32xf32>
    %c0_1 = arith.constant 0 : index
    %c0_2 = arith.constant 0 : index
    %2 = vector.load %arg2[%c0_1, %c0_2] : memref<1x32xf32, #tpu.memory_space<vmem>>, vector<1x32xf32>
    %3 = vector.broadcast %2 : vector<1x32xf32> to vector<32x32xf32>
    %4 = arith.mulf %1, %3 : vector<32x32xf32>
    %c0_3 = arith.constant 0 : index
    %c0_4 = arith.constant 0 : index
    %5 = vector.load %arg3[%c0_3, %c0_4] : memref<1x32xf32, #tpu.memory_space<vmem>>, vector<1x32xf32>
    %6 = vector.broadcast %5 : vector<1x32xf32> to vector<32x32xf32>
    %7 = arith.addf %4, %6 : vector<32x32xf32>
    %8 = arith.truncf %7 : vector<32x32xf32> to vector<32x32xbf16>
    %c0_5 = arith.constant 0 : index
    %c0_6 = arith.constant 0 : index
    %9 = vector.load %arg4[%c0_5, %c0_6] : memref<32x32xbf16, #tpu.memory_space<vmem>>, vector<32x32xbf16>
    tpu.vector_store %arg4[%c0_5, %c0_6], %8 {strides = array<i32>} : memref<32x32xbf16, #tpu.memory_space<vmem>>, vector<32x32xbf16>,
    return
  }
  func.func @transform_0(%arg0: i32) -> (i32, i32) {
    %c0_i32 = arith.constant 0 : i32
    %c0_i32_0 = arith.constant 0 : i32
    return %arg0, %c0_i32 : i32, i32
  }
  func.func @transform_1(%arg0: i32) -> (i32, i32) {
    %c0_i32 = arith.constant 0 : i32
    %c0_i32_0 = arith.constant 0 : i32
    %c0_i32_1 = arith.constant 0 : i32
    return %c0_i32, %c0_i32_0 : i32, i32
  }
  func.func @transform_2(%arg0: i32) -> (i32, i32) {
    %c0_i32 = arith.constant 0 : i32
    %c0_i32_0 = arith.constant 0 : i32
    %c0_i32_1 = arith.constant 0 : i32
    return %c0_i32, %c0_i32_0 : i32, i32
  }
  func.func @transform_3(%arg0: i32) -> (i32, i32) {
    %c0_i32 = arith.constant 0 : i32
    %c0_i32_0 = arith.constant 0 : i32
    return %arg0, %c0_i32 : i32, i32
  }
}

module attributes {stable_mosaic.version = 11 : i64} {
  func.func @_fused_matmul_kernel(%arg0: i32, %arg1: i32, %arg2: i32, %arg3: memref<8x128xbf16, #tpu.memory_space<vmem>>, %arg4: memref<128x128xbf16, #tpu.memory_space<vmem>>, %arg5: memref<1x128xf32, #tpu.memory_space<vmem>>, %arg6: memref<8x128xbf16, #tpu.memory_space<vmem>>, %arg7: memref<8x128xf32, #tpu.memory_space<vmem>>) attributes {dimension_semantics = [#tpu.dimension_semantics<parallel>, #tpu.dimension_semantics<parallel>, #tpu.dimension_semantics<arbitrary>], iteration_bounds = array<i64: 1, 1, 1>, scalar_prefetch = 0 : i64, scratch_operands = 1 : i64, tpu.core_type = #tpu.core_type<tc>, window_params = [{transform_indices = @transform_0, window_bounds = array<i64: 8, 128>}, {transform_indices = @transform_1, window_bounds = array<i64: 128, 128>}, {transform_indices = @transform_2, window_bounds = array<i64: 1, 128>}, {transform_indices = @transform_3, window_bounds = array<i64: 8, 128>}]} {
    %c0 = arith.constant 0 : index
    %c0_0 = arith.constant 0 : index
    %0 = vector.load %arg3[%c0, %c0_0] : memref<8x128xbf16, #tpu.memory_space<vmem>>, vector<8x128xbf16>
    %c0_1 = arith.constant 0 : index
    %c0_2 = arith.constant 0 : index
    %1 = vector.load %arg4[%c0_1, %c0_2] : memref<128x128xbf16, #tpu.memory_space<vmem>>, vector<128x128xbf16>
    %cst = arith.constant dense<0.000000e+00> : vector<8x128xf32>
    %2 = tpu.matmul %0, %1, %cst {dimension_numbers = #tpu.dot_dimension_numbers<[1], [0], [0], [1], [0, 0, 1, 1], [], []>} : vector<8x128xbf16>, vector<128x128xbf16>, vector<8x128xf32> -> vector<8x128xf32>
    %c0_i32 = arith.constant 0 : i32
    %3 = arith.cmpi eq, %arg2, %c0_i32 : i32
    %4 = arith.extui %3 : i1 to i32
    %c0_i32_3 = arith.constant 0 : i32
    %5 = arith.cmpi ne, %4, %c0_i32_3 : i32
    scf.if %5 {
      %c0_8 = arith.constant 0 : index
      %c0_9 = arith.constant 0 : index
      %12 = vector.load %arg7[%c0_8, %c0_9] : memref<8x128xf32, #tpu.memory_space<vmem>>, vector<8x128xf32>
      tpu.vector_store %arg7[%c0_8, %c0_9], %2 {strides = array<i32>} : memref<8x128xf32, #tpu.memory_space<vmem>>, vector<8x128xf32>,
    } else {
    }
    %c0_i32_4 = arith.constant 0 : i32
    %6 = arith.cmpi sgt, %arg2, %c0_i32_4 : i32
    %7 = arith.extui %6 : i1 to i32
    %c0_i32_5 = arith.constant 0 : i32
    %8 = arith.cmpi ne, %7, %c0_i32_5 : i32
    scf.if %8 {
      %c0_8 = arith.constant 0 : index
      %c0_9 = arith.constant 0 : index
      %12 = vector.load %arg7[%c0_8, %c0_9] : memref<8x128xf32, #tpu.memory_space<vmem>>, vector<8x128xf32>
      %13 = arith.addf %12, %2 : vector<8x128xf32>
      %c0_10 = arith.constant 0 : index
      %c0_11 = arith.constant 0 : index
      %14 = vector.load %arg7[%c0_10, %c0_11] : memref<8x128xf32, #tpu.memory_space<vmem>>, vector<8x128xf32>
      tpu.vector_store %arg7[%c0_10, %c0_11], %13 {strides = array<i32>} : memref<8x128xf32, #tpu.memory_space<vmem>>, vector<8x128xf32>,
    } else {
    }
    %c0_i32_6 = arith.constant 0 : i32
    %9 = arith.cmpi eq, %arg2, %c0_i32_6 : i32
    %10 = arith.extui %9 : i1 to i32
    %c0_i32_7 = arith.constant 0 : i32
    %11 = arith.cmpi ne, %10, %c0_i32_7 : i32
    scf.if %11 {
      %c0_8 = arith.constant 0 : index
      %c0_9 = arith.constant 0 : index
      %12 = vector.load %arg7[%c0_8, %c0_9] : memref<8x128xf32, #tpu.memory_space<vmem>>, vector<8x128xf32>
      %c0_10 = arith.constant 0 : index
      %c0_11 = arith.constant 0 : index
      %13 = vector.load %arg5[%c0_10, %c0_11] : memref<1x128xf32, #tpu.memory_space<vmem>>, vector<1x128xf32>
      %14 = vector.broadcast %13 : vector<1x128xf32> to vector<8x128xf32>
      %15 = arith.addf %12, %14 : vector<8x128xf32>
      %16 = arith.negf %15 : vector<8x128xf32>
      %17 = math.exp %16 : vector<8x128xf32>
      %cst_12 = arith.constant 1.000000e+00 : f32
      %18 = vector.broadcast %cst_12 : f32 to vector<8x128xf32>
      %19 = arith.addf %18, %17 : vector<8x128xf32>
      %20 = arith.divf %18, %19 : vector<8x128xf32>
      %21 = arith.mulf %15, %20 : vector<8x128xf32>
      %22 = arith.truncf %21 : vector<8x128xf32> to vector<8x128xbf16>
      %c0_13 = arith.constant 0 : index
      %c0_14 = arith.constant 0 : index
      %23 = vector.load %arg6[%c0_13, %c0_14] : memref<8x128xbf16, #tpu.memory_space<vmem>>, vector<8x128xbf16>
      tpu.vector_store %arg6[%c0_13, %c0_14], %22 {strides = array<i32>} : memref<8x128xbf16, #tpu.memory_space<vmem>>, vector<8x128xbf16>,
    } else {
    }
    return
  }
  func.func @transform_0(%arg0: i32, %arg1: i32, %arg2: i32) -> (i32, i32) {
    %c0_i32 = arith.constant 0 : i32
    return %arg0, %arg2 : i32, i32
  }
  func.func @transform_1(%arg0: i32, %arg1: i32, %arg2: i32) -> (i32, i32) {
    %c0_i32 = arith.constant 0 : i32
    return %arg2, %arg1 : i32, i32
  }
  func.func @transform_2(%arg0: i32, %arg1: i32, %arg2: i32) -> (i32, i32) {
    %c0_i32 = arith.constant 0 : i32
    %c0_i32_0 = arith.constant 0 : i32
    return %c0_i32, %arg1 : i32, i32
  }
  func.func @transform_3(%arg0: i32, %arg1: i32, %arg2: i32) -> (i32, i32) {
    %c0_i32 = arith.constant 0 : i32
    return %arg0, %arg1 : i32, i32
  }
}

module attributes {stable_mosaic.version = 11 : i64} {
  func.func @_fused_matmul_kernel(%arg0: i32, %arg1: i32, %arg2: i32, %arg3: memref<48x128xbf16, #tpu.memory_space<vmem>>, %arg4: memref<128x128xbf16, #tpu.memory_space<vmem>>, %arg5: memref<1x128xf32, #tpu.memory_space<vmem>>, %arg6: memref<48x128xbf16, #tpu.memory_space<vmem>>, %arg7: memref<48x128xbf16, #tpu.memory_space<vmem>>, %arg8: memref<48x128xf32, #tpu.memory_space<vmem>>) attributes {dimension_semantics = [#tpu.dimension_semantics<parallel>, #tpu.dimension_semantics<parallel>, #tpu.dimension_semantics<arbitrary>], iteration_bounds = array<i64: 1, 1, 1>, scalar_prefetch = 0 : i64, scratch_operands = 1 : i64, tpu.core_type = #tpu.core_type<tc>, window_params = [{transform_indices = @transform_0, window_bounds = array<i64: 48, 128>}, {transform_indices = @transform_1, window_bounds = array<i64: 128, 128>}, {transform_indices = @transform_2, window_bounds = array<i64: 1, 128>}, {transform_indices = @transform_3, window_bounds = array<i64: 48, 128>}, {transform_indices = @transform_4, window_bounds = array<i64: 48, 128>}]} {
    %c0 = arith.constant 0 : index
    %c0_0 = arith.constant 0 : index
    %0 = vector.load %arg3[%c0, %c0_0] : memref<48x128xbf16, #tpu.memory_space<vmem>>, vector<48x128xbf16>
    %c0_1 = arith.constant 0 : index
    %c0_2 = arith.constant 0 : index
    %1 = vector.load %arg4[%c0_1, %c0_2] : memref<128x128xbf16, #tpu.memory_space<vmem>>, vector<128x128xbf16>
    %cst = arith.constant dense<0.000000e+00> : vector<48x128xf32>
    %2 = tpu.matmul %0, %1, %cst {dimension_numbers = #tpu.dot_dimension_numbers<[1], [0], [0], [1], [0, 0, 1, 1], [], []>} : vector<48x128xbf16>, vector<128x128xbf16>, vector<48x128xf32> -> vector<48x128xf32>
    %c0_i32 = arith.constant 0 : i32
    %3 = arith.cmpi eq, %arg2, %c0_i32 : i32
    %4 = arith.extui %3 : i1 to i32
    %c0_i32_3 = arith.constant 0 : i32
    %5 = arith.cmpi ne, %4, %c0_i32_3 : i32
    scf.if %5 {
      %c0_8 = arith.constant 0 : index
      %c0_9 = arith.constant 0 : index
      %12 = vector.load %arg8[%c0_8, %c0_9] : memref<48x128xf32, #tpu.memory_space<vmem>>, vector<48x128xf32>
      tpu.vector_store %arg8[%c0_8, %c0_9], %2 {strides = array<i32>} : memref<48x128xf32, #tpu.memory_space<vmem>>, vector<48x128xf32>,
    } else {
    }
    %c0_i32_4 = arith.constant 0 : i32
    %6 = arith.cmpi sgt, %arg2, %c0_i32_4 : i32
    %7 = arith.extui %6 : i1 to i32
    %c0_i32_5 = arith.constant 0 : i32
    %8 = arith.cmpi ne, %7, %c0_i32_5 : i32
    scf.if %8 {
      %c0_8 = arith.constant 0 : index
      %c0_9 = arith.constant 0 : index
      %12 = vector.load %arg8[%c0_8, %c0_9] : memref<48x128xf32, #tpu.memory_space<vmem>>, vector<48x128xf32>
      %13 = arith.addf %12, %2 : vector<48x128xf32>
      %c0_10 = arith.constant 0 : index
      %c0_11 = arith.constant 0 : index
      %14 = vector.load %arg8[%c0_10, %c0_11] : memref<48x128xf32, #tpu.memory_space<vmem>>, vector<48x128xf32>
      tpu.vector_store %arg8[%c0_10, %c0_11], %13 {strides = array<i32>} : memref<48x128xf32, #tpu.memory_space<vmem>>, vector<48x128xf32>,
    } else {
    }
    %c0_i32_6 = arith.constant 0 : i32
    %9 = arith.cmpi eq, %arg2, %c0_i32_6 : i32
    %10 = arith.extui %9 : i1 to i32
    %c0_i32_7 = arith.constant 0 : i32
    %11 = arith.cmpi ne, %10, %c0_i32_7 : i32
    scf.if %11 {
      %c0_8 = arith.constant 0 : index
      %c0_9 = arith.constant 0 : index
      %12 = vector.load %arg8[%c0_8, %c0_9] : memref<48x128xf32, #tpu.memory_space<vmem>>, vector<48x128xf32>
      %c0_10 = arith.constant 0 : index
      %c0_11 = arith.constant 0 : index
      %13 = vector.load %arg5[%c0_10, %c0_11] : memref<1x128xf32, #tpu.memory_space<vmem>>, vector<1x128xf32>
      %14 = vector.broadcast %13 : vector<1x128xf32> to vector<48x128xf32>
      %15 = arith.addf %12, %14 : vector<48x128xf32>
      %c0_12 = arith.constant 0 : index
      %c0_13 = arith.constant 0 : index
      %16 = vector.load %arg6[%c0_12, %c0_13] : memref<48x128xbf16, #tpu.memory_space<vmem>>, vector<48x128xbf16>
      %17 = arith.extf %16 : vector<48x128xbf16> to vector<48x128xf32>
      %18 = arith.addf %15, %17 : vector<48x128xf32>
      %19 = arith.truncf %18 : vector<48x128xf32> to vector<48x128xbf16>
      %c0_14 = arith.constant 0 : index
      %c0_15 = arith.constant 0 : index
      %20 = vector.load %arg7[%c0_14, %c0_15] : memref<48x128xbf16, #tpu.memory_space<vmem>>, vector<48x128xbf16>
      tpu.vector_store %arg7[%c0_14, %c0_15], %19 {strides = array<i32>} : memref<48x128xbf16, #tpu.memory_space<vmem>>, vector<48x128xbf16>,
    } else {
    }
    return
  }
  func.func @transform_0(%arg0: i32, %arg1: i32, %arg2: i32) -> (i32, i32) {
    %c0_i32 = arith.constant 0 : i32
    return %arg0, %arg2 : i32, i32
  }
  func.func @transform_1(%arg0: i32, %arg1: i32, %arg2: i32) -> (i32, i32) {
    %c0_i32 = arith.constant 0 : i32
    return %arg2, %arg1 : i32, i32
  }
  func.func @transform_2(%arg0: i32, %arg1: i32, %arg2: i32) -> (i32, i32) {
    %c0_i32 = arith.constant 0 : i32
    %c0_i32_0 = arith.constant 0 : i32
    return %c0_i32, %arg1 : i32, i32
  }
  func.func @transform_3(%arg0: i32, %arg1: i32, %arg2: i32) -> (i32, i32) {
    %c0_i32 = arith.constant 0 : i32
    return %arg0, %arg1 : i32, i32
  }
  func.func @transform_4(%arg0: i32, %arg1: i32, %arg2: i32) -> (i32, i32) {
    %c0_i32 = arith.constant 0 : i32
    return %arg0, %arg1 : i32, i32
  }
}

module attributes {stable_mosaic.version = 11 : i64} {
  func.func @_mha_kernel(%arg0: i32, %arg1: i32, %arg2: memref<1x24x96xbf16, #tpu.memory_space<vmem>>, %arg3: memref<1x22x96xbf16, #tpu.memory_space<vmem>>, %arg4: memref<1x24x32xbf16, #tpu.memory_space<vmem>>) attributes {dimension_semantics = [#tpu.dimension_semantics<parallel>, #tpu.dimension_semantics<parallel>], iteration_bounds = array<i64: 2, 1>, scalar_prefetch = 0 : i64, scratch_operands = 0 : i64, tpu.core_type = #tpu.core_type<tc>, window_params = [{transform_indices = @transform_0, window_bounds = array<i64: 1, 24, 96>}, {transform_indices = @transform_1, window_bounds = array<i64: 1, 22, 96>}, {transform_indices = @transform_2, window_bounds = array<i64: 1, 24, 32>}]} {
    %c0 = arith.constant 0 : index
    %c0_0 = arith.constant 0 : index
    %c0_1 = arith.constant 0 : index
    %0 = vector.load %arg2[%c0, %c0_0, %c0_1] : memref<1x24x96xbf16, #tpu.memory_space<vmem>>, vector<1x24x8xbf16>
    %1 = vector.shape_cast %0 : vector<1x24x8xbf16> to vector<24x8xbf16>
    %c0_2 = arith.constant 0 : index
    %c0_3 = arith.constant 0 : index
    %c32 = arith.constant 32 : index
    %2 = vector.load %arg3[%c0_2, %c0_3, %c32] : memref<1x22x96xbf16, #tpu.memory_space<vmem>>, vector<1x22x8xbf16>
    %3 = vector.shape_cast %2 : vector<1x22x8xbf16> to vector<22x8xbf16>
    %c0_4 = arith.constant 0 : index
    %c0_5 = arith.constant 0 : index
    %c64 = arith.constant 64 : index
    %4 = vector.load %arg3[%c0_4, %c0_5, %c64] : memref<1x22x96xbf16, #tpu.memory_space<vmem>>, vector<1x22x8xbf16>
    %5 = vector.shape_cast %4 : vector<1x22x8xbf16> to vector<22x8xbf16>
    %cst = arith.constant dense<0.000000e+00> : vector<24x22xf32>
    %6 = tpu.matmul %1, %3, %cst {dimension_numbers = #tpu.dot_dimension_numbers<[1], [1], [0], [0], [0, 0, 1, 0], [], []>} : vector<24x8xbf16>, vector<22x8xbf16>, vector<24x22xf32> -> vector<24x22xf32>
    %cst_6 = arith.constant 0.353553385 : f32
    %7 = vector.broadcast %cst_6 : f32 to vector<24x22xf32>
    %8 = arith.mulf %6, %7 : vector<24x22xf32>
    %cst_7 = arith.constant dense<0xFF800000> : vector<24xf32>
    %9 = vector.multi_reduction <maximumf>, %8, %cst_7 [1] : vector<24x22xf32> to vector<24xf32>
    %10 = vector.shape_cast %9 : vector<24xf32> to vector<24x1xf32>
    %11 = vector.broadcast %10 : vector<24x1xf32> to vector<24x22xf32>
    %12 = arith.subf %8, %11 : vector<24x22xf32>
    %13 = math.exp %12 : vector<24x22xf32>
    %cst_8 = arith.constant dense<0.000000e+00> : vector<24xf32>
    %14 = vector.multi_reduction <add>, %13, %cst_8 [1] : vector<24x22xf32> to vector<24xf32>
    %15 = vector.shape_cast %14 : vector<24xf32> to vector<24x1xf32>
    %16 = tpu.reciprocal %15 {approx = true} : vector<24x1xf32> -> vector<24x1xf32>
    %17 = vector.broadcast %16 : vector<24x1xf32> to vector<24x22xf32>
    %18 = arith.mulf %13, %17 : vector<24x22xf32>
    %19 = arith.truncf %18 : vector<24x22xf32> to vector<24x22xbf16>
    %cst_9 = arith.constant dense<0.000000e+00> : vector<24x8xf32>
    %20 = tpu.matmul %19, %5, %cst_9 {dimension_numbers = #tpu.dot_dimension_numbers<[1], [0], [0], [1], [0, 0, 1, 1], [], []>} : vector<24x22xbf16>, vector<22x8xbf16>, vector<24x8xf32> -> vector<24x8xf32>
    %21 = arith.truncf %20 : vector<24x8xf32> to vector<24x8xbf16>
    %c0_10 = arith.constant 0 : index
    %c0_11 = arith.constant 0 : index
    %c0_12 = arith.constant 0 : index
    %22 = vector.load %arg4[%c0_10, %c0_11, %c0_12] : memref<1x24x32xbf16, #tpu.memory_space<vmem>>, vector<1x24x8xbf16>
    %23 = vector.shape_cast %22 : vector<1x24x8xbf16> to vector<24x8xbf16>
    %24 = vector.shape_cast %21 : vector<24x8xbf16> to vector<1x24x8xbf16>
    tpu.vector_store %arg4[%c0_10, %c0_11, %c0_12], %24 {strides = array<i32>} : memref<1x24x32xbf16, #tpu.memory_space<vmem>>, vector<1x24x8xbf16>,
    %c0_13 = arith.constant 0 : index
    %c0_14 = arith.constant 0 : index
    %c8 = arith.constant 8 : index
    %25 = vector.load %arg2[%c0_13, %c0_14, %c8] : memref<1x24x96xbf16, #tpu.memory_space<vmem>>, vector<1x24x8xbf16>
    %26 = vector.shape_cast %25 : vector<1x24x8xbf16> to vector<24x8xbf16>
    %c0_15 = arith.constant 0 : index
    %c0_16 = arith.constant 0 : index
    %c40 = arith.constant 40 : index
    %27 = vector.load %arg3[%c0_15, %c0_16, %c40] : memref<1x22x96xbf16, #tpu.memory_space<vmem>>, vector<1x22x8xbf16>
    %28 = vector.shape_cast %27 : vector<1x22x8xbf16> to vector<22x8xbf16>
    %c0_17 = arith.constant 0 : index
    %c0_18 = arith.constant 0 : index
    %c72 = arith.constant 72 : index
    %29 = vector.load %arg3[%c0_17, %c0_18, %c72] : memref<1x22x96xbf16, #tpu.memory_space<vmem>>, vector<1x22x8xbf16>
    %30 = vector.shape_cast %29 : vector<1x22x8xbf16> to vector<22x8xbf16>
    %cst_19 = arith.constant dense<0.000000e+00> : vector<24x22xf32>
    %31 = tpu.matmul %26, %28, %cst_19 {dimension_numbers = #tpu.dot_dimension_numbers<[1], [1], [0], [0], [0, 0, 1, 0], [], []>} : vector<24x8xbf16>, vector<22x8xbf16>, vector<24x22xf32> -> vector<24x22xf32>
    %cst_20 = arith.constant 0.353553385 : f32
    %32 = vector.broadcast %cst_20 : f32 to vector<24x22xf32>
    %33 = arith.mulf %31, %32 : vector<24x22xf32>
    %cst_21 = arith.constant dense<0xFF800000> : vector<24xf32>
    %34 = vector.multi_reduction <maximumf>, %33, %cst_21 [1] : vector<24x22xf32> to vector<24xf32>
    %35 = vector.shape_cast %34 : vector<24xf32> to vector<24x1xf32>
    %36 = vector.broadcast %35 : vector<24x1xf32> to vector<24x22xf32>
    %37 = arith.subf %33, %36 : vector<24x22xf32>
    %38 = math.exp %37 : vector<24x22xf32>
    %cst_22 = arith.constant dense<0.000000e+00> : vector<24xf32>
    %39 = vector.multi_reduction <add>, %38, %cst_22 [1] : vector<24x22xf32> to vector<24xf32>
    %40 = vector.shape_cast %39 : vector<24xf32> to vector<24x1xf32>
    %41 = tpu.reciprocal %40 {approx = true} : vector<24x1xf32> -> vector<24x1xf32>
    %42 = vector.broadcast %41 : vector<24x1xf32> to vector<24x22xf32>
    %43 = arith.mulf %38, %42 : vector<24x22xf32>
    %44 = arith.truncf %43 : vector<24x22xf32> to vector<24x22xbf16>
    %cst_23 = arith.constant dense<0.000000e+00> : vector<24x8xf32>
    %45 = tpu.matmul %44, %30, %cst_23 {dimension_numbers = #tpu.dot_dimension_numbers<[1], [0], [0], [1], [0, 0, 1, 1], [], []>} : vector<24x22xbf16>, vector<22x8xbf16>, vector<24x8xf32> -> vector<24x8xf32>
    %46 = arith.truncf %45 : vector<24x8xf32> to vector<24x8xbf16>
    %c0_24 = arith.constant 0 : index
    %c0_25 = arith.constant 0 : index
    %c8_26 = arith.constant 8 : index
    %47 = vector.load %arg4[%c0_24, %c0_25, %c8_26] : memref<1x24x32xbf16, #tpu.memory_space<vmem>>, vector<1x24x8xbf16>
    %48 = vector.shape_cast %47 : vector<1x24x8xbf16> to vector<24x8xbf16>
    %49 = vector.shape_cast %46 : vector<24x8xbf16> to vector<1x24x8xbf16>
    tpu.vector_store %arg4[%c0_24, %c0_25, %c8_26], %49 {strides = array<i32>} : memref<1x24x32xbf16, #tpu.memory_space<vmem>>, vector<1x24x8xbf16>,
    %c0_27 = arith.constant 0 : index
    %c0_28 = arith.constant 0 : index
    %c16 = arith.constant 16 : index
    %50 = vector.load %arg2[%c0_27, %c0_28, %c16] : memref<1x24x96xbf16, #tpu.memory_space<vmem>>, vector<1x24x8xbf16>
    %51 = vector.shape_cast %50 : vector<1x24x8xbf16> to vector<24x8xbf16>
    %c0_29 = arith.constant 0 : index
    %c0_30 = arith.constant 0 : index
    %c48 = arith.constant 48 : index
    %52 = vector.load %arg3[%c0_29, %c0_30, %c48] : memref<1x22x96xbf16, #tpu.memory_space<vmem>>, vector<1x22x8xbf16>
    %53 = vector.shape_cast %52 : vector<1x22x8xbf16> to vector<22x8xbf16>
    %c0_31 = arith.constant 0 : index
    %c0_32 = arith.constant 0 : index
    %c80 = arith.constant 80 : index
    %54 = vector.load %arg3[%c0_31, %c0_32, %c80] : memref<1x22x96xbf16, #tpu.memory_space<vmem>>, vector<1x22x8xbf16>
    %55 = vector.shape_cast %54 : vector<1x22x8xbf16> to vector<22x8xbf16>
    %cst_33 = arith.constant dense<0.000000e+00> : vector<24x22xf32>
    %56 = tpu.matmul %51, %53, %cst_33 {dimension_numbers = #tpu.dot_dimension_numbers<[1], [1], [0], [0], [0, 0, 1, 0], [], []>} : vector<24x8xbf16>, vector<22x8xbf16>, vector<24x22xf32> -> vector<24x22xf32>
    %cst_34 = arith.constant 0.353553385 : f32
    %57 = vector.broadcast %cst_34 : f32 to vector<24x22xf32>
    %58 = arith.mulf %56, %57 : vector<24x22xf32>
    %cst_35 = arith.constant dense<0xFF800000> : vector<24xf32>
    %59 = vector.multi_reduction <maximumf>, %58, %cst_35 [1] : vector<24x22xf32> to vector<24xf32>
    %60 = vector.shape_cast %59 : vector<24xf32> to vector<24x1xf32>
    %61 = vector.broadcast %60 : vector<24x1xf32> to vector<24x22xf32>
    %62 = arith.subf %58, %61 : vector<24x22xf32>
    %63 = math.exp %62 : vector<24x22xf32>
    %cst_36 = arith.constant dense<0.000000e+00> : vector<24xf32>
    %64 = vector.multi_reduction <add>, %63, %cst_36 [1] : vector<24x22xf32> to vector<24xf32>
    %65 = vector.shape_cast %64 : vector<24xf32> to vector<24x1xf32>
    %66 = tpu.reciprocal %65 {approx = true} : vector<24x1xf32> -> vector<24x1xf32>
    %67 = vector.broadcast %66 : vector<24x1xf32> to vector<24x22xf32>
    %68 = arith.mulf %63, %67 : vector<24x22xf32>
    %69 = arith.truncf %68 : vector<24x22xf32> to vector<24x22xbf16>
    %cst_37 = arith.constant dense<0.000000e+00> : vector<24x8xf32>
    %70 = tpu.matmul %69, %55, %cst_37 {dimension_numbers = #tpu.dot_dimension_numbers<[1], [0], [0], [1], [0, 0, 1, 1], [], []>} : vector<24x22xbf16>, vector<22x8xbf16>, vector<24x8xf32> -> vector<24x8xf32>
    %71 = arith.truncf %70 : vector<24x8xf32> to vector<24x8xbf16>
    %c0_38 = arith.constant 0 : index
    %c0_39 = arith.constant 0 : index
    %c16_40 = arith.constant 16 : index
    %72 = vector.load %arg4[%c0_38, %c0_39, %c16_40] : memref<1x24x32xbf16, #tpu.memory_space<vmem>>, vector<1x24x8xbf16>
    %73 = vector.shape_cast %72 : vector<1x24x8xbf16> to vector<24x8xbf16>
    %74 = vector.shape_cast %71 : vector<24x8xbf16> to vector<1x24x8xbf16>
    tpu.vector_store %arg4[%c0_38, %c0_39, %c16_40], %74 {strides = array<i32>} : memref<1x24x32xbf16, #tpu.memory_space<vmem>>, vector<1x24x8xbf16>,
    %c0_41 = arith.constant 0 : index
    %c0_42 = arith.constant 0 : index
    %c24 = arith.constant 24 : index
    %75 = vector.load %arg2[%c0_41, %c0_42, %c24] : memref<1x24x96xbf16, #tpu.memory_space<vmem>>, vector<1x24x8xbf16>
    %76 = vector.shape_cast %75 : vector<1x24x8xbf16> to vector<24x8xbf16>
    %c0_43 = arith.constant 0 : index
    %c0_44 = arith.constant 0 : index
    %c56 = arith.constant 56 : index
    %77 = vector.load %arg3[%c0_43, %c0_44, %c56] : memref<1x22x96xbf16, #tpu.memory_space<vmem>>, vector<1x22x8xbf16>
    %78 = vector.shape_cast %77 : vector<1x22x8xbf16> to vector<22x8xbf16>
    %c0_45 = arith.constant 0 : index
    %c0_46 = arith.constant 0 : index
    %c88 = arith.constant 88 : index
    %79 = vector.load %arg3[%c0_45, %c0_46, %c88] : memref<1x22x96xbf16, #tpu.memory_space<vmem>>, vector<1x22x8xbf16>
    %80 = vector.shape_cast %79 : vector<1x22x8xbf16> to vector<22x8xbf16>
    %cst_47 = arith.constant dense<0.000000e+00> : vector<24x22xf32>
    %81 = tpu.matmul %76, %78, %cst_47 {dimension_numbers = #tpu.dot_dimension_numbers<[1], [1], [0], [0], [0, 0, 1, 0], [], []>} : vector<24x8xbf16>, vector<22x8xbf16>, vector<24x22xf32> -> vector<24x22xf32>
    %cst_48 = arith.constant 0.353553385 : f32
    %82 = vector.broadcast %cst_48 : f32 to vector<24x22xf32>
    %83 = arith.mulf %81, %82 : vector<24x22xf32>
    %cst_49 = arith.constant dense<0xFF800000> : vector<24xf32>
    %84 = vector.multi_reduction <maximumf>, %83, %cst_49 [1] : vector<24x22xf32> to vector<24xf32>
    %85 = vector.shape_cast %84 : vector<24xf32> to vector<24x1xf32>
    %86 = vector.broadcast %85 : vector<24x1xf32> to vector<24x22xf32>
    %87 = arith.subf %83, %86 : vector<24x22xf32>
    %88 = math.exp %87 : vector<24x22xf32>
    %cst_50 = arith.constant dense<0.000000e+00> : vector<24xf32>
    %89 = vector.multi_reduction <add>, %88, %cst_50 [1] : vector<24x22xf32> to vector<24xf32>
    %90 = vector.shape_cast %89 : vector<24xf32> to vector<24x1xf32>
    %91 = tpu.reciprocal %90 {approx = true} : vector<24x1xf32> -> vector<24x1xf32>
    %92 = vector.broadcast %91 : vector<24x1xf32> to vector<24x22xf32>
    %93 = arith.mulf %88, %92 : vector<24x22xf32>
    %94 = arith.truncf %93 : vector<24x22xf32> to vector<24x22xbf16>
    %cst_51 = arith.constant dense<0.000000e+00> : vector<24x8xf32>
    %95 = tpu.matmul %94, %80, %cst_51 {dimension_numbers = #tpu.dot_dimension_numbers<[1], [0], [0], [1], [0, 0, 1, 1], [], []>} : vector<24x22xbf16>, vector<22x8xbf16>, vector<24x8xf32> -> vector<24x8xf32>
    %96 = arith.truncf %95 : vector<24x8xf32> to vector<24x8xbf16>
    %c0_52 = arith.constant 0 : index
    %c0_53 = arith.constant 0 : index
    %c24_54 = arith.constant 24 : index
    %97 = vector.load %arg4[%c0_52, %c0_53, %c24_54] : memref<1x24x32xbf16, #tpu.memory_space<vmem>>, vector<1x24x8xbf16>
    %98 = vector.shape_cast %97 : vector<1x24x8xbf16> to vector<24x8xbf16>
    %99 = vector.shape_cast %96 : vector<24x8xbf16> to vector<1x24x8xbf16>
    tpu.vector_store %arg4[%c0_52, %c0_53, %c24_54], %99 {strides = array<i32>} : memref<1x24x32xbf16, #tpu.memory_space<vmem>>, vector<1x24x8xbf16>,
    return
  }
  func.func @transform_0(%arg0: i32, %arg1: i32) -> (i32, i32, i32) {
    %c0_i32 = arith.constant 0 : i32
    %c0_i32_0 = arith.constant 0 : i32
    return %arg0, %arg1, %c0_i32 : i32, i32, i32
  }
  func.func @transform_1(%arg0: i32, %arg1: i32) -> (i32, i32, i32) {
    %c0_i32 = arith.constant 0 : i32
    %c0_i32_0 = arith.constant 0 : i32
    %c0_i32_1 = arith.constant 0 : i32
    return %arg0, %c0_i32, %c0_i32_0 : i32, i32, i32
  }
  func.func @transform_2(%arg0: i32, %arg1: i32) -> (i32, i32, i32) {
    %c0_i32 = arith.constant 0 : i32
    %c0_i32_0 = arith.constant 0 : i32
    return %arg0, %arg1, %c0_i32 : i32, i32, i32
  }
}

module attributes {stable_mosaic.version = 11 : i64} {
  func.func @_fused_matmul_kernel(%arg0: i32, %arg1: i32, %arg2: i32, %arg3: memref<48x128xbf16, #tpu.memory_space<vmem>>, %arg4: memref<128x128xbf16, #tpu.memory_space<vmem>>, %arg5: memref<1x128xf32, #tpu.memory_space<vmem>>, %arg6: memref<48x128xbf16, #tpu.memory_space<vmem>>, %arg7: memref<48x128xf32, #tpu.memory_space<vmem>>) attributes {dimension_semantics = [#tpu.dimension_semantics<parallel>, #tpu.dimension_semantics<parallel>, #tpu.dimension_semantics<arbitrary>], iteration_bounds = array<i64: 1, 1, 1>, scalar_prefetch = 0 : i64, scratch_operands = 1 : i64, tpu.core_type = #tpu.core_type<tc>, window_params = [{transform_indices = @transform_0, window_bounds = array<i64: 48, 128>}, {transform_indices = @transform_1, window_bounds = array<i64: 128, 128>}, {transform_indices = @transform_2, window_bounds = array<i64: 1, 128>}, {transform_indices = @transform_3, window_bounds = array<i64: 48, 128>}]} {
    %c0 = arith.constant 0 : index
    %c0_0 = arith.constant 0 : index
    %0 = vector.load %arg3[%c0, %c0_0] : memref<48x128xbf16, #tpu.memory_space<vmem>>, vector<48x128xbf16>
    %c0_1 = arith.constant 0 : index
    %c0_2 = arith.constant 0 : index
    %1 = vector.load %arg4[%c0_1, %c0_2] : memref<128x128xbf16, #tpu.memory_space<vmem>>, vector<128x128xbf16>
    %cst = arith.constant dense<0.000000e+00> : vector<48x128xf32>
    %2 = tpu.matmul %0, %1, %cst {dimension_numbers = #tpu.dot_dimension_numbers<[1], [0], [0], [1], [0, 0, 1, 1], [], []>} : vector<48x128xbf16>, vector<128x128xbf16>, vector<48x128xf32> -> vector<48x128xf32>
    %c0_i32 = arith.constant 0 : i32
    %3 = arith.cmpi eq, %arg2, %c0_i32 : i32
    %4 = arith.extui %3 : i1 to i32
    %c0_i32_3 = arith.constant 0 : i32
    %5 = arith.cmpi ne, %4, %c0_i32_3 : i32
    scf.if %5 {
      %c0_8 = arith.constant 0 : index
      %c0_9 = arith.constant 0 : index
      %12 = vector.load %arg7[%c0_8, %c0_9] : memref<48x128xf32, #tpu.memory_space<vmem>>, vector<48x128xf32>
      tpu.vector_store %arg7[%c0_8, %c0_9], %2 {strides = array<i32>} : memref<48x128xf32, #tpu.memory_space<vmem>>, vector<48x128xf32>,
    } else {
    }
    %c0_i32_4 = arith.constant 0 : i32
    %6 = arith.cmpi sgt, %arg2, %c0_i32_4 : i32
    %7 = arith.extui %6 : i1 to i32
    %c0_i32_5 = arith.constant 0 : i32
    %8 = arith.cmpi ne, %7, %c0_i32_5 : i32
    scf.if %8 {
      %c0_8 = arith.constant 0 : index
      %c0_9 = arith.constant 0 : index
      %12 = vector.load %arg7[%c0_8, %c0_9] : memref<48x128xf32, #tpu.memory_space<vmem>>, vector<48x128xf32>
      %13 = arith.addf %12, %2 : vector<48x128xf32>
      %c0_10 = arith.constant 0 : index
      %c0_11 = arith.constant 0 : index
      %14 = vector.load %arg7[%c0_10, %c0_11] : memref<48x128xf32, #tpu.memory_space<vmem>>, vector<48x128xf32>
      tpu.vector_store %arg7[%c0_10, %c0_11], %13 {strides = array<i32>} : memref<48x128xf32, #tpu.memory_space<vmem>>, vector<48x128xf32>,
    } else {
    }
    %c0_i32_6 = arith.constant 0 : i32
    %9 = arith.cmpi eq, %arg2, %c0_i32_6 : i32
    %10 = arith.extui %9 : i1 to i32
    %c0_i32_7 = arith.constant 0 : i32
    %11 = arith.cmpi ne, %10, %c0_i32_7 : i32
    scf.if %11 {
      %c0_8 = arith.constant 0 : index
      %c0_9 = arith.constant 0 : index
      %12 = vector.load %arg7[%c0_8, %c0_9] : memref<48x128xf32, #tpu.memory_space<vmem>>, vector<48x128xf32>
      %c0_10 = arith.constant 0 : index
      %c0_11 = arith.constant 0 : index
      %13 = vector.load %arg5[%c0_10, %c0_11] : memref<1x128xf32, #tpu.memory_space<vmem>>, vector<1x128xf32>
      %14 = vector.broadcast %13 : vector<1x128xf32> to vector<48x128xf32>
      %15 = arith.addf %12, %14 : vector<48x128xf32>
      %16 = arith.truncf %15 : vector<48x128xf32> to vector<48x128xbf16>
      %c0_12 = arith.constant 0 : index
      %c0_13 = arith.constant 0 : index
      %17 = vector.load %arg6[%c0_12, %c0_13] : memref<48x128xbf16, #tpu.memory_space<vmem>>, vector<48x128xbf16>
      tpu.vector_store %arg6[%c0_12, %c0_13], %16 {strides = array<i32>} : memref<48x128xbf16, #tpu.memory_space<vmem>>, vector<48x128xbf16>,
    } else {
    }
    return
  }
  func.func @transform_0(%arg0: i32, %arg1: i32, %arg2: i32) -> (i32, i32) {
    %c0_i32 = arith.constant 0 : i32
    return %arg0, %arg2 : i32, i32
  }
  func.func @transform_1(%arg0: i32, %arg1: i32, %arg2: i32) -> (i32, i32) {
    %c0_i32 = arith.constant 0 : i32
    return %arg2, %arg1 : i32, i32
  }
  func.func @transform_2(%arg0: i32, %arg1: i32, %arg2: i32) -> (i32, i32) {
    %c0_i32 = arith.constant 0 : i32
    %c0_i32_0 = arith.constant 0 : i32
    return %c0_i32, %arg1 : i32, i32
  }
  func.func @transform_3(%arg0: i32, %arg1: i32, %arg2: i32) -> (i32, i32) {
    %c0_i32 = arith.constant 0 : i32
    return %arg0, %arg1 : i32, i32
  }
}

module attributes {stable_mosaic.version = 11 : i64} {
  func.func @_rownorm_kernel(%arg0: i32, %arg1: memref<48x32xbf16, #tpu.memory_space<vmem>>, %arg2: memref<1x32xf32, #tpu.memory_space<vmem>>, %arg3: memref<1x32xf32, #tpu.memory_space<vmem>>, %arg4: memref<48x32xbf16, #tpu.memory_space<vmem>>) attributes {dimension_semantics = [#tpu.dimension_semantics<parallel>], iteration_bounds = array<i64: 1>, scalar_prefetch = 0 : i64, scratch_operands = 0 : i64, tpu.core_type = #tpu.core_type<tc>, window_params = [{transform_indices = @transform_0, window_bounds = array<i64: 48, 32>}, {pipeline_mode = #tpu.pipeline_mode<synchronous>, transform_indices = @transform_1, window_bounds = array<i64: 1, 32>}, {pipeline_mode = #tpu.pipeline_mode<synchronous>, transform_indices = @transform_2, window_bounds = array<i64: 1, 32>}, {transform_indices = @transform_3, window_bounds = array<i64: 48, 32>}]} {
    %c0 = arith.constant 0 : index
    %c0_0 = arith.constant 0 : index
    %0 = vector.load %arg1[%c0, %c0_0] : memref<48x32xbf16, #tpu.memory_space<vmem>>, vector<48x32xbf16>
    %1 = arith.extf %0 : vector<48x32xbf16> to vector<48x32xf32>
    %cst = arith.constant dense<0.000000e+00> : vector<48xf32>
    %2 = vector.multi_reduction <add>, %1, %cst [1] : vector<48x32xf32> to vector<48xf32>
    %3 = vector.shape_cast %2 : vector<48xf32> to vector<48x1xf32>
    %cst_1 = arith.constant 3.200000e+01 : f32
    %4 = vector.broadcast %cst_1 : f32 to vector<48x1xf32>
    %5 = arith.divf %3, %4 : vector<48x1xf32>
    %6 = vector.broadcast %5 : vector<48x1xf32> to vector<48x32xf32>
    %7 = arith.subf %1, %6 : vector<48x32xf32>
    %8 = arith.mulf %7, %7 : vector<48x32xf32>
    %cst_2 = arith.constant dense<0.000000e+00> : vector<48xf32>
    %9 = vector.multi_reduction <add>, %8, %cst_2 [1] : vector<48x32xf32> to vector<48xf32>
    %10 = vector.shape_cast %9 : vector<48xf32> to vector<48x1xf32>
    %cst_3 = arith.constant 3.200000e+01 : f32
    %11 = vector.broadcast %cst_3 : f32 to vector<48x1xf32>
    %12 = arith.divf %10, %11 : vector<48x1xf32>
    %13 = vector.broadcast %5 : vector<48x1xf32> to vector<48x32xf32>
    %14 = arith.subf %1, %13 : vector<48x32xf32>
    %cst_4 = arith.constant 9.99999974E-6 : f32
    %15 = vector.broadcast %cst_4 : f32 to vector<48x1xf32>
    %16 = arith.addf %12, %15 : vector<48x1xf32>
    %17 = math.rsqrt %16 : vector<48x1xf32>
    %18 = vector.broadcast %17 : vector<48x1xf32> to vector<48x32xf32>
    %19 = arith.mulf %14, %18 : vector<48x32xf32>
    %c0_5 = arith.constant 0 : index
    %c0_6 = arith.constant 0 : index
    %20 = vector.load %arg2[%c0_5, %c0_6] : memref<1x32xf32, #tpu.memory_space<vmem>>, vector<1x32xf32>
    %21 = vector.broadcast %20 : vector<1x32xf32> to vector<48x32xf32>
    %22 = arith.mulf %19, %21 : vector<48x32xf32>
    %c0_7 = arith.constant 0 : index
    %c0_8 = arith.constant 0 : index
    %23 = vector.load %arg3[%c0_7, %c0_8] : memref<1x32xf32, #tpu.memory_space<vmem>>, vector<1x32xf32>
    %24 = vector.broadcast %23 : vector<1x32xf32> to vector<48x32xf32>
    %25 = arith.addf %22, %24 : vector<48x32xf32>
    %26 = arith.truncf %25 : vector<48x32xf32> to vector<48x32xbf16>
    %c0_9 = arith.constant 0 : index
    %c0_10 = arith.constant 0 : index
    %27 = vector.load %arg4[%c0_9, %c0_10] : memref<48x32xbf16, #tpu.memory_space<vmem>>, vector<48x32xbf16>
    tpu.vector_store %arg4[%c0_9, %c0_10], %26 {strides = array<i32>} : memref<48x32xbf16, #tpu.memory_space<vmem>>, vector<48x32xbf16>,
    return
  }
  func.func @transform_0(%arg0: i32) -> (i32, i32) {
    %c0_i32 = arith.constant 0 : i32
    %c0_i32_0 = arith.constant 0 : i32
    return %arg0, %c0_i32 : i32, i32
  }
  func.func @transform_1(%arg0: i32) -> (i32, i32) {
    %c0_i32 = arith.constant 0 : i32
    %c0_i32_0 = arith.constant 0 : i32
    %c0_i32_1 = arith.constant 0 : i32
    return %c0_i32, %c0_i32_0 : i32, i32
  }
  func.func @transform_2(%arg0: i32) -> (i32, i32) {
    %c0_i32 = arith.constant 0 : i32
    %c0_i32_0 = arith.constant 0 : i32
    %c0_i32_1 = arith.constant 0 : i32
    return %c0_i32, %c0_i32_0 : i32, i32
  }
  func.func @transform_3(%arg0: i32) -> (i32, i32) {
    %c0_i32 = arith.constant 0 : i32
    %c0_i32_0 = arith.constant 0 : i32
    return %arg0, %c0_i32 : i32, i32
  }
}

module attributes {stable_mosaic.version = 11 : i64} {
  func.func @_fused_matmul_kernel(%arg0: i32, %arg1: i32, %arg2: i32, %arg3: memref<16x128xbf16, #tpu.memory_space<vmem>>, %arg4: memref<128x128xbf16, #tpu.memory_space<vmem>>, %arg5: memref<1x128xf32, #tpu.memory_space<vmem>>, %arg6: memref<16x128xbf16, #tpu.memory_space<vmem>>, %arg7: memref<16x128xf32, #tpu.memory_space<vmem>>) attributes {dimension_semantics = [#tpu.dimension_semantics<parallel>, #tpu.dimension_semantics<parallel>, #tpu.dimension_semantics<arbitrary>], iteration_bounds = array<i64: 1, 1, 1>, scalar_prefetch = 0 : i64, scratch_operands = 1 : i64, tpu.core_type = #tpu.core_type<tc>, window_params = [{transform_indices = @transform_0, window_bounds = array<i64: 16, 128>}, {transform_indices = @transform_1, window_bounds = array<i64: 128, 128>}, {transform_indices = @transform_2, window_bounds = array<i64: 1, 128>}, {transform_indices = @transform_3, window_bounds = array<i64: 16, 128>}]} {
    %c0 = arith.constant 0 : index
    %c0_0 = arith.constant 0 : index
    %0 = vector.load %arg3[%c0, %c0_0] : memref<16x128xbf16, #tpu.memory_space<vmem>>, vector<16x128xbf16>
    %c0_1 = arith.constant 0 : index
    %c0_2 = arith.constant 0 : index
    %1 = vector.load %arg4[%c0_1, %c0_2] : memref<128x128xbf16, #tpu.memory_space<vmem>>, vector<128x128xbf16>
    %cst = arith.constant dense<0.000000e+00> : vector<16x128xf32>
    %2 = tpu.matmul %0, %1, %cst {dimension_numbers = #tpu.dot_dimension_numbers<[1], [0], [0], [1], [0, 0, 1, 1], [], []>} : vector<16x128xbf16>, vector<128x128xbf16>, vector<16x128xf32> -> vector<16x128xf32>
    %c0_i32 = arith.constant 0 : i32
    %3 = arith.cmpi eq, %arg2, %c0_i32 : i32
    %4 = arith.extui %3 : i1 to i32
    %c0_i32_3 = arith.constant 0 : i32
    %5 = arith.cmpi ne, %4, %c0_i32_3 : i32
    scf.if %5 {
      %c0_8 = arith.constant 0 : index
      %c0_9 = arith.constant 0 : index
      %12 = vector.load %arg7[%c0_8, %c0_9] : memref<16x128xf32, #tpu.memory_space<vmem>>, vector<16x128xf32>
      tpu.vector_store %arg7[%c0_8, %c0_9], %2 {strides = array<i32>} : memref<16x128xf32, #tpu.memory_space<vmem>>, vector<16x128xf32>,
    } else {
    }
    %c0_i32_4 = arith.constant 0 : i32
    %6 = arith.cmpi sgt, %arg2, %c0_i32_4 : i32
    %7 = arith.extui %6 : i1 to i32
    %c0_i32_5 = arith.constant 0 : i32
    %8 = arith.cmpi ne, %7, %c0_i32_5 : i32
    scf.if %8 {
      %c0_8 = arith.constant 0 : index
      %c0_9 = arith.constant 0 : index
      %12 = vector.load %arg7[%c0_8, %c0_9] : memref<16x128xf32, #tpu.memory_space<vmem>>, vector<16x128xf32>
      %13 = arith.addf %12, %2 : vector<16x128xf32>
      %c0_10 = arith.constant 0 : index
      %c0_11 = arith.constant 0 : index
      %14 = vector.load %arg7[%c0_10, %c0_11] : memref<16x128xf32, #tpu.memory_space<vmem>>, vector<16x128xf32>
      tpu.vector_store %arg7[%c0_10, %c0_11], %13 {strides = array<i32>} : memref<16x128xf32, #tpu.memory_space<vmem>>, vector<16x128xf32>,
    } else {
    }
    %c0_i32_6 = arith.constant 0 : i32
    %9 = arith.cmpi eq, %arg2, %c0_i32_6 : i32
    %10 = arith.extui %9 : i1 to i32
    %c0_i32_7 = arith.constant 0 : i32
    %11 = arith.cmpi ne, %10, %c0_i32_7 : i32
    scf.if %11 {
      %c0_8 = arith.constant 0 : index
      %c0_9 = arith.constant 0 : index
      %12 = vector.load %arg7[%c0_8, %c0_9] : memref<16x128xf32, #tpu.memory_space<vmem>>, vector<16x128xf32>
      %c0_10 = arith.constant 0 : index
      %c0_11 = arith.constant 0 : index
      %13 = vector.load %arg5[%c0_10, %c0_11] : memref<1x128xf32, #tpu.memory_space<vmem>>, vector<1x128xf32>
      %14 = vector.broadcast %13 : vector<1x128xf32> to vector<16x128xf32>
      %15 = arith.addf %12, %14 : vector<16x128xf32>
      %16 = arith.truncf %15 : vector<16x128xf32> to vector<16x128xbf16>
      %c0_12 = arith.constant 0 : index
      %c0_13 = arith.constant 0 : index
      %17 = vector.load %arg6[%c0_12, %c0_13] : memref<16x128xbf16, #tpu.memory_space<vmem>>, vector<16x128xbf16>
      tpu.vector_store %arg6[%c0_12, %c0_13], %16 {strides = array<i32>} : memref<16x128xbf16, #tpu.memory_space<vmem>>, vector<16x128xbf16>,
    } else {
    }
    return
  }
  func.func @transform_0(%arg0: i32, %arg1: i32, %arg2: i32) -> (i32, i32) {
    %c0_i32 = arith.constant 0 : i32
    return %arg0, %arg2 : i32, i32
  }
  func.func @transform_1(%arg0: i32, %arg1: i32, %arg2: i32) -> (i32, i32) {
    %c0_i32 = arith.constant 0 : i32
    return %arg2, %arg1 : i32, i32
  }
  func.func @transform_2(%arg0: i32, %arg1: i32, %arg2: i32) -> (i32, i32) {
    %c0_i32 = arith.constant 0 : i32
    %c0_i32_0 = arith.constant 0 : i32
    return %c0_i32, %arg1 : i32, i32
  }
  func.func @transform_3(%arg0: i32, %arg1: i32, %arg2: i32) -> (i32, i32) {
    %c0_i32 = arith.constant 0 : i32
    return %arg0, %arg1 : i32, i32
  }
}

module attributes {stable_mosaic.version = 11 : i64} {
  func.func @_rownorm_kernel(%arg0: i32, %arg1: memref<16x32xbf16, #tpu.memory_space<vmem>>, %arg2: memref<16x32xbf16, #tpu.memory_space<vmem>>) attributes {dimension_semantics = [#tpu.dimension_semantics<parallel>], iteration_bounds = array<i64: 1>, scalar_prefetch = 0 : i64, scratch_operands = 0 : i64, tpu.core_type = #tpu.core_type<tc>, window_params = [{transform_indices = @transform_0, window_bounds = array<i64: 16, 32>}, {transform_indices = @transform_1, window_bounds = array<i64: 16, 32>}]} {
    %c0 = arith.constant 0 : index
    %c0_0 = arith.constant 0 : index
    %0 = vector.load %arg1[%c0, %c0_0] : memref<16x32xbf16, #tpu.memory_space<vmem>>, vector<16x32xbf16>
    %1 = arith.extf %0 : vector<16x32xbf16> to vector<16x32xf32>
    %cst = arith.constant dense<0.000000e+00> : vector<16xf32>
    %2 = vector.multi_reduction <add>, %1, %cst [1] : vector<16x32xf32> to vector<16xf32>
    %3 = vector.shape_cast %2 : vector<16xf32> to vector<16x1xf32>
    %cst_1 = arith.constant 3.200000e+01 : f32
    %4 = vector.broadcast %cst_1 : f32 to vector<16x1xf32>
    %5 = arith.divf %3, %4 : vector<16x1xf32>
    %6 = vector.broadcast %5 : vector<16x1xf32> to vector<16x32xf32>
    %7 = arith.subf %1, %6 : vector<16x32xf32>
    %8 = arith.mulf %7, %7 : vector<16x32xf32>
    %cst_2 = arith.constant dense<0.000000e+00> : vector<16xf32>
    %9 = vector.multi_reduction <add>, %8, %cst_2 [1] : vector<16x32xf32> to vector<16xf32>
    %10 = vector.shape_cast %9 : vector<16xf32> to vector<16x1xf32>
    %cst_3 = arith.constant 3.200000e+01 : f32
    %11 = vector.broadcast %cst_3 : f32 to vector<16x1xf32>
    %12 = arith.divf %10, %11 : vector<16x1xf32>
    %13 = vector.broadcast %5 : vector<16x1xf32> to vector<16x32xf32>
    %14 = arith.subf %1, %13 : vector<16x32xf32>
    %cst_4 = arith.constant 9.99999997E-7 : f32
    %15 = vector.broadcast %cst_4 : f32 to vector<16x1xf32>
    %16 = arith.addf %12, %15 : vector<16x1xf32>
    %17 = math.rsqrt %16 : vector<16x1xf32>
    %18 = vector.broadcast %17 : vector<16x1xf32> to vector<16x32xf32>
    %19 = arith.mulf %14, %18 : vector<16x32xf32>
    %20 = arith.truncf %19 : vector<16x32xf32> to vector<16x32xbf16>
    %c0_5 = arith.constant 0 : index
    %c0_6 = arith.constant 0 : index
    %21 = vector.load %arg2[%c0_5, %c0_6] : memref<16x32xbf16, #tpu.memory_space<vmem>>, vector<16x32xbf16>
    tpu.vector_store %arg2[%c0_5, %c0_6], %20 {strides = array<i32>} : memref<16x32xbf16, #tpu.memory_space<vmem>>, vector<16x32xbf16>,
    return
  }
  func.func @transform_0(%arg0: i32) -> (i32, i32) {
    %c0_i32 = arith.constant 0 : i32
    %c0_i32_0 = arith.constant 0 : i32
    return %arg0, %c0_i32 : i32, i32
  }
  func.func @transform_1(%arg0: i32) -> (i32, i32) {
    %c0_i32 = arith.constant 0 : i32
    %c0_i32_0 = arith.constant 0 : i32
    return %arg0, %c0_i32 : i32, i32
  }
}

module attributes {stable_mosaic.version = 11 : i64} {
  func.func @_fused_matmul_kernel(%arg0: i32, %arg1: i32, %arg2: i32, %arg3: memref<48x128xbf16, #tpu.memory_space<vmem>>, %arg4: memref<128x128xbf16, #tpu.memory_space<vmem>>, %arg5: memref<1x128xf32, #tpu.memory_space<vmem>>, %arg6: memref<48x128xbf16, #tpu.memory_space<vmem>>, %arg7: memref<48x128xf32, #tpu.memory_space<vmem>>) attributes {dimension_semantics = [#tpu.dimension_semantics<parallel>, #tpu.dimension_semantics<parallel>, #tpu.dimension_semantics<arbitrary>], iteration_bounds = array<i64: 1, 1, 1>, scalar_prefetch = 0 : i64, scratch_operands = 1 : i64, tpu.core_type = #tpu.core_type<tc>, window_params = [{transform_indices = @transform_0, window_bounds = array<i64: 48, 128>}, {transform_indices = @transform_1, window_bounds = array<i64: 128, 128>}, {transform_indices = @transform_2, window_bounds = array<i64: 1, 128>}, {transform_indices = @transform_3, window_bounds = array<i64: 48, 128>}]} {
    %c0 = arith.constant 0 : index
    %c0_0 = arith.constant 0 : index
    %0 = vector.load %arg3[%c0, %c0_0] : memref<48x128xbf16, #tpu.memory_space<vmem>>, vector<48x128xbf16>
    %c0_1 = arith.constant 0 : index
    %c0_2 = arith.constant 0 : index
    %1 = vector.load %arg4[%c0_1, %c0_2] : memref<128x128xbf16, #tpu.memory_space<vmem>>, vector<128x128xbf16>
    %cst = arith.constant dense<0.000000e+00> : vector<48x128xf32>
    %2 = tpu.matmul %0, %1, %cst {dimension_numbers = #tpu.dot_dimension_numbers<[1], [0], [0], [1], [0, 0, 1, 1], [], []>} : vector<48x128xbf16>, vector<128x128xbf16>, vector<48x128xf32> -> vector<48x128xf32>
    %c0_i32 = arith.constant 0 : i32
    %3 = arith.cmpi eq, %arg2, %c0_i32 : i32
    %4 = arith.extui %3 : i1 to i32
    %c0_i32_3 = arith.constant 0 : i32
    %5 = arith.cmpi ne, %4, %c0_i32_3 : i32
    scf.if %5 {
      %c0_8 = arith.constant 0 : index
      %c0_9 = arith.constant 0 : index
      %12 = vector.load %arg7[%c0_8, %c0_9] : memref<48x128xf32, #tpu.memory_space<vmem>>, vector<48x128xf32>
      tpu.vector_store %arg7[%c0_8, %c0_9], %2 {strides = array<i32>} : memref<48x128xf32, #tpu.memory_space<vmem>>, vector<48x128xf32>,
    } else {
    }
    %c0_i32_4 = arith.constant 0 : i32
    %6 = arith.cmpi sgt, %arg2, %c0_i32_4 : i32
    %7 = arith.extui %6 : i1 to i32
    %c0_i32_5 = arith.constant 0 : i32
    %8 = arith.cmpi ne, %7, %c0_i32_5 : i32
    scf.if %8 {
      %c0_8 = arith.constant 0 : index
      %c0_9 = arith.constant 0 : index
      %12 = vector.load %arg7[%c0_8, %c0_9] : memref<48x128xf32, #tpu.memory_space<vmem>>, vector<48x128xf32>
      %13 = arith.addf %12, %2 : vector<48x128xf32>
      %c0_10 = arith.constant 0 : index
      %c0_11 = arith.constant 0 : index
      %14 = vector.load %arg7[%c0_10, %c0_11] : memref<48x128xf32, #tpu.memory_space<vmem>>, vector<48x128xf32>
      tpu.vector_store %arg7[%c0_10, %c0_11], %13 {strides = array<i32>} : memref<48x128xf32, #tpu.memory_space<vmem>>, vector<48x128xf32>,
    } else {
    }
    %c0_i32_6 = arith.constant 0 : i32
    %9 = arith.cmpi eq, %arg2, %c0_i32_6 : i32
    %10 = arith.extui %9 : i1 to i32
    %c0_i32_7 = arith.constant 0 : i32
    %11 = arith.cmpi ne, %10, %c0_i32_7 : i32
    scf.if %11 {
      %c0_8 = arith.constant 0 : index
      %c0_9 = arith.constant 0 : index
      %12 = vector.load %arg7[%c0_8, %c0_9] : memref<48x128xf32, #tpu.memory_space<vmem>>, vector<48x128xf32>
      %c0_10 = arith.constant 0 : index
      %c0_11 = arith.constant 0 : index
      %13 = vector.load %arg5[%c0_10, %c0_11] : memref<1x128xf32, #tpu.memory_space<vmem>>, vector<1x128xf32>
      %14 = vector.broadcast %13 : vector<1x128xf32> to vector<48x128xf32>
      %15 = arith.addf %12, %14 : vector<48x128xf32>
      %16 = arith.mulf %15, %15 : vector<48x128xf32>
      %17 = arith.mulf %15, %16 : vector<48x128xf32>
      %cst_12 = arith.constant 4.471500e-02 : f32
      %18 = vector.broadcast %cst_12 : f32 to vector<48x128xf32>
      %19 = arith.mulf %18, %17 : vector<48x128xf32>
      %20 = arith.addf %15, %19 : vector<48x128xf32>
      %cst_13 = arith.constant 0.797884583 : f32
      %21 = vector.broadcast %cst_13 : f32 to vector<48x128xf32>
      %22 = arith.mulf %21, %20 : vector<48x128xf32>
      %23 = math.tanh %22 : vector<48x128xf32>
      %cst_14 = arith.constant 1.000000e+00 : f32
      %24 = vector.broadcast %cst_14 : f32 to vector<48x128xf32>
      %25 = arith.addf %24, %23 : vector<48x128xf32>
      %cst_15 = arith.constant 5.000000e-01 : f32
      %26 = vector.broadcast %cst_15 : f32 to vector<48x128xf32>
      %27 = arith.mulf %26, %25 : vector<48x128xf32>
      %28 = arith.mulf %15, %27 : vector<48x128xf32>
      %29 = arith.truncf %28 : vector<48x128xf32> to vector<48x128xbf16>
      %c0_16 = arith.constant 0 : index
      %c0_17 = arith.constant 0 : index
      %30 = vector.load %arg6[%c0_16, %c0_17] : memref<48x128xbf16, #tpu.memory_space<vmem>>, vector<48x128xbf16>
      tpu.vector_store %arg6[%c0_16, %c0_17], %29 {strides = array<i32>} : memref<48x128xbf16, #tpu.memory_space<vmem>>, vector<48x128xbf16>,
    } else {
    }
    return
  }
  func.func @transform_0(%arg0: i32, %arg1: i32, %arg2: i32) -> (i32, i32) {
    %c0_i32 = arith.constant 0 : i32
    return %arg0, %arg2 : i32, i32
  }
  func.func @transform_1(%arg0: i32, %arg1: i32, %arg2: i32) -> (i32, i32) {
    %c0_i32 = arith.constant 0 : i32
    return %arg2, %arg1 : i32, i32
  }
  func.func @transform_2(%arg0: i32, %arg1: i32, %arg2: i32) -> (i32, i32) {
    %c0_i32 = arith.constant 0 : i32
    %c0_i32_0 = arith.constant 0 : i32
    return %c0_i32, %arg1 : i32, i32
  }
  func.func @transform_3(%arg0: i32, %arg1: i32, %arg2: i32) -> (i32, i32) {
    %c0_i32 = arith.constant 0 : i32
    return %arg0, %arg1 : i32, i32
  }
}

module attributes {stable_mosaic.version = 11 : i64} {
  func.func @_mha_kernel(%arg0: i32, %arg1: i32, %arg2: memref<1x24x32xbf16, #tpu.memory_space<vmem>>, %arg3: memref<1x5x64xbf16, #tpu.memory_space<vmem>>, %arg4: memref<1x24x32xbf16, #tpu.memory_space<vmem>>) attributes {dimension_semantics = [#tpu.dimension_semantics<parallel>, #tpu.dimension_semantics<parallel>], iteration_bounds = array<i64: 2, 1>, scalar_prefetch = 0 : i64, scratch_operands = 0 : i64, tpu.core_type = #tpu.core_type<tc>, window_params = [{transform_indices = @transform_0, window_bounds = array<i64: 1, 24, 32>}, {transform_indices = @transform_1, window_bounds = array<i64: 1, 5, 64>}, {transform_indices = @transform_2, window_bounds = array<i64: 1, 24, 32>}]} {
    %c0 = arith.constant 0 : index
    %c0_0 = arith.constant 0 : index
    %c0_1 = arith.constant 0 : index
    %0 = vector.load %arg2[%c0, %c0_0, %c0_1] : memref<1x24x32xbf16, #tpu.memory_space<vmem>>, vector<1x24x8xbf16>
    %1 = vector.shape_cast %0 : vector<1x24x8xbf16> to vector<24x8xbf16>
    %c0_2 = arith.constant 0 : index
    %c0_3 = arith.constant 0 : index
    %c0_4 = arith.constant 0 : index
    %2 = vector.load %arg3[%c0_2, %c0_3, %c0_4] : memref<1x5x64xbf16, #tpu.memory_space<vmem>>, vector<1x5x8xbf16>
    %3 = vector.shape_cast %2 : vector<1x5x8xbf16> to vector<5x8xbf16>
    %c0_5 = arith.constant 0 : index
    %c0_6 = arith.constant 0 : index
    %c32 = arith.constant 32 : index
    %4 = vector.load %arg3[%c0_5, %c0_6, %c32] : memref<1x5x64xbf16, #tpu.memory_space<vmem>>, vector<1x5x8xbf16>
    %5 = vector.shape_cast %4 : vector<1x5x8xbf16> to vector<5x8xbf16>
    %cst = arith.constant dense<0.000000e+00> : vector<24x5xf32>
    %6 = tpu.matmul %1, %3, %cst {dimension_numbers = #tpu.dot_dimension_numbers<[1], [1], [0], [0], [0, 0, 1, 0], [], []>} : vector<24x8xbf16>, vector<5x8xbf16>, vector<24x5xf32> -> vector<24x5xf32>
    %cst_7 = arith.constant 0.353553385 : f32
    %7 = vector.broadcast %cst_7 : f32 to vector<24x5xf32>
    %8 = arith.mulf %6, %7 : vector<24x5xf32>
    %cst_8 = arith.constant dense<0xFF800000> : vector<24xf32>
    %9 = vector.multi_reduction <maximumf>, %8, %cst_8 [1] : vector<24x5xf32> to vector<24xf32>
    %10 = vector.shape_cast %9 : vector<24xf32> to vector<24x1xf32>
    %11 = vector.broadcast %10 : vector<24x1xf32> to vector<24x5xf32>
    %12 = arith.subf %8, %11 : vector<24x5xf32>
    %13 = math.exp %12 : vector<24x5xf32>
    %cst_9 = arith.constant dense<0.000000e+00> : vector<24xf32>
    %14 = vector.multi_reduction <add>, %13, %cst_9 [1] : vector<24x5xf32> to vector<24xf32>
    %15 = vector.shape_cast %14 : vector<24xf32> to vector<24x1xf32>
    %16 = tpu.reciprocal %15 {approx = true} : vector<24x1xf32> -> vector<24x1xf32>
    %17 = vector.broadcast %16 : vector<24x1xf32> to vector<24x5xf32>
    %18 = arith.mulf %13, %17 : vector<24x5xf32>
    %19 = arith.truncf %18 : vector<24x5xf32> to vector<24x5xbf16>
    %cst_10 = arith.constant dense<0.000000e+00> : vector<24x8xf32>
    %20 = tpu.matmul %19, %5, %cst_10 {dimension_numbers = #tpu.dot_dimension_numbers<[1], [0], [0], [1], [0, 0, 1, 1], [], []>} : vector<24x5xbf16>, vector<5x8xbf16>, vector<24x8xf32> -> vector<24x8xf32>
    %21 = arith.truncf %20 : vector<24x8xf32> to vector<24x8xbf16>
    %c0_11 = arith.constant 0 : index
    %c0_12 = arith.constant 0 : index
    %c0_13 = arith.constant 0 : index
    %22 = vector.load %arg4[%c0_11, %c0_12, %c0_13] : memref<1x24x32xbf16, #tpu.memory_space<vmem>>, vector<1x24x8xbf16>
    %23 = vector.shape_cast %22 : vector<1x24x8xbf16> to vector<24x8xbf16>
    %24 = vector.shape_cast %21 : vector<24x8xbf16> to vector<1x24x8xbf16>
    tpu.vector_store %arg4[%c0_11, %c0_12, %c0_13], %24 {strides = array<i32>} : memref<1x24x32xbf16, #tpu.memory_space<vmem>>, vector<1x24x8xbf16>,
    %c0_14 = arith.constant 0 : index
    %c0_15 = arith.constant 0 : index
    %c8 = arith.constant 8 : index
    %25 = vector.load %arg2[%c0_14, %c0_15, %c8] : memref<1x24x32xbf16, #tpu.memory_space<vmem>>, vector<1x24x8xbf16>
    %26 = vector.shape_cast %25 : vector<1x24x8xbf16> to vector<24x8xbf16>
    %c0_16 = arith.constant 0 : index
    %c0_17 = arith.constant 0 : index
    %c8_18 = arith.constant 8 : index
    %27 = vector.load %arg3[%c0_16, %c0_17, %c8_18] : memref<1x5x64xbf16, #tpu.memory_space<vmem>>, vector<1x5x8xbf16>
    %28 = vector.shape_cast %27 : vector<1x5x8xbf16> to vector<5x8xbf16>
    %c0_19 = arith.constant 0 : index
    %c0_20 = arith.constant 0 : index
    %c40 = arith.constant 40 : index
    %29 = vector.load %arg3[%c0_19, %c0_20, %c40] : memref<1x5x64xbf16, #tpu.memory_space<vmem>>, vector<1x5x8xbf16>
    %30 = vector.shape_cast %29 : vector<1x5x8xbf16> to vector<5x8xbf16>
    %cst_21 = arith.constant dense<0.000000e+00> : vector<24x5xf32>
    %31 = tpu.matmul %26, %28, %cst_21 {dimension_numbers = #tpu.dot_dimension_numbers<[1], [1], [0], [0], [0, 0, 1, 0], [], []>} : vector<24x8xbf16>, vector<5x8xbf16>, vector<24x5xf32> -> vector<24x5xf32>
    %cst_22 = arith.constant 0.353553385 : f32
    %32 = vector.broadcast %cst_22 : f32 to vector<24x5xf32>
    %33 = arith.mulf %31, %32 : vector<24x5xf32>
    %cst_23 = arith.constant dense<0xFF800000> : vector<24xf32>
    %34 = vector.multi_reduction <maximumf>, %33, %cst_23 [1] : vector<24x5xf32> to vector<24xf32>
    %35 = vector.shape_cast %34 : vector<24xf32> to vector<24x1xf32>
    %36 = vector.broadcast %35 : vector<24x1xf32> to vector<24x5xf32>
    %37 = arith.subf %33, %36 : vector<24x5xf32>
    %38 = math.exp %37 : vector<24x5xf32>
    %cst_24 = arith.constant dense<0.000000e+00> : vector<24xf32>
    %39 = vector.multi_reduction <add>, %38, %cst_24 [1] : vector<24x5xf32> to vector<24xf32>
    %40 = vector.shape_cast %39 : vector<24xf32> to vector<24x1xf32>
    %41 = tpu.reciprocal %40 {approx = true} : vector<24x1xf32> -> vector<24x1xf32>
    %42 = vector.broadcast %41 : vector<24x1xf32> to vector<24x5xf32>
    %43 = arith.mulf %38, %42 : vector<24x5xf32>
    %44 = arith.truncf %43 : vector<24x5xf32> to vector<24x5xbf16>
    %cst_25 = arith.constant dense<0.000000e+00> : vector<24x8xf32>
    %45 = tpu.matmul %44, %30, %cst_25 {dimension_numbers = #tpu.dot_dimension_numbers<[1], [0], [0], [1], [0, 0, 1, 1], [], []>} : vector<24x5xbf16>, vector<5x8xbf16>, vector<24x8xf32> -> vector<24x8xf32>
    %46 = arith.truncf %45 : vector<24x8xf32> to vector<24x8xbf16>
    %c0_26 = arith.constant 0 : index
    %c0_27 = arith.constant 0 : index
    %c8_28 = arith.constant 8 : index
    %47 = vector.load %arg4[%c0_26, %c0_27, %c8_28] : memref<1x24x32xbf16, #tpu.memory_space<vmem>>, vector<1x24x8xbf16>
    %48 = vector.shape_cast %47 : vector<1x24x8xbf16> to vector<24x8xbf16>
    %49 = vector.shape_cast %46 : vector<24x8xbf16> to vector<1x24x8xbf16>
    tpu.vector_store %arg4[%c0_26, %c0_27, %c8_28], %49 {strides = array<i32>} : memref<1x24x32xbf16, #tpu.memory_space<vmem>>, vector<1x24x8xbf16>,
    %c0_29 = arith.constant 0 : index
    %c0_30 = arith.constant 0 : index
    %c16 = arith.constant 16 : index
    %50 = vector.load %arg2[%c0_29, %c0_30, %c16] : memref<1x24x32xbf16, #tpu.memory_space<vmem>>, vector<1x24x8xbf16>
    %51 = vector.shape_cast %50 : vector<1x24x8xbf16> to vector<24x8xbf16>
    %c0_31 = arith.constant 0 : index
    %c0_32 = arith.constant 0 : index
    %c16_33 = arith.constant 16 : index
    %52 = vector.load %arg3[%c0_31, %c0_32, %c16_33] : memref<1x5x64xbf16, #tpu.memory_space<vmem>>, vector<1x5x8xbf16>
    %53 = vector.shape_cast %52 : vector<1x5x8xbf16> to vector<5x8xbf16>
    %c0_34 = arith.constant 0 : index
    %c0_35 = arith.constant 0 : index
    %c48 = arith.constant 48 : index
    %54 = vector.load %arg3[%c0_34, %c0_35, %c48] : memref<1x5x64xbf16, #tpu.memory_space<vmem>>, vector<1x5x8xbf16>
    %55 = vector.shape_cast %54 : vector<1x5x8xbf16> to vector<5x8xbf16>
    %cst_36 = arith.constant dense<0.000000e+00> : vector<24x5xf32>
    %56 = tpu.matmul %51, %53, %cst_36 {dimension_numbers = #tpu.dot_dimension_numbers<[1], [1], [0], [0], [0, 0, 1, 0], [], []>} : vector<24x8xbf16>, vector<5x8xbf16>, vector<24x5xf32> -> vector<24x5xf32>
    %cst_37 = arith.constant 0.353553385 : f32
    %57 = vector.broadcast %cst_37 : f32 to vector<24x5xf32>
    %58 = arith.mulf %56, %57 : vector<24x5xf32>
    %cst_38 = arith.constant dense<0xFF800000> : vector<24xf32>
    %59 = vector.multi_reduction <maximumf>, %58, %cst_38 [1] : vector<24x5xf32> to vector<24xf32>
    %60 = vector.shape_cast %59 : vector<24xf32> to vector<24x1xf32>
    %61 = vector.broadcast %60 : vector<24x1xf32> to vector<24x5xf32>
    %62 = arith.subf %58, %61 : vector<24x5xf32>
    %63 = math.exp %62 : vector<24x5xf32>
    %cst_39 = arith.constant dense<0.000000e+00> : vector<24xf32>
    %64 = vector.multi_reduction <add>, %63, %cst_39 [1] : vector<24x5xf32> to vector<24xf32>
    %65 = vector.shape_cast %64 : vector<24xf32> to vector<24x1xf32>
    %66 = tpu.reciprocal %65 {approx = true} : vector<24x1xf32> -> vector<24x1xf32>
    %67 = vector.broadcast %66 : vector<24x1xf32> to vector<24x5xf32>
    %68 = arith.mulf %63, %67 : vector<24x5xf32>
    %69 = arith.truncf %68 : vector<24x5xf32> to vector<24x5xbf16>
    %cst_40 = arith.constant dense<0.000000e+00> : vector<24x8xf32>
    %70 = tpu.matmul %69, %55, %cst_40 {dimension_numbers = #tpu.dot_dimension_numbers<[1], [0], [0], [1], [0, 0, 1, 1], [], []>} : vector<24x5xbf16>, vector<5x8xbf16>, vector<24x8xf32> -> vector<24x8xf32>
    %71 = arith.truncf %70 : vector<24x8xf32> to vector<24x8xbf16>
    %c0_41 = arith.constant 0 : index
    %c0_42 = arith.constant 0 : index
    %c16_43 = arith.constant 16 : index
    %72 = vector.load %arg4[%c0_41, %c0_42, %c16_43] : memref<1x24x32xbf16, #tpu.memory_space<vmem>>, vector<1x24x8xbf16>
    %73 = vector.shape_cast %72 : vector<1x24x8xbf16> to vector<24x8xbf16>
    %74 = vector.shape_cast %71 : vector<24x8xbf16> to vector<1x24x8xbf16>
    tpu.vector_store %arg4[%c0_41, %c0_42, %c16_43], %74 {strides = array<i32>} : memref<1x24x32xbf16, #tpu.memory_space<vmem>>, vector<1x24x8xbf16>,
    %c0_44 = arith.constant 0 : index
    %c0_45 = arith.constant 0 : index
    %c24 = arith.constant 24 : index
    %75 = vector.load %arg2[%c0_44, %c0_45, %c24] : memref<1x24x32xbf16, #tpu.memory_space<vmem>>, vector<1x24x8xbf16>
    %76 = vector.shape_cast %75 : vector<1x24x8xbf16> to vector<24x8xbf16>
    %c0_46 = arith.constant 0 : index
    %c0_47 = arith.constant 0 : index
    %c24_48 = arith.constant 24 : index
    %77 = vector.load %arg3[%c0_46, %c0_47, %c24_48] : memref<1x5x64xbf16, #tpu.memory_space<vmem>>, vector<1x5x8xbf16>
    %78 = vector.shape_cast %77 : vector<1x5x8xbf16> to vector<5x8xbf16>
    %c0_49 = arith.constant 0 : index
    %c0_50 = arith.constant 0 : index
    %c56 = arith.constant 56 : index
    %79 = vector.load %arg3[%c0_49, %c0_50, %c56] : memref<1x5x64xbf16, #tpu.memory_space<vmem>>, vector<1x5x8xbf16>
    %80 = vector.shape_cast %79 : vector<1x5x8xbf16> to vector<5x8xbf16>
    %cst_51 = arith.constant dense<0.000000e+00> : vector<24x5xf32>
    %81 = tpu.matmul %76, %78, %cst_51 {dimension_numbers = #tpu.dot_dimension_numbers<[1], [1], [0], [0], [0, 0, 1, 0], [], []>} : vector<24x8xbf16>, vector<5x8xbf16>, vector<24x5xf32> -> vector<24x5xf32>
    %cst_52 = arith.constant 0.353553385 : f32
    %82 = vector.broadcast %cst_52 : f32 to vector<24x5xf32>
    %83 = arith.mulf %81, %82 : vector<24x5xf32>
    %cst_53 = arith.constant dense<0xFF800000> : vector<24xf32>
    %84 = vector.multi_reduction <maximumf>, %83, %cst_53 [1] : vector<24x5xf32> to vector<24xf32>
    %85 = vector.shape_cast %84 : vector<24xf32> to vector<24x1xf32>
    %86 = vector.broadcast %85 : vector<24x1xf32> to vector<24x5xf32>
    %87 = arith.subf %83, %86 : vector<24x5xf32>
    %88 = math.exp %87 : vector<24x5xf32>
    %cst_54 = arith.constant dense<0.000000e+00> : vector<24xf32>
    %89 = vector.multi_reduction <add>, %88, %cst_54 [1] : vector<24x5xf32> to vector<24xf32>
    %90 = vector.shape_cast %89 : vector<24xf32> to vector<24x1xf32>
    %91 = tpu.reciprocal %90 {approx = true} : vector<24x1xf32> -> vector<24x1xf32>
    %92 = vector.broadcast %91 : vector<24x1xf32> to vector<24x5xf32>
    %93 = arith.mulf %88, %92 : vector<24x5xf32>
    %94 = arith.truncf %93 : vector<24x5xf32> to vector<24x5xbf16>
    %cst_55 = arith.constant dense<0.000000e+00> : vector<24x8xf32>
    %95 = tpu.matmul %94, %80, %cst_55 {dimension_numbers = #tpu.dot_dimension_numbers<[1], [0], [0], [1], [0, 0, 1, 1], [], []>} : vector<24x5xbf16>, vector<5x8xbf16>, vector<24x8xf32> -> vector<24x8xf32>
    %96 = arith.truncf %95 : vector<24x8xf32> to vector<24x8xbf16>
    %c0_56 = arith.constant 0 : index
    %c0_57 = arith.constant 0 : index
    %c24_58 = arith.constant 24 : index
    %97 = vector.load %arg4[%c0_56, %c0_57, %c24_58] : memref<1x24x32xbf16, #tpu.memory_space<vmem>>, vector<1x24x8xbf16>
    %98 = vector.shape_cast %97 : vector<1x24x8xbf16> to vector<24x8xbf16>
    %99 = vector.shape_cast %96 : vector<24x8xbf16> to vector<1x24x8xbf16>
    tpu.vector_store %arg4[%c0_56, %c0_57, %c24_58], %99 {strides = array<i32>} : memref<1x24x32xbf16, #tpu.memory_space<vmem>>, vector<1x24x8xbf16>,
    return
  }
  func.func @transform_0(%arg0: i32, %arg1: i32) -> (i32, i32, i32) {
    %c0_i32 = arith.constant 0 : i32
    %c0_i32_0 = arith.constant 0 : i32
    return %arg0, %arg1, %c0_i32 : i32, i32, i32
  }
  func.func @transform_1(%arg0: i32, %arg1: i32) -> (i32, i32, i32) {
    %c0_i32 = arith.constant 0 : i32
    %c0_i32_0 = arith.constant 0 : i32
    %c0_i32_1 = arith.constant 0 : i32
    return %arg0, %c0_i32, %c0_i32_0 : i32, i32, i32
  }
  func.func @transform_2(%arg0: i32, %arg1: i32) -> (i32, i32, i32) {
    %c0_i32 = arith.constant 0 : i32
    %c0_i32_0 = arith.constant 0 : i32
    return %arg0, %arg1, %c0_i32 : i32, i32, i32
  }
}

module attributes {stable_mosaic.version = 11 : i64} {
  func.func @_silu_inorm_kernel(%arg0: i32, %arg1: memref<1x16x32xbf16, #tpu.memory_space<vmem>>, %arg2: memref<1x16x32xbf16, #tpu.memory_space<vmem>>) attributes {dimension_semantics = [#tpu.dimension_semantics<parallel>], iteration_bounds = array<i64: 2>, scalar_prefetch = 0 : i64, scratch_operands = 0 : i64, tpu.core_type = #tpu.core_type<tc>, window_params = [{transform_indices = @transform_0, window_bounds = array<i64: 1, 16, 32>}, {transform_indices = @transform_1, window_bounds = array<i64: 1, 16, 32>}]} {
    %c0 = arith.constant 0 : index
    %c0_0 = arith.constant 0 : index
    %c0_1 = arith.constant 0 : index
    %0 = vector.load %arg1[%c0, %c0_0, %c0_1] : memref<1x16x32xbf16, #tpu.memory_space<vmem>>, vector<1x16x32xbf16>
    %1 = vector.shape_cast %0 : vector<1x16x32xbf16> to vector<16x32xbf16>
    %2 = arith.extf %1 : vector<16x32xbf16> to vector<16x32xf32>
    %3 = arith.negf %2 : vector<16x32xf32>
    %4 = math.exp %3 : vector<16x32xf32>
    %cst = arith.constant 1.000000e+00 : f32
    %5 = vector.broadcast %cst : f32 to vector<16x32xf32>
    %6 = arith.addf %5, %4 : vector<16x32xf32>
    %7 = arith.divf %5, %6 : vector<16x32xf32>
    %8 = arith.mulf %2, %7 : vector<16x32xf32>
    %cst_2 = arith.constant dense<0.000000e+00> : vector<32xf32>
    %9 = vector.multi_reduction <add>, %8, %cst_2 [0] : vector<16x32xf32> to vector<32xf32>
    %10 = vector.shape_cast %9 : vector<32xf32> to vector<1x32xf32>
    %cst_3 = arith.constant 1.600000e+01 : f32
    %11 = vector.broadcast %cst_3 : f32 to vector<1x32xf32>
    %12 = arith.divf %10, %11 : vector<1x32xf32>
    %13 = vector.broadcast %12 : vector<1x32xf32> to vector<16x32xf32>
    %14 = arith.subf %8, %13 : vector<16x32xf32>
    %15 = arith.mulf %14, %14 : vector<16x32xf32>
    %cst_4 = arith.constant dense<0.000000e+00> : vector<32xf32>
    %16 = vector.multi_reduction <add>, %15, %cst_4 [0] : vector<16x32xf32> to vector<32xf32>
    %17 = vector.shape_cast %16 : vector<32xf32> to vector<1x32xf32>
    %cst_5 = arith.constant 1.600000e+01 : f32
    %18 = vector.broadcast %cst_5 : f32 to vector<1x32xf32>
    %19 = arith.divf %17, %18 : vector<1x32xf32>
    %20 = vector.broadcast %12 : vector<1x32xf32> to vector<16x32xf32>
    %21 = arith.subf %8, %20 : vector<16x32xf32>
    %cst_6 = arith.constant 9.99999974E-6 : f32
    %22 = vector.broadcast %cst_6 : f32 to vector<1x32xf32>
    %23 = arith.addf %19, %22 : vector<1x32xf32>
    %24 = math.rsqrt %23 : vector<1x32xf32>
    %25 = vector.broadcast %24 : vector<1x32xf32> to vector<16x32xf32>
    %26 = arith.mulf %21, %25 : vector<16x32xf32>
    %27 = arith.truncf %26 : vector<16x32xf32> to vector<16x32xbf16>
    %c0_7 = arith.constant 0 : index
    %c0_8 = arith.constant 0 : index
    %c0_9 = arith.constant 0 : index
    %28 = vector.load %arg2[%c0_7, %c0_8, %c0_9] : memref<1x16x32xbf16, #tpu.memory_space<vmem>>, vector<1x16x32xbf16>
    %29 = vector.shape_cast %28 : vector<1x16x32xbf16> to vector<16x32xbf16>
    %30 = vector.shape_cast %27 : vector<16x32xbf16> to vector<1x16x32xbf16>
    tpu.vector_store %arg2[%c0_7, %c0_8, %c0_9], %30 {strides = array<i32>} : memref<1x16x32xbf16, #tpu.memory_space<vmem>>, vector<1x16x32xbf16>,
    return
  }
  func.func @transform_0(%arg0: i32) -> (i32, i32, i32) {
    %c0_i32 = arith.constant 0 : i32
    %c0_i32_0 = arith.constant 0 : i32
    %c0_i32_1 = arith.constant 0 : i32
    return %arg0, %c0_i32, %c0_i32_0 : i32, i32, i32
  }
  func.func @transform_1(%arg0: i32) -> (i32, i32, i32) {
    %c0_i32 = arith.constant 0 : i32
    %c0_i32_0 = arith.constant 0 : i32
    %c0_i32_1 = arith.constant 0 : i32
    return %arg0, %c0_i32, %c0_i32_0 : i32, i32, i32
  }
}

module attributes {stable_mosaic.version = 11 : i64} {
  func.func @_conv_tap_kernel(%arg0: i32, %arg1: i32, %arg2: i32, %arg3: memref<1x1x6x32xbf16, #tpu.memory_space<vmem>>, %arg4: memref<1x3x32x128xbf16, #tpu.memory_space<vmem>>, %arg5: memref<1x1x4x128xbf16, #tpu.memory_space<vmem>>, %arg6: memref<4x128xf32, #tpu.memory_space<vmem>>) attributes {dimension_semantics = [#tpu.dimension_semantics<parallel>, #tpu.dimension_semantics<parallel>, #tpu.dimension_semantics<arbitrary>], iteration_bounds = array<i64: 2, 4, 3>, scalar_prefetch = 0 : i64, scratch_operands = 1 : i64, tpu.core_type = #tpu.core_type<tc>, window_params = [{transform_indices = @transform_0, window_bounds = array<i64: 1, 1, 6, 32>}, {transform_indices = @transform_1, window_bounds = array<i64: 1, 3, 32, 128>}, {transform_indices = @transform_2, window_bounds = array<i64: 1, 1, 4, 128>}]} {
    %c0 = arith.constant 0 : index
    %c0_0 = arith.constant 0 : index
    %c0_1 = arith.constant 0 : index
    %c0_2 = arith.constant 0 : index
    %0 = vector.load %arg3[%c0, %c0_0, %c0_1, %c0_2] : memref<1x1x6x32xbf16, #tpu.memory_space<vmem>>, vector<1x1x4x32xbf16>
    %1 = vector.shape_cast %0 : vector<1x1x4x32xbf16> to vector<4x32xbf16>
    %c0_3 = arith.constant 0 : index
    %c0_4 = arith.constant 0 : index
    %c0_5 = arith.constant 0 : index
    %c0_6 = arith.constant 0 : index
    %2 = vector.load %arg4[%c0_3, %c0_4, %c0_5, %c0_6] : memref<1x3x32x128xbf16, #tpu.memory_space<vmem>>, vector<1x1x32x128xbf16>
    %3 = vector.shape_cast %2 : vector<1x1x32x128xbf16> to vector<32x128xbf16>
    %cst = arith.constant dense<0.000000e+00> : vector<4x128xf32>
    %4 = tpu.matmul %1, %3, %cst {dimension_numbers = #tpu.dot_dimension_numbers<[1], [0], [0], [1], [0, 0, 1, 1], [], []>} : vector<4x32xbf16>, vector<32x128xbf16>, vector<4x128xf32> -> vector<4x128xf32>
    %c0_7 = arith.constant 0 : index
    %c0_8 = arith.constant 0 : index
    %c1 = arith.constant 1 : index
    %c0_9 = arith.constant 0 : index
    %5 = vector.load %arg3[%c0_7, %c0_8, %c1, %c0_9] : memref<1x1x6x32xbf16, #tpu.memory_space<vmem>>, vector<1x1x4x32xbf16>
    %6 = vector.shape_cast %5 : vector<1x1x4x32xbf16> to vector<4x32xbf16>
    %c0_10 = arith.constant 0 : index
    %c1_11 = arith.constant 1 : index
    %c0_12 = arith.constant 0 : index
    %c0_13 = arith.constant 0 : index
    %7 = vector.load %arg4[%c0_10, %c1_11, %c0_12, %c0_13] : memref<1x3x32x128xbf16, #tpu.memory_space<vmem>>, vector<1x1x32x128xbf16>
    %8 = vector.shape_cast %7 : vector<1x1x32x128xbf16> to vector<32x128xbf16>
    %cst_14 = arith.constant dense<0.000000e+00> : vector<4x128xf32>
    %9 = tpu.matmul %6, %8, %cst_14 {dimension_numbers = #tpu.dot_dimension_numbers<[1], [0], [0], [1], [0, 0, 1, 1], [], []>} : vector<4x32xbf16>, vector<32x128xbf16>, vector<4x128xf32> -> vector<4x128xf32>
    %10 = arith.addf %4, %9 : vector<4x128xf32>
    %c0_15 = arith.constant 0 : index
    %c0_16 = arith.constant 0 : index
    %c2 = arith.constant 2 : index
    %c0_17 = arith.constant 0 : index
    %11 = vector.load %arg3[%c0_15, %c0_16, %c2, %c0_17] : memref<1x1x6x32xbf16, #tpu.memory_space<vmem>>, vector<1x1x4x32xbf16>
    %12 = vector.shape_cast %11 : vector<1x1x4x32xbf16> to vector<4x32xbf16>
    %c0_18 = arith.constant 0 : index
    %c2_19 = arith.constant 2 : index
    %c0_20 = arith.constant 0 : index
    %c0_21 = arith.constant 0 : index
    %13 = vector.load %arg4[%c0_18, %c2_19, %c0_20, %c0_21] : memref<1x3x32x128xbf16, #tpu.memory_space<vmem>>, vector<1x1x32x128xbf16>
    %14 = vector.shape_cast %13 : vector<1x1x32x128xbf16> to vector<32x128xbf16>
    %cst_22 = arith.constant dense<0.000000e+00> : vector<4x128xf32>
    %15 = tpu.matmul %12, %14, %cst_22 {dimension_numbers = #tpu.dot_dimension_numbers<[1], [0], [0], [1], [0, 0, 1, 1], [], []>} : vector<4x32xbf16>, vector<32x128xbf16>, vector<4x128xf32> -> vector<4x128xf32>
    %16 = arith.addf %10, %15 : vector<4x128xf32>
    %c0_i32 = arith.constant 0 : i32
    %17 = arith.cmpi eq, %arg2, %c0_i32 : i32
    %18 = arith.extui %17 : i1 to i32
    %c0_i32_23 = arith.constant 0 : i32
    %19 = arith.cmpi ne, %18, %c0_i32_23 : i32
    scf.if %19 {
      %c0_27 = arith.constant 0 : index
      %c0_28 = arith.constant 0 : index
      %26 = vector.load %arg6[%c0_27, %c0_28] : memref<4x128xf32, #tpu.memory_space<vmem>>, vector<4x128xf32>
      tpu.vector_store %arg6[%c0_27, %c0_28], %16 {strides = array<i32>} : memref<4x128xf32, #tpu.memory_space<vmem>>, vector<4x128xf32>,
    } else {
    }
    %c0_i32_24 = arith.constant 0 : i32
    %20 = arith.cmpi sgt, %arg2, %c0_i32_24 : i32
    %21 = arith.extui %20 : i1 to i32
    %c0_i32_25 = arith.constant 0 : i32
    %22 = arith.cmpi ne, %21, %c0_i32_25 : i32
    scf.if %22 {
      %c0_27 = arith.constant 0 : index
      %c0_28 = arith.constant 0 : index
      %26 = vector.load %arg6[%c0_27, %c0_28] : memref<4x128xf32, #tpu.memory_space<vmem>>, vector<4x128xf32>
      %27 = arith.addf %26, %16 : vector<4x128xf32>
      %c0_29 = arith.constant 0 : index
      %c0_30 = arith.constant 0 : index
      %28 = vector.load %arg6[%c0_29, %c0_30] : memref<4x128xf32, #tpu.memory_space<vmem>>, vector<4x128xf32>
      tpu.vector_store %arg6[%c0_29, %c0_30], %27 {strides = array<i32>} : memref<4x128xf32, #tpu.memory_space<vmem>>, vector<4x128xf32>,
    } else {
    }
    %c2_i32 = arith.constant 2 : i32
    %23 = arith.cmpi eq, %arg2, %c2_i32 : i32
    %24 = arith.extui %23 : i1 to i32
    %c0_i32_26 = arith.constant 0 : i32
    %25 = arith.cmpi ne, %24, %c0_i32_26 : i32
    scf.if %25 {
      %c0_27 = arith.constant 0 : index
      %c0_28 = arith.constant 0 : index
      %26 = vector.load %arg6[%c0_27, %c0_28] : memref<4x128xf32, #tpu.memory_space<vmem>>, vector<4x128xf32>
      %27 = arith.truncf %26 : vector<4x128xf32> to vector<4x128xbf16>
      %c0_29 = arith.constant 0 : index
      %c0_30 = arith.constant 0 : index
      %c0_31 = arith.constant 0 : index
      %c0_32 = arith.constant 0 : index
      %28 = vector.load %arg5[%c0_29, %c0_30, %c0_31, %c0_32] : memref<1x1x4x128xbf16, #tpu.memory_space<vmem>>, vector<1x1x4x128xbf16>
      %29 = vector.shape_cast %28 : vector<1x1x4x128xbf16> to vector<4x128xbf16>
      %30 = vector.shape_cast %27 : vector<4x128xbf16> to vector<1x1x4x128xbf16>
      tpu.vector_store %arg5[%c0_29, %c0_30, %c0_31, %c0_32], %30 {strides = array<i32>} : memref<1x1x4x128xbf16, #tpu.memory_space<vmem>>, vector<1x1x4x128xbf16>,
    } else {
    }
    return
  }
  func.func @transform_0(%arg0: i32, %arg1: i32, %arg2: i32) -> (i32, i32, i32, i32) {
    %c1_i32 = arith.constant 1 : i32
    %0 = arith.muli %arg1, %c1_i32 : i32
    %1 = arith.addi %0, %arg2 : i32
    %c0_i32 = arith.constant 0 : i32
    %c0_i32_0 = arith.constant 0 : i32
    %c0_i32_1 = arith.constant 0 : i32
    return %arg0, %1, %c0_i32, %c0_i32_0 : i32, i32, i32, i32
  }
  func.func @transform_1(%arg0: i32, %arg1: i32, %arg2: i32) -> (i32, i32, i32, i32) {
    %c0_i32 = arith.constant 0 : i32
    %c0_i32_0 = arith.constant 0 : i32
    %c0_i32_1 = arith.constant 0 : i32
    %c0_i32_2 = arith.constant 0 : i32
    return %arg2, %c0_i32, %c0_i32_0, %c0_i32_1 : i32, i32, i32, i32
  }
  func.func @transform_2(%arg0: i32, %arg1: i32, %arg2: i32) -> (i32, i32, i32, i32) {
    %c0_i32 = arith.constant 0 : i32
    %c0_i32_0 = arith.constant 0 : i32
    %c0_i32_1 = arith.constant 0 : i32
    return %arg0, %arg1, %c0_i32, %c0_i32_0 : i32, i32, i32, i32
  }
}

module attributes {stable_mosaic.version = 11 : i64} {
  func.func @_conv_tap_kernel(%arg0: i32, %arg1: i32, %arg2: i32, %arg3: memref<1x1x12x32xbf16, #tpu.memory_space<vmem>>, %arg4: memref<1x5x32x4xbf16, #tpu.memory_space<vmem>>, %arg5: memref<1x1x8x4xf32, #tpu.memory_space<vmem>>, %arg6: memref<8x4xf32, #tpu.memory_space<vmem>>) attributes {dimension_semantics = [#tpu.dimension_semantics<parallel>, #tpu.dimension_semantics<parallel>, #tpu.dimension_semantics<arbitrary>], iteration_bounds = array<i64: 2, 8, 5>, scalar_prefetch = 0 : i64, scratch_operands = 1 : i64, tpu.core_type = #tpu.core_type<tc>, window_params = [{transform_indices = @transform_0, window_bounds = array<i64: 1, 1, 12, 32>}, {transform_indices = @transform_1, window_bounds = array<i64: 1, 5, 32, 4>}, {transform_indices = @transform_2, window_bounds = array<i64: 1, 1, 8, 4>}]} {
    %c0 = arith.constant 0 : index
    %c0_0 = arith.constant 0 : index
    %c0_1 = arith.constant 0 : index
    %c0_2 = arith.constant 0 : index
    %0 = vector.load %arg3[%c0, %c0_0, %c0_1, %c0_2] : memref<1x1x12x32xbf16, #tpu.memory_space<vmem>>, vector<1x1x8x32xbf16>
    %1 = vector.shape_cast %0 : vector<1x1x8x32xbf16> to vector<8x32xbf16>
    %c0_3 = arith.constant 0 : index
    %c0_4 = arith.constant 0 : index
    %c0_5 = arith.constant 0 : index
    %c0_6 = arith.constant 0 : index
    %2 = vector.load %arg4[%c0_3, %c0_4, %c0_5, %c0_6] : memref<1x5x32x4xbf16, #tpu.memory_space<vmem>>, vector<1x1x32x4xbf16>
    %3 = vector.shape_cast %2 : vector<1x1x32x4xbf16> to vector<32x4xbf16>
    %cst = arith.constant dense<0.000000e+00> : vector<8x4xf32>
    %4 = tpu.matmul %1, %3, %cst {dimension_numbers = #tpu.dot_dimension_numbers<[1], [0], [0], [1], [0, 0, 1, 1], [], []>} : vector<8x32xbf16>, vector<32x4xbf16>, vector<8x4xf32> -> vector<8x4xf32>
    %c0_7 = arith.constant 0 : index
    %c0_8 = arith.constant 0 : index
    %c1 = arith.constant 1 : index
    %c0_9 = arith.constant 0 : index
    %5 = vector.load %arg3[%c0_7, %c0_8, %c1, %c0_9] : memref<1x1x12x32xbf16, #tpu.memory_space<vmem>>, vector<1x1x8x32xbf16>
    %6 = vector.shape_cast %5 : vector<1x1x8x32xbf16> to vector<8x32xbf16>
    %c0_10 = arith.constant 0 : index
    %c1_11 = arith.constant 1 : index
    %c0_12 = arith.constant 0 : index
    %c0_13 = arith.constant 0 : index
    %7 = vector.load %arg4[%c0_10, %c1_11, %c0_12, %c0_13] : memref<1x5x32x4xbf16, #tpu.memory_space<vmem>>, vector<1x1x32x4xbf16>
    %8 = vector.shape_cast %7 : vector<1x1x32x4xbf16> to vector<32x4xbf16>
    %cst_14 = arith.constant dense<0.000000e+00> : vector<8x4xf32>
    %9 = tpu.matmul %6, %8, %cst_14 {dimension_numbers = #tpu.dot_dimension_numbers<[1], [0], [0], [1], [0, 0, 1, 1], [], []>} : vector<8x32xbf16>, vector<32x4xbf16>, vector<8x4xf32> -> vector<8x4xf32>
    %10 = arith.addf %4, %9 : vector<8x4xf32>
    %c0_15 = arith.constant 0 : index
    %c0_16 = arith.constant 0 : index
    %c2 = arith.constant 2 : index
    %c0_17 = arith.constant 0 : index
    %11 = vector.load %arg3[%c0_15, %c0_16, %c2, %c0_17] : memref<1x1x12x32xbf16, #tpu.memory_space<vmem>>, vector<1x1x8x32xbf16>
    %12 = vector.shape_cast %11 : vector<1x1x8x32xbf16> to vector<8x32xbf16>
    %c0_18 = arith.constant 0 : index
    %c2_19 = arith.constant 2 : index
    %c0_20 = arith.constant 0 : index
    %c0_21 = arith.constant 0 : index
    %13 = vector.load %arg4[%c0_18, %c2_19, %c0_20, %c0_21] : memref<1x5x32x4xbf16, #tpu.memory_space<vmem>>, vector<1x1x32x4xbf16>
    %14 = vector.shape_cast %13 : vector<1x1x32x4xbf16> to vector<32x4xbf16>
    %cst_22 = arith.constant dense<0.000000e+00> : vector<8x4xf32>
    %15 = tpu.matmul %12, %14, %cst_22 {dimension_numbers = #tpu.dot_dimension_numbers<[1], [0], [0], [1], [0, 0, 1, 1], [], []>} : vector<8x32xbf16>, vector<32x4xbf16>, vector<8x4xf32> -> vector<8x4xf32>
    %16 = arith.addf %10, %15 : vector<8x4xf32>
    %c0_23 = arith.constant 0 : index
    %c0_24 = arith.constant 0 : index
    %c3 = arith.constant 3 : index
    %c0_25 = arith.constant 0 : index
    %17 = vector.load %arg3[%c0_23, %c0_24, %c3, %c0_25] : memref<1x1x12x32xbf16, #tpu.memory_space<vmem>>, vector<1x1x8x32xbf16>
    %18 = vector.shape_cast %17 : vector<1x1x8x32xbf16> to vector<8x32xbf16>
    %c0_26 = arith.constant 0 : index
    %c3_27 = arith.constant 3 : index
    %c0_28 = arith.constant 0 : index
    %c0_29 = arith.constant 0 : index
    %19 = vector.load %arg4[%c0_26, %c3_27, %c0_28, %c0_29] : memref<1x5x32x4xbf16, #tpu.memory_space<vmem>>, vector<1x1x32x4xbf16>
    %20 = vector.shape_cast %19 : vector<1x1x32x4xbf16> to vector<32x4xbf16>
    %cst_30 = arith.constant dense<0.000000e+00> : vector<8x4xf32>
    %21 = tpu.matmul %18, %20, %cst_30 {dimension_numbers = #tpu.dot_dimension_numbers<[1], [0], [0], [1], [0, 0, 1, 1], [], []>} : vector<8x32xbf16>, vector<32x4xbf16>, vector<8x4xf32> -> vector<8x4xf32>
    %22 = arith.addf %16, %21 : vector<8x4xf32>
    %c0_31 = arith.constant 0 : index
    %c0_32 = arith.constant 0 : index
    %c4 = arith.constant 4 : index
    %c0_33 = arith.constant 0 : index
    %23 = vector.load %arg3[%c0_31, %c0_32, %c4, %c0_33] : memref<1x1x12x32xbf16, #tpu.memory_space<vmem>>, vector<1x1x8x32xbf16>
    %24 = vector.shape_cast %23 : vector<1x1x8x32xbf16> to vector<8x32xbf16>
    %c0_34 = arith.constant 0 : index
    %c4_35 = arith.constant 4 : index
    %c0_36 = arith.constant 0 : index
    %c0_37 = arith.constant 0 : index
    %25 = vector.load %arg4[%c0_34, %c4_35, %c0_36, %c0_37] : memref<1x5x32x4xbf16, #tpu.memory_space<vmem>>, vector<1x1x32x4xbf16>
    %26 = vector.shape_cast %25 : vector<1x1x32x4xbf16> to vector<32x4xbf16>
    %cst_38 = arith.constant dense<0.000000e+00> : vector<8x4xf32>
    %27 = tpu.matmul %24, %26, %cst_38 {dimension_numbers = #tpu.dot_dimension_numbers<[1], [0], [0], [1], [0, 0, 1, 1], [], []>} : vector<8x32xbf16>, vector<32x4xbf16>, vector<8x4xf32> -> vector<8x4xf32>
    %28 = arith.addf %22, %27 : vector<8x4xf32>
    %c0_i32 = arith.constant 0 : i32
    %29 = arith.cmpi eq, %arg2, %c0_i32 : i32
    %30 = arith.extui %29 : i1 to i32
    %c0_i32_39 = arith.constant 0 : i32
    %31 = arith.cmpi ne, %30, %c0_i32_39 : i32
    scf.if %31 {
      %c0_43 = arith.constant 0 : index
      %c0_44 = arith.constant 0 : index
      %38 = vector.load %arg6[%c0_43, %c0_44] : memref<8x4xf32, #tpu.memory_space<vmem>>, vector<8x4xf32>
      tpu.vector_store %arg6[%c0_43, %c0_44], %28 {strides = array<i32>} : memref<8x4xf32, #tpu.memory_space<vmem>>, vector<8x4xf32>,
    } else {
    }
    %c0_i32_40 = arith.constant 0 : i32
    %32 = arith.cmpi sgt, %arg2, %c0_i32_40 : i32
    %33 = arith.extui %32 : i1 to i32
    %c0_i32_41 = arith.constant 0 : i32
    %34 = arith.cmpi ne, %33, %c0_i32_41 : i32
    scf.if %34 {
      %c0_43 = arith.constant 0 : index
      %c0_44 = arith.constant 0 : index
      %38 = vector.load %arg6[%c0_43, %c0_44] : memref<8x4xf32, #tpu.memory_space<vmem>>, vector<8x4xf32>
      %39 = arith.addf %38, %28 : vector<8x4xf32>
      %c0_45 = arith.constant 0 : index
      %c0_46 = arith.constant 0 : index
      %40 = vector.load %arg6[%c0_45, %c0_46] : memref<8x4xf32, #tpu.memory_space<vmem>>, vector<8x4xf32>
      tpu.vector_store %arg6[%c0_45, %c0_46], %39 {strides = array<i32>} : memref<8x4xf32, #tpu.memory_space<vmem>>, vector<8x4xf32>,
    } else {
    }
    %c4_i32 = arith.constant 4 : i32
    %35 = arith.cmpi eq, %arg2, %c4_i32 : i32
    %36 = arith.extui %35 : i1 to i32
    %c0_i32_42 = arith.constant 0 : i32
    %37 = arith.cmpi ne, %36, %c0_i32_42 : i32
    scf.if %37 {
      %c0_43 = arith.constant 0 : index
      %c0_44 = arith.constant 0 : index
      %38 = vector.load %arg6[%c0_43, %c0_44] : memref<8x4xf32, #tpu.memory_space<vmem>>, vector<8x4xf32>
      %c0_45 = arith.constant 0 : index
      %c0_46 = arith.constant 0 : index
      %c0_47 = arith.constant 0 : index
      %c0_48 = arith.constant 0 : index
      %39 = vector.load %arg5[%c0_45, %c0_46, %c0_47, %c0_48] : memref<1x1x8x4xf32, #tpu.memory_space<vmem>>, vector<1x1x8x4xf32>
      %40 = vector.shape_cast %39 : vector<1x1x8x4xf32> to vector<8x4xf32>
      %41 = vector.shape_cast %38 : vector<8x4xf32> to vector<1x1x8x4xf32>
      tpu.vector_store %arg5[%c0_45, %c0_46, %c0_47, %c0_48], %41 {strides = array<i32>} : memref<1x1x8x4xf32, #tpu.memory_space<vmem>>, vector<1x1x8x4xf32>,
    } else {
    }
    return
  }
  func.func @transform_0(%arg0: i32, %arg1: i32, %arg2: i32) -> (i32, i32, i32, i32) {
    %c1_i32 = arith.constant 1 : i32
    %0 = arith.muli %arg1, %c1_i32 : i32
    %1 = arith.addi %0, %arg2 : i32
    %c0_i32 = arith.constant 0 : i32
    %c0_i32_0 = arith.constant 0 : i32
    %c0_i32_1 = arith.constant 0 : i32
    return %arg0, %1, %c0_i32, %c0_i32_0 : i32, i32, i32, i32
  }
  func.func @transform_1(%arg0: i32, %arg1: i32, %arg2: i32) -> (i32, i32, i32, i32) {
    %c0_i32 = arith.constant 0 : i32
    %c0_i32_0 = arith.constant 0 : i32
    %c0_i32_1 = arith.constant 0 : i32
    %c0_i32_2 = arith.constant 0 : i32
    return %arg2, %c0_i32, %c0_i32_0, %c0_i32_1 : i32, i32, i32, i32
  }
  func.func @transform_2(%arg0: i32, %arg1: i32, %arg2: i32) -> (i32, i32, i32, i32) {
    %c0_i32 = arith.constant 0 : i32
    %c0_i32_0 = arith.constant 0 : i32
    %c0_i32_1 = arith.constant 0 : i32
    return %arg0, %arg1, %c0_i32, %c0_i32_0 : i32, i32, i32, i32
  }
}

</mosaic_0001>

<llo_original>
// kernel: _lambda_.35
$region0: #{_lambda_.35}
  #allocation0 [shape = 'u32[]', space=smem, size = 0x4, offset = 0x4, fixed_abs, tag = 'smem constant byte address 0x4 - core index']
  #allocation1 [shape = 'u32[144,128]{1,0:T(1,128)}', space=vmem, size = 0x12000, scoped, tag = 'internal scratch']
  %s0 = inlined_call_operand.vmem [shape: f32[128,4], index: 0, kind: input, shape index: {}]
  %s1 = inlined_call_operand.vmem [shape: f32[1,4], index: 1, kind: input, shape index: {}]
  %s2 = inlined_call_operand.vmem [shape: f32[1,4], index: 2, kind: input, shape index: {}]
  %s3 = inlined_call_operand.vmem [shape: bf16[128,4], index: 3, kind: output, shape index: {}]
  %s4 = sld [smem:[#allocation0]]
  $region22: #{_lambda_.35} parent=0
    _
  %s6 = ssub.s32 1, %s4
  %s7 = scalar_select 0, %s6, %s4
  // Predicated region
  $region2: #{_lambda_.35} parent=0 // pred_check
    _
  $region3: #{_lambda_.35} parent=0 // pred_check_branch
    %9 = sbr.rel (0) target = $region5
  $region4: #{_lambda_.35} parent=0 // pred_region
    _
  $region5: #{_lambda_.35} parent=0 // pred_fallthru
    _
  // Predicated region
  $region6: #{_lambda_.35} parent=0 // pred_check
    _
  $region7: #{_lambda_.35} parent=0 // pred_check_branch
    %11 = sbr.rel (0) target = $region9
  $region8: #{_lambda_.35} parent=0 // pred_region
    _
  $region9: #{_lambda_.35} parent=0 // pred_fallthru
    _
  // Predicated region
  $region10: #{_lambda_.35} parent=0 // pred_check
    _
  $region11: #{_lambda_.35} parent=0 // pred_check_branch
    %13 = sbr.rel (0) target = $region13
  $region12: #{_lambda_.35} parent=0 // pred_region
    _
  $region13: #{_lambda_.35} parent=0 // pred_fallthru
    _
  %v14 = vld [vmem:[%s0] sm:$0xff]
  %v15 = vld [vmem:[%s0 + $0x8] sm:$0xff]
  %v16 = vld [vmem:[%s0 + $0x10] sm:$0xff]
  %v17 = vld [vmem:[%s0 + $0x18] sm:$0xff]
  %v18 = vld [vmem:[%s0 + $0x20] sm:$0xff]
  %v19 = vld [vmem:[%s0 + $0x28] sm:$0xff]
  %v20 = vld [vmem:[%s0 + $0x30] sm:$0xff]
  %v21 = vld [vmem:[%s0 + $0x38] sm:$0xff]
  %v22 = vld [vmem:[%s0 + $0x40] sm:$0xff]
  %v23 = vld [vmem:[%s0 + $0x48] sm:$0xff]
  %v24 = vld [vmem:[%s0 + $0x50] sm:$0xff]
  %v25 = vld [vmem:[%s0 + $0x58] sm:$0xff]
  %v26 = vld [vmem:[%s0 + $0x60] sm:$0xff]
  %v27 = vld [vmem:[%s0 + $0x68] sm:$0xff]
  %v28 = vld [vmem:[%s0 + $0x70] sm:$0xff]
  %v29 = vld [vmem:[%s0 + $0x78] sm:$0xff]
  %v30 = vld [vmem:[%s1] sm:$0x1]
  %v32 = vlaneseq
  %v33 = vshrl.u32 %v32, 7
  %v34 = vsub.s32 0, %v33
  %v35 = vrot.slane %v30, %v34
  %v37 = vmul.f32 %v14, %v35
  %v38 = vmul.f32 %v15, %v35
  %v39 = vmul.f32 %v16, %v35
  %v40 = vmul.f32 %v17, %v35
  %v41 = vmul.f32 %v18, %v35
  %v42 = vmul.f32 %v19, %v35
  %v43 = vmul.f32 %v20, %v35
  %v44 = vmul.f32 %v21, %v35
  %v45 = vmul.f32 %v22, %v35
  %v46 = vmul.f32 %v23, %v35
  %v47 = vmul.f32 %v24, %v35
  %v48 = vmul.f32 %v25, %v35
  %v49 = vmul.f32 %v26, %v35
  %v50 = vmul.f32 %v27, %v35
  %v51 = vmul.f32 %v28, %v35
  %v52 = vmul.f32 %v29, %v35
  %v53 = vld [vmem:[%s2] sm:$0x1]
  %v55 = vlaneseq
  %v56 = vshrl.u32 %v55, 7
  %v57 = vsub.s32 0, %v56
  %v58 = vrot.slane %v53, %v57
  %v60 = vadd.f32 %v37, %v58
  %v61 = vadd.f32 %v38, %v58
  %v62 = vadd.f32 %v39, %v58
  %v63 = vadd.f32 %v40, %v58
  %v64 = vadd.f32 %v41, %v58
  %v65 = vadd.f32 %v42, %v58
  %v66 = vadd.f32 %v43, %v58
  %v67 = vadd.f32 %v44, %v58
  %v68 = vadd.f32 %v45, %v58
  %v69 = vadd.f32 %v46, %v58
  %v70 = vadd.f32 %v47, %v58
  %v71 = vadd.f32 %v48, %v58
  %v72 = vadd.f32 %v49, %v58
  %v73 = vadd.f32 %v50, %v58
  %v74 = vadd.f32 %v51, %v58
  %v75 = vadd.f32 %v52, %v58
  %v76 = vpack.c.bf16 %v61, %v60
  %v77 = vpack.c.bf16 %v63, %v62
  %v78 = vpack.c.bf16 %v65, %v64
  %v79 = vpack.c.bf16 %v67, %v66
  %v80 = vpack.c.bf16 %v69, %v68
  %v81 = vpack.c.bf16 %v71, %v70
  %v82 = vpack.c.bf16 %v73, %v72
  %v83 = vpack.c.bf16 %v75, %v74
  %v92 = vunpack.c.l.b16 %v76
  %v93 = vunpack.c.h.b16 %v76
  %v94 = vunpack.c.l.b16 %v77
  %v95 = vunpack.c.h.b16 %v77
  %v96 = vunpack.c.l.b16 %v78
  %v97 = vunpack.c.h.b16 %v78
  %v98 = vunpack.c.l.b16 %v79
  %v99 = vunpack.c.h.b16 %v79
  %v100 = vunpack.c.l.b16 %v80
  %v101 = vunpack.c.h.b16 %v80
  %v102 = vunpack.c.l.b16 %v81
  %v103 = vunpack.c.h.b16 %v81
  %v104 = vunpack.c.l.b16 %v82
  %v105 = vunpack.c.h.b16 %v82
  %v106 = vunpack.c.l.b16 %v83
  %v107 = vunpack.c.h.b16 %v83
  %v108 = vpack.c.b16 %v92, %v92
  %v109 = vpack.c.b16 %v93, %v93
  %v110 = vpack.c.b16 %v94, %v94
  %v111 = vpack.c.b16 %v95, %v95
  %v112 = vpack.c.b16 %v96, %v96
  %v113 = vpack.c.b16 %v97, %v97
  %v114 = vpack.c.b16 %v98, %v98
  %v115 = vpack.c.b16 %v99, %v99
  %v116 = vpack.c.b16 %v100, %v100
  %v117 = vpack.c.b16 %v101, %v101
  %v118 = vpack.c.b16 %v102, %v102
  %v119 = vpack.c.b16 %v103, %v103
  %v120 = vpack.c.b16 %v104, %v104
  %v121 = vpack.c.b16 %v105, %v105
  %v122 = vpack.c.b16 %v106, %v106
  %v123 = vpack.c.b16 %v107, %v107
  %vm140 = vcmask 27648
  %141 = vst.msk [vmem:[%s3] sm:$0xf] %vm140, %v108
  %142 = vst.msk [vmem:[%s3 + $0x4] sm:$0xf] %vm140, %v109
  %143 = vst.msk [vmem:[%s3 + $0x8] sm:$0xf] %vm140, %v110
  %144 = vst.msk [vmem:[%s3 + $0xc] sm:$0xf] %vm140, %v111
  %145 = vst.msk [vmem:[%s3 + $0x10] sm:$0xf] %vm140, %v112
  %146 = vst.msk [vmem:[%s3 + $0x14] sm:$0xf] %vm140, %v113
  %147 = vst.msk [vmem:[%s3 + $0x18] sm:$0xf] %vm140, %v114
  %148 = vst.msk [vmem:[%s3 + $0x1c] sm:$0xf] %vm140, %v115
  %149 = vst.msk [vmem:[%s3 + $0x20] sm:$0xf] %vm140, %v116
  %150 = vst.msk [vmem:[%s3 + $0x24] sm:$0xf] %vm140, %v117
  %151 = vst.msk [vmem:[%s3 + $0x28] sm:$0xf] %vm140, %v118
  %152 = vst.msk [vmem:[%s3 + $0x2c] sm:$0xf] %vm140, %v119
  %153 = vst.msk [vmem:[%s3 + $0x30] sm:$0xf] %vm140, %v120
  %154 = vst.msk [vmem:[%s3 + $0x34] sm:$0xf] %vm140, %v121
  %155 = vst.msk [vmem:[%s3 + $0x38] sm:$0xf] %vm140, %v122
  %156 = vst.msk [vmem:[%s3 + $0x3c] sm:$0xf] %vm140, %v123
  // Predicated region
  $region14: #{_lambda_.35} parent=0 // pred_check
    _
  $region15: #{_lambda_.35} parent=0 // pred_check_branch
    %158 = sbr.rel (0) target = $region17
  $region16: #{_lambda_.35} parent=0 // pred_region
    _
  $region17: #{_lambda_.35} parent=0 // pred_fallthru
    _
  // Predicated region
  $region18: #{_lambda_.35} parent=0 // pred_check
    _
  $region19: #{_lambda_.35} parent=0 // pred_check_branch
    %160 = sbr.rel (0) target = $region21
  $region20: #{_lambda_.35} parent=0 // pred_region
    _
  $region21: #{_lambda_.35} parent=0 // pred_fallthru
    _

// kernel: _lambda_.36
$region0: #{_lambda_.36}
  #allocation0 [shape = 'u32[]', space=smem, size = 0x4, offset = 0x4, fixed_abs, tag = 'smem constant byte address 0x4 - core index']
  #allocation1 [shape = 'u32[144,128]{1,0:T(1,128)}', space=vmem, size = 0x12000, scoped, tag = 'internal scratch']
  #allocation2 [shape = 'f32[4,32]{1,0:T(4,128)}', space=vmem, size = 0x800, scoped, tag = 'scratch operand']
  %s0 = inlined_call_operand.vmem [shape: bf16[2,20,5,4], index: 0, kind: input, shape index: {}]
  %s1 = inlined_call_operand.vmem [shape: bf16[4,4,4,32], index: 1, kind: input, shape index: {}]
  %s2 = inlined_call_operand.vmem [shape: bf16[2,4,4,32], index: 2, kind: output, shape index: {}]
  %s3 = sld [smem:[#allocation0]]
  $region53: #{_lambda_.36} parent=0
    _
  %s5 = ssub.s32 1, %s3
  %s6 = scalar_select 0, %s5, %s3
  loop: start=0, step=1, limit=34
  $region2: #{_lambda_.36} parent=0 // loop_pre_header
    _
  $region3: #{_lambda_.36} parent=0 // loop_header
    %s8 = sphi 0, %s12
    %p9 = scmp.ge.s32.totalorder %s8, 34
    %s15 = sphi 0, %s34
    %s16 = sphi 0, %s30
    %s17 = sphi 0, %s26
    %s18 = sphi 0, %s15
    %s19 = sphi 0, %s16
    %s20 = sphi 0, %s17
    %s21 = sphi 0, %s18
    %s22 = sphi 0, %s19
    %s23 = sphi 0, %s20
    %s43 = sphi 0, %s45
    %s46 = sphi 0, %s43
    %s47 = sphi 0, %s46
    %s63 = sphi 0, %s47
    %s69 = sphi 0, %s71
    %s72 = sphi 0, %s69
    %s73 = sphi 0, %s72
    %s89 = sphi 0, %s73
    %s97 = sphi 0, %s99
    %s100 = sphi 0, %s97
    %s101 = sphi 0, %s100
    %s117 = sphi 0, %s101
  $region4: #{_lambda_.36} parent=0 // loop_header_branch
    %11 = sbr.rel (%p9) target = $region8
  $region5: #{_lambda_.36} parent=0 // loop_body
    %s13 = ssub.s32 %s8, 1
    %s14 = ssub.s32 %s8, 2
    %s24 = sadd.s32 1, %s17
    %p25 = scmp.ge.s32.totalorder %s24, 4
    %s26 = scalar_select %p25, 0, %s24
    %s27 = sadd.s32 1, %s16
    %s28 = scalar_select %p25, %s27, %s16
    %p29 = scmp.ge.s32.totalorder %s28, 4
    %s30 = scalar_select %p29, 0, %s28
    %s31 = sadd.s32 1, %s15
    %s32 = scalar_select %p29, %s31, %s15
    %p33 = scmp.ge.s32.totalorder %s32, 2
    %s34 = scalar_select %p33, 0, %s32
    %s35 = smul.u32 %s16, 2
    %s36 = sadd.s32 %s35, %s17
    %s37 = smul.u32 %s30, 2
    %s38 = sadd.s32 %s37, %s26
    %s39 = ssub.s32 %s15, %s34
    %s40 = ssub.s32 %s36, %s38
    %s41 = sor.u32 %s39, %s40
    %p42 = scmp.eq.s32.totalorder %s41, 0
    %s44 = sadd.s32 %s43, 1
    %s45 = scalar_select %p42, %s43, %s44
    %p48 = pneg %p42
    %p49 = scmp.eq.s32.totalorder %s8, 31
    %p50 = por %p48, %p49
    %p51 = scmp.ne.s32.totalorder %s43, %s46
    %p52 = scmp.eq.s32.totalorder %s8, 0
    %p53 = por %p51, %p52
    %p54 = scmp.ne.s32.totalorder %s43, %s46
    %p55 = scmp.eq.s32.totalorder %s13, 31
    %p56 = por %p54, %p55
    %p57 = scmp.ne.s32.totalorder %s46, %s47
    %p58 = scmp.eq.s32.totalorder %s13, 0
    %p59 = por %p57, %p58
    %p60 = scmp.ne.s32.totalorder %s46, %s47
    %p61 = scmp.eq.s32.totalorder %s14, 31
    %p62 = por %p60, %p61
    %p64 = scmp.ne.s32.totalorder %s47, %s63
    %p65 = scmp.eq.s32.totalorder %s14, 0
    %p66 = por %p64, %p65
    %s67 = ssub.s32 %s17, %s26
    %p68 = scmp.eq.s32.totalorder %s67, 0
    %s70 = sadd.s32 %s69, 1
    %s71 = scalar_select %p68, %s69, %s70
    %p74 = pneg %p68
    %p75 = scmp.eq.s32.totalorder %s8, 31
    %p76 = por %p74, %p75
    %p77 = scmp.ne.s32.totalorder %s69, %s72
    %p78 = scmp.eq.s32.totalorder %s8, 0
    %p79 = por %p77, %p78
    %p80 = scmp.ne.s32.totalorder %s69, %s72
    %p81 = scmp.eq.s32.totalorder %s13, 31
    %p82 = por %p80, %p81
    %p83 = scmp.ne.s32.totalorder %s72, %s73
    %p84 = scmp.eq.s32.totalorder %s13, 0
    %p85 = por %p83, %p84
    %p86 = scmp.ne.s32.totalorder %s72, %s73
    %p87 = scmp.eq.s32.totalorder %s14, 31
    %p88 = por %p86, %p87
    %p90 = scmp.ne.s32.totalorder %s73, %s89
    %p91 = scmp.eq.s32.totalorder %s14, 0
    %p92 = por %p90, %p91
    %s93 = ssub.s32 %s15, %s34
    %s94 = ssub.s32 %s16, %s30
    %s95 = sor.u32 %s93, %s94
    %p96 = scmp.eq.s32.totalorder %s95, 0
    %s98 = sadd.s32 %s97, 1
    %s99 = scalar_select %p96, %s97, %s98
    %p102 = pneg %p96
    %p103 = scmp.eq.s32.totalorder %s8, 31
    %p104 = por %p102, %p103
    %p105 = scmp.ne.s32.totalorder %s97, %s100
    %p106 = scmp.eq.s32.totalorder %s8, 0
    %p107 = por %p105, %p106
    %p108 = scmp.ne.s32.totalorder %s97, %s100
    %p109 = scmp.eq.s32.totalorder %s13, 31
    %p110 = por %p108, %p109
    %p111 = scmp.ne.s32.totalorder %s100, %s101
    %p112 = scmp.eq.s32.totalorder %s13, 0
    %p113 = por %p111, %p112
    %p114 = scmp.ne.s32.totalorder %s100, %s101
    %p115 = scmp.eq.s32.totalorder %s14, 31
    %p116 = por %p114, %p115
    %p118 = scmp.ne.s32.totalorder %s101, %s117
    %p119 = scmp.eq.s32.totalorder %s14, 0
    %p120 = por %p118, %p119
    %p121 = scmp.le.s32.totalorder 1, %s8
    %p122 = scmp.lt.s32.totalorder %s8, 33
    %p123 = pnand %p121, %p122
    %p124 = pneg %p123
    // Predicated region
    $region9: #{_lambda_.36} parent=5 // pred_check
      _
    $region10: #{_lambda_.36} parent=5 // pred_check_branch
      %126 = sbr.rel (%p123) target = $region12
    $region11: #{_lambda_.36} parent=5 // pred_region
      %s127 = ssub.s32 %s8, 1
    $region12: #{_lambda_.36} parent=5 // pred_fallthru
      _
    %p128 = scmp.lt.s32.totalorder %s8, 32
    // Predicated region
    $region13: #{_lambda_.36} parent=5 // pred_check
      %p129 = pneg %p128
    $region14: #{_lambda_.36} parent=5 // pred_check_branch
      %131 = sbr.rel (%p129) target = $region16
    $region15: #{_lambda_.36} parent=5 // pred_region
      // Predicated region
      $region17: #{_lambda_.36} parent=15 // pred_check
        %p132 = pneg %p53
      $region18: #{_lambda_.36} parent=15 // pred_check_branch
        %134 = sbr.rel (%p132) target = $region20
      $region19: #{_lambda_.36} parent=15 // pred_region
        %s135 = smul.u32 %s16, 2
        %s136 = sadd.s32 %s135, %s17
        %s137 = smul.u32 2, %s136
        %p138 = scmp.lt.s32.totalorder %s15, 1
        %s139 = scalar_select %p138, %s15, 1
        %p140 = scmp.lt.s32.totalorder %s137, 19
        %s141 = scalar_select %p140, %s137, 19
        %s142 = smul.addr %s139, 20
        %s143 = sadd.s32 %s141, %s142
        %s144 = smul.addr %s143, 4
        %s145 = scalar_lea.vmem %s0, %s144
        %s146 = smul.u32 %s16, 2
        %s147 = sadd.s32 %s146, %s17
        %s148 = smul.u32 2, %s147
      $region20: #{_lambda_.36} parent=15 // pred_fallthru
        _
      // Predicated region
      $region21: #{_lambda_.36} parent=15 // pred_check
        %p149 = pneg %p79
      $region22: #{_lambda_.36} parent=15 // pred_check_branch
        %151 = sbr.rel (%p149) target = $region24
      $region23: #{_lambda_.36} parent=15 // pred_region
        %p152 = scmp.lt.s32.totalorder %s17, 3
        %s153 = scalar_select %p152, %s17, 3
        %s154 = smul.addr %s153, 4
        %s155 = smul.addr %s154, 2
        %s156 = scalar_lea.vmem %s1, %s155
      $region24: #{_lambda_.36} parent=15 // pred_fallthru
        _
    $region16: #{_lambda_.36} parent=5 // pred_fallthru
      _
    %p157 = scmp.le.s32.totalorder 1, %s8
    %p158 = scmp.lt.s32.totalorder %s8, 33
    %p159 = pnand %p157, %p158
    %p160 = pneg %p159
    // Predicated region
    $region25: #{_lambda_.36} parent=5 // pred_check
      _
    $region26: #{_lambda_.36} parent=5 // pred_check_branch
      %162 = sbr.rel (%p159) target = $region28
    $region27: #{_lambda_.36} parent=5 // pred_region
      %s163 = ssub.s32 %s8, 1
      %s164 = smul.u32 %s19, 2
      %s165 = sadd.s32 %s164, %s20
      %s166 = smul.u32 2, %s165
      %p167 = scmp.lt.s32.totalorder %s18, 1
      %s168 = scalar_select %p167, %s18, 1
      %p169 = scmp.lt.s32.totalorder %s166, 19
      %s170 = scalar_select %p169, %s166, 19
      %s171 = smul.addr %s168, 20
      %s172 = sadd.s32 %s170, %s171
      %s173 = smul.addr %s172, 4
      %s174 = scalar_lea.vmem %s0, %s173
      %p175 = pneg %p59
      %p176 = pneg %p56
      %p177 = scmp.lt.s32.totalorder %s20, 3
      %s178 = scalar_select %p177, %s20, 3
      %s179 = smul.addr %s178, 4
      %s180 = smul.addr %s179, 2
      %s181 = scalar_lea.vmem %s1, %s180
      %p182 = pneg %p85
      %p183 = pneg %p82
      %p184 = pneg %p113
      %p185 = pneg %p110
      %p186 = scmp.lt.s32.totalorder %s18, 1
      %s187 = scalar_select %p186, %s18, 1
      %p188 = scmp.lt.s32.totalorder %s19, 3
      %s189 = scalar_select %p188, %s19, 3
      %s190 = smul.addr %s187, 4
      %s191 = sadd.s32 %s189, %s190
      %s192 = smul.addr %s191, 2
      %s193 = scalar_lea.vmem %s2, %s192
      %s194 = smul.u32 %s19, 2
      %s195 = sadd.s32 %s194, %s20
      %s196 = smul.u32 2, %s195
      %p197 = scmp.lt.s32.totalorder %s18, 1
      %s198 = scalar_select %p197, %s18, 1
      %p199 = scmp.lt.s32.totalorder %s196, 19
      %s200 = scalar_select %p199, %s196, 19
      %s201 = smul.addr %s198, 20
      %s202 = sadd.s32 %s200, %s201
      %s203 = smul.addr %s202, 4
      %s204 = scalar_lea.vmem %s0, %s203
      %s205 = smul.u32 %s19, 2
      %s206 = sadd.s32 %s205, %s20
      %s207 = smul.u32 2, %s206
      %p208 = scmp.lt.s32.totalorder %s20, 3
      %s209 = scalar_select %p208, %s20, 3
      %s210 = smul.addr %s209, 4
      %s211 = smul.addr %s210, 2
      %s212 = scalar_lea.vmem %s1, %s211
      %p213 = scmp.lt.s32.totalorder %s18, 1
      %s214 = scalar_select %p213, %s18, 1
      %p215 = scmp.lt.s32.totalorder %s19, 3
      %s216 = scalar_select %p215, %s19, 3
      %s217 = smul.addr %s214, 4
      %s218 = sadd.s32 %s216, %s217
      %s219 = smul.addr %s218, 2
      %s220 = scalar_lea.vmem %s2, %s219
      %v222 = vld [vmem:[%s204] sm:$0x3]
      %v223 = vld [vmem:[%s212] sm:$0x3]
      %s224 = scalar_lea.vmem %s204, 4
      %v225 = vld [vmem:[%s224] sm:$0x3]
      %s226 = scalar_lea.vmem %s212, 2
      %v227 = vld [vmem:[%s226] sm:$0x3]
      %vm228 = vcmask 31744
      %v230 = vsel %vm228, %v225, 0
      %vm232 = vcmask 1041408
      %v234 = vsel %vm232, %v227, 0
      %236 = vmatprep.subr.bf16.mxu0 0
      %237 = vmatpush1.bf16.msra.mxu0 0
      %238 = vmatprep.subr.bf16.mxu0 0
      %239 = vmatpush1.bf16.msra.mxu0 0
      %240 = vmatprep.subr.bf16.mxu0 0
      %241 = vmatpush1.bf16.msra.mxu0 0
      %242 = vmatprep.subr.bf16.mxu0 0
      %243 = vmatpush1.bf16.msra.mxu0 0
      %244 = vmatprep.subr.bf16.mxu0 0
      %245 = vmatpush1.bf16.msra.mxu0 0
      %246 = vmatprep.subr.bf16.mxu0 0
      %247 = vmatpush1.bf16.msra.mxu0 0
      %248 = vmatprep.subr.bf16.mxu0 0
      %249 = vmatpush1.bf16.msra.mxu0 0
      %250 = vmatprep.subr.bf16.mxu0 0
      %251 = vmatpush1.bf16.msra.mxu0 %v234
      %252 = vmatprep.subr.bf16.mxu0 0
      %253 = vmatpush2.bf16.msra.mxu0 0
      %254 = vmatprep.subr.bf16.mxu0 0
      %255 = vmatpush2.bf16.msra.mxu0 0
      %256 = vmatprep.subr.bf16.mxu0 0
      %257 = vmatpush2.bf16.msra.mxu0 0
      %258 = vmatprep.subr.bf16.mxu0 0
      %259 = vmatpush2.bf16.msra.mxu0 0
      %260 = vmatprep.subr.bf16.mxu0 0
      %261 = vmatpush2.bf16.msra.mxu0 0
      %262 = vmatprep.subr.bf16.mxu0 0
      %263 = vmatpush2.bf16.msra.mxu0 0
      %264 = vmatprep.subr.bf16.mxu0 0
      %265 = vmatpush2.bf16.msra.mxu0 0
      %266 = vmatprep.subr.bf16.mxu0 0
      %267 = vmatpush2.bf16.msra.mxu0 0
      %268 = vmatprep.mubr.bf16.mxu0 0
      %269 = vmatmul.mubr.bf16.gmra.mxu0 %v230
      %v270 = vpop.f32.mrf.mxu0
      %v271 = vadd.f32 0.0, %v270
      %v272 = vpop.f32.mrf.mxu0
      %v273 = vpop.f32.mrf.mxu0
      %v274 = vpop.f32.mrf.mxu0
      %275 = vdwg.mxu0
      %v277 = vsel %vm228, %v222, 0
      %v280 = vsel %vm232, %v223, 0
      %282 = vmatprep.subr.bf16.mxu0 0
      %283 = vmatpush1.bf16.msra.mxu0 0
      %284 = vmatprep.subr.bf16.mxu0 0
      %285 = vmatpush1.bf16.msra.mxu0 0
      %286 = vmatprep.subr.bf16.mxu0 0
      %287 = vmatpush1.bf16.msra.mxu0 0
      %288 = vmatprep.subr.bf16.mxu0 0
      %289 = vmatpush1.bf16.msra.mxu0 0
      %290 = vmatprep.subr.bf16.mxu0 0
      %291 = vmatpush1.bf16.msra.mxu0 0
      %292 = vmatprep.subr.bf16.mxu0 0
      %293 = vmatpush1.bf16.msra.mxu0 0
      %294 = vmatprep.subr.bf16.mxu0 0
      %295 = vmatpush1.bf16.msra.mxu0 0
      %296 = vmatprep.subr.bf16.mxu0 0
      %297 = vmatpush1.bf16.msra.mxu0 %v280
      %298 = vmatprep.subr.bf16.mxu0 0
      %299 = vmatpush2.bf16.msra.mxu0 0
      %300 = vmatprep.subr.bf16.mxu0 0
      %301 = vmatpush2.bf16.msra.mxu0 0
      %302 = vmatprep.subr.bf16.mxu0 0
      %303 = vmatpush2.bf16.msra.mxu0 0
      %304 = vmatprep.subr.bf16.mxu0 0
      %305 = vmatpush2.bf16.msra.mxu0 0
      %306 = vmatprep.subr.bf16.mxu0 0
      %307 = vmatpush2.bf16.msra.mxu0 0
      %308 = vmatprep.subr.bf16.mxu0 0
      %309 = vmatpush2.bf16.msra.mxu0 0
      %310 = vmatprep.subr.bf16.mxu0 0
      %311 = vmatpush2.bf16.msra.mxu0 0
      %312 = vmatprep.subr.bf16.mxu0 0
      %313 = vmatpush2.bf16.msra.mxu0 0
      %314 = vmatprep.mubr.bf16.mxu0 0
      %315 = vmatmul.mubr.bf16.gmra.mxu0 %v277
      %v316 = vpop.f32.mrf.mxu0
      %v317 = vadd.f32 %v271, %v316
      %v318 = vpop.f32.mrf.mxu0
      %v319 = vpop.f32.mrf.mxu0
      %v320 = vpop.f32.mrf.mxu0
      %321 = vdwg.mxu0
      %v322 = vld [vmem:[%s204] sm:$0x7]
      %s323 = scalar_lea.vmem %s212, 4
      %v324 = vld [vmem:[%s323] sm:$0x3]
      %v326 = vunpack.c.l.b16 %v322
      %v327 = vpack.c.b16 %v326, %v326
      %v329 = vshrl.u32 %v327, 16
      %v331 = vshll.u32 %v327, 16
      %v333 = vrot.slane %v331, 1
      %v334 = vor.u32 %v329, %v333
      %v336 = vsel %vm228, %v334, 0
      %v339 = vsel %vm232, %v324, 0
      %341 = vmatprep.subr.bf16.mxu0 0
      %342 = vmatpush1.bf16.msra.mxu0 0
      %343 = vmatprep.subr.bf16.mxu0 0
      %344 = vmatpush1.bf16.msra.mxu0 0
      %345 = vmatprep.subr.bf16.mxu0 0
      %346 = vmatpush1.bf16.msra.mxu0 0
      %347 = vmatprep.subr.bf16.mxu0 0
      %348 = vmatpush1.bf16.msra.mxu0 0
      %349 = vmatprep.subr.bf16.mxu0 0
      %350 = vmatpush1.bf16.msra.mxu0 0
      %351 = vmatprep.subr.bf16.mxu0 0
      %352 = vmatpush1.bf16.msra.mxu0 0
      %353 = vmatprep.subr.bf16.mxu0 0
      %354 = vmatpush1.bf16.msra.mxu0 0
      %355 = vmatprep.subr.bf16.mxu0 0
      %356 = vmatpush1.bf16.msra.mxu0 %v339
      %357 = vmatprep.subr.bf16.mxu0 0
      %358 = vmatpush2.bf16.msra.mxu0 0
      %359 = vmatprep.subr.bf16.mxu0 0
      %360 = vmatpush2.bf16.msra.mxu0 0
      %361 = vmatprep.subr.bf16.mxu0 0
      %362 = vmatpush2.bf16.msra.mxu0 0
      %363 = vmatprep.subr.bf16.mxu0 0
      %364 = vmatpush2.bf16.msra.mxu0 0
      %365 = vmatprep.subr.bf16.mxu0 0
      %366 = vmatpush2.bf16.msra.mxu0 0
      %367 = vmatprep.subr.bf16.mxu0 0
      %368 = vmatpush2.bf16.msra.mxu0 0
      %369 = vmatprep.subr.bf16.mxu0 0
      %370 = vmatpush2.bf16.msra.mxu0 0
      %371 = vmatprep.subr.bf16.mxu0 0
      %372 = vmatpush2.bf16.msra.mxu0 0
      %373 = vmatprep.mubr.bf16.mxu0 0
      %374 = vmatmul.mubr.bf16.gmra.mxu0 %v336
      %v375 = vpop.f32.mrf.mxu0
      %v376 = vadd.f32 0.0, %v375
      %v377 = vpop.f32.mrf.mxu0
      %v378 = vpop.f32.mrf.mxu0
      %v379 = vpop.f32.mrf.mxu0
      %380 = vdwg.mxu0
      %v381 = vadd.f32 %v317, %v376
      %v382 = vld [vmem:[%s224] sm:$0x7]
      %s383 = scalar_lea.vmem %s212, 6
      %v384 = vld [vmem:[%s383] sm:$0x3]
      %v386 = vunpack.c.l.b16 %v382
      %v387 = vpack.c.b16 %v386, %v386
      %v389 = vshrl.u32 %v387, 16
      %v391 = vshll.u32 %v387, 16
      %v393 = vrot.slane %v391, 1
      %v394 = vor.u32 %v389, %v393
      %v396 = vsel %vm228, %v394, 0
      %v399 = vsel %vm232, %v384, 0
      %401 = vmatprep.subr.bf16.mxu0 0
      %402 = vmatpush1.bf16.msra.mxu0 0
      %403 = vmatprep.subr.bf16.mxu0 0
      %404 = vmatpush1.bf16.msra.mxu0 0
      %405 = vmatprep.subr.bf16.mxu0 0
      %406 = vmatpush1.bf16.msra.mxu0 0
      %407 = vmatprep.subr.bf16.mxu0 0
      %408 = vmatpush1.bf16.msra.mxu0 0
      %409 = vmatprep.subr.bf16.mxu0 0
      %410 = vmatpush1.bf16.msra.mxu0 0
      %411 = vmatprep.subr.bf16.mxu0 0
      %412 = vmatpush1.bf16.msra.mxu0 0
      %413 = vmatprep.subr.bf16.mxu0 0
      %414 = vmatpush1.bf16.msra.mxu0 0
      %415 = vmatprep.subr.bf16.mxu0 0
      %416 = vmatpush1.bf16.msra.mxu0 %v399
      %417 = vmatprep.subr.bf16.mxu0 0
      %418 = vmatpush2.bf16.msra.mxu0 0
      %419 = vmatprep.subr.bf16.mxu0 0
      %420 = vmatpush2.bf16.msra.mxu0 0
      %421 = vmatprep.subr.bf16.mxu0 0
      %422 = vmatpush2.bf16.msra.mxu0 0
      %423 = vmatprep.subr.bf16.mxu0 0
      %424 = vmatpush2.bf16.msra.mxu0 0
      %425 = vmatprep.subr.bf16.mxu0 0
      %426 = vmatpush2.bf16.msra.mxu0 0
      %427 = vmatprep.subr.bf16.mxu0 0
      %428 = vmatpush2.bf16.msra.mxu0 0
      %429 = vmatprep.subr.bf16.mxu0 0
      %430 = vmatpush2.bf16.msra.mxu0 0
      %431 = vmatprep.subr.bf16.mxu0 0
      %432 = vmatpush2.bf16.msra.mxu0 0
      %433 = vmatprep.mubr.bf16.mxu0 0
      %434 = vmatmul.mubr.bf16.gmra.mxu0 %v396
      %v435 = vpop.f32.mrf.mxu0
      %v436 = vadd.f32 0.0, %v435
      %v437 = vpop.f32.mrf.mxu0
      %v438 = vpop.f32.mrf.mxu0
      %v439 = vpop.f32.mrf.mxu0
      %440 = vdwg.mxu0
      %v441 = vadd.f32 %v381, %v436
      %p442 = scmp.eq.s32.totalorder %s20, 0
      // Predicated region
      $region29: #{_lambda_.36} parent=27 // pred_check
        %p443 = pneg %p442
      $region30: #{_lambda_.36} parent=27 // pred_check_branch
        %445 = sbr.rel (%p443) target = $region32
      $region31: #{_lambda_.36} parent=27 // pred_region
        %vm446 = vcmask 257024
        %447 = vst.msk [vmem:[#allocation2] sm:$0xf] %vm446, %v441
      $region32: #{_lambda_.36} parent=27 // pred_fallthru
        _
      %p448 = scmp.gt.s32.totalorder %s20, 0
      // Predicated region
      $region33: #{_lambda_.36} parent=27 // pred_check
        %p449 = pneg %p448
      $region34: #{_lambda_.36} parent=27 // pred_check_branch
        %451 = sbr.rel (%p449) target = $region36
      $region35: #{_lambda_.36} parent=27 // pred_region
        %v452 = vld [vmem:[#allocation2] sm:$0xf]
        %v453 = vadd.f32 %v452, %v441
        %vm454 = vcmask 257024
        %455 = vst.msk [vmem:[#allocation2] sm:$0xf] %vm454, %v453
      $region36: #{_lambda_.36} parent=27 // pred_fallthru
        _
      %p456 = scmp.eq.s32.totalorder %s20, 3
      // Predicated region
      $region37: #{_lambda_.36} parent=27 // pred_check
        %p457 = pneg %p456
      $region38: #{_lambda_.36} parent=27 // pred_check_branch
        %459 = sbr.rel (%p457) target = $region40
      $region39: #{_lambda_.36} parent=27 // pred_region
        %v460 = vld [vmem:[#allocation2] sm:$0xf]
        %v461 = vpack.c.bf16 %v460, %v460
        %vm462 = vcmask 254976
        %463 = vst.msk [vmem:[%s220] sm:$0x3] %vm462, %v461
      $region40: #{_lambda_.36} parent=27 // pred_fallthru
        _
      %p464 = scmp.lt.s32.totalorder %s18, 1
      %s465 = scalar_select %p464, %s18, 1
      %p466 = scmp.lt.s32.totalorder %s19, 3
      %s467 = scalar_select %p466, %s19, 3
      %s468 = smul.addr %s465, 4
      %s469 = sadd.s32 %s467, %s468
      %s470 = smul.addr %s469, 2
      %s471 = scalar_lea.vmem %s2, %s470
      // Predicated region
      $region41: #{_lambda_.36} parent=27 // pred_check
        %p472 = pneg %p110
      $region42: #{_lambda_.36} parent=27 // pred_check_branch
        %474 = sbr.rel (%p472) target = $region44
      $region43: #{_lambda_.36} parent=27 // pred_region
        _
      $region44: #{_lambda_.36} parent=27 // pred_fallthru
        _
    $region28: #{_lambda_.36} parent=5 // pred_fallthru
      _
    %p475 = scmp.le.s32.totalorder 2, %s8
    // Predicated region
    $region45: #{_lambda_.36} parent=5 // pred_check
      %p476 = pneg %p475
    $region46: #{_lambda_.36} parent=5 // pred_check_branch
      %478 = sbr.rel (%p476) target = $region48
    $region47: #{_lambda_.36} parent=5 // pred_region
      %s479 = ssub.s32 %s8, 2
      // Predicated region
      $region49: #{_lambda_.36} parent=47 // pred_check
        %p480 = pneg %p116
      $region50: #{_lambda_.36} parent=47 // pred_check_branch
        %482 = sbr.rel (%p480) target = $region52
      $region51: #{_lambda_.36} parent=47 // pred_region
        %p483 = scmp.lt.s32.totalorder %s21, 1
        %s484 = scalar_select %p483, %s21, 1
        %p485 = scmp.lt.s32.totalorder %s22, 3
        %s486 = scalar_select %p485, %s22, 3
        %s487 = smul.addr %s484, 4
        %s488 = sadd.s32 %s486, %s487
        %s489 = smul.addr %s488, 2
        %s490 = scalar_lea.vmem %s2, %s489
      $region52: #{_lambda_.36} parent=47 // pred_fallthru
        _
    $region48: #{_lambda_.36} parent=5 // pred_fallthru
      _
  $region6: #{_lambda_.36} parent=0 // loop_footer
    %s12 = sadd.s32 1, %s8
  $region7: #{_lambda_.36} parent=0 // loop_footer_branch
    %7 = sbr.rel target = $region3
  $region8: #{_lambda_.36} parent=0 // loop_exit
    _

// kernel: _lambda_.37
$region0: #{_lambda_.37}
  #allocation0 [shape = 'u32[]', space=smem, size = 0x4, offset = 0x4, fixed_abs, tag = 'smem constant byte address 0x4 - core index']
  #allocation1 [shape = 'u32[144,128]{1,0:T(1,128)}', space=vmem, size = 0x12000, scoped, tag = 'internal scratch']
  %s0 = inlined_call_operand.vmem [shape: bf16[32,32], index: 0, kind: input, shape index: {}]
  %s1 = inlined_call_operand.vmem [shape: f32[1,32], index: 1, kind: input, shape index: {}]
  %s2 = inlined_call_operand.vmem [shape: f32[1,32], index: 2, kind: input, shape index: {}]
  %s3 = inlined_call_operand.vmem [shape: bf16[32,32], index: 3, kind: output, shape index: {}]
  %s4 = sld [smem:[#allocation0]]
  $region22: #{_lambda_.37} parent=0
    _
  %s6 = ssub.s32 1, %s4
  %s7 = scalar_select 0, %s6, %s4
  // Predicated region
  $region2: #{_lambda_.37} parent=0 // pred_check
    _
  $region3: #{_lambda_.37} parent=0 // pred_check_branch
    %9 = sbr.rel (0) target = $region5
  $region4: #{_lambda_.37} parent=0 // pred_region
    _
  $region5: #{_lambda_.37} parent=0 // pred_fallthru
    _
  // Predicated region
  $region6: #{_lambda_.37} parent=0 // pred_check
    _
  $region7: #{_lambda_.37} parent=0 // pred_check_branch
    %11 = sbr.rel (0) target = $region9
  $region8: #{_lambda_.37} parent=0 // pred_region
    _
  $region9: #{_lambda_.37} parent=0 // pred_fallthru
    _
  // Predicated region
  $region10: #{_lambda_.37} parent=0 // pred_check
    _
  $region11: #{_lambda_.37} parent=0 // pred_check_branch
    %13 = sbr.rel (0) target = $region13
  $region12: #{_lambda_.37} parent=0 // pred_region
    _
  $region13: #{_lambda_.37} parent=0 // pred_fallthru
    _
  %v14 = vld [vmem:[%s0] sm:$0xf]
  %v15 = vld [vmem:[%s0 + $0x4] sm:$0xf]
  %v16 = vld [vmem:[%s0 + $0x8] sm:$0xf]
  %v17 = vld [vmem:[%s0 + $0xc] sm:$0xf]
  %v18 = vunpack.c.l.bf16 %v14
  %v19 = vunpack.c.l.bf16 %v15
  %v20 = vunpack.c.l.bf16 %v16
  %v21 = vunpack.c.l.bf16 %v17
  %v22 = vld [vmem:[%s1] sm:$0x1]
  %v24 = vlaneseq
  %v25 = vshrl.u32 %v24, 7
  %v26 = vsub.s32 0, %v25
  %v27 = vrot.slane %v22, %v26
  %v29 = vmul.f32 %v18, %v27
  %v30 = vmul.f32 %v19, %v27
  %v31 = vmul.f32 %v20, %v27
  %v32 = vmul.f32 %v21, %v27
  %v33 = vld [vmem:[%s2] sm:$0x1]
  %v35 = vlaneseq
  %v36 = vshrl.u32 %v35, 7
  %v37 = vsub.s32 0, %v36
  %v38 = vrot.slane %v33, %v37
  %v40 = vadd.f32 %v29, %v38
  %v41 = vadd.f32 %v30, %v38
  %v42 = vadd.f32 %v31, %v38
  %v43 = vadd.f32 %v32, %v38
  %v44 = vpack.c.bf16 %v41, %v40
  %v45 = vpack.c.bf16 %v43, %v42
  %v48 = vunpack.c.l.b16 %v44
  %v49 = vunpack.c.h.b16 %v44
  %v50 = vunpack.c.l.b16 %v45
  %v51 = vunpack.c.h.b16 %v45
  %v52 = vpack.c.b16 %v48, %v48
  %v53 = vpack.c.b16 %v49, %v49
  %v54 = vpack.c.b16 %v50, %v50
  %v55 = vpack.c.b16 %v51, %v51
  %vm60 = vcmask 257024
  %61 = vst.msk [vmem:[%s3] sm:$0xf] %vm60, %v52
  %62 = vst.msk [vmem:[%s3 + $0x4] sm:$0xf] %vm60, %v53
  %63 = vst.msk [vmem:[%s3 + $0x8] sm:$0xf] %vm60, %v54
  %64 = vst.msk [vmem:[%s3 + $0xc] sm:$0xf] %vm60, %v55
  // Predicated region
  $region14: #{_lambda_.37} parent=0 // pred_check
    _
  $region15: #{_lambda_.37} parent=0 // pred_check_branch
    %66 = sbr.rel (0) target = $region17
  $region16: #{_lambda_.37} parent=0 // pred_region
    _
  $region17: #{_lambda_.37} parent=0 // pred_fallthru
    _
  // Predicated region
  $region18: #{_lambda_.37} parent=0 // pred_check
    _
  $region19: #{_lambda_.37} parent=0 // pred_check_branch
    %68 = sbr.rel (0) target = $region21
  $region20: #{_lambda_.37} parent=0 // pred_region
    _
  $region21: #{_lambda_.37} parent=0 // pred_fallthru
    _

// kernel: _lambda_.38
$region0: #{_lambda_.38}
  #allocation0 [shape = 'u32[]', space=smem, size = 0x4, offset = 0x4, fixed_abs, tag = 'smem constant byte address 0x4 - core index']
  #allocation1 [shape = 'u32[144,128]{1,0:T(1,128)}', space=vmem, size = 0x12000, scoped, tag = 'internal scratch']
  #allocation2 [shape = 'f32[8,128]{1,0:T(8,128)}', space=vmem, size = 0x1000, scoped, tag = 'scratch operand']
  %s0 = inlined_call_operand.vmem [shape: bf16[8,128], index: 0, kind: input, shape index: {}]
  %s1 = inlined_call_operand.vmem [shape: bf16[128,128], index: 1, kind: input, shape index: {}]
  %s2 = inlined_call_operand.vmem [shape: f32[1,128], index: 2, kind: input, shape index: {}]
  %s3 = inlined_call_operand.vmem [shape: bf16[8,128], index: 3, kind: output, shape index: {}]
  %s4 = sld [smem:[#allocation0]]
  $region34: #{_lambda_.38} parent=0
    _
  %s6 = ssub.s32 1, %s4
  %s7 = scalar_select 0, %s6, %s4
  // Predicated region
  $region2: #{_lambda_.38} parent=0 // pred_check
    _
  $region3: #{_lambda_.38} parent=0 // pred_check_branch
    %9 = sbr.rel (0) target = $region5
  $region4: #{_lambda_.38} parent=0 // pred_region
    _
  $region5: #{_lambda_.38} parent=0 // pred_fallthru
    _
  // Predicated region
  $region6: #{_lambda_.38} parent=0 // pred_check
    _
  $region7: #{_lambda_.38} parent=0 // pred_check_branch
    %11 = sbr.rel (0) target = $region9
  $region8: #{_lambda_.38} parent=0 // pred_region
    _
  $region9: #{_lambda_.38} parent=0 // pred_fallthru
    _
  // Predicated region
  $region10: #{_lambda_.38} parent=0 // pred_check
    _
  $region11: #{_lambda_.38} parent=0 // pred_check_branch
    %13 = sbr.rel (0) target = $region13
  $region12: #{_lambda_.38} parent=0 // pred_region
    _
  $region13: #{_lambda_.38} parent=0 // pred_fallthru
    _
  %v15 = vld [vmem:[%s0] sm:$0xf]
  %v16 = vld [vmem:[%s1] sm:$0xf]
  %v17 = vld [vmem:[%s1 + $0x4] sm:$0xf]
  %v18 = vld [vmem:[%s1 + $0x8] sm:$0xf]
  %v19 = vld [vmem:[%s1 + $0xc] sm:$0xf]
  %v20 = vld [vmem:[%s1 + $0x10] sm:$0xf]
  %v21 = vld [vmem:[%s1 + $0x14] sm:$0xf]
  %v22 = vld [vmem:[%s1 + $0x18] sm:$0xf]
  %v23 = vld [vmem:[%s1 + $0x1c] sm:$0xf]
  %v24 = vld [vmem:[%s1 + $0x20] sm:$0xf]
  %v25 = vld [vmem:[%s1 + $0x24] sm:$0xf]
  %v26 = vld [vmem:[%s1 + $0x28] sm:$0xf]
  %v27 = vld [vmem:[%s1 + $0x2c] sm:$0xf]
  %v28 = vld [vmem:[%s1 + $0x30] sm:$0xf]
  %v29 = vld [vmem:[%s1 + $0x34] sm:$0xf]
  %v30 = vld [vmem:[%s1 + $0x38] sm:$0xf]
  %v31 = vld [vmem:[%s1 + $0x3c] sm:$0xf]
  %v48 = vunpack.c.l.b16 %v16
  %v49 = vunpack.c.l.b16 %v17
  %v50 = vunpack.c.l.b16 %v18
  %v51 = vunpack.c.l.b16 %v19
  %v52 = vunpack.c.l.b16 %v20
  %v53 = vunpack.c.l.b16 %v21
  %v54 = vunpack.c.l.b16 %v22
  %v55 = vunpack.c.l.b16 %v23
  %v56 = vunpack.c.l.b16 %v24
  %v57 = vunpack.c.l.b16 %v25
  %v58 = vunpack.c.l.b16 %v26
  %v59 = vunpack.c.l.b16 %v27
  %v60 = vunpack.c.l.b16 %v28
  %v61 = vunpack.c.l.b16 %v29
  %v62 = vunpack.c.l.b16 %v30
  %v63 = vunpack.c.l.b16 %v31
  %v64 = vpack.c.b16 %v49, %v48
  %v65 = vpack.c.b16 %v51, %v50
  %v66 = vpack.c.b16 %v53, %v52
  %v67 = vpack.c.b16 %v55, %v54
  %v68 = vpack.c.b16 %v57, %v56
  %v69 = vpack.c.b16 %v59, %v58
  %v70 = vpack.c.b16 %v61, %v60
  %v71 = vpack.c.b16 %v63, %v62
  %80 = vmatprep.subr.bf16.mxu0 0
  %81 = vmatpush1.bf16.msra.mxu0 %v71
  %82 = vmatprep.subr.bf16.mxu0 0
  %83 = vmatpush1.bf16.msra.mxu0 %v70
  %84 = vmatprep.subr.bf16.mxu0 0
  %85 = vmatpush1.bf16.msra.mxu0 %v69
  %86 = vmatprep.subr.bf16.mxu0 0
  %87 = vmatpush1.bf16.msra.mxu0 %v68
  %88 = vmatprep.subr.bf16.mxu0 0
  %89 = vmatpush1.bf16.msra.mxu0 %v67
  %90 = vmatprep.subr.bf16.mxu0 0
  %91 = vmatpush1.bf16.msra.mxu0 %v66
  %92 = vmatprep.subr.bf16.mxu0 0
  %93 = vmatpush1.bf16.msra.mxu0 %v65
  %94 = vmatprep.subr.bf16.mxu0 0
  %95 = vmatpush1.bf16.msra.mxu0 %v64
  %96 = vmatprep.subr.bf16.mxu0 0
  %97 = vmatpush2.bf16.msra.mxu0 0
  %98 = vmatprep.subr.bf16.mxu0 0
  %99 = vmatpush2.bf16.msra.mxu0 0
  %100 = vmatprep.subr.bf16.mxu0 0
  %101 = vmatpush2.bf16.msra.mxu0 0
  %102 = vmatprep.subr.bf16.mxu0 0
  %103 = vmatpush2.bf16.msra.mxu0 0
  %104 = vmatprep.subr.bf16.mxu0 0
  %105 = vmatpush2.bf16.msra.mxu0 0
  %106 = vmatprep.subr.bf16.mxu0 0
  %107 = vmatpush2.bf16.msra.mxu0 0
  %108 = vmatprep.subr.bf16.mxu0 0
  %109 = vmatpush2.bf16.msra.mxu0 0
  %110 = vmatprep.subr.bf16.mxu0 0
  %111 = vmatpush2.bf16.msra.mxu0 0
  %112 = vmatprep.mubr.bf16.mxu0 0
  %113 = vmatmul.mubr.bf16.gmra.mxu0 %v15
  %v114 = vpop.f32.mrf.mxu0
  %v115 = vadd.f32 0.0, %v114
  %v116 = vpop.f32.mrf.mxu0
  %v117 = vpop.f32.mrf.mxu0
  %v118 = vpop.f32.mrf.mxu0
  %119 = vdwg.mxu0
  %p120 = scmp.eq.s32.totalorder 0, 0
  // Predicated region
  $region14: #{_lambda_.38} parent=0 // pred_check
    %p121 = pneg %p120
  $region15: #{_lambda_.38} parent=0 // pred_check_branch
    %123 = sbr.rel (%p121) target = $region17
  $region16: #{_lambda_.38} parent=0 // pred_region
    %124 = vst [vmem:[#allocation2] sm:$0xff] %v115
  $region17: #{_lambda_.38} parent=0 // pred_fallthru
    _
  %p125 = scmp.gt.s32.totalorder 0, 0
  // Predicated region
  $region18: #{_lambda_.38} parent=0 // pred_check
    %p126 = pneg %p125
  $region19: #{_lambda_.38} parent=0 // pred_check_branch
    %128 = sbr.rel (%p126) target = $region21
  $region20: #{_lambda_.38} parent=0 // pred_region
    %v129 = vld [vmem:[#allocation2] sm:$0xff]
    %v130 = vadd.f32 %v129, %v115
    %131 = vst [vmem:[#allocation2] sm:$0xff] %v130
  $region21: #{_lambda_.38} parent=0 // pred_fallthru
    _
  // Predicated region
  $region22: #{_lambda_.38} parent=0 // pred_check
    %p132 = pneg %p120
  $region23: #{_lambda_.38} parent=0 // pred_check_branch
    %134 = sbr.rel (%p132) target = $region25
  $region24: #{_lambda_.38} parent=0 // pred_region
    %v135 = vld [vmem:[#allocation2] sm:$0xff]
    %v136 = vld [vmem:[%s2] sm:$0x1]
    %v138 = vlaneseq
    %v139 = vshrl.u32 %v138, 7
    %v140 = vsub.s32 0, %v139
    %v141 = vrot.slane %v136, %v140
    %v143 = vadd.f32 %v135, %v141
    %v144 = vxor.u32 %v143, 2147483648
    %v145 = vmul.f32 %v144, 1.442695
    %v146 = vpow.pop %v145
    %v147 = vadd.f32 %v146, 1.0
    %v148 = vrcp.pop %v147
    %v149 = vmul.f32 1.0, %v148
    %v150 = vmul.f32 %v143, %v149
    %v151 = vpack.c.bf16 %v150, %v150
    %152 = vst [vmem:[%s3] sm:$0xf] %v151
  $region25: #{_lambda_.38} parent=0 // pred_fallthru
    _
  // Predicated region
  $region26: #{_lambda_.38} parent=0 // pred_check
    _
  $region27: #{_lambda_.38} parent=0 // pred_check_branch
    %154 = sbr.rel (0) target = $region29
  $region28: #{_lambda_.38} parent=0 // pred_region
    _
  $region29: #{_lambda_.38} parent=0 // pred_fallthru
    _
  // Predicated region
  $region30: #{_lambda_.38} parent=0 // pred_check
    _
  $region31: #{_lambda_.38} parent=0 // pred_check_branch
    %156 = sbr.rel (0) target = $region33
  $region32: #{_lambda_.38} parent=0 // pred_region
    _
  $region33: #{_lambda_.38} parent=0 // pred_fallthru
    _

// kernel: _lambda_.41
$region0: #{_lambda_.41}
  #allocation0 [shape = 'u32[]', space=smem, size = 0x4, offset = 0x4, fixed_abs, tag = 'smem constant byte address 0x4 - core index']
  #allocation1 [shape = 'u32[144,128]{1,0:T(1,128)}', space=vmem, size = 0x12000, scoped, tag = 'internal scratch']
  #allocation2 [shape = 'f32[48,128]{1,0:T(8,128)}', space=vmem, size = 0x6000, scoped, tag = 'scratch operand']
  %s0 = inlined_call_operand.vmem [shape: bf16[48,128], index: 0, kind: input, shape index: {}]
  %s1 = inlined_call_operand.vmem [shape: bf16[128,128], index: 1, kind: input, shape index: {}]
  %s2 = inlined_call_operand.vmem [shape: f32[1,128], index: 2, kind: input, shape index: {}]
  %s3 = inlined_call_operand.vmem [shape: bf16[48,128], index: 3, kind: input, shape index: {}]
  %s4 = inlined_call_operand.vmem [shape: bf16[48,128], index: 4, kind: output, shape index: {}]
  %s5 = sld [smem:[#allocation0]]
  $region38: #{_lambda_.41} parent=0
    _
  %s7 = ssub.s32 1, %s5
  %s8 = scalar_select 0, %s7, %s5
  // Predicated region
  $region2: #{_lambda_.41} parent=0 // pred_check
    _
  $region3: #{_lambda_.41} parent=0 // pred_check_branch
    %10 = sbr.rel (0) target = $region5
  $region4: #{_lambda_.41} parent=0 // pred_region
    _
  $region5: #{_lambda_.41} parent=0 // pred_fallthru
    _
  // Predicated region
  $region6: #{_lambda_.41} parent=0 // pred_check
    _
  $region7: #{_lambda_.41} parent=0 // pred_check_branch
    %12 = sbr.rel (0) target = $region9
  $region8: #{_lambda_.41} parent=0 // pred_region
    _
  $region9: #{_lambda_.41} parent=0 // pred_fallthru
    _
  // Predicated region
  $region10: #{_lambda_.41} parent=0 // pred_check
    _
  $region11: #{_lambda_.41} parent=0 // pred_check_branch
    %14 = sbr.rel (0) target = $region13
  $region12: #{_lambda_.41} parent=0 // pred_region
    _
  $region13: #{_lambda_.41} parent=0 // pred_fallthru
    _
  // Predicated region
  $region14: #{_lambda_.41} parent=0 // pred_check
    _
  $region15: #{_lambda_.41} parent=0 // pred_check_branch
    %16 = sbr.rel (0) target = $region17
  $region16: #{_lambda_.41} parent=0 // pred_region
    _
  $region17: #{_lambda_.41} parent=0 // pred_fallthru
    _
  %v18 = vld [vmem:[%s0] sm:$0xf]
  %v19 = vld [vmem:[%s0 + $0x4] sm:$0xf]
  %v20 = vld [vmem:[%s0 + $0x8] sm:$0xf]
  %v21 = vld [vmem:[%s0 + $0xc] sm:$0xf]
  %v22 = vld [vmem:[%s0 + $0x10] sm:$0xf]
  %v23 = vld [vmem:[%s0 + $0x14] sm:$0xf]
  %v24 = vld [vmem:[%s1] sm:$0xf]
  %v25 = vld [vmem:[%s1 + $0x4] sm:$0xf]
  %v26 = vld [vmem:[%s1 + $0x8] sm:$0xf]
  %v27 = vld [vmem:[%s1 + $0xc] sm:$0xf]
  %v28 = vld [vmem:[%s1 + $0x10] sm:$0xf]
  %v29 = vld [vmem:[%s1 + $0x14] sm:$0xf]
  %v30 = vld [vmem:[%s1 + $0x18] sm:$0xf]
  %v31 = vld [vmem:[%s1 + $0x1c] sm:$0xf]
  %v32 = vld [vmem:[%s1 + $0x20] sm:$0xf]
  %v33 = vld [vmem:[%s1 + $0x24] sm:$0xf]
  %v34 = vld [vmem:[%s1 + $0x28] sm:$0xf]
  %v35 = vld [vmem:[%s1 + $0x2c] sm:$0xf]
  %v36 = vld [vmem:[%s1 + $0x30] sm:$0xf]
  %v37 = vld [vmem:[%s1 + $0x34] sm:$0xf]
  %v38 = vld [vmem:[%s1 + $0x38] sm:$0xf]
  %v39 = vld [vmem:[%s1 + $0x3c] sm:$0xf]
  %v46 = vunpack.c.l.b16 %v18
  %v47 = vunpack.c.l.b16 %v19
  %v48 = vunpack.c.l.b16 %v20
  %v49 = vunpack.c.l.b16 %v21
  %v50 = vunpack.c.l.b16 %v22
  %v51 = vunpack.c.l.b16 %v23
  %v52 = vpack.c.b16 %v47, %v46
  %v53 = vpack.c.b16 %v49, %v48
  %v54 = vpack.c.b16 %v51, %v50
  %v74 = vunpack.c.l.b16 %v24
  %v75 = vunpack.c.l.b16 %v25
  %v76 = vunpack.c.l.b16 %v26
  %v77 = vunpack.c.l.b16 %v27
  %v78 = vunpack.c.l.b16 %v28
  %v79 = vunpack.c.l.b16 %v29
  %v80 = vunpack.c.l.b16 %v30
  %v81 = vunpack.c.l.b16 %v31
  %v82 = vunpack.c.l.b16 %v32
  %v83 = vunpack.c.l.b16 %v33
  %v84 = vunpack.c.l.b16 %v34
  %v85 = vunpack.c.l.b16 %v35
  %v86 = vunpack.c.l.b16 %v36
  %v87 = vunpack.c.l.b16 %v37
  %v88 = vunpack.c.l.b16 %v38
  %v89 = vunpack.c.l.b16 %v39
  %v90 = vpack.c.b16 %v75, %v74
  %v91 = vpack.c.b16 %v77, %v76
  %v92 = vpack.c.b16 %v79, %v78
  %v93 = vpack.c.b16 %v81, %v80
  %v94 = vpack.c.b16 %v83, %v82
  %v95 = vpack.c.b16 %v85, %v84
  %v96 = vpack.c.b16 %v87, %v86
  %v97 = vpack.c.b16 %v89, %v88
  %106 = vmatprep.subr.bf16.mxu0 0
  %107 = vmatpush1.bf16.msra.mxu0 %v97
  %108 = vmatprep.subr.bf16.mxu0 0
  %109 = vmatpush1.bf16.msra.mxu0 %v96
  %110 = vmatprep.subr.bf16.mxu0 0
  %111 = vmatpush1.bf16.msra.mxu0 %v95
  %112 = vmatprep.subr.bf16.mxu0 0
  %113 = vmatpush1.bf16.msra.mxu0 %v94
  %114 = vmatprep.subr.bf16.mxu0 0
  %115 = vmatpush1.bf16.msra.mxu0 %v93
  %116 = vmatprep.subr.bf16.mxu0 0
  %117 = vmatpush1.bf16.msra.mxu0 %v92
  %118 = vmatprep.subr.bf16.mxu0 0
  %119 = vmatpush1.bf16.msra.mxu0 %v91
  %120 = vmatprep.subr.bf16.mxu0 0
  %121 = vmatpush1.bf16.msra.mxu0 %v90
  %122 = vmatprep.subr.bf16.mxu0 0
  %123 = vmatpush2.bf16.msra.mxu0 0
  %124 = vmatprep.subr.bf16.mxu0 0
  %125 = vmatpush2.bf16.msra.mxu0 0
  %126 = vmatprep.subr.bf16.mxu0 0
  %127 = vmatpush2.bf16.msra.mxu0 0
  %128 = vmatprep.subr.bf16.mxu0 0
  %129 = vmatpush2.bf16.msra.mxu0 0
  %130 = vmatprep.subr.bf16.mxu0 0
  %131 = vmatpush2.bf16.msra.mxu0 0
  %132 = vmatprep.subr.bf16.mxu0 0
  %133 = vmatpush2.bf16.msra.mxu0 0
  %134 = vmatprep.subr.bf16.mxu0 0
  %135 = vmatpush2.bf16.msra.mxu0 0
  %136 = vmatprep.subr.bf16.mxu0 0
  %137 = vmatpush2.bf16.msra.mxu0 0
  %138 = vmatprep.mubr.bf16.mxu0 0
  %139 = vmatmul.mubr.bf16.gmra.mxu0 %v52
  %v140 = vpop.f32.mrf.mxu0
  %v141 = vadd.f32 0.0, %v140
  %v142 = vpop.f32.mrf.mxu0
  %v143 = vpop.f32.mrf.mxu0
  %v144 = vadd.f32 0.0, %v143
  %v145 = vpop.f32.mrf.mxu0
  %146 = vmatprep.mubr.bf16.mxu0 0
  %147 = vmatmul.mubr.bf16.gmra.mxu0 %v53
  %v148 = vpop.f32.mrf.mxu0
  %v149 = vadd.f32 0.0, %v148
  %v150 = vpop.f32.mrf.mxu0
  %v151 = vpop.f32.mrf.mxu0
  %v152 = vadd.f32 0.0, %v151
  %v153 = vpop.f32.mrf.mxu0
  %154 = vmatprep.mubr.bf16.mxu0 0
  %155 = vmatmul.mubr.bf16.gmra.mxu0 %v54
  %v156 = vpop.f32.mrf.mxu0
  %v157 = vadd.f32 0.0, %v156
  %v158 = vpop.f32.mrf.mxu0
  %v159 = vpop.f32.mrf.mxu0
  %v160 = vadd.f32 0.0, %v159
  %v161 = vpop.f32.mrf.mxu0
  %162 = vdwg.mxu0
  %p163 = scmp.eq.s32.totalorder 0, 0
  // Predicated region
  $region18: #{_lambda_.41} parent=0 // pred_check
    %p164 = pneg %p163
  $region19: #{_lambda_.41} parent=0 // pred_check_branch
    %166 = sbr.rel (%p164) target = $region21
  $region20: #{_lambda_.41} parent=0 // pred_region
    %167 = vst [vmem:[#allocation2] sm:$0xff] %v141
    %168 = vst [vmem:[#allocation2 + $0x8] sm:$0xff] %v144
    %169 = vst [vmem:[#allocation2 + $0x10] sm:$0xff] %v149
    %170 = vst [vmem:[#allocation2 + $0x18] sm:$0xff] %v152
    %171 = vst [vmem:[#allocation2 + $0x20] sm:$0xff] %v157
    %172 = vst [vmem:[#allocation2 + $0x28] sm:$0xff] %v160
  $region21: #{_lambda_.41} parent=0 // pred_fallthru
    _
  %p173 = scmp.gt.s32.totalorder 0, 0
  // Predicated region
  $region22: #{_lambda_.41} parent=0 // pred_check
    %p174 = pneg %p173
  $region23: #{_lambda_.41} parent=0 // pred_check_branch
    %176 = sbr.rel (%p174) target = $region25
  $region24: #{_lambda_.41} parent=0 // pred_region
    %v177 = vld [vmem:[#allocation2] sm:$0xff]
    %v178 = vld [vmem:[#allocation2 + $0x8] sm:$0xff]
    %v179 = vld [vmem:[#allocation2 + $0x10] sm:$0xff]
    %v180 = vld [vmem:[#allocation2 + $0x18] sm:$0xff]
    %v181 = vld [vmem:[#allocation2 + $0x20] sm:$0xff]
    %v182 = vld [vmem:[#allocation2 + $0x28] sm:$0xff]
    %v183 = vadd.f32 %v177, %v141
    %v184 = vadd.f32 %v178, %v144
    %v185 = vadd.f32 %v179, %v149
    %v186 = vadd.f32 %v180, %v152
    %v187 = vadd.f32 %v181, %v157
    %v188 = vadd.f32 %v182, %v160
    %189 = vst [vmem:[#allocation2] sm:$0xff] %v183
    %190 = vst [vmem:[#allocation2 + $0x8] sm:$0xff] %v184
    %191 = vst [vmem:[#allocation2 + $0x10] sm:$0xff] %v185
    %192 = vst [vmem:[#allocation2 + $0x18] sm:$0xff] %v186
    %193 = vst [vmem:[#allocation2 + $0x20] sm:$0xff] %v187
    %194 = vst [vmem:[#allocation2 + $0x28] sm:$0xff] %v188
  $region25: #{_lambda_.41} parent=0 // pred_fallthru
    _
  // Predicated region
  $region26: #{_lambda_.41} parent=0 // pred_check
    %p195 = pneg %p163
  $region27: #{_lambda_.41} parent=0 // pred_check_branch
    %197 = sbr.rel (%p195) target = $region29
  $region28: #{_lambda_.41} parent=0 // pred_region
    %v198 = vld [vmem:[#allocation2] sm:$0xff]
    %v199 = vld [vmem:[#allocation2 + $0x8] sm:$0xff]
    %v200 = vld [vmem:[#allocation2 + $0x10] sm:$0xff]
    %v201 = vld [vmem:[#allocation2 + $0x18] sm:$0xff]
    %v202 = vld [vmem:[#allocation2 + $0x20] sm:$0xff]
    %v203 = vld [vmem:[#allocation2 + $0x28] sm:$0xff]
    %v204 = vld [vmem:[%s2] sm:$0x1]
    %v206 = vlaneseq
    %v207 = vshrl.u32 %v206, 7
    %v208 = vsub.s32 0, %v207
    %v209 = vrot.slane %v204, %v208
    %v211 = vadd.f32 %v198, %v209
    %v212 = vadd.f32 %v199, %v209
    %v213 = vadd.f32 %v200, %v209
    %v214 = vadd.f32 %v201, %v209
    %v215 = vadd.f32 %v202, %v209
    %v216 = vadd.f32 %v203, %v209
    %v217 = vld [vmem:[%s3] sm:$0xf]
    %v218 = vld [vmem:[%s3 + $0x4] sm:$0xf]
    %v219 = vld [vmem:[%s3 + $0x8] sm:$0xf]
    %v220 = vld [vmem:[%s3 + $0xc] sm:$0xf]
    %v221 = vld [vmem:[%s3 + $0x10] sm:$0xf]
    %v222 = vld [vmem:[%s3 + $0x14] sm:$0xf]
    %v223 = vunpack.c.l.bf16 %v217
    %v224 = vunpack.c.l.bf16 %v218
    %v225 = vunpack.c.l.bf16 %v219
    %v226 = vunpack.c.l.bf16 %v220
    %v227 = vunpack.c.l.bf16 %v221
    %v228 = vunpack.c.l.bf16 %v222
    %v229 = vadd.f32 %v211, %v223
    %v230 = vadd.f32 %v212, %v224
    %v231 = vadd.f32 %v213, %v225
    %v232 = vadd.f32 %v214, %v226
    %v233 = vadd.f32 %v215, %v227
    %v234 = vadd.f32 %v216, %v228
    %v235 = vpack.c.bf16 %v230, %v229
    %v236 = vpack.c.bf16 %v232, %v231
    %v237 = vpack.c.bf16 %v234, %v233
    %v241 = vunpack.c.l.b16 %v235
    %v242 = vunpack.c.h.b16 %v235
    %v243 = vunpack.c.l.b16 %v236
    %v244 = vunpack.c.h.b16 %v236
    %v245 = vunpack.c.l.b16 %v237
    %v246 = vunpack.c.h.b16 %v237
    %v247 = vpack.c.b16 %v241, %v241
    %v248 = vpack.c.b16 %v242, %v242
    %v249 = vpack.c.b16 %v243, %v243
    %v250 = vpack.c.b16 %v244, %v244
    %v251 = vpack.c.b16 %v245, %v245
    %v252 = vpack.c.b16 %v246, %v246
    %259 = vst [vmem:[%s4] sm:$0xf] %v247
    %260 = vst [vmem:[%s4 + $0x4] sm:$0xf] %v248
    %261 = vst [vmem:[%s4 + $0x8] sm:$0xf] %v249
    %262 = vst [vmem:[%s4 + $0xc] sm:$0xf] %v250
    %263 = vst [vmem:[%s4 + $0x10] sm:$0xf] %v251
    %264 = vst [vmem:[%s4 + $0x14] sm:$0xf] %v252
  $region29: #{_lambda_.41} parent=0 // pred_fallthru
    _
  // Predicated region
  $region30: #{_lambda_.41} parent=0 // pred_check
    _
  $region31: #{_lambda_.41} parent=0 // pred_check_branch
    %266 = sbr.rel (0) target = $region33
  $region32: #{_lambda_.41} parent=0 // pred_region
    _
  $region33: #{_lambda_.41} parent=0 // pred_fallthru
    _
  // Predicated region
  $region34: #{_lambda_.41} parent=0 // pred_check
    _
  $region35: #{_lambda_.41} parent=0 // pred_check_branch
    %268 = sbr.rel (0) target = $region37
  $region36: #{_lambda_.41} parent=0 // pred_region
    _
  $region37: #{_lambda_.41} parent=0 // pred_fallthru
    _

// kernel: _lambda_.39
$region0: #{_lambda_.39}
  #allocation0 [shape = 'u32[]', space=smem, size = 0x4, offset = 0x4, fixed_abs, tag = 'smem constant byte address 0x4 - core index']
  #allocation1 [shape = 'u32[144,128]{1,0:T(1,128)}', space=vmem, size = 0x12000, scoped, tag = 'internal scratch']
  #allocation2 [shape = 'f32[48,128]{1,0:T(8,128)}', space=vmem, size = 0x6000, scoped, tag = 'scratch operand']
  %s0 = inlined_call_operand.vmem [shape: bf16[48,128], index: 0, kind: input, shape index: {}]
  %s1 = inlined_call_operand.vmem [shape: bf16[128,128], index: 1, kind: input, shape index: {}]
  %s2 = inlined_call_operand.vmem [shape: f32[1,128], index: 2, kind: input, shape index: {}]
  %s3 = inlined_call_operand.vmem [shape: bf16[48,128], index: 3, kind: output, shape index: {}]
  %s4 = sld [smem:[#allocation0]]
  $region34: #{_lambda_.39} parent=0
    _
  %s6 = ssub.s32 1, %s4
  %s7 = scalar_select 0, %s6, %s4
  // Predicated region
  $region2: #{_lambda_.39} parent=0 // pred_check
    _
  $region3: #{_lambda_.39} parent=0 // pred_check_branch
    %9 = sbr.rel (0) target = $region5
  $region4: #{_lambda_.39} parent=0 // pred_region
    _
  $region5: #{_lambda_.39} parent=0 // pred_fallthru
    _
  // Predicated region
  $region6: #{_lambda_.39} parent=0 // pred_check
    _
  $region7: #{_lambda_.39} parent=0 // pred_check_branch
    %11 = sbr.rel (0) target = $region9
  $region8: #{_lambda_.39} parent=0 // pred_region
    _
  $region9: #{_lambda_.39} parent=0 // pred_fallthru
    _
  // Predicated region
  $region10: #{_lambda_.39} parent=0 // pred_check
    _
  $region11: #{_lambda_.39} parent=0 // pred_check_branch
    %13 = sbr.rel (0) target = $region13
  $region12: #{_lambda_.39} parent=0 // pred_region
    _
  $region13: #{_lambda_.39} parent=0 // pred_fallthru
    _
  %v15 = vld [vmem:[%s0] sm:$0xf]
  %v16 = vld [vmem:[%s0 + $0x4] sm:$0xf]
  %v17 = vld [vmem:[%s0 + $0x8] sm:$0xf]
  %v18 = vld [vmem:[%s0 + $0xc] sm:$0xf]
  %v19 = vld [vmem:[%s0 + $0x10] sm:$0xf]
  %v20 = vld [vmem:[%s0 + $0x14] sm:$0xf]
  %v21 = vld [vmem:[%s1] sm:$0xf]
  %v22 = vld [vmem:[%s1 + $0x4] sm:$0xf]
  %v23 = vld [vmem:[%s1 + $0x8] sm:$0xf]
  %v24 = vld [vmem:[%s1 + $0xc] sm:$0xf]
  %v25 = vld [vmem:[%s1 + $0x10] sm:$0xf]
  %v26 = vld [vmem:[%s1 + $0x14] sm:$0xf]
  %v27 = vld [vmem:[%s1 + $0x18] sm:$0xf]
  %v28 = vld [vmem:[%s1 + $0x1c] sm:$0xf]
  %v29 = vld [vmem:[%s1 + $0x20] sm:$0xf]
  %v30 = vld [vmem:[%s1 + $0x24] sm:$0xf]
  %v31 = vld [vmem:[%s1 + $0x28] sm:$0xf]
  %v32 = vld [vmem:[%s1 + $0x2c] sm:$0xf]
  %v33 = vld [vmem:[%s1 + $0x30] sm:$0xf]
  %v34 = vld [vmem:[%s1 + $0x34] sm:$0xf]
  %v35 = vld [vmem:[%s1 + $0x38] sm:$0xf]
  %v36 = vld [vmem:[%s1 + $0x3c] sm:$0xf]
  %v43 = vunpack.c.l.b16 %v15
  %v44 = vunpack.c.l.b16 %v16
  %v45 = vunpack.c.l.b16 %v17
  %v46 = vunpack.c.l.b16 %v18
  %v47 = vunpack.c.l.b16 %v19
  %v48 = vunpack.c.l.b16 %v20
  %v49 = vpack.c.b16 %v44, %v43
  %v50 = vpack.c.b16 %v46, %v45
  %v51 = vpack.c.b16 %v48, %v47
  %v71 = vunpack.c.l.b16 %v21
  %v72 = vunpack.c.l.b16 %v22
  %v73 = vunpack.c.l.b16 %v23
  %v74 = vunpack.c.l.b16 %v24
  %v75 = vunpack.c.l.b16 %v25
  %v76 = vunpack.c.l.b16 %v26
  %v77 = vunpack.c.l.b16 %v27
  %v78 = vunpack.c.l.b16 %v28
  %v79 = vunpack.c.l.b16 %v29
  %v80 = vunpack.c.l.b16 %v30
  %v81 = vunpack.c.l.b16 %v31
  %v82 = vunpack.c.l.b16 %v32
  %v83 = vunpack.c.l.b16 %v33
  %v84 = vunpack.c.l.b16 %v34
  %v85 = vunpack.c.l.b16 %v35
  %v86 = vunpack.c.l.b16 %v36
  %v87 = vpack.c.b16 %v72, %v71
  %v88 = vpack.c.b16 %v74, %v73
  %v89 = vpack.c.b16 %v76, %v75
  %v90 = vpack.c.b16 %v78, %v77
  %v91 = vpack.c.b16 %v80, %v79
  %v92 = vpack.c.b16 %v82, %v81
  %v93 = vpack.c.b16 %v84, %v83
  %v94 = vpack.c.b16 %v86, %v85
  %103 = vmatprep.subr.bf16.mxu0 0
  %104 = vmatpush1.bf16.msra.mxu0 %v94
  %105 = vmatprep.subr.bf16.mxu0 0
  %106 = vmatpush1.bf16.msra.mxu0 %v93
  %107 = vmatprep.subr.bf16.mxu0 0
  %108 = vmatpush1.bf16.msra.mxu0 %v92
  %109 = vmatprep.subr.bf16.mxu0 0
  %110 = vmatpush1.bf16.msra.mxu0 %v91
  %111 = vmatprep.subr.bf16.mxu0 0
  %112 = vmatpush1.bf16.msra.mxu0 %v90
  %113 = vmatprep.subr.bf16.mxu0 0
  %114 = vmatpush1.bf16.msra.mxu0 %v89
  %115 = vmatprep.subr.bf16.mxu0 0
  %116 = vmatpush1.bf16.msra.mxu0 %v88
  %117 = vmatprep.subr.bf16.mxu0 0
  %118 = vmatpush1.bf16.msra.mxu0 %v87
  %119 = vmatprep.subr.bf16.mxu0 0
  %120 = vmatpush2.bf16.msra.mxu0 0
  %121 = vmatprep.subr.bf16.mxu0 0
  %122 = vmatpush2.bf16.msra.mxu0 0
  %123 = vmatprep.subr.bf16.mxu0 0
  %124 = vmatpush2.bf16.msra.mxu0 0
  %125 = vmatprep.subr.bf16.mxu0 0
  %126 = vmatpush2.bf16.msra.mxu0 0
  %127 = vmatprep.subr.bf16.mxu0 0
  %128 = vmatpush2.bf16.msra.mxu0 0
  %129 = vmatprep.subr.bf16.mxu0 0
  %130 = vmatpush2.bf16.msra.mxu0 0
  %131 = vmatprep.subr.bf16.mxu0 0
  %132 = vmatpush2.bf16.msra.mxu0 0
  %133 = vmatprep.subr.bf16.mxu0 0
  %134 = vmatpush2.bf16.msra.mxu0 0
  %135 = vmatprep.mubr.bf16.mxu0 0
  %136 = vmatmul.mubr.bf16.gmra.mxu0 %v49
  %v137 = vpop.f32.mrf.mxu0
  %v138 = vadd.f32 0.0, %v137
  %v139 = vpop.f32.mrf.mxu0
  %v140 = vpop.f32.mrf.mxu0
  %v141 = vadd.f32 0.0, %v140
  %v142 = vpop.f32.mrf.mxu0
  %143 = vmatprep.mubr.bf16.mxu0 0
  %144 = vmatmul.mubr.bf16.gmra.mxu0 %v50
  %v145 = vpop.f32.mrf.mxu0
  %v146 = vadd.f32 0.0, %v145
  %v147 = vpop.f32.mrf.mxu0
  %v148 = vpop.f32.mrf.mxu0
  %v149 = vadd.f32 0.0, %v148
  %v150 = vpop.f32.mrf.mxu0
  %151 = vmatprep.mubr.bf16.mxu0 0
  %152 = vmatmul.mubr.bf16.gmra.mxu0 %v51
  %v153 = vpop.f32.mrf.mxu0
  %v154 = vadd.f32 0.0, %v153
  %v155 = vpop.f32.mrf.mxu0
  %v156 = vpop.f32.mrf.mxu0
  %v157 = vadd.f32 0.0, %v156
  %v158 = vpop.f32.mrf.mxu0
  %159 = vdwg.mxu0
  %p160 = scmp.eq.s32.totalorder 0, 0
  // Predicated region
  $region14: #{_lambda_.39} parent=0 // pred_check
    %p161 = pneg %p160
  $region15: #{_lambda_.39} parent=0 // pred_check_branch
    %163 = sbr.rel (%p161) target = $region17
  $region16: #{_lambda_.39} parent=0 // pred_region
    %164 = vst [vmem:[#allocation2] sm:$0xff] %v138
    %165 = vst [vmem:[#allocation2 + $0x8] sm:$0xff] %v141
    %166 = vst [vmem:[#allocation2 + $0x10] sm:$0xff] %v146
    %167 = vst [vmem:[#allocation2 + $0x18] sm:$0xff] %v149
    %168 = vst [vmem:[#allocation2 + $0x20] sm:$0xff] %v154
    %169 = vst [vmem:[#allocation2 + $0x28] sm:$0xff] %v157
  $region17: #{_lambda_.39} parent=0 // pred_fallthru
    _
  %p170 = scmp.gt.s32.totalorder 0, 0
  // Predicated region
  $region18: #{_lambda_.39} parent=0 // pred_check
    %p171 = pneg %p170
  $region19: #{_lambda_.39} parent=0 // pred_check_branch
    %173 = sbr.rel (%p171) target = $region21
  $region20: #{_lambda_.39} parent=0 // pred_region
    %v174 = vld [vmem:[#allocation2] sm:$0xff]
    %v175 = vld [vmem:[#allocation2 + $0x8] sm:$0xff]
    %v176 = vld [vmem:[#allocation2 + $0x10] sm:$0xff]
    %v177 = vld [vmem:[#allocation2 + $0x18] sm:$0xff]
    %v178 = vld [vmem:[#allocation2 + $0x20] sm:$0xff]
    %v179 = vld [vmem:[#allocation2 + $0x28] sm:$0xff]
    %v180 = vadd.f32 %v174, %v138
    %v181 = vadd.f32 %v175, %v141
    %v182 = vadd.f32 %v176, %v146
    %v183 = vadd.f32 %v177, %v149
    %v184 = vadd.f32 %v178, %v154
    %v185 = vadd.f32 %v179, %v157
    %186 = vst [vmem:[#allocation2] sm:$0xff] %v180
    %187 = vst [vmem:[#allocation2 + $0x8] sm:$0xff] %v181
    %188 = vst [vmem:[#allocation2 + $0x10] sm:$0xff] %v182
    %189 = vst [vmem:[#allocation2 + $0x18] sm:$0xff] %v183
    %190 = vst [vmem:[#allocation2 + $0x20] sm:$0xff] %v184
    %191 = vst [vmem:[#allocation2 + $0x28] sm:$0xff] %v185
  $region21: #{_lambda_.39} parent=0 // pred_fallthru
    _
  // Predicated region
  $region22: #{_lambda_.39} parent=0 // pred_check
    %p192 = pneg %p160
  $region23: #{_lambda_.39} parent=0 // pred_check_branch
    %194 = sbr.rel (%p192) target = $region25
  $region24: #{_lambda_.39} parent=0 // pred_region
    %v195 = vld [vmem:[#allocation2] sm:$0xff]
    %v196 = vld [vmem:[#allocation2 + $0x8] sm:$0xff]
    %v197 = vld [vmem:[#allocation2 + $0x10] sm:$0xff]
    %v198 = vld [vmem:[#allocation2 + $0x18] sm:$0xff]
    %v199 = vld [vmem:[#allocation2 + $0x20] sm:$0xff]
    %v200 = vld [vmem:[#allocation2 + $0x28] sm:$0xff]
    %v201 = vld [vmem:[%s2] sm:$0x1]
    %v203 = vlaneseq
    %v204 = vshrl.u32 %v203, 7
    %v205 = vsub.s32 0, %v204
    %v206 = vrot.slane %v201, %v205
    %v208 = vadd.f32 %v195, %v206
    %v209 = vadd.f32 %v196, %v206
    %v210 = vadd.f32 %v197, %v206
    %v211 = vadd.f32 %v198, %v206
    %v212 = vadd.f32 %v199, %v206
    %v213 = vadd.f32 %v200, %v206
    %v214 = vpack.c.bf16 %v209, %v208
    %v215 = vpack.c.bf16 %v211, %v210
    %v216 = vpack.c.bf16 %v213, %v212
    %v220 = vunpack.c.l.b16 %v214
    %v221 = vunpack.c.h.b16 %v214
    %v222 = vunpack.c.l.b16 %v215
    %v223 = vunpack.c.h.b16 %v215
    %v224 = vunpack.c.l.b16 %v216
    %v225 = vunpack.c.h.b16 %v216
    %v226 = vpack.c.b16 %v220, %v220
    %v227 = vpack.c.b16 %v221, %v221
    %v228 = vpack.c.b16 %v222, %v222
    %v229 = vpack.c.b16 %v223, %v223
    %v230 = vpack.c.b16 %v224, %v224
    %v231 = vpack.c.b16 %v225, %v225
    %238 = vst [vmem:[%s3] sm:$0xf] %v226
    %239 = vst [vmem:[%s3 + $0x4] sm:$0xf] %v227
    %240 = vst [vmem:[%s3 + $0x8] sm:$0xf] %v228
    %241 = vst [vmem:[%s3 + $0xc] sm:$0xf] %v229
    %242 = vst [vmem:[%s3 + $0x10] sm:$0xf] %v230
    %243 = vst [vmem:[%s3 + $0x14] sm:$0xf] %v231
  $region25: #{_lambda_.39} parent=0 // pred_fallthru
    _
  // Predicated region
  $region26: #{_lambda_.39} parent=0 // pred_check
    _
  $region27: #{_lambda_.39} parent=0 // pred_check_branch
    %245 = sbr.rel (0) target = $region29
  $region28: #{_lambda_.39} parent=0 // pred_region
    _
  $region29: #{_lambda_.39} parent=0 // pred_fallthru
    _
  // Predicated region
  $region30: #{_lambda_.39} parent=0 // pred_check
    _
  $region31: #{_lambda_.39} parent=0 // pred_check_branch
    %247 = sbr.rel (0) target = $region33
  $region32: #{_lambda_.39} parent=0 // pred_region
    _
  $region33: #{_lambda_.39} parent=0 // pred_fallthru
    _

// kernel: _lambda_.40
$region0: #{_lambda_.40}
  #allocation0 [shape = 'u32[]', space=smem, size = 0x4, offset = 0x4, fixed_abs, tag = 'smem constant byte address 0x4 - core index']
  #allocation1 [shape = 'u32[144,128]{1,0:T(1,128)}', space=vmem, size = 0x12000, scoped, tag = 'internal scratch']
  %s0 = inlined_call_operand.vmem [shape: bf16[2,24,96], index: 0, kind: input, shape index: {}]
  %s1 = inlined_call_operand.vmem [shape: bf16[2,22,96], index: 1, kind: input, shape index: {}]
  %s2 = inlined_call_operand.vmem [shape: bf16[2,24,32], index: 2, kind: output, shape index: {}]
  %s3 = sld [smem:[#allocation0]]
  $region41: #{_lambda_.40} parent=0
    _
  %s5 = ssub.s32 1, %s3
  %s6 = scalar_select 0, %s5, %s3
  loop: start=0, step=1, limit=4
  $region2: #{_lambda_.40} parent=0 // loop_pre_header
    _
  $region3: #{_lambda_.40} parent=0 // loop_header
    %s8 = sphi 0, %s12
    %p9 = scmp.ge.s32.totalorder %s8, 4
    %s15 = sphi 0, %s27
    %s16 = sphi 0, %s23
    %s17 = sphi 0, %s15
    %s18 = sphi 0, %s16
    %s19 = sphi 0, %s17
    %s20 = sphi 0, %s18
    %s32 = sphi 0, %s34
    %s35 = sphi 0, %s32
    %s36 = sphi 0, %s35
    %s52 = sphi 0, %s36
    %s58 = sphi 0, %s60
    %s61 = sphi 0, %s58
    %s62 = sphi 0, %s61
    %s78 = sphi 0, %s62
    %s86 = sphi 0, %s88
    %s89 = sphi 0, %s86
    %s90 = sphi 0, %s89
    %s106 = sphi 0, %s90
  $region4: #{_lambda_.40} parent=0 // loop_header_branch
    %11 = sbr.rel (%p9) target = $region8
  $region5: #{_lambda_.40} parent=0 // loop_body
    %s13 = ssub.s32 %s8, 1
    %s14 = ssub.s32 %s8, 2
    %s21 = sadd.s32 1, %s16
    %p22 = scmp.ge.s32.totalorder %s21, 1
    %s23 = scalar_select %p22, 0, %s21
    %s24 = sadd.s32 1, %s15
    %s25 = scalar_select %p22, %s24, %s15
    %p26 = scmp.ge.s32.totalorder %s25, 2
    %s27 = scalar_select %p26, 0, %s25
    %s28 = ssub.s32 %s15, %s27
    %s29 = ssub.s32 %s16, %s23
    %s30 = sor.u32 %s28, %s29
    %p31 = scmp.eq.s32.totalorder %s30, 0
    %s33 = sadd.s32 %s32, 1
    %s34 = scalar_select %p31, %s32, %s33
    %p37 = pneg %p31
    %p38 = scmp.eq.s32.totalorder %s8, 1
    %p39 = por %p37, %p38
    %p40 = scmp.ne.s32.totalorder %s32, %s35
    %p41 = scmp.eq.s32.totalorder %s8, 0
    %p42 = por %p40, %p41
    %p43 = scmp.ne.s32.totalorder %s32, %s35
    %p44 = scmp.eq.s32.totalorder %s13, 1
    %p45 = por %p43, %p44
    %p46 = scmp.ne.s32.totalorder %s35, %s36
    %p47 = scmp.eq.s32.totalorder %s13, 0
    %p48 = por %p46, %p47
    %p49 = scmp.ne.s32.totalorder %s35, %s36
    %p50 = scmp.eq.s32.totalorder %s14, 1
    %p51 = por %p49, %p50
    %p53 = scmp.ne.s32.totalorder %s36, %s52
    %p54 = scmp.eq.s32.totalorder %s14, 0
    %p55 = por %p53, %p54
    %s56 = ssub.s32 %s15, %s27
    %p57 = scmp.eq.s32.totalorder %s56, 0
    %s59 = sadd.s32 %s58, 1
    %s60 = scalar_select %p57, %s58, %s59
    %p63 = pneg %p57
    %p64 = scmp.eq.s32.totalorder %s8, 1
    %p65 = por %p63, %p64
    %p66 = scmp.ne.s32.totalorder %s58, %s61
    %p67 = scmp.eq.s32.totalorder %s8, 0
    %p68 = por %p66, %p67
    %p69 = scmp.ne.s32.totalorder %s58, %s61
    %p70 = scmp.eq.s32.totalorder %s13, 1
    %p71 = por %p69, %p70
    %p72 = scmp.ne.s32.totalorder %s61, %s62
    %p73 = scmp.eq.s32.totalorder %s13, 0
    %p74 = por %p72, %p73
    %p75 = scmp.ne.s32.totalorder %s61, %s62
    %p76 = scmp.eq.s32.totalorder %s14, 1
    %p77 = por %p75, %p76
    %p79 = scmp.ne.s32.totalorder %s62, %s78
    %p80 = scmp.eq.s32.totalorder %s14, 0
    %p81 = por %p79, %p80
    %s82 = ssub.s32 %s15, %s27
    %s83 = ssub.s32 %s16, %s23
    %s84 = sor.u32 %s82, %s83
    %p85 = scmp.eq.s32.totalorder %s84, 0
    %s87 = sadd.s32 %s86, 1
    %s88 = scalar_select %p85, %s86, %s87
    %p91 = pneg %p85
    %p92 = scmp.eq.s32.totalorder %s8, 1
    %p93 = por %p91, %p92
    %p94 = scmp.ne.s32.totalorder %s86, %s89
    %p95 = scmp.eq.s32.totalorder %s8, 0
    %p96 = por %p94, %p95
    %p97 = scmp.ne.s32.totalorder %s86, %s89
    %p98 = scmp.eq.s32.totalorder %s13, 1
    %p99 = por %p97, %p98
    %p100 = scmp.ne.s32.totalorder %s89, %s90
    %p101 = scmp.eq.s32.totalorder %s13, 0
    %p102 = por %p100, %p101
    %p103 = scmp.ne.s32.totalorder %s89, %s90
    %p104 = scmp.eq.s32.totalorder %s14, 1
    %p105 = por %p103, %p104
    %p107 = scmp.ne.s32.totalorder %s90, %s106
    %p108 = scmp.eq.s32.totalorder %s14, 0
    %p109 = por %p107, %p108
    %p110 = scmp.le.s32.totalorder 1, %s8
    %p111 = scmp.lt.s32.totalorder %s8, 3
    %p112 = pnand %p110, %p111
    %p113 = pneg %p112
    // Predicated region
    $region9: #{_lambda_.40} parent=5 // pred_check
      _
    $region10: #{_lambda_.40} parent=5 // pred_check_branch
      %115 = sbr.rel (%p112) target = $region12
    $region11: #{_lambda_.40} parent=5 // pred_region
      %s116 = ssub.s32 %s8, 1
    $region12: #{_lambda_.40} parent=5 // pred_fallthru
      _
    %p117 = scmp.lt.s32.totalorder %s8, 2
    // Predicated region
    $region13: #{_lambda_.40} parent=5 // pred_check
      %p118 = pneg %p117
    $region14: #{_lambda_.40} parent=5 // pred_check_branch
      %120 = sbr.rel (%p118) target = $region16
    $region15: #{_lambda_.40} parent=5 // pred_region
      // Predicated region
      $region17: #{_lambda_.40} parent=15 // pred_check
        %p121 = pneg %p42
      $region18: #{_lambda_.40} parent=15 // pred_check_branch
        %123 = sbr.rel (%p121) target = $region20
      $region19: #{_lambda_.40} parent=15 // pred_region
        %s124 = smul.u32 3, %s16
        %p125 = scmp.lt.s32.totalorder %s15, 1
        %s126 = scalar_select %p125, %s15, 1
        %p127 = scmp.lt.s32.totalorder %s124, 2
        %s128 = scalar_select %p127, %s124, 2
        %s129 = smul.addr %s126, 3
        %s130 = sadd.s32 %s128, %s129
        %s131 = smul.addr %s130, 4
        %s132 = scalar_lea.vmem %s0, %s131
        %s133 = smul.u32 3, %s16
      $region20: #{_lambda_.40} parent=15 // pred_fallthru
        _
      // Predicated region
      $region21: #{_lambda_.40} parent=15 // pred_check
        %p134 = pneg %p68
      $region22: #{_lambda_.40} parent=15 // pred_check_branch
        %136 = sbr.rel (%p134) target = $region24
      $region23: #{_lambda_.40} parent=15 // pred_region
        %p137 = scmp.lt.s32.totalorder %s15, 1
        %s138 = scalar_select %p137, %s15, 1
        %s139 = smul.addr %s138, 3
        %s140 = smul.addr %s139, 4
        %s141 = scalar_lea.vmem %s1, %s140
      $region24: #{_lambda_.40} parent=15 // pred_fallthru
        _
    $region16: #{_lambda_.40} parent=5 // pred_fallthru
      _
    %p142 = scmp.le.s32.totalorder 1, %s8
    %p143 = scmp.lt.s32.totalorder %s8, 3
    %p144 = pnand %p142, %p143
    %p145 = pneg %p144
    // Predicated region
    $region25: #{_lambda_.40} parent=5 // pred_check
      _
    $region26: #{_lambda_.40} parent=5 // pred_check_branch
      %147 = sbr.rel (%p144) target = $region28
    $region27: #{_lambda_.40} parent=5 // pred_region
      %s148 = ssub.s32 %s8, 1
      %s149 = smul.u32 3, %s18
      %p150 = scmp.lt.s32.totalorder %s17, 1
      %s151 = scalar_select %p150, %s17, 1
      %p152 = scmp.lt.s32.totalorder %s149, 2
      %s153 = scalar_select %p152, %s149, 2
      %s154 = smul.addr %s151, 3
      %s155 = sadd.s32 %s153, %s154
      %s156 = smul.addr %s155, 4
      %s157 = scalar_lea.vmem %s0, %s156
      %p158 = pneg %p48
      %p159 = pneg %p45
      %p160 = scmp.lt.s32.totalorder %s17, 1
      %s161 = scalar_select %p160, %s17, 1
      %s162 = smul.addr %s161, 3
      %s163 = smul.addr %s162, 4
      %s164 = scalar_lea.vmem %s1, %s163
      %p165 = pneg %p74
      %p166 = pneg %p71
      %p167 = pneg %p102
      %p168 = pneg %p99
      %s169 = smul.u32 3, %s18
      %p170 = scmp.lt.s32.totalorder %s17, 1
      %s171 = scalar_select %p170, %s17, 1
      %p172 = scmp.lt.s32.totalorder %s169, 2
      %s173 = scalar_select %p172, %s169, 2
      %s174 = smul.addr %s171, 3
      %s175 = sadd.s32 %s173, %s174
      %s176 = smul.addr %s175, 4
      %s177 = scalar_lea.vmem %s2, %s176
      %s178 = smul.u32 3, %s18
      %p179 = scmp.lt.s32.totalorder %s17, 1
      %s180 = scalar_select %p179, %s17, 1
      %p181 = scmp.lt.s32.totalorder %s178, 2
      %s182 = scalar_select %p181, %s178, 2
      %s183 = smul.addr %s180, 3
      %s184 = sadd.s32 %s182, %s183
      %s185 = smul.addr %s184, 4
      %s186 = scalar_lea.vmem %s0, %s185
      %s187 = smul.u32 3, %s18
      %p188 = scmp.lt.s32.totalorder %s17, 1
      %s189 = scalar_select %p188, %s17, 1
      %s190 = smul.addr %s189, 3
      %s191 = smul.addr %s190, 4
      %s192 = scalar_lea.vmem %s1, %s191
      %s193 = smul.u32 3, %s18
      %p194 = scmp.lt.s32.totalorder %s17, 1
      %s195 = scalar_select %p194, %s17, 1
      %p196 = scmp.lt.s32.totalorder %s193, 2
      %s197 = scalar_select %p196, %s193, 2
      %s198 = smul.addr %s195, 3
      %s199 = sadd.s32 %s197, %s198
      %s200 = smul.addr %s199, 4
      %s201 = scalar_lea.vmem %s2, %s200
      %s202 = smul.u32 3, %s18
      %v204 = vld [vmem:[%s186] sm:$0xf]
      %v205 = vld [vmem:[%s186 + $0x4] sm:$0xf]
      %v206 = vld [vmem:[%s186 + $0x8] sm:$0xf]
      %v207 = vld [vmem:[%s192] sm:$0xf]
      %v208 = vld [vmem:[%s192 + $0x4] sm:$0xf]
      %v209 = vld [vmem:[%s192 + $0x8] sm:$0x7]
      %v213 = vunpack.c.l.b16 %v204
      %v214 = vunpack.c.l.b16 %v205
      %v215 = vunpack.c.l.b16 %v206
      %v216 = vpack.c.b16 %v214, %v213
      %v217 = vpack.c.b16 %v215, %v215
      %v221 = vunpack.c.l.b16 %v207
      %v222 = vunpack.c.l.b16 %v208
      %v223 = vunpack.c.l.b16 %v209
      %v224 = vpack.c.b16 %v222, %v221
      %v225 = vpack.c.b16 %v223, %v223
      %226 = vrot.lane.b32.xlu0 %v224, 96
      %v227 = vpop.permute.xlu0 %226
      %228 = vrot.lane.b32.xlu0 %v225, 96
      %v229 = vpop.permute.xlu0 %228
      %vm230 = vcmask 64512
      %v232 = vsel %vm230, %v216, 0
      %v235 = vsel %vm230, %v217, 0
      %v238 = vsel %vm230, %v227, 0
      %v241 = vsel %vm230, %v229, 0
      %243 = vmatprep.subr.bf16.mxu0 0
      %244 = vmatpush1.bf16.xpose.msra.mxu0 0
      %245 = vmatprep.subr.bf16.mxu0 0
      %246 = vmatpush1.bf16.xpose.msra.mxu0 0
      %247 = vmatprep.subr.bf16.mxu0 0
      %248 = vmatpush1.bf16.xpose.msra.mxu0 0
      %249 = vmatprep.subr.bf16.mxu0 0
      %250 = vmatpush1.bf16.xpose.msra.mxu0 0
      %251 = vmatprep.subr.bf16.mxu0 0
      %252 = vmatpush1.bf16.xpose.msra.mxu0 0
      %253 = vmatprep.subr.bf16.mxu0 0
      %254 = vmatpush1.bf16.xpose.msra.mxu0 0
      %255 = vmatprep.subr.bf16.mxu0 0
      %256 = vmatpush1.bf16.xpose.msra.mxu0 %v241
      %257 = vmatprep.subr.bf16.mxu0 0
      %258 = vmatpush1.bf16.xpose.msra.mxu0 %v238
      %259 = vmatprep.subr.bf16.mxu0 0
      %260 = vmatpush2.bf16.xpose.msra.mxu0 0
      %261 = vmatprep.subr.bf16.mxu0 0
      %262 = vmatpush2.bf16.xpose.msra.mxu0 0
      %263 = vmatprep.subr.bf16.mxu0 0
      %264 = vmatpush2.bf16.xpose.msra.mxu0 0
      %265 = vmatprep.subr.bf16.mxu0 0
      %266 = vmatpush2.bf16.xpose.msra.mxu0 0
      %267 = vmatprep.subr.bf16.mxu0 0
      %268 = vmatpush2.bf16.xpose.msra.mxu0 0
      %269 = vmatprep.subr.bf16.mxu0 0
      %270 = vmatpush2.bf16.xpose.msra.mxu0 0
      %271 = vmatprep.subr.bf16.mxu0 0
      %272 = vmatpush2.bf16.xpose.msra.mxu0 0
      %273 = vmatprep.subr.bf16.mxu0 0
      %274 = vmatpush2.bf16.xpose.msra.mxu0 0
      %275 = vmatprep.mubr.bf16.mxu0 0
      %276 = vmatmul.mubr.bf16.gmra.mxu0 %v232
      %v277 = vpop.f32.mrf.mxu0
      %v278 = vadd.f32 0.0, %v277
      %v279 = vpop.f32.mrf.mxu0
      %v280 = vpop.f32.mrf.mxu0
      %v281 = vadd.f32 0.0, %v280
      %v282 = vpop.f32.mrf.mxu0
      %283 = vmatprep.mubr.bf16.mxu0 0
      %284 = vmatmul.mubr.bf16.gmra.mxu0 %v235
      %v285 = vpop.f32.mrf.mxu0
      %v286 = vadd.f32 0.0, %v285
      %v287 = vpop.f32.mrf.mxu0
      %v288 = vpop.f32.mrf.mxu0
      %v289 = vpop.f32.mrf.mxu0
      %290 = vdwg.mxu0
      %v291 = vmul.f32 %v278, 0.35355338
      %v292 = vmul.f32 %v281, 0.35355338
      %v293 = vmul.f32 %v286, 0.35355338
      %vm294 = vcmask 179200
      %v295 = vsel %vm294, %v291, -inf
      %296 = vmax.xlane.f32.xlu0 %v295
      %v297 = vpop.xlane.xlu0 %296
      %v298 = vsel %vm294, %v292, -inf
      %299 = vmax.xlane.f32.xlu0 %v298
      %v300 = vpop.xlane.xlu0 %299
      %v301 = vsel %vm294, %v293, -inf
      %302 = vmax.xlane.f32.xlu0 %v301
      %v303 = vpop.xlane.xlu0 %302
      %v304 = vsub.f32 %v291, %v297
      %v305 = vsub.f32 %v292, %v300
      %v306 = vsub.f32 %v293, %v303
      %v307 = vmul.f32 %v304, 1.442695
      %v308 = vpow.pop %v307
      %v309 = vmul.f32 %v305, 1.442695
      %v310 = vpow.pop %v309
      %v311 = vmul.f32 %v306, 1.442695
      %v312 = vpow.pop %v311
      %v313 = vsel %vm294, %v308, 0.0
      %314 = vadd.xlane.f32.xlu0 %v313
      %v315 = vpop.xlane.xlu0 %314
      %v316 = vsel %vm294, %v310, 0.0
      %317 = vadd.xlane.f32.xlu0 %v316
      %v318 = vpop.xlane.xlu0 %317
      %v319 = vsel %vm294, %v312, 0.0
      %320 = vadd.xlane.f32.xlu0 %v319
      %v321 = vpop.xlane.xlu0 %320
      %v322 = vrcp.pop %v315
      %v323 = vrcp.pop %v318
      %v324 = vrcp.pop %v321
      %v325 = vmul.f32 %v308, %v322
      %v326 = vmul.f32 %v310, %v323
      %v327 = vmul.f32 %v312, %v324
      %v328 = vpack.c.bf16 %v326, %v325
      %v329 = vpack.c.bf16 %v327, %v327
      %330 = vrot.lane.b32.xlu0 %v224, 64
      %v331 = vpop.permute.xlu0 %330
      %332 = vrot.lane.b32.xlu0 %v225, 64
      %v333 = vpop.permute.xlu0 %332
      %v336 = vsel %vm294, %v328, 0
      %v339 = vsel %vm294, %v329, 0
      %vm341 = vcmask 1042432
      %v343 = vsel %vm341, %v333, 0
      %345 = vmatprep.subr.bf16.mxu0 0
      %346 = vmatpush1.bf16.msra.mxu0 0
      %347 = vmatprep.subr.bf16.mxu0 0
      %348 = vmatpush1.bf16.msra.mxu0 0
      %349 = vmatprep.subr.bf16.mxu0 0
      %350 = vmatpush1.bf16.msra.mxu0 0
      %351 = vmatprep.subr.bf16.mxu0 0
      %352 = vmatpush1.bf16.msra.mxu0 0
      %353 = vmatprep.subr.bf16.mxu0 0
      %354 = vmatpush1.bf16.msra.mxu0 0
      %355 = vmatprep.subr.bf16.mxu0 0
      %356 = vmatpush1.bf16.msra.mxu0 0
      %357 = vmatprep.subr.bf16.mxu0 0
      %358 = vmatpush1.bf16.msra.mxu0 %v343
      %359 = vmatprep.subr.bf16.mxu0 0
      %360 = vmatpush1.bf16.msra.mxu0 %v331
      %361 = vmatprep.subr.bf16.mxu0 0
      %362 = vmatpush2.bf16.msra.mxu0 0
      %363 = vmatprep.subr.bf16.mxu0 0
      %364 = vmatpush2.bf16.msra.mxu0 0
      %365 = vmatprep.subr.bf16.mxu0 0
      %366 = vmatpush2.bf16.msra.mxu0 0
      %367 = vmatprep.subr.bf16.mxu0 0
      %368 = vmatpush2.bf16.msra.mxu0 0
      %369 = vmatprep.subr.bf16.mxu0 0
      %370 = vmatpush2.bf16.msra.mxu0 0
      %371 = vmatprep.subr.bf16.mxu0 0
      %372 = vmatpush2.bf16.msra.mxu0 0
      %373 = vmatprep.subr.bf16.mxu0 0
      %374 = vmatpush2.bf16.msra.mxu0 0
      %375 = vmatprep.subr.bf16.mxu0 0
      %376 = vmatpush2.bf16.msra.mxu0 0
      %377 = vmatprep.mubr.bf16.mxu0 0
      %378 = vmatmul.mubr.bf16.gmra.mxu0 %v336
      %v379 = vpop.f32.mrf.mxu0
      %v380 = vadd.f32 0.0, %v379
      %v381 = vpop.f32.mrf.mxu0
      %v382 = vpop.f32.mrf.mxu0
      %v383 = vadd.f32 0.0, %v382
      %v384 = vpop.f32.mrf.mxu0
      %385 = vmatprep.mubr.bf16.mxu0 0
      %386 = vmatmul.mubr.bf16.gmra.mxu0 %v339
      %v387 = vpop.f32.mrf.mxu0
      %v388 = vadd.f32 0.0, %v387
      %v389 = vpop.f32.mrf.mxu0
      %v390 = vpop.f32.mrf.mxu0
      %v391 = vpop.f32.mrf.mxu0
      %392 = vdwg.mxu0
      %v393 = vpack.c.bf16 %v383, %v380
      %v394 = vpack.c.bf16 %v388, %v388
      %v397 = vunpack.c.l.b16 %v393
      %v398 = vunpack.c.h.b16 %v393
      %v399 = vunpack.c.l.b16 %v394
      %v400 = vpack.c.b16 %v397, %v397
      %v401 = vpack.c.b16 %v398, %v398
      %v402 = vpack.c.b16 %v399, %v399
      %vm406 = vcmask 60416
      %407 = vst.msk [vmem:[%s201] sm:$0xf] %vm406, %v400
      %408 = vst.msk [vmem:[%s201 + $0x4] sm:$0xf] %vm406, %v401
      %409 = vst.msk [vmem:[%s201 + $0x8] sm:$0xf] %vm406, %v402
      %v410 = vld [vmem:[%s186] sm:$0xf]
      %v411 = vld [vmem:[%s186 + $0x4] sm:$0xf]
      %v412 = vld [vmem:[%s186 + $0x8] sm:$0xf]
      %v413 = vld [vmem:[%s192] sm:$0xf]
      %v414 = vld [vmem:[%s192 + $0x4] sm:$0xf]
      %v415 = vld [vmem:[%s192 + $0x8] sm:$0x7]
      %v419 = vunpack.c.l.b16 %v410
      %v420 = vunpack.c.l.b16 %v411
      %v421 = vunpack.c.l.b16 %v412
      %v422 = vpack.c.b16 %v420, %v419
      %v423 = vpack.c.b16 %v421, %v421
      %424 = vrot.lane.b32.xlu0 %v422, 120
      %v425 = vpop.permute.xlu0 %424
      %426 = vrot.lane.b32.xlu0 %v423, 120
      %v427 = vpop.permute.xlu0 %426
      %v431 = vunpack.c.l.b16 %v413
      %v432 = vunpack.c.l.b16 %v414
      %v433 = vunpack.c.l.b16 %v415
      %v434 = vpack.c.b16 %v432, %v431
      %v435 = vpack.c.b16 %v433, %v433
      %436 = vrot.lane.b32.xlu0 %v434, 88
      %v437 = vpop.permute.xlu0 %436
      %438 = vrot.lane.b32.xlu0 %v435, 88
      %v439 = vpop.permute.xlu0 %438
      %v441 = vsel %vm230, %v425, 0
      %v444 = vsel %vm230, %v427, 0
      %v447 = vsel %vm230, %v437, 0
      %v450 = vsel %vm230, %v439, 0
      %452 = vmatprep.subr.bf16.mxu0 0
      %453 = vmatpush1.bf16.xpose.msra.mxu0 0
      %454 = vmatprep.subr.bf16.mxu0 0
      %455 = vmatpush1.bf16.xpose.msra.mxu0 0
      %456 = vmatprep.subr.bf16.mxu0 0
      %457 = vmatpush1.bf16.xpose.msra.mxu0 0
      %458 = vmatprep.subr.bf16.mxu0 0
      %459 = vmatpush1.bf16.xpose.msra.mxu0 0
      %460 = vmatprep.subr.bf16.mxu0 0
      %461 = vmatpush1.bf16.xpose.msra.mxu0 0
      %462 = vmatprep.subr.bf16.mxu0 0
      %463 = vmatpush1.bf16.xpose.msra.mxu0 0
      %464 = vmatprep.subr.bf16.mxu0 0
      %465 = vmatpush1.bf16.xpose.msra.mxu0 %v450
      %466 = vmatprep.subr.bf16.mxu0 0
      %467 = vmatpush1.bf16.xpose.msra.mxu0 %v447
      %468 = vmatprep.subr.bf16.mxu0 0
      %469 = vmatpush2.bf16.xpose.msra.mxu0 0
      %470 = vmatprep.subr.bf16.mxu0 0
      %471 = vmatpush2.bf16.xpose.msra.mxu0 0
      %472 = vmatprep.subr.bf16.mxu0 0
      %473 = vmatpush2.bf16.xpose.msra.mxu0 0
      %474 = vmatprep.subr.bf16.mxu0 0
      %475 = vmatpush2.bf16.xpose.msra.mxu0 0
      %476 = vmatprep.subr.bf16.mxu0 0
      %477 = vmatpush2.bf16.xpose.msra.mxu0 0
      %478 = vmatprep.subr.bf16.mxu0 0
      %479 = vmatpush2.bf16.xpose.msra.mxu0 0
      %480 = vmatprep.subr.bf16.mxu0 0
      %481 = vmatpush2.bf16.xpose.msra.mxu0 0
      %482 = vmatprep.subr.bf16.mxu0 0
      %483 = vmatpush2.bf16.xpose.msra.mxu0 0
      %484 = vmatprep.mubr.bf16.mxu0 0
      %485 = vmatmul.mubr.bf16.gmra.mxu0 %v441
      %v486 = vpop.f32.mrf.mxu0
      %v487 = vadd.f32 0.0, %v486
      %v488 = vpop.f32.mrf.mxu0
      %v489 = vpop.f32.mrf.mxu0
      %v490 = vadd.f32 0.0, %v489
      %v491 = vpop.f32.mrf.mxu0
      %492 = vmatprep.mubr.bf16.mxu0 0
      %493 = vmatmul.mubr.bf16.gmra.mxu0 %v444
      %v494 = vpop.f32.mrf.mxu0
      %v495 = vadd.f32 0.0, %v494
      %v496 = vpop.f32.mrf.mxu0
      %v497 = vpop.f32.mrf.mxu0
      %v498 = vpop.f32.mrf.mxu0
      %499 = vdwg.mxu0
      %v500 = vmul.f32 %v487, 0.35355338
      %v501 = vmul.f32 %v490, 0.35355338
      %v502 = vmul.f32 %v495, 0.35355338
      %v503 = vsel %vm294, %v500, -inf
      %504 = vmax.xlane.f32.xlu0 %v503
      %v505 = vpop.xlane.xlu0 %504
      %v506 = vsel %vm294, %v501, -inf
      %507 = vmax.xlane.f32.xlu0 %v506
      %v508 = vpop.xlane.xlu0 %507
      %v509 = vsel %vm294, %v502, -inf
      %510 = vmax.xlane.f32.xlu0 %v509
      %v511 = vpop.xlane.xlu0 %510
      %v512 = vsub.f32 %v500, %v505
      %v513 = vsub.f32 %v501, %v508
      %v514 = vsub.f32 %v502, %v511
      %v515 = vmul.f32 %v512, 1.442695
      %v516 = vpow.pop %v515
      %v517 = vmul.f32 %v513, 1.442695
      %v518 = vpow.pop %v517
      %v519 = vmul.f32 %v514, 1.442695
      %v520 = vpow.pop %v519
      %v521 = vsel %vm294, %v516, 0.0
      %522 = vadd.xlane.f32.xlu0 %v521
      %v523 = vpop.xlane.xlu0 %522
      %v524 = vsel %vm294, %v518, 0.0
      %525 = vadd.xlane.f32.xlu0 %v524
      %v526 = vpop.xlane.xlu0 %525
      %v527 = vsel %vm294, %v520, 0.0
      %528 = vadd.xlane.f32.xlu0 %v527
      %v529 = vpop.xlane.xlu0 %528
      %v530 = vrcp.pop %v523
      %v531 = vrcp.pop %v526
      %v532 = vrcp.pop %v529
      %v533 = vmul.f32 %v516, %v530
      %v534 = vmul.f32 %v518, %v531
      %v535 = vmul.f32 %v520, %v532
      %v536 = vpack.c.bf16 %v534, %v533
      %v537 = vpack.c.bf16 %v535, %v535
      %538 = vrot.lane.b32.xlu0 %v434, 56
      %v539 = vpop.permute.xlu0 %538
      %540 = vrot.lane.b32.xlu0 %v435, 56
      %v541 = vpop.permute.xlu0 %540
      %v544 = vsel %vm294, %v536, 0
      %v547 = vsel %vm294, %v537, 0
      %v550 = vsel %vm341, %v541, 0
      %552 = vmatprep.subr.bf16.mxu0 0
      %553 = vmatpush1.bf16.msra.mxu0 0
      %554 = vmatprep.subr.bf16.mxu0 0
      %555 = vmatpush1.bf16.msra.mxu0 0
      %556 = vmatprep.subr.bf16.mxu0 0
      %557 = vmatpush1.bf16.msra.mxu0 0
      %558 = vmatprep.subr.bf16.mxu0 0
      %559 = vmatpush1.bf16.msra.mxu0 0
      %560 = vmatprep.subr.bf16.mxu0 0
      %561 = vmatpush1.bf16.msra.mxu0 0
      %562 = vmatprep.subr.bf16.mxu0 0
      %563 = vmatpush1.bf16.msra.mxu0 0
      %564 = vmatprep.subr.bf16.mxu0 0
      %565 = vmatpush1.bf16.msra.mxu0 %v550
      %566 = vmatprep.subr.bf16.mxu0 0
      %567 = vmatpush1.bf16.msra.mxu0 %v539
      %568 = vmatprep.subr.bf16.mxu0 0
      %569 = vmatpush2.bf16.msra.mxu0 0
      %570 = vmatprep.subr.bf16.mxu0 0
      %571 = vmatpush2.bf16.msra.mxu0 0
      %572 = vmatprep.subr.bf16.mxu0 0
      %573 = vmatpush2.bf16.msra.mxu0 0
      %574 = vmatprep.subr.bf16.mxu0 0
      %575 = vmatpush2.bf16.msra.mxu0 0
      %576 = vmatprep.subr.bf16.mxu0 0
      %577 = vmatpush2.bf16.msra.mxu0 0
      %578 = vmatprep.subr.bf16.mxu0 0
      %579 = vmatpush2.bf16.msra.mxu0 0
      %580 = vmatprep.subr.bf16.mxu0 0
      %581 = vmatpush2.bf16.msra.mxu0 0
      %582 = vmatprep.subr.bf16.mxu0 0
      %583 = vmatpush2.bf16.msra.mxu0 0
      %584 = vmatprep.mubr.bf16.mxu0 0
      %585 = vmatmul.mubr.bf16.gmra.mxu0 %v544
      %v586 = vpop.f32.mrf.mxu0
      %v587 = vadd.f32 0.0, %v586
      %v588 = vpop.f32.mrf.mxu0
      %v589 = vpop.f32.mrf.mxu0
      %v590 = vadd.f32 0.0, %v589
      %v591 = vpop.f32.mrf.mxu0
      %592 = vmatprep.mubr.bf16.mxu0 0
      %593 = vmatmul.mubr.bf16.gmra.mxu0 %v547
      %v594 = vpop.f32.mrf.mxu0
      %v595 = vadd.f32 0.0, %v594
      %v596 = vpop.f32.mrf.mxu0
      %v597 = vpop.f32.mrf.mxu0
      %v598 = vpop.f32.mrf.mxu0
      %599 = vdwg.mxu0
      %v600 = vpack.c.bf16 %v590, %v587
      %v601 = vpack.c.bf16 %v595, %v595
      %v604 = vunpack.c.l.b16 %v600
      %v605 = vunpack.c.h.b16 %v600
      %v606 = vunpack.c.l.b16 %v601
      %v607 = vpack.c.b16 %v604, %v604
      %v608 = vpack.c.b16 %v605, %v605
      %v609 = vpack.c.b16 %v606, %v606
      %610 = vrot.lane.b32.xlu0 %v607, 8
      %v611 = vpop.permute.xlu0 %610
      %612 = vrot.lane.b32.xlu0 %v608, 8
      %v613 = vpop.permute.xlu0 %612
      %614 = vrot.lane.b32.xlu0 %v609, 8
      %v615 = vpop.permute.xlu0 %614
      %vm619 = vcmask 126016
      %620 = vst.msk [vmem:[%s201] sm:$0xf] %vm619, %v611
      %621 = vst.msk [vmem:[%s201 + $0x4] sm:$0xf] %vm619, %v613
      %622 = vst.msk [vmem:[%s201 + $0x8] sm:$0xf] %vm619, %v615
      %v623 = vld [vmem:[%s186] sm:$0xf]
      %v624 = vld [vmem:[%s186 + $0x4] sm:$0xf]
      %v625 = vld [vmem:[%s186 + $0x8] sm:$0xf]
      %v626 = vld [vmem:[%s192] sm:$0xf]
      %v627 = vld [vmem:[%s192 + $0x4] sm:$0xf]
      %v628 = vld [vmem:[%s192 + $0x8] sm:$0x7]
      %v632 = vunpack.c.l.b16 %v623
      %v633 = vunpack.c.l.b16 %v624
      %v634 = vunpack.c.l.b16 %v625
      %v635 = vpack.c.b16 %v633, %v632
      %v636 = vpack.c.b16 %v634, %v634
      %637 = vrot.lane.b32.xlu0 %v635, 112
      %v638 = vpop.permute.xlu0 %637
      %639 = vrot.lane.b32.xlu0 %v636, 112
      %v640 = vpop.permute.xlu0 %639
      %v644 = vunpack.c.l.b16 %v626
      %v645 = vunpack.c.l.b16 %v627
      %v646 = vunpack.c.l.b16 %v628
      %v647 = vpack.c.b16 %v645, %v644
      %v648 = vpack.c.b16 %v646, %v646
      %649 = vrot.lane.b32.xlu0 %v647, 80
      %v650 = vpop.permute.xlu0 %649
      %651 = vrot.lane.b32.xlu0 %v648, 80
      %v652 = vpop.permute.xlu0 %651
      %v654 = vsel %vm230, %v638, 0
      %v657 = vsel %vm230, %v640, 0
      %v660 = vsel %vm230, %v650, 0
      %v663 = vsel %vm230, %v652, 0
      %665 = vmatprep.subr.bf16.mxu0 0
      %666 = vmatpush1.bf16.xpose.msra.mxu0 0
      %667 = vmatprep.subr.bf16.mxu0 0
      %668 = vmatpush1.bf16.xpose.msra.mxu0 0
      %669 = vmatprep.subr.bf16.mxu0 0
      %670 = vmatpush1.bf16.xpose.msra.mxu0 0
      %671 = vmatprep.subr.bf16.mxu0 0
      %672 = vmatpush1.bf16.xpose.msra.mxu0 0
      %673 = vmatprep.subr.bf16.mxu0 0
      %674 = vmatpush1.bf16.xpose.msra.mxu0 0
      %675 = vmatprep.subr.bf16.mxu0 0
      %676 = vmatpush1.bf16.xpose.msra.mxu0 0
      %677 = vmatprep.subr.bf16.mxu0 0
      %678 = vmatpush1.bf16.xpose.msra.mxu0 %v663
      %679 = vmatprep.subr.bf16.mxu0 0
      %680 = vmatpush1.bf16.xpose.msra.mxu0 %v660
      %681 = vmatprep.subr.bf16.mxu0 0
      %682 = vmatpush2.bf16.xpose.msra.mxu0 0
      %683 = vmatprep.subr.bf16.mxu0 0
      %684 = vmatpush2.bf16.xpose.msra.mxu0 0
      %685 = vmatprep.subr.bf16.mxu0 0
      %686 = vmatpush2.bf16.xpose.msra.mxu0 0
      %687 = vmatprep.subr.bf16.mxu0 0
      %688 = vmatpush2.bf16.xpose.msra.mxu0 0
      %689 = vmatprep.subr.bf16.mxu0 0
      %690 = vmatpush2.bf16.xpose.msra.mxu0 0
      %691 = vmatprep.subr.bf16.mxu0 0
      %692 = vmatpush2.bf16.xpose.msra.mxu0 0
      %693 = vmatprep.subr.bf16.mxu0 0
      %694 = vmatpush2.bf16.xpose.msra.mxu0 0
      %695 = vmatprep.subr.bf16.mxu0 0
      %696 = vmatpush2.bf16.xpose.msra.mxu0 0
      %697 = vmatprep.mubr.bf16.mxu0 0
      %698 = vmatmul.mubr.bf16.gmra.mxu0 %v654
      %v699 = vpop.f32.mrf.mxu0
      %v700 = vadd.f32 0.0, %v699
      %v701 = vpop.f32.mrf.mxu0
      %v702 = vpop.f32.mrf.mxu0
      %v703 = vadd.f32 0.0, %v702
      %v704 = vpop.f32.mrf.mxu0
      %705 = vmatprep.mubr.bf16.mxu0 0
      %706 = vmatmul.mubr.bf16.gmra.mxu0 %v657
      %v707 = vpop.f32.mrf.mxu0
      %v708 = vadd.f32 0.0, %v707
      %v709 = vpop.f32.mrf.mxu0
      %v710 = vpop.f32.mrf.mxu0
      %v711 = vpop.f32.mrf.mxu0
      %712 = vdwg.mxu0
      %v713 = vmul.f32 %v700, 0.35355338
      %v714 = vmul.f32 %v703, 0.35355338
      %v715 = vmul.f32 %v708, 0.35355338
      %v716 = vsel %vm294, %v713, -inf
      %717 = vmax.xlane.f32.xlu0 %v716
      %v718 = vpop.xlane.xlu0 %717
      %v719 = vsel %vm294, %v714, -inf
      %720 = vmax.xlane.f32.xlu0 %v719
      %v721 = vpop.xlane.xlu0 %720
      %v722 = vsel %vm294, %v715, -inf
      %723 = vmax.xlane.f32.xlu0 %v722
      %v724 = vpop.xlane.xlu0 %723
      %v725 = vsub.f32 %v713, %v718
      %v726 = vsub.f32 %v714, %v721
      %v727 = vsub.f32 %v715, %v724
      %v728 = vmul.f32 %v725, 1.442695
      %v729 = vpow.pop %v728
      %v730 = vmul.f32 %v726, 1.442695
      %v731 = vpow.pop %v730
      %v732 = vmul.f32 %v727, 1.442695
      %v733 = vpow.pop %v732
      %v734 = vsel %vm294, %v729, 0.0
      %735 = vadd.xlane.f32.xlu0 %v734
      %v736 = vpop.xlane.xlu0 %735
      %v737 = vsel %vm294, %v731, 0.0
      %738 = vadd.xlane.f32.xlu0 %v737
      %v739 = vpop.xlane.xlu0 %738
      %v740 = vsel %vm294, %v733, 0.0
      %741 = vadd.xlane.f32.xlu0 %v740
      %v742 = vpop.xlane.xlu0 %741
      %v743 = vrcp.pop %v736
      %v744 = vrcp.pop %v739
      %v745 = vrcp.pop %v742
      %v746 = vmul.f32 %v729, %v743
      %v747 = vmul.f32 %v731, %v744
      %v748 = vmul.f32 %v733, %v745
      %v749 = vpack.c.bf16 %v747, %v746
      %v750 = vpack.c.bf16 %v748, %v748
      %751 = vrot.lane.b32.xlu0 %v647, 48
      %v752 = vpop.permute.xlu0 %751
      %753 = vrot.lane.b32.xlu0 %v648, 48
      %v754 = vpop.permute.xlu0 %753
      %v757 = vsel %vm294, %v749, 0
      %v760 = vsel %vm294, %v750, 0
      %v763 = vsel %vm341, %v754, 0
      %765 = vmatprep.subr.bf16.mxu0 0
      %766 = vmatpush1.bf16.msra.mxu0 0
      %767 = vmatprep.subr.bf16.mxu0 0
      %768 = vmatpush1.bf16.msra.mxu0 0
      %769 = vmatprep.subr.bf16.mxu0 0
      %770 = vmatpush1.bf16.msra.mxu0 0
      %771 = vmatprep.subr.bf16.mxu0 0
      %772 = vmatpush1.bf16.msra.mxu0 0
      %773 = vmatprep.subr.bf16.mxu0 0
      %774 = vmatpush1.bf16.msra.mxu0 0
      %775 = vmatprep.subr.bf16.mxu0 0
      %776 = vmatpush1.bf16.msra.mxu0 0
      %777 = vmatprep.subr.bf16.mxu0 0
      %778 = vmatpush1.bf16.msra.mxu0 %v763
      %779 = vmatprep.subr.bf16.mxu0 0
      %780 = vmatpush1.bf16.msra.mxu0 %v752
      %781 = vmatprep.subr.bf16.mxu0 0
      %782 = vmatpush2.bf16.msra.mxu0 0
      %783 = vmatprep.subr.bf16.mxu0 0
      %784 = vmatpush2.bf16.msra.mxu0 0
      %785 = vmatprep.subr.bf16.mxu0 0
      %786 = vmatpush2.bf16.msra.mxu0 0
      %787 = vmatprep.subr.bf16.mxu0 0
      %788 = vmatpush2.bf16.msra.mxu0 0
      %789 = vmatprep.subr.bf16.mxu0 0
      %790 = vmatpush2.bf16.msra.mxu0 0
      %791 = vmatprep.subr.bf16.mxu0 0
      %792 = vmatpush2.bf16.msra.mxu0 0
      %793 = vmatprep.subr.bf16.mxu0 0
      %794 = vmatpush2.bf16.msra.mxu0 0
      %795 = vmatprep.subr.bf16.mxu0 0
      %796 = vmatpush2.bf16.msra.mxu0 0
      %797 = vmatprep.mubr.bf16.mxu0 0
      %798 = vmatmul.mubr.bf16.gmra.mxu0 %v757
      %v799 = vpop.f32.mrf.mxu0
      %v800 = vadd.f32 0.0, %v799
      %v801 = vpop.f32.mrf.mxu0
      %v802 = vpop.f32.mrf.mxu0
      %v803 = vadd.f32 0.0, %v802
      %v804 = vpop.f32.mrf.mxu0
      %805 = vmatprep.mubr.bf16.mxu0 0
      %806 = vmatmul.mubr.bf16.gmra.mxu0 %v760
      %v807 = vpop.f32.mrf.mxu0
      %v808 = vadd.f32 0.0, %v807
      %v809 = vpop.f32.mrf.mxu0
      %v810 = vpop.f32.mrf.mxu0
      %v811 = vpop.f32.mrf.mxu0
      %812 = vdwg.mxu0
      %v813 = vpack.c.bf16 %v803, %v800
      %v814 = vpack.c.bf16 %v808, %v808
      %v817 = vunpack.c.l.b16 %v813
      %v818 = vunpack.c.h.b16 %v813
      %v819 = vunpack.c.l.b16 %v814
      %v820 = vpack.c.b16 %v817, %v817
      %v821 = vpack.c.b16 %v818, %v818
      %v822 = vpack.c.b16 %v819, %v819
      %823 = vrot.lane.b32.xlu0 %v820, 16
      %v824 = vpop.permute.xlu0 %823
      %825 = vrot.lane.b32.xlu0 %v821, 16
      %v826 = vpop.permute.xlu0 %825
      %827 = vrot.lane.b32.xlu0 %v822, 16
      %v828 = vpop.permute.xlu0 %827
      %vm832 = vcmask 191616
      %833 = vst.msk [vmem:[%s201] sm:$0xf] %vm832, %v824
      %834 = vst.msk [vmem:[%s201 + $0x4] sm:$0xf] %vm832, %v826
      %835 = vst.msk [vmem:[%s201 + $0x8] sm:$0xf] %vm832, %v828
      %v836 = vld [vmem:[%s186] sm:$0xf]
      %v837 = vld [vmem:[%s186 + $0x4] sm:$0xf]
      %v838 = vld [vmem:[%s186 + $0x8] sm:$0xf]
      %v839 = vld [vmem:[%s192] sm:$0xf]
      %v840 = vld [vmem:[%s192 + $0x4] sm:$0xf]
      %v841 = vld [vmem:[%s192 + $0x8] sm:$0x7]
      %v845 = vunpack.c.l.b16 %v836
      %v846 = vunpack.c.l.b16 %v837
      %v847 = vunpack.c.l.b16 %v838
      %v848 = vpack.c.b16 %v846, %v845
      %v849 = vpack.c.b16 %v847, %v847
      %850 = vrot.lane.b32.xlu0 %v848, 104
      %v851 = vpop.permute.xlu0 %850
      %852 = vrot.lane.b32.xlu0 %v849, 104
      %v853 = vpop.permute.xlu0 %852
      %v857 = vunpack.c.l.b16 %v839
      %v858 = vunpack.c.l.b16 %v840
      %v859 = vunpack.c.l.b16 %v841
      %v860 = vpack.c.b16 %v858, %v857
      %v861 = vpack.c.b16 %v859, %v859
      %862 = vrot.lane.b32.xlu0 %v860, 72
      %v863 = vpop.permute.xlu0 %862
      %864 = vrot.lane.b32.xlu0 %v861, 72
      %v865 = vpop.permute.xlu0 %864
      %v867 = vsel %vm230, %v851, 0
      %v870 = vsel %vm230, %v853, 0
      %v873 = vsel %vm230, %v863, 0
      %v876 = vsel %vm230, %v865, 0
      %878 = vmatprep.subr.bf16.mxu0 0
      %879 = vmatpush1.bf16.xpose.msra.mxu0 0
      %880 = vmatprep.subr.bf16.mxu0 0
      %881 = vmatpush1.bf16.xpose.msra.mxu0 0
      %882 = vmatprep.subr.bf16.mxu0 0
      %883 = vmatpush1.bf16.xpose.msra.mxu0 0
      %884 = vmatprep.subr.bf16.mxu0 0
      %885 = vmatpush1.bf16.xpose.msra.mxu0 0
      %886 = vmatprep.subr.bf16.mxu0 0
      %887 = vmatpush1.bf16.xpose.msra.mxu0 0
      %888 = vmatprep.subr.bf16.mxu0 0
      %889 = vmatpush1.bf16.xpose.msra.mxu0 0
      %890 = vmatprep.subr.bf16.mxu0 0
      %891 = vmatpush1.bf16.xpose.msra.mxu0 %v876
      %892 = vmatprep.subr.bf16.mxu0 0
      %893 = vmatpush1.bf16.xpose.msra.mxu0 %v873
      %894 = vmatprep.subr.bf16.mxu0 0
      %895 = vmatpush2.bf16.xpose.msra.mxu0 0
      %896 = vmatprep.subr.bf16.mxu0 0
      %897 = vmatpush2.bf16.xpose.msra.mxu0 0
      %898 = vmatprep.subr.bf16.mxu0 0
      %899 = vmatpush2.bf16.xpose.msra.mxu0 0
      %900 = vmatprep.subr.bf16.mxu0 0
      %901 = vmatpush2.bf16.xpose.msra.mxu0 0
      %902 = vmatprep.subr.bf16.mxu0 0
      %903 = vmatpush2.bf16.xpose.msra.mxu0 0
      %904 = vmatprep.subr.bf16.mxu0 0
      %905 = vmatpush2.bf16.xpose.msra.mxu0 0
      %906 = vmatprep.subr.bf16.mxu0 0
      %907 = vmatpush2.bf16.xpose.msra.mxu0 0
      %908 = vmatprep.subr.bf16.mxu0 0
      %909 = vmatpush2.bf16.xpose.msra.mxu0 0
      %910 = vmatprep.mubr.bf16.mxu0 0
      %911 = vmatmul.mubr.bf16.gmra.mxu0 %v867
      %v912 = vpop.f32.mrf.mxu0
      %v913 = vadd.f32 0.0, %v912
      %v914 = vpop.f32.mrf.mxu0
      %v915 = vpop.f32.mrf.mxu0
      %v916 = vadd.f32 0.0, %v915
      %v917 = vpop.f32.mrf.mxu0
      %918 = vmatprep.mubr.bf16.mxu0 0
      %919 = vmatmul.mubr.bf16.gmra.mxu0 %v870
      %v920 = vpop.f32.mrf.mxu0
      %v921 = vadd.f32 0.0, %v920
      %v922 = vpop.f32.mrf.mxu0
      %v923 = vpop.f32.mrf.mxu0
      %v924 = vpop.f32.mrf.mxu0
      %925 = vdwg.mxu0
      %v926 = vmul.f32 %v913, 0.35355338
      %v927 = vmul.f32 %v916, 0.35355338
      %v928 = vmul.f32 %v921, 0.35355338
      %v929 = vsel %vm294, %v926, -inf
      %930 = vmax.xlane.f32.xlu0 %v929
      %v931 = vpop.xlane.xlu0 %930
      %v932 = vsel %vm294, %v927, -inf
      %933 = vmax.xlane.f32.xlu0 %v932
      %v934 = vpop.xlane.xlu0 %933
      %v935 = vsel %vm294, %v928, -inf
      %936 = vmax.xlane.f32.xlu0 %v935
      %v937 = vpop.xlane.xlu0 %936
      %v938 = vsub.f32 %v926, %v931
      %v939 = vsub.f32 %v927, %v934
      %v940 = vsub.f32 %v928, %v937
      %v941 = vmul.f32 %v938, 1.442695
      %v942 = vpow.pop %v941
      %v943 = vmul.f32 %v939, 1.442695
      %v944 = vpow.pop %v943
      %v945 = vmul.f32 %v940, 1.442695
      %v946 = vpow.pop %v945
      %v947 = vsel %vm294, %v942, 0.0
      %948 = vadd.xlane.f32.xlu0 %v947
      %v949 = vpop.xlane.xlu0 %948
      %v950 = vsel %vm294, %v944, 0.0
      %951 = vadd.xlane.f32.xlu0 %v950
      %v952 = vpop.xlane.xlu0 %951
      %v953 = vsel %vm294, %v946, 0.0
      %954 = vadd.xlane.f32.xlu0 %v953
      %v955 = vpop.xlane.xlu0 %954
      %v956 = vrcp.pop %v949
      %v957 = vrcp.pop %v952
      %v958 = vrcp.pop %v955
      %v959 = vmul.f32 %v942, %v956
      %v960 = vmul.f32 %v944, %v957
      %v961 = vmul.f32 %v946, %v958
      %v962 = vpack.c.bf16 %v960, %v959
      %v963 = vpack.c.bf16 %v961, %v961
      %964 = vrot.lane.b32.xlu0 %v860, 40
      %v965 = vpop.permute.xlu0 %964
      %966 = vrot.lane.b32.xlu0 %v861, 40
      %v967 = vpop.permute.xlu0 %966
      %v970 = vsel %vm294, %v962, 0
      %v973 = vsel %vm294, %v963, 0
      %v976 = vsel %vm341, %v967, 0
      %978 = vmatprep.subr.bf16.mxu0 0
      %979 = vmatpush1.bf16.msra.mxu0 0
      %980 = vmatprep.subr.bf16.mxu0 0
      %981 = vmatpush1.bf16.msra.mxu0 0
      %982 = vmatprep.subr.bf16.mxu0 0
      %983 = vmatpush1.bf16.msra.mxu0 0
      %984 = vmatprep.subr.bf16.mxu0 0
      %985 = vmatpush1.bf16.msra.mxu0 0
      %986 = vmatprep.subr.bf16.mxu0 0
      %987 = vmatpush1.bf16.msra.mxu0 0
      %988 = vmatprep.subr.bf16.mxu0 0
      %989 = vmatpush1.bf16.msra.mxu0 0
      %990 = vmatprep.subr.bf16.mxu0 0
      %991 = vmatpush1.bf16.msra.mxu0 %v976
      %992 = vmatprep.subr.bf16.mxu0 0
      %993 = vmatpush1.bf16.msra.mxu0 %v965
      %994 = vmatprep.subr.bf16.mxu0 0
      %995 = vmatpush2.bf16.msra.mxu0 0
      %996 = vmatprep.subr.bf16.mxu0 0
      %997 = vmatpush2.bf16.msra.mxu0 0
      %998 = vmatprep.subr.bf16.mxu0 0
      %999 = vmatpush2.bf16.msra.mxu0 0
      %1000 = vmatprep.subr.bf16.mxu0 0
      %1001 = vmatpush2.bf16.msra.mxu0 0
      %1002 = vmatprep.subr.bf16.mxu0 0
      %1003 = vmatpush2.bf16.msra.mxu0 0
      %1004 = vmatprep.subr.bf16.mxu0 0
      %1005 = vmatpush2.bf16.msra.mxu0 0
      %1006 = vmatprep.subr.bf16.mxu0 0
      %1007 = vmatpush2.bf16.msra.mxu0 0
      %1008 = vmatprep.subr.bf16.mxu0 0
      %1009 = vmatpush2.bf16.msra.mxu0 0
      %1010 = vmatprep.mubr.bf16.mxu0 0
      %1011 = vmatmul.mubr.bf16.gmra.mxu0 %v970
      %v1012 = vpop.f32.mrf.mxu0
      %v1013 = vadd.f32 0.0, %v1012
      %v1014 = vpop.f32.mrf.mxu0
      %v1015 = vpop.f32.mrf.mxu0
      %v1016 = vadd.f32 0.0, %v1015
      %v1017 = vpop.f32.mrf.mxu0
      %1018 = vmatprep.mubr.bf16.mxu0 0
      %1019 = vmatmul.mubr.bf16.gmra.mxu0 %v973
      %v1020 = vpop.f32.mrf.mxu0
      %v1021 = vadd.f32 0.0, %v1020
      %v1022 = vpop.f32.mrf.mxu0
      %v1023 = vpop.f32.mrf.mxu0
      %v1024 = vpop.f32.mrf.mxu0
      %1025 = vdwg.mxu0
      %v1026 = vpack.c.bf16 %v1016, %v1013
      %v1027 = vpack.c.bf16 %v1021, %v1021
      %v1030 = vunpack.c.l.b16 %v1026
      %v1031 = vunpack.c.h.b16 %v1026
      %v1032 = vunpack.c.l.b16 %v1027
      %v1033 = vpack.c.b16 %v1030, %v1030
      %v1034 = vpack.c.b16 %v1031, %v1031
      %v1035 = vpack.c.b16 %v1032, %v1032
      %1036 = vrot.lane.b32.xlu0 %v1033, 24
      %v1037 = vpop.permute.xlu0 %1036
      %1038 = vrot.lane.b32.xlu0 %v1034, 24
      %v1039 = vpop.permute.xlu0 %1038
      %1040 = vrot.lane.b32.xlu0 %v1035, 24
      %v1041 = vpop.permute.xlu0 %1040
      %vm1045 = vcmask 257216
      %1046 = vst.msk [vmem:[%s201] sm:$0xf] %vm1045, %v1037
      %1047 = vst.msk [vmem:[%s201 + $0x4] sm:$0xf] %vm1045, %v1039
      %1048 = vst.msk [vmem:[%s201 + $0x8] sm:$0xf] %vm1045, %v1041
      %s1049 = smul.u32 3, %s18
      %p1050 = scmp.lt.s32.totalorder %s17, 1
      %s1051 = scalar_select %p1050, %s17, 1
      %p1052 = scmp.lt.s32.totalorder %s1049, 2
      %s1053 = scalar_select %p1052, %s1049, 2
      %s1054 = smul.addr %s1051, 3
      %s1055 = sadd.s32 %s1053, %s1054
      %s1056 = smul.addr %s1055, 4
      %s1057 = scalar_lea.vmem %s2, %s1056
      // Predicated region
      $region29: #{_lambda_.40} parent=27 // pred_check
        %p1058 = pneg %p99
      $region30: #{_lambda_.40} parent=27 // pred_check_branch
        %1060 = sbr.rel (%p1058) target = $region32
      $region31: #{_lambda_.40} parent=27 // pred_region
        %s1061 = smul.u32 3, %s18
      $region32: #{_lambda_.40} parent=27 // pred_fallthru
        _
    $region28: #{_lambda_.40} parent=5 // pred_fallthru
      _
    %p1062 = scmp.le.s32.totalorder 2, %s8
    // Predicated region
    $region33: #{_lambda_.40} parent=5 // pred_check
      %p1063 = pneg %p1062
    $region34: #{_lambda_.40} parent=5 // pred_check_branch
      %1065 = sbr.rel (%p1063) target = $region36
    $region35: #{_lambda_.40} parent=5 // pred_region
      %s1066 = ssub.s32 %s8, 2
      // Predicated region
      $region37: #{_lambda_.40} parent=35 // pred_check
        %p1067 = pneg %p105
      $region38: #{_lambda_.40} parent=35 // pred_check_branch
        %1069 = sbr.rel (%p1067) target = $region40
      $region39: #{_lambda_.40} parent=35 // pred_region
        %s1070 = smul.u32 3, %s20
        %p1071 = scmp.lt.s32.totalorder %s19, 1
        %s1072 = scalar_select %p1071, %s19, 1
        %p1073 = scmp.lt.s32.totalorder %s1070, 2
        %s1074 = scalar_select %p1073, %s1070, 2
        %s1075 = smul.addr %s1072, 3
        %s1076 = sadd.s32 %s1074, %s1075
        %s1077 = smul.addr %s1076, 4
        %s1078 = scalar_lea.vmem %s2, %s1077
      $region40: #{_lambda_.40} parent=35 // pred_fallthru
        _
    $region36: #{_lambda_.40} parent=5 // pred_fallthru
      _
  $region6: #{_lambda_.40} parent=0 // loop_footer
    %s12 = sadd.s32 1, %s8
  $region7: #{_lambda_.40} parent=0 // loop_footer_branch
    %7 = sbr.rel target = $region3
  $region8: #{_lambda_.40} parent=0 // loop_exit
    _

// kernel: _lambda_.42
$region0: #{_lambda_.42}
  #allocation0 [shape = 'u32[]', space=smem, size = 0x4, offset = 0x4, fixed_abs, tag = 'smem constant byte address 0x4 - core index']
  #allocation1 [shape = 'u32[144,128]{1,0:T(1,128)}', space=vmem, size = 0x12000, scoped, tag = 'internal scratch']
  %s0 = inlined_call_operand.vmem [shape: bf16[48,32], index: 0, kind: input, shape index: {}]
  %s1 = inlined_call_operand.vmem [shape: f32[1,32], index: 1, kind: input, shape index: {}]
  %s2 = inlined_call_operand.vmem [shape: f32[1,32], index: 2, kind: input, shape index: {}]
  %s3 = inlined_call_operand.vmem [shape: bf16[48,32], index: 3, kind: output, shape index: {}]
  %s4 = sld [smem:[#allocation0]]
  $region22: #{_lambda_.42} parent=0
    _
  %s6 = ssub.s32 1, %s4
  %s7 = scalar_select 0, %s6, %s4
  // Predicated region
  $region2: #{_lambda_.42} parent=0 // pred_check
    _
  $region3: #{_lambda_.42} parent=0 // pred_check_branch
    %9 = sbr.rel (0) target = $region5
  $region4: #{_lambda_.42} parent=0 // pred_region
    _
  $region5: #{_lambda_.42} parent=0 // pred_fallthru
    _
  // Predicated region
  $region6: #{_lambda_.42} parent=0 // pred_check
    _
  $region7: #{_lambda_.42} parent=0 // pred_check_branch
    %11 = sbr.rel (0) target = $region9
  $region8: #{_lambda_.42} parent=0 // pred_region
    _
  $region9: #{_lambda_.42} parent=0 // pred_fallthru
    _
  // Predicated region
  $region10: #{_lambda_.42} parent=0 // pred_check
    _
  $region11: #{_lambda_.42} parent=0 // pred_check_branch
    %13 = sbr.rel (0) target = $region13
  $region12: #{_lambda_.42} parent=0 // pred_region
    _
  $region13: #{_lambda_.42} parent=0 // pred_fallthru
    _
  %v14 = vld [vmem:[%s0] sm:$0xf]
  %v15 = vld [vmem:[%s0 + $0x4] sm:$0xf]
  %v16 = vld [vmem:[%s0 + $0x8] sm:$0xf]
  %v17 = vld [vmem:[%s0 + $0xc] sm:$0xf]
  %v18 = vld [vmem:[%s0 + $0x10] sm:$0xf]
  %v19 = vld [vmem:[%s0 + $0x14] sm:$0xf]
  %v20 = vunpack.c.l.bf16 %v14
  %v21 = vunpack.c.l.bf16 %v15
  %v22 = vunpack.c.l.bf16 %v16
  %v23 = vunpack.c.l.bf16 %v17
  %v24 = vunpack.c.l.bf16 %v18
  %v25 = vunpack.c.l.bf16 %v19
  %vm26 = vcmask 261120
  %v27 = vsel %vm26, %v20, 0.0
  %28 = vadd.xlane.f32.xlu0 %v27
  %v29 = vpop.xlane.xlu0 %28
  %v30 = vsel %vm26, %v21, 0.0
  %31 = vadd.xlane.f32.xlu0 %v30
  %v32 = vpop.xlane.xlu0 %31
  %v33 = vsel %vm26, %v22, 0.0
  %34 = vadd.xlane.f32.xlu0 %v33
  %v35 = vpop.xlane.xlu0 %34
  %v36 = vsel %vm26, %v23, 0.0
  %37 = vadd.xlane.f32.xlu0 %v36
  %v38 = vpop.xlane.xlu0 %37
  %v39 = vsel %vm26, %v24, 0.0
  %40 = vadd.xlane.f32.xlu0 %v39
  %v41 = vpop.xlane.xlu0 %40
  %v42 = vsel %vm26, %v25, 0.0
  %43 = vadd.xlane.f32.xlu0 %v42
  %v44 = vpop.xlane.xlu0 %43
  %v45 = vrcp.pop 32.0
  %v46 = vmul.f32 %v29, %v45
  %v47 = vmul.f32 %v32, %v45
  %v48 = vmul.f32 %v35, %v45
  %v49 = vmul.f32 %v38, %v45
  %v50 = vmul.f32 %v41, %v45
  %v51 = vmul.f32 %v44, %v45
  %v52 = vsub.f32 %v20, %v46
  %v53 = vsub.f32 %v21, %v47
  %v54 = vsub.f32 %v22, %v48
  %v55 = vsub.f32 %v23, %v49
  %v56 = vsub.f32 %v24, %v50
  %v57 = vsub.f32 %v25, %v51
  %v58 = vmul.f32 %v52, %v52
  %v59 = vmul.f32 %v53, %v53
  %v60 = vmul.f32 %v54, %v54
  %v61 = vmul.f32 %v55, %v55
  %v62 = vmul.f32 %v56, %v56
  %v63 = vmul.f32 %v57, %v57
  %v64 = vsel %vm26, %v58, 0.0
  %65 = vadd.xlane.f32.xlu0 %v64
  %v66 = vpop.xlane.xlu0 %65
  %v67 = vsel %vm26, %v59, 0.0
  %68 = vadd.xlane.f32.xlu0 %v67
  %v69 = vpop.xlane.xlu0 %68
  %v70 = vsel %vm26, %v60, 0.0
  %71 = vadd.xlane.f32.xlu0 %v70
  %v72 = vpop.xlane.xlu0 %71
  %v73 = vsel %vm26, %v61, 0.0
  %74 = vadd.xlane.f32.xlu0 %v73
  %v75 = vpop.xlane.xlu0 %74
  %v76 = vsel %vm26, %v62, 0.0
  %77 = vadd.xlane.f32.xlu0 %v76
  %v78 = vpop.xlane.xlu0 %77
  %v79 = vsel %vm26, %v63, 0.0
  %80 = vadd.xlane.f32.xlu0 %v79
  %v81 = vpop.xlane.xlu0 %80
  %v82 = vmul.f32 %v66, %v45
  %v83 = vmul.f32 %v69, %v45
  %v84 = vmul.f32 %v72, %v45
  %v85 = vmul.f32 %v75, %v45
  %v86 = vmul.f32 %v78, %v45
  %v87 = vmul.f32 %v81, %v45
  %v88 = vadd.f32 %v82, 1e-05
  %v89 = vadd.f32 %v83, 1e-05
  %v90 = vadd.f32 %v84, 1e-05
  %v91 = vadd.f32 %v85, 1e-05
  %v92 = vadd.f32 %v86, 1e-05
  %v93 = vadd.f32 %v87, 1e-05
  %v94 = vrsqrt.pop %v88
  %v95 = vrsqrt.pop %v89
  %v96 = vrsqrt.pop %v90
  %v97 = vrsqrt.pop %v91
  %v98 = vrsqrt.pop %v92
  %v99 = vrsqrt.pop %v93
  %v100 = vmul.f32 %v52, %v94
  %v101 = vmul.f32 %v53, %v95
  %v102 = vmul.f32 %v54, %v96
  %v103 = vmul.f32 %v55, %v97
  %v104 = vmul.f32 %v56, %v98
  %v105 = vmul.f32 %v57, %v99
  %v106 = vld [vmem:[%s1] sm:$0x1]
  %v108 = vlaneseq
  %v109 = vshrl.u32 %v108, 7
  %v110 = vsub.s32 0, %v109
  %v111 = vrot.slane %v106, %v110
  %v113 = vmul.f32 %v100, %v111
  %v114 = vmul.f32 %v101, %v111
  %v115 = vmul.f32 %v102, %v111
  %v116 = vmul.f32 %v103, %v111
  %v117 = vmul.f32 %v104, %v111
  %v118 = vmul.f32 %v105, %v111
  %v119 = vld [vmem:[%s2] sm:$0x1]
  %v121 = vlaneseq
  %v122 = vshrl.u32 %v121, 7
  %v123 = vsub.s32 0, %v122
  %v124 = vrot.slane %v119, %v123
  %v126 = vadd.f32 %v113, %v124
  %v127 = vadd.f32 %v114, %v124
  %v128 = vadd.f32 %v115, %v124
  %v129 = vadd.f32 %v116, %v124
  %v130 = vadd.f32 %v117, %v124
  %v131 = vadd.f32 %v118, %v124
  %v132 = vpack.c.bf16 %v127, %v126
  %v133 = vpack.c.bf16 %v129, %v128
  %v134 = vpack.c.bf16 %v131, %v130
  %v138 = vunpack.c.l.b16 %v132
  %v139 = vunpack.c.h.b16 %v132
  %v140 = vunpack.c.l.b16 %v133
  %v141 = vunpack.c.h.b16 %v133
  %v142 = vunpack.c.l.b16 %v134
  %v143 = vunpack.c.h.b16 %v134
  %v144 = vpack.c.b16 %v138, %v138
  %v145 = vpack.c.b16 %v139, %v139
  %v146 = vpack.c.b16 %v140, %v140
  %v147 = vpack.c.b16 %v141, %v141
  %v148 = vpack.c.b16 %v142, %v142
  %v149 = vpack.c.b16 %v143, %v143
  %vm156 = vcmask 257024
  %157 = vst.msk [vmem:[%s3] sm:$0xf] %vm156, %v144
  %158 = vst.msk [vmem:[%s3 + $0x4] sm:$0xf] %vm156, %v145
  %159 = vst.msk [vmem:[%s3 + $0x8] sm:$0xf] %vm156, %v146
  %160 = vst.msk [vmem:[%s3 + $0xc] sm:$0xf] %vm156, %v147
  %161 = vst.msk [vmem:[%s3 + $0x10] sm:$0xf] %vm156, %v148
  %162 = vst.msk [vmem:[%s3 + $0x14] sm:$0xf] %vm156, %v149
  // Predicated region
  $region14: #{_lambda_.42} parent=0 // pred_check
    _
  $region15: #{_lambda_.42} parent=0 // pred_check_branch
    %164 = sbr.rel (0) target = $region17
  $region16: #{_lambda_.42} parent=0 // pred_region
    _
  $region17: #{_lambda_.42} parent=0 // pred_fallthru
    _
  // Predicated region
  $region18: #{_lambda_.42} parent=0 // pred_check
    _
  $region19: #{_lambda_.42} parent=0 // pred_check_branch
    %166 = sbr.rel (0) target = $region21
  $region20: #{_lambda_.42} parent=0 // pred_region
    _
  $region21: #{_lambda_.42} parent=0 // pred_fallthru
    _

// kernel: _lambda_.34
$region0: #{_lambda_.34}
  #allocation0 [shape = 'u32[]', space=smem, size = 0x4, offset = 0x4, fixed_abs, tag = 'smem constant byte address 0x4 - core index']
  #allocation1 [shape = 'u32[144,128]{1,0:T(1,128)}', space=vmem, size = 0x12000, scoped, tag = 'internal scratch']
  %s0 = inlined_call_operand.vmem [shape: bf16[16,32], index: 0, kind: input, shape index: {}]
  %s1 = inlined_call_operand.vmem [shape: bf16[16,32], index: 1, kind: output, shape index: {}]
  %s2 = sld [smem:[#allocation0]]
  $region14: #{_lambda_.34} parent=0
    _
  %s4 = ssub.s32 1, %s2
  %s5 = scalar_select 0, %s4, %s2
  // Predicated region
  $region2: #{_lambda_.34} parent=0 // pred_check
    _
  $region3: #{_lambda_.34} parent=0 // pred_check_branch
    %7 = sbr.rel (0) target = $region5
  $region4: #{_lambda_.34} parent=0 // pred_region
    _
  $region5: #{_lambda_.34} parent=0 // pred_fallthru
    _
  %v8 = vld [vmem:[%s0] sm:$0xf]
  %v9 = vld [vmem:[%s0 + $0x4] sm:$0xf]
  %v10 = vunpack.c.l.bf16 %v8
  %v11 = vunpack.c.l.bf16 %v9
  %vm12 = vcmask 261120
  %v13 = vsel %vm12, %v10, 0.0
  %14 = vadd.xlane.f32.xlu0 %v13
  %v15 = vpop.xlane.xlu0 %14
  %v16 = vsel %vm12, %v11, 0.0
  %17 = vadd.xlane.f32.xlu0 %v16
  %v18 = vpop.xlane.xlu0 %17
  %v19 = vrcp.pop 32.0
  %v20 = vmul.f32 %v15, %v19
  %v21 = vmul.f32 %v18, %v19
  %v22 = vsub.f32 %v10, %v20
  %v23 = vsub.f32 %v11, %v21
  %v24 = vmul.f32 %v22, %v22
  %v25 = vmul.f32 %v23, %v23
  %v26 = vsel %vm12, %v24, 0.0
  %27 = vadd.xlane.f32.xlu0 %v26
  %v28 = vpop.xlane.xlu0 %27
  %v29 = vsel %vm12, %v25, 0.0
  %30 = vadd.xlane.f32.xlu0 %v29
  %v31 = vpop.xlane.xlu0 %30
  %v32 = vmul.f32 %v28, %v19
  %v33 = vmul.f32 %v31, %v19
  %v34 = vadd.f32 %v32, 1e-06
  %v35 = vadd.f32 %v33, 1e-06
  %v36 = vrsqrt.pop %v34
  %v37 = vrsqrt.pop %v35
  %v38 = vmul.f32 %v22, %v36
  %v39 = vmul.f32 %v23, %v37
  %v40 = vpack.c.bf16 %v39, %v38
  %v42 = vunpack.c.l.b16 %v40
  %v43 = vunpack.c.h.b16 %v40
  %v44 = vpack.c.b16 %v42, %v42
  %v45 = vpack.c.b16 %v43, %v43
  %vm48 = vcmask 257024
  %49 = vst.msk [vmem:[%s1] sm:$0xf] %vm48, %v44
  %50 = vst.msk [vmem:[%s1 + $0x4] sm:$0xf] %vm48, %v45
  // Predicated region
  $region6: #{_lambda_.34} parent=0 // pred_check
    _
  $region7: #{_lambda_.34} parent=0 // pred_check_branch
    %52 = sbr.rel (0) target = $region9
  $region8: #{_lambda_.34} parent=0 // pred_region
    _
  $region9: #{_lambda_.34} parent=0 // pred_fallthru
    _
  // Predicated region
  $region10: #{_lambda_.34} parent=0 // pred_check
    _
  $region11: #{_lambda_.34} parent=0 // pred_check_branch
    %54 = sbr.rel (0) target = $region13
  $region12: #{_lambda_.34} parent=0 // pred_region
    _
  $region13: #{_lambda_.34} parent=0 // pred_fallthru
    _

// kernel: _lambda_.33
$region0: #{_lambda_.33}
  #allocation0 [shape = 'u32[]', space=smem, size = 0x4, offset = 0x4, fixed_abs, tag = 'smem constant byte address 0x4 - core index']
  #allocation1 [shape = 'u32[144,128]{1,0:T(1,128)}', space=vmem, size = 0x12000, scoped, tag = 'internal scratch']
  #allocation2 [shape = 'f32[16,128]{1,0:T(8,128)}', space=vmem, size = 0x2000, scoped, tag = 'scratch operand']
  %s0 = inlined_call_operand.vmem [shape: bf16[16,128], index: 0, kind: input, shape index: {}]
  %s1 = inlined_call_operand.vmem [shape: bf16[128,128], index: 1, kind: input, shape index: {}]
  %s2 = inlined_call_operand.vmem [shape: f32[1,128], index: 2, kind: input, shape index: {}]
  %s3 = inlined_call_operand.vmem [shape: bf16[16,128], index: 3, kind: output, shape index: {}]
  %s4 = sld [smem:[#allocation0]]
  $region34: #{_lambda_.33} parent=0
    _
  %s6 = ssub.s32 1, %s4
  %s7 = scalar_select 0, %s6, %s4
  // Predicated region
  $region2: #{_lambda_.33} parent=0 // pred_check
    _
  $region3: #{_lambda_.33} parent=0 // pred_check_branch
    %9 = sbr.rel (0) target = $region5
  $region4: #{_lambda_.33} parent=0 // pred_region
    _
  $region5: #{_lambda_.33} parent=0 // pred_fallthru
    _
  // Predicated region
  $region6: #{_lambda_.33} parent=0 // pred_check
    _
  $region7: #{_lambda_.33} parent=0 // pred_check_branch
    %11 = sbr.rel (0) target = $region9
  $region8: #{_lambda_.33} parent=0 // pred_region
    _
  $region9: #{_lambda_.33} parent=0 // pred_fallthru
    _
  // Predicated region
  $region10: #{_lambda_.33} parent=0 // pred_check
    _
  $region11: #{_lambda_.33} parent=0 // pred_check_branch
    %13 = sbr.rel (0) target = $region13
  $region12: #{_lambda_.33} parent=0 // pred_region
    _
  $region13: #{_lambda_.33} parent=0 // pred_fallthru
    _
  %v15 = vld [vmem:[%s0] sm:$0xf]
  %v16 = vld [vmem:[%s0 + $0x4] sm:$0xf]
  %v17 = vld [vmem:[%s1] sm:$0xf]
  %v18 = vld [vmem:[%s1 + $0x4] sm:$0xf]
  %v19 = vld [vmem:[%s1 + $0x8] sm:$0xf]
  %v20 = vld [vmem:[%s1 + $0xc] sm:$0xf]
  %v21 = vld [vmem:[%s1 + $0x10] sm:$0xf]
  %v22 = vld [vmem:[%s1 + $0x14] sm:$0xf]
  %v23 = vld [vmem:[%s1 + $0x18] sm:$0xf]
  %v24 = vld [vmem:[%s1 + $0x1c] sm:$0xf]
  %v25 = vld [vmem:[%s1 + $0x20] sm:$0xf]
  %v26 = vld [vmem:[%s1 + $0x24] sm:$0xf]
  %v27 = vld [vmem:[%s1 + $0x28] sm:$0xf]
  %v28 = vld [vmem:[%s1 + $0x2c] sm:$0xf]
  %v29 = vld [vmem:[%s1 + $0x30] sm:$0xf]
  %v30 = vld [vmem:[%s1 + $0x34] sm:$0xf]
  %v31 = vld [vmem:[%s1 + $0x38] sm:$0xf]
  %v32 = vld [vmem:[%s1 + $0x3c] sm:$0xf]
  %v35 = vunpack.c.l.b16 %v15
  %v36 = vunpack.c.l.b16 %v16
  %v37 = vpack.c.b16 %v36, %v35
  %v55 = vunpack.c.l.b16 %v17
  %v56 = vunpack.c.l.b16 %v18
  %v57 = vunpack.c.l.b16 %v19
  %v58 = vunpack.c.l.b16 %v20
  %v59 = vunpack.c.l.b16 %v21
  %v60 = vunpack.c.l.b16 %v22
  %v61 = vunpack.c.l.b16 %v23
  %v62 = vunpack.c.l.b16 %v24
  %v63 = vunpack.c.l.b16 %v25
  %v64 = vunpack.c.l.b16 %v26
  %v65 = vunpack.c.l.b16 %v27
  %v66 = vunpack.c.l.b16 %v28
  %v67 = vunpack.c.l.b16 %v29
  %v68 = vunpack.c.l.b16 %v30
  %v69 = vunpack.c.l.b16 %v31
  %v70 = vunpack.c.l.b16 %v32
  %v71 = vpack.c.b16 %v56, %v55
  %v72 = vpack.c.b16 %v58, %v57
  %v73 = vpack.c.b16 %v60, %v59
  %v74 = vpack.c.b16 %v62, %v61
  %v75 = vpack.c.b16 %v64, %v63
  %v76 = vpack.c.b16 %v66, %v65
  %v77 = vpack.c.b16 %v68, %v67
  %v78 = vpack.c.b16 %v70, %v69
  %87 = vmatprep.subr.bf16.mxu0 0
  %88 = vmatpush1.bf16.msra.mxu0 %v78
  %89 = vmatprep.subr.bf16.mxu0 0
  %90 = vmatpush1.bf16.msra.mxu0 %v77
  %91 = vmatprep.subr.bf16.mxu0 0
  %92 = vmatpush1.bf16.msra.mxu0 %v76
  %93 = vmatprep.subr.bf16.mxu0 0
  %94 = vmatpush1.bf16.msra.mxu0 %v75
  %95 = vmatprep.subr.bf16.mxu0 0
  %96 = vmatpush1.bf16.msra.mxu0 %v74
  %97 = vmatprep.subr.bf16.mxu0 0
  %98 = vmatpush1.bf16.msra.mxu0 %v73
  %99 = vmatprep.subr.bf16.mxu0 0
  %100 = vmatpush1.bf16.msra.mxu0 %v72
  %101 = vmatprep.subr.bf16.mxu0 0
  %102 = vmatpush1.bf16.msra.mxu0 %v71
  %103 = vmatprep.subr.bf16.mxu0 0
  %104 = vmatpush2.bf16.msra.mxu0 0
  %105 = vmatprep.subr.bf16.mxu0 0
  %106 = vmatpush2.bf16.msra.mxu0 0
  %107 = vmatprep.subr.bf16.mxu0 0
  %108 = vmatpush2.bf16.msra.mxu0 0
  %109 = vmatprep.subr.bf16.mxu0 0
  %110 = vmatpush2.bf16.msra.mxu0 0
  %111 = vmatprep.subr.bf16.mxu0 0
  %112 = vmatpush2.bf16.msra.mxu0 0
  %113 = vmatprep.subr.bf16.mxu0 0
  %114 = vmatpush2.bf16.msra.mxu0 0
  %115 = vmatprep.subr.bf16.mxu0 0
  %116 = vmatpush2.bf16.msra.mxu0 0
  %117 = vmatprep.subr.bf16.mxu0 0
  %118 = vmatpush2.bf16.msra.mxu0 0
  %119 = vmatprep.mubr.bf16.mxu0 0
  %120 = vmatmul.mubr.bf16.gmra.mxu0 %v37
  %v121 = vpop.f32.mrf.mxu0
  %v122 = vadd.f32 0.0, %v121
  %v123 = vpop.f32.mrf.mxu0
  %v124 = vpop.f32.mrf.mxu0
  %v125 = vadd.f32 0.0, %v124
  %v126 = vpop.f32.mrf.mxu0
  %127 = vdwg.mxu0
  %p128 = scmp.eq.s32.totalorder 0, 0
  // Predicated region
  $region14: #{_lambda_.33} parent=0 // pred_check
    %p129 = pneg %p128
  $region15: #{_lambda_.33} parent=0 // pred_check_branch
    %131 = sbr.rel (%p129) target = $region17
  $region16: #{_lambda_.33} parent=0 // pred_region
    %132 = vst [vmem:[#allocation2] sm:$0xff] %v122
    %133 = vst [vmem:[#allocation2 + $0x8] sm:$0xff] %v125
  $region17: #{_lambda_.33} parent=0 // pred_fallthru
    _
  %p134 = scmp.gt.s32.totalorder 0, 0
  // Predicated region
  $region18: #{_lambda_.33} parent=0 // pred_check
    %p135 = pneg %p134
  $region19: #{_lambda_.33} parent=0 // pred_check_branch
    %137 = sbr.rel (%p135) target = $region21
  $region20: #{_lambda_.33} parent=0 // pred_region
    %v138 = vld [vmem:[#allocation2] sm:$0xff]
    %v139 = vld [vmem:[#allocation2 + $0x8] sm:$0xff]
    %v140 = vadd.f32 %v138, %v122
    %v141 = vadd.f32 %v139, %v125
    %142 = vst [vmem:[#allocation2] sm:$0xff] %v140
    %143 = vst [vmem:[#allocation2 + $0x8] sm:$0xff] %v141
  $region21: #{_lambda_.33} parent=0 // pred_fallthru
    _
  // Predicated region
  $region22: #{_lambda_.33} parent=0 // pred_check
    %p144 = pneg %p128
  $region23: #{_lambda_.33} parent=0 // pred_check_branch
    %146 = sbr.rel (%p144) target = $region25
  $region24: #{_lambda_.33} parent=0 // pred_region
    %v147 = vld [vmem:[#allocation2] sm:$0xff]
    %v148 = vld [vmem:[#allocation2 + $0x8] sm:$0xff]
    %v149 = vld [vmem:[%s2] sm:$0x1]
    %v151 = vlaneseq
    %v152 = vshrl.u32 %v151, 7
    %v153 = vsub.s32 0, %v152
    %v154 = vrot.slane %v149, %v153
    %v156 = vadd.f32 %v147, %v154
    %v157 = vadd.f32 %v148, %v154
    %v158 = vpack.c.bf16 %v157, %v156
    %v160 = vunpack.c.l.b16 %v158
    %v161 = vunpack.c.h.b16 %v158
    %v162 = vpack.c.b16 %v160, %v160
    %v163 = vpack.c.b16 %v161, %v161
    %166 = vst [vmem:[%s3] sm:$0xf] %v162
    %167 = vst [vmem:[%s3 + $0x4] sm:$0xf] %v163
  $region25: #{_lambda_.33} parent=0 // pred_fallthru
    _
  // Predicated region
  $region26: #{_lambda_.33} parent=0 // pred_check
    _
  $region27: #{_lambda_.33} parent=0 // pred_check_branch
    %169 = sbr.rel (0) target = $region29
  $region28: #{_lambda_.33} parent=0 // pred_region
    _
  $region29: #{_lambda_.33} parent=0 // pred_fallthru
    _
  // Predicated region
  $region30: #{_lambda_.33} parent=0 // pred_check
    _
  $region31: #{_lambda_.33} parent=0 // pred_check_branch
    %171 = sbr.rel (0) target = $region33
  $region32: #{_lambda_.33} parent=0 // pred_region
    _
  $region33: #{_lambda_.33} parent=0 // pred_fallthru
    _

// kernel: _lambda_.48
$region0: #{_lambda_.48}
  #allocation0 [shape = 'u32[]', space=smem, size = 0x4, offset = 0x4, fixed_abs, tag = 'smem constant byte address 0x4 - core index']
  #allocation1 [shape = 'u32[144,128]{1,0:T(1,128)}', space=vmem, size = 0x12000, scoped, tag = 'internal scratch']
  #allocation2 [shape = 'f32[48,128]{1,0:T(8,128)}', space=vmem, size = 0x6000, scoped, tag = 'scratch operand']
  %s0 = inlined_call_operand.vmem [shape: bf16[48,128], index: 0, kind: input, shape index: {}]
  %s1 = inlined_call_operand.vmem [shape: bf16[128,128], index: 1, kind: input, shape index: {}]
  %s2 = inlined_call_operand.vmem [shape: f32[1,128], index: 2, kind: input, shape index: {}]
  %s3 = inlined_call_operand.vmem [shape: bf16[48,128], index: 3, kind: output, shape index: {}]
  %s4 = sld [smem:[#allocation0]]
  $region34: #{_lambda_.48} parent=0
    _
  %s6 = ssub.s32 1, %s4
  %s7 = scalar_select 0, %s6, %s4
  // Predicated region
  $region2: #{_lambda_.48} parent=0 // pred_check
    _
  $region3: #{_lambda_.48} parent=0 // pred_check_branch
    %9 = sbr.rel (0) target = $region5
  $region4: #{_lambda_.48} parent=0 // pred_region
    _
  $region5: #{_lambda_.48} parent=0 // pred_fallthru
    _
  // Predicated region
  $region6: #{_lambda_.48} parent=0 // pred_check
    _
  $region7: #{_lambda_.48} parent=0 // pred_check_branch
    %11 = sbr.rel (0) target = $region9
  $region8: #{_lambda_.48} parent=0 // pred_region
    _
  $region9: #{_lambda_.48} parent=0 // pred_fallthru
    _
  // Predicated region
  $region10: #{_lambda_.48} parent=0 // pred_check
    _
  $region11: #{_lambda_.48} parent=0 // pred_check_branch
    %13 = sbr.rel (0) target = $region13
  $region12: #{_lambda_.48} parent=0 // pred_region
    _
  $region13: #{_lambda_.48} parent=0 // pred_fallthru
    _
  %v15 = vld [vmem:[%s0] sm:$0xf]
  %v16 = vld [vmem:[%s0 + $0x4] sm:$0xf]
  %v17 = vld [vmem:[%s0 + $0x8] sm:$0xf]
  %v18 = vld [vmem:[%s0 + $0xc] sm:$0xf]
  %v19 = vld [vmem:[%s0 + $0x10] sm:$0xf]
  %v20 = vld [vmem:[%s0 + $0x14] sm:$0xf]
  %v21 = vld [vmem:[%s1] sm:$0xf]
  %v22 = vld [vmem:[%s1 + $0x4] sm:$0xf]
  %v23 = vld [vmem:[%s1 + $0x8] sm:$0xf]
  %v24 = vld [vmem:[%s1 + $0xc] sm:$0xf]
  %v25 = vld [vmem:[%s1 + $0x10] sm:$0xf]
  %v26 = vld [vmem:[%s1 + $0x14] sm:$0xf]
  %v27 = vld [vmem:[%s1 + $0x18] sm:$0xf]
  %v28 = vld [vmem:[%s1 + $0x1c] sm:$0xf]
  %v29 = vld [vmem:[%s1 + $0x20] sm:$0xf]
  %v30 = vld [vmem:[%s1 + $0x24] sm:$0xf]
  %v31 = vld [vmem:[%s1 + $0x28] sm:$0xf]
  %v32 = vld [vmem:[%s1 + $0x2c] sm:$0xf]
  %v33 = vld [vmem:[%s1 + $0x30] sm:$0xf]
  %v34 = vld [vmem:[%s1 + $0x34] sm:$0xf]
  %v35 = vld [vmem:[%s1 + $0x38] sm:$0xf]
  %v36 = vld [vmem:[%s1 + $0x3c] sm:$0xf]
  %v43 = vunpack.c.l.b16 %v15
  %v44 = vunpack.c.l.b16 %v16
  %v45 = vunpack.c.l.b16 %v17
  %v46 = vunpack.c.l.b16 %v18
  %v47 = vunpack.c.l.b16 %v19
  %v48 = vunpack.c.l.b16 %v20
  %v49 = vpack.c.b16 %v44, %v43
  %v50 = vpack.c.b16 %v46, %v45
  %v51 = vpack.c.b16 %v48, %v47
  %v71 = vunpack.c.l.b16 %v21
  %v72 = vunpack.c.l.b16 %v22
  %v73 = vunpack.c.l.b16 %v23
  %v74 = vunpack.c.l.b16 %v24
  %v75 = vunpack.c.l.b16 %v25
  %v76 = vunpack.c.l.b16 %v26
  %v77 = vunpack.c.l.b16 %v27
  %v78 = vunpack.c.l.b16 %v28
  %v79 = vunpack.c.l.b16 %v29
  %v80 = vunpack.c.l.b16 %v30
  %v81 = vunpack.c.l.b16 %v31
  %v82 = vunpack.c.l.b16 %v32
  %v83 = vunpack.c.l.b16 %v33
  %v84 = vunpack.c.l.b16 %v34
  %v85 = vunpack.c.l.b16 %v35
  %v86 = vunpack.c.l.b16 %v36
  %v87 = vpack.c.b16 %v72, %v71
  %v88 = vpack.c.b16 %v74, %v73
  %v89 = vpack.c.b16 %v76, %v75
  %v90 = vpack.c.b16 %v78, %v77
  %v91 = vpack.c.b16 %v80, %v79
  %v92 = vpack.c.b16 %v82, %v81
  %v93 = vpack.c.b16 %v84, %v83
  %v94 = vpack.c.b16 %v86, %v85
  %103 = vmatprep.subr.bf16.mxu0 0
  %104 = vmatpush1.bf16.msra.mxu0 %v94
  %105 = vmatprep.subr.bf16.mxu0 0
  %106 = vmatpush1.bf16.msra.mxu0 %v93
  %107 = vmatprep.subr.bf16.mxu0 0
  %108 = vmatpush1.bf16.msra.mxu0 %v92
  %109 = vmatprep.subr.bf16.mxu0 0
  %110 = vmatpush1.bf16.msra.mxu0 %v91
  %111 = vmatprep.subr.bf16.mxu0 0
  %112 = vmatpush1.bf16.msra.mxu0 %v90
  %113 = vmatprep.subr.bf16.mxu0 0
  %114 = vmatpush1.bf16.msra.mxu0 %v89
  %115 = vmatprep.subr.bf16.mxu0 0
  %116 = vmatpush1.bf16.msra.mxu0 %v88
  %117 = vmatprep.subr.bf16.mxu0 0
  %118 = vmatpush1.bf16.msra.mxu0 %v87
  %119 = vmatprep.subr.bf16.mxu0 0
  %120 = vmatpush2.bf16.msra.mxu0 0
  %121 = vmatprep.subr.bf16.mxu0 0
  %122 = vmatpush2.bf16.msra.mxu0 0
  %123 = vmatprep.subr.bf16.mxu0 0
  %124 = vmatpush2.bf16.msra.mxu0 0
  %125 = vmatprep.subr.bf16.mxu0 0
  %126 = vmatpush2.bf16.msra.mxu0 0
  %127 = vmatprep.subr.bf16.mxu0 0
  %128 = vmatpush2.bf16.msra.mxu0 0
  %129 = vmatprep.subr.bf16.mxu0 0
  %130 = vmatpush2.bf16.msra.mxu0 0
  %131 = vmatprep.subr.bf16.mxu0 0
  %132 = vmatpush2.bf16.msra.mxu0 0
  %133 = vmatprep.subr.bf16.mxu0 0
  %134 = vmatpush2.bf16.msra.mxu0 0
  %135 = vmatprep.mubr.bf16.mxu0 0
  %136 = vmatmul.mubr.bf16.gmra.mxu0 %v49
  %v137 = vpop.f32.mrf.mxu0
  %v138 = vadd.f32 0.0, %v137
  %v139 = vpop.f32.mrf.mxu0
  %v140 = vpop.f32.mrf.mxu0
  %v141 = vadd.f32 0.0, %v140
  %v142 = vpop.f32.mrf.mxu0
  %143 = vmatprep.mubr.bf16.mxu0 0
  %144 = vmatmul.mubr.bf16.gmra.mxu0 %v50
  %v145 = vpop.f32.mrf.mxu0
  %v146 = vadd.f32 0.0, %v145
  %v147 = vpop.f32.mrf.mxu0
  %v148 = vpop.f32.mrf.mxu0
  %v149 = vadd.f32 0.0, %v148
  %v150 = vpop.f32.mrf.mxu0
  %151 = vmatprep.mubr.bf16.mxu0 0
  %152 = vmatmul.mubr.bf16.gmra.mxu0 %v51
  %v153 = vpop.f32.mrf.mxu0
  %v154 = vadd.f32 0.0, %v153
  %v155 = vpop.f32.mrf.mxu0
  %v156 = vpop.f32.mrf.mxu0
  %v157 = vadd.f32 0.0, %v156
  %v158 = vpop.f32.mrf.mxu0
  %159 = vdwg.mxu0
  %p160 = scmp.eq.s32.totalorder 0, 0
  // Predicated region
  $region14: #{_lambda_.48} parent=0 // pred_check
    %p161 = pneg %p160
  $region15: #{_lambda_.48} parent=0 // pred_check_branch
    %163 = sbr.rel (%p161) target = $region17
  $region16: #{_lambda_.48} parent=0 // pred_region
    %164 = vst [vmem:[#allocation2] sm:$0xff] %v138
    %165 = vst [vmem:[#allocation2 + $0x8] sm:$0xff] %v141
    %166 = vst [vmem:[#allocation2 + $0x10] sm:$0xff] %v146
    %167 = vst [vmem:[#allocation2 + $0x18] sm:$0xff] %v149
    %168 = vst [vmem:[#allocation2 + $0x20] sm:$0xff] %v154
    %169 = vst [vmem:[#allocation2 + $0x28] sm:$0xff] %v157
  $region17: #{_lambda_.48} parent=0 // pred_fallthru
    _
  %p170 = scmp.gt.s32.totalorder 0, 0
  // Predicated region
  $region18: #{_lambda_.48} parent=0 // pred_check
    %p171 = pneg %p170
  $region19: #{_lambda_.48} parent=0 // pred_check_branch
    %173 = sbr.rel (%p171) target = $region21
  $region20: #{_lambda_.48} parent=0 // pred_region
    %v174 = vld [vmem:[#allocation2] sm:$0xff]
    %v175 = vld [vmem:[#allocation2 + $0x8] sm:$0xff]
    %v176 = vld [vmem:[#allocation2 + $0x10] sm:$0xff]
    %v177 = vld [vmem:[#allocation2 + $0x18] sm:$0xff]
    %v178 = vld [vmem:[#allocation2 + $0x20] sm:$0xff]
    %v179 = vld [vmem:[#allocation2 + $0x28] sm:$0xff]
    %v180 = vadd.f32 %v174, %v138
    %v181 = vadd.f32 %v175, %v141
    %v182 = vadd.f32 %v176, %v146
    %v183 = vadd.f32 %v177, %v149
    %v184 = vadd.f32 %v178, %v154
    %v185 = vadd.f32 %v179, %v157
    %186 = vst [vmem:[#allocation2] sm:$0xff] %v180
    %187 = vst [vmem:[#allocation2 + $0x8] sm:$0xff] %v181
    %188 = vst [vmem:[#allocation2 + $0x10] sm:$0xff] %v182
    %189 = vst [vmem:[#allocation2 + $0x18] sm:$0xff] %v183
    %190 = vst [vmem:[#allocation2 + $0x20] sm:$0xff] %v184
    %191 = vst [vmem:[#allocation2 + $0x28] sm:$0xff] %v185
  $region21: #{_lambda_.48} parent=0 // pred_fallthru
    _
  // Predicated region
  $region22: #{_lambda_.48} parent=0 // pred_check
    %p192 = pneg %p160
  $region23: #{_lambda_.48} parent=0 // pred_check_branch
    %194 = sbr.rel (%p192) target = $region25
  $region24: #{_lambda_.48} parent=0 // pred_region
    %v195 = vld [vmem:[#allocation2] sm:$0xff]
    %v196 = vld [vmem:[#allocation2 + $0x8] sm:$0xff]
    %v197 = vld [vmem:[#allocation2 + $0x10] sm:$0xff]
    %v198 = vld [vmem:[#allocation2 + $0x18] sm:$0xff]
    %v199 = vld [vmem:[#allocation2 + $0x20] sm:$0xff]
    %v200 = vld [vmem:[#allocation2 + $0x28] sm:$0xff]
    %v201 = vld [vmem:[%s2] sm:$0x1]
    %v203 = vlaneseq
    %v204 = vshrl.u32 %v203, 7
    %v205 = vsub.s32 0, %v204
    %v206 = vrot.slane %v201, %v205
    %v208 = vadd.f32 %v195, %v206
    %v209 = vadd.f32 %v196, %v206
    %v210 = vadd.f32 %v197, %v206
    %v211 = vadd.f32 %v198, %v206
    %v212 = vadd.f32 %v199, %v206
    %v213 = vadd.f32 %v200, %v206
    %v214 = vmul.f32 %v208, %v208
    %v215 = vmul.f32 %v209, %v209
    %v216 = vmul.f32 %v210, %v210
    %v217 = vmul.f32 %v211, %v211
    %v218 = vmul.f32 %v212, %v212
    %v219 = vmul.f32 %v213, %v213
    %v220 = vmul.f32 %v208, %v214
    %v221 = vmul.f32 %v209, %v215
    %v222 = vmul.f32 %v210, %v216
    %v223 = vmul.f32 %v211, %v217
    %v224 = vmul.f32 %v212, %v218
    %v225 = vmul.f32 %v213, %v219
    %v226 = vmul.f32 %v220, 0.044715
    %v227 = vmul.f32 %v221, 0.044715
    %v228 = vmul.f32 %v222, 0.044715
    %v229 = vmul.f32 %v223, 0.044715
    %v230 = vmul.f32 %v224, 0.044715
    %v231 = vmul.f32 %v225, 0.044715
    %v232 = vadd.f32 %v208, %v226
    %v233 = vadd.f32 %v209, %v227
    %v234 = vadd.f32 %v210, %v228
    %v235 = vadd.f32 %v211, %v229
    %v236 = vadd.f32 %v212, %v230
    %v237 = vadd.f32 %v213, %v231
    %v238 = vmul.f32 %v232, 0.7978846
    %v239 = vmul.f32 %v233, 0.7978846
    %v240 = vmul.f32 %v234, 0.7978846
    %v241 = vmul.f32 %v235, 0.7978846
    %v242 = vmul.f32 %v236, 0.7978846
    %v243 = vmul.f32 %v237, 0.7978846
    %v244 = vtanh.pop %v238
    %v245 = vtanh.pop %v239
    %v246 = vtanh.pop %v240
    %v247 = vtanh.pop %v241
    %v248 = vtanh.pop %v242
    %v249 = vtanh.pop %v243
    %v250 = vadd.f32 %v244, 1.0
    %v251 = vadd.f32 %v245, 1.0
    %v252 = vadd.f32 %v246, 1.0
    %v253 = vadd.f32 %v247, 1.0
    %v254 = vadd.f32 %v248, 1.0
    %v255 = vadd.f32 %v249, 1.0
    %v256 = vmul.f32 %v250, 0.5
    %v257 = vmul.f32 %v251, 0.5
    %v258 = vmul.f32 %v252, 0.5
    %v259 = vmul.f32 %v253, 0.5
    %v260 = vmul.f32 %v254, 0.5
    %v261 = vmul.f32 %v255, 0.5
    %v262 = vmul.f32 %v208, %v256
    %v263 = vmul.f32 %v209, %v257
    %v264 = vmul.f32 %v210, %v258
    %v265 = vmul.f32 %v211, %v259
    %v266 = vmul.f32 %v212, %v260
    %v267 = vmul.f32 %v213, %v261
    %v268 = vpack.c.bf16 %v263, %v262
    %v269 = vpack.c.bf16 %v265, %v264
    %v270 = vpack.c.bf16 %v267, %v266
    %v274 = vunpack.c.l.b16 %v268
    %v275 = vunpack.c.h.b16 %v268
    %v276 = vunpack.c.l.b16 %v269
    %v277 = vunpack.c.h.b16 %v269
    %v278 = vunpack.c.l.b16 %v270
    %v279 = vunpack.c.h.b16 %v270
    %v280 = vpack.c.b16 %v274, %v274
    %v281 = vpack.c.b16 %v275, %v275
    %v282 = vpack.c.b16 %v276, %v276
    %v283 = vpack.c.b16 %v277, %v277
    %v284 = vpack.c.b16 %v278, %v278
    %v285 = vpack.c.b16 %v279, %v279
    %292 = vst [vmem:[%s3] sm:$0xf] %v280
    %293 = vst [vmem:[%s3 + $0x4] sm:$0xf] %v281
    %294 = vst [vmem:[%s3 + $0x8] sm:$0xf] %v282
    %295 = vst [vmem:[%s3 + $0xc] sm:$0xf] %v283
    %296 = vst [vmem:[%s3 + $0x10] sm:$0xf] %v284
    %297 = vst [vmem:[%s3 + $0x14] sm:$0xf] %v285
  $region25: #{_lambda_.48} parent=0 // pred_fallthru
    _
  // Predicated region
  $region26: #{_lambda_.48} parent=0 // pred_check
    _
  $region27: #{_lambda_.48} parent=0 // pred_check_branch
    %299 = sbr.rel (0) target = $region29
  $region28: #{_lambda_.48} parent=0 // pred_region
    _
  $region29: #{_lambda_.48} parent=0 // pred_fallthru
    _
  // Predicated region
  $region30: #{_lambda_.48} parent=0 // pred_check
    _
  $region31: #{_lambda_.48} parent=0 // pred_check_branch
    %301 = sbr.rel (0) target = $region33
  $region32: #{_lambda_.48} parent=0 // pred_region
    _
  $region33: #{_lambda_.48} parent=0 // pred_fallthru
    _

// kernel: _lambda_.63
$region0: #{_lambda_.63}
  #allocation0 [shape = 'u32[]', space=smem, size = 0x4, offset = 0x4, fixed_abs, tag = 'smem constant byte address 0x4 - core index']
  #allocation1 [shape = 'u32[144,128]{1,0:T(1,128)}', space=vmem, size = 0x12000, scoped, tag = 'internal scratch']
  %s0 = inlined_call_operand.vmem [shape: bf16[2,16,32], index: 0, kind: input, shape index: {}]
  %s1 = inlined_call_operand.vmem [shape: bf16[2,16,32], index: 1, kind: output, shape index: {}]
  %s2 = sld [smem:[#allocation0]]
  $region37: #{_lambda_.63} parent=0
    _
  %s4 = ssub.s32 1, %s2
  %s5 = scalar_select 0, %s4, %s2
  loop: start=0, step=1, limit=4
  $region2: #{_lambda_.63} parent=0 // loop_pre_header
    _
  $region3: #{_lambda_.63} parent=0 // loop_header
    %s7 = sphi 0, %s11
    %p8 = scmp.ge.s32.totalorder %s7, 4
    %s17 = sphi 0, %s19
    %s20 = sphi 0, %s17
    %s21 = sphi 0, %s20
    %s37 = sphi 0, %s21
    %s43 = sphi 0, %s45
    %s46 = sphi 0, %s43
    %s47 = sphi 0, %s46
    %s63 = sphi 0, %s47
  $region4: #{_lambda_.63} parent=0 // loop_header_branch
    %10 = sbr.rel (%p8) target = $region8
  $region5: #{_lambda_.63} parent=0 // loop_body
    %s12 = ssub.s32 %s7, 1
    %s13 = ssub.s32 %s7, 2
    %s14 = sadd.s32 %s7, 1
    %s15 = ssub.s32 %s7, %s14
    %p16 = scmp.eq.s32.totalorder %s15, 0
    %s18 = sadd.s32 %s17, 1
    %s19 = scalar_select %p16, %s17, %s18
    %p22 = pneg %p16
    %p23 = scmp.eq.s32.totalorder %s7, 1
    %p24 = por %p22, %p23
    %p25 = scmp.ne.s32.totalorder %s17, %s20
    %p26 = scmp.eq.s32.totalorder %s7, 0
    %p27 = por %p25, %p26
    %p28 = scmp.ne.s32.totalorder %s17, %s20
    %p29 = scmp.eq.s32.totalorder %s12, 1
    %p30 = por %p28, %p29
    %p31 = scmp.ne.s32.totalorder %s20, %s21
    %p32 = scmp.eq.s32.totalorder %s12, 0
    %p33 = por %p31, %p32
    %p34 = scmp.ne.s32.totalorder %s20, %s21
    %p35 = scmp.eq.s32.totalorder %s13, 1
    %p36 = por %p34, %p35
    %p38 = scmp.ne.s32.totalorder %s21, %s37
    %p39 = scmp.eq.s32.totalorder %s13, 0
    %p40 = por %p38, %p39
    %s41 = ssub.s32 %s7, %s14
    %p42 = scmp.eq.s32.totalorder %s41, 0
    %s44 = sadd.s32 %s43, 1
    %s45 = scalar_select %p42, %s43, %s44
    %p48 = pneg %p42
    %p49 = scmp.eq.s32.totalorder %s7, 1
    %p50 = por %p48, %p49
    %p51 = scmp.ne.s32.totalorder %s43, %s46
    %p52 = scmp.eq.s32.totalorder %s7, 0
    %p53 = por %p51, %p52
    %p54 = scmp.ne.s32.totalorder %s43, %s46
    %p55 = scmp.eq.s32.totalorder %s12, 1
    %p56 = por %p54, %p55
    %p57 = scmp.ne.s32.totalorder %s46, %s47
    %p58 = scmp.eq.s32.totalorder %s12, 0
    %p59 = por %p57, %p58
    %p60 = scmp.ne.s32.totalorder %s46, %s47
    %p61 = scmp.eq.s32.totalorder %s13, 1
    %p62 = por %p60, %p61
    %p64 = scmp.ne.s32.totalorder %s47, %s63
    %p65 = scmp.eq.s32.totalorder %s13, 0
    %p66 = por %p64, %p65
    %p67 = scmp.le.s32.totalorder 1, %s7
    %p68 = scmp.lt.s32.totalorder %s7, 3
    %p69 = pnand %p67, %p68
    %p70 = pneg %p69
    // Predicated region
    $region9: #{_lambda_.63} parent=5 // pred_check
      _
    $region10: #{_lambda_.63} parent=5 // pred_check_branch
      %72 = sbr.rel (%p69) target = $region12
    $region11: #{_lambda_.63} parent=5 // pred_region
      %s73 = ssub.s32 %s7, 1
    $region12: #{_lambda_.63} parent=5 // pred_fallthru
      _
    %p74 = scmp.lt.s32.totalorder %s7, 2
    // Predicated region
    $region13: #{_lambda_.63} parent=5 // pred_check
      %p75 = pneg %p74
    $region14: #{_lambda_.63} parent=5 // pred_check_branch
      %77 = sbr.rel (%p75) target = $region16
    $region15: #{_lambda_.63} parent=5 // pred_region
      // Predicated region
      $region17: #{_lambda_.63} parent=15 // pred_check
        %p78 = pneg %p27
      $region18: #{_lambda_.63} parent=15 // pred_check_branch
        %80 = sbr.rel (%p78) target = $region20
      $region19: #{_lambda_.63} parent=15 // pred_region
        %p81 = scmp.lt.s32.totalorder %s7, 1
        %s82 = scalar_select %p81, %s7, 1
        %s83 = smul.addr %s82, 2
        %s84 = smul.addr %s83, 4
        %s85 = scalar_lea.vmem %s0, %s84
      $region20: #{_lambda_.63} parent=15 // pred_fallthru
        _
    $region16: #{_lambda_.63} parent=5 // pred_fallthru
      _
    %p86 = scmp.le.s32.totalorder 1, %s7
    %p87 = scmp.lt.s32.totalorder %s7, 3
    %p88 = pnand %p86, %p87
    %p89 = pneg %p88
    // Predicated region
    $region21: #{_lambda_.63} parent=5 // pred_check
      _
    $region22: #{_lambda_.63} parent=5 // pred_check_branch
      %91 = sbr.rel (%p88) target = $region24
    $region23: #{_lambda_.63} parent=5 // pred_region
      %s92 = ssub.s32 %s7, 1
      %p93 = scmp.lt.s32.totalorder %s12, 1
      %s94 = scalar_select %p93, %s12, 1
      %s95 = smul.addr %s94, 2
      %s96 = smul.addr %s95, 4
      %s97 = scalar_lea.vmem %s0, %s96
      %p98 = pneg %p33
      %p99 = pneg %p30
      %p100 = pneg %p59
      %p101 = pneg %p56
      %p102 = scmp.lt.s32.totalorder %s12, 1
      %s103 = scalar_select %p102, %s12, 1
      %s104 = smul.addr %s103, 2
      %s105 = smul.addr %s104, 4
      %s106 = scalar_lea.vmem %s1, %s105
      %p107 = scmp.lt.s32.totalorder %s12, 1
      %s108 = scalar_select %p107, %s12, 1
      %s109 = smul.addr %s108, 2
      %s110 = smul.addr %s109, 4
      %s111 = scalar_lea.vmem %s0, %s110
      %p112 = scmp.lt.s32.totalorder %s12, 1
      %s113 = scalar_select %p112, %s12, 1
      %s114 = smul.addr %s113, 2
      %s115 = smul.addr %s114, 4
      %s116 = scalar_lea.vmem %s1, %s115
      %v117 = vld [vmem:[%s111] sm:$0xf]
      %v118 = vld [vmem:[%s111 + $0x4] sm:$0xf]
      %v119 = vunpack.c.l.bf16 %v117
      %v120 = vunpack.c.l.bf16 %v118
      %v121 = vxor.u32 %v119, 2147483648
      %v122 = vxor.u32 %v120, 2147483648
      %v123 = vmul.f32 %v121, 1.442695
      %v124 = vpow.pop %v123
      %v125 = vmul.f32 %v122, 1.442695
      %v126 = vpow.pop %v125
      %v127 = vadd.f32 %v124, 1.0
      %v128 = vadd.f32 %v126, 1.0
      %v129 = vrcp.pop %v127
      %v130 = vmul.f32 1.0, %v129
      %v131 = vrcp.pop %v128
      %v132 = vmul.f32 1.0, %v131
      %v133 = vmul.f32 %v119, %v130
      %v134 = vmul.f32 %v120, %v132
      %vm135 = vcmask 261120
      %v136 = vsel %vm135, %v133, 0.0
      %v137 = vsel %vm135, %v134, 0.0
      %v138 = vadd.f32 %v136, %v137
      %v139 = vrot.slane %v138, 4
      %v140 = vadd.f32 %v138, %v139
      %v141 = vrot.slane %v140, 2
      %v142 = vadd.f32 %v140, %v141
      %v143 = vrot.slane %v142, 1
      %v144 = vadd.f32 %v142, %v143
      %v145 = vrcp.pop 16.0
      %v146 = vmul.f32 %v144, %v145
      %v147 = vsub.f32 %v133, %v146
      %v148 = vsub.f32 %v134, %v146
      %v149 = vmul.f32 %v147, %v147
      %v150 = vmul.f32 %v148, %v148
      %v151 = vsel %vm135, %v149, 0.0
      %v152 = vsel %vm135, %v150, 0.0
      %v153 = vadd.f32 %v151, %v152
      %v154 = vrot.slane %v153, 4
      %v155 = vadd.f32 %v153, %v154
      %v156 = vrot.slane %v155, 2
      %v157 = vadd.f32 %v155, %v156
      %v158 = vrot.slane %v157, 1
      %v159 = vadd.f32 %v157, %v158
      %v160 = vmul.f32 %v159, %v145
      %v161 = vadd.f32 %v160, 1e-05
      %v162 = vrsqrt.pop %v161
      %v163 = vmul.f32 %v147, %v162
      %v164 = vmul.f32 %v148, %v162
      %v165 = vpack.c.bf16 %v164, %v163
      %v167 = vunpack.c.l.b16 %v165
      %v168 = vunpack.c.h.b16 %v165
      %v169 = vpack.c.b16 %v167, %v167
      %v170 = vpack.c.b16 %v168, %v168
      %vm173 = vcmask 257024
      %174 = vst.msk [vmem:[%s116] sm:$0xf] %vm173, %v169
      %175 = vst.msk [vmem:[%s116 + $0x4] sm:$0xf] %vm173, %v170
      %p176 = scmp.lt.s32.totalorder %s12, 1
      %s177 = scalar_select %p176, %s12, 1
      %s178 = smul.addr %s177, 2
      %s179 = smul.addr %s178, 4
      %s180 = scalar_lea.vmem %s1, %s179
      // Predicated region
      $region25: #{_lambda_.63} parent=23 // pred_check
        %p181 = pneg %p56
      $region26: #{_lambda_.63} parent=23 // pred_check_branch
        %183 = sbr.rel (%p181) target = $region28
      $region27: #{_lambda_.63} parent=23 // pred_region
        _
      $region28: #{_lambda_.63} parent=23 // pred_fallthru
        _
    $region24: #{_lambda_.63} parent=5 // pred_fallthru
      _
    %p184 = scmp.le.s32.totalorder 2, %s7
    // Predicated region
    $region29: #{_lambda_.63} parent=5 // pred_check
      %p185 = pneg %p184
    $region30: #{_lambda_.63} parent=5 // pred_check_branch
      %187 = sbr.rel (%p185) target = $region32
    $region31: #{_lambda_.63} parent=5 // pred_region
      %s188 = ssub.s32 %s7, 2
      // Predicated region
      $region33: #{_lambda_.63} parent=31 // pred_check
        %p189 = pneg %p62
      $region34: #{_lambda_.63} parent=31 // pred_check_branch
        %191 = sbr.rel (%p189) target = $region36
      $region35: #{_lambda_.63} parent=31 // pred_region
        %p192 = scmp.lt.s32.totalorder %s13, 1
        %s193 = scalar_select %p192, %s13, 1
        %s194 = smul.addr %s193, 2
        %s195 = smul.addr %s194, 4
        %s196 = scalar_lea.vmem %s1, %s195
      $region36: #{_lambda_.63} parent=31 // pred_fallthru
        _
    $region32: #{_lambda_.63} parent=5 // pred_fallthru
      _
  $region6: #{_lambda_.63} parent=0 // loop_footer
    %s11 = sadd.s32 1, %s7
  $region7: #{_lambda_.63} parent=0 // loop_footer_branch
    %6 = sbr.rel target = $region3
  $region8: #{_lambda_.63} parent=0 // loop_exit
    _

// kernel: _lambda_.45
$region0: #{_lambda_.45}
  #allocation0 [shape = 'u32[]', space=smem, size = 0x4, offset = 0x4, fixed_abs, tag = 'smem constant byte address 0x4 - core index']
  #allocation1 [shape = 'u32[144,128]{1,0:T(1,128)}', space=vmem, size = 0x12000, scoped, tag = 'internal scratch']
  %s0 = inlined_call_operand.vmem [shape: bf16[2,24,32], index: 0, kind: input, shape index: {}]
  %s1 = inlined_call_operand.vmem [shape: bf16[2,5,64], index: 1, kind: input, shape index: {}]
  %s2 = inlined_call_operand.vmem [shape: bf16[2,24,32], index: 2, kind: output, shape index: {}]
  %s3 = sld [smem:[#allocation0]]
  $region41: #{_lambda_.45} parent=0
    _
  %s5 = ssub.s32 1, %s3
  %s6 = scalar_select 0, %s5, %s3
  loop: start=0, step=1, limit=4
  $region2: #{_lambda_.45} parent=0 // loop_pre_header
    _
  $region3: #{_lambda_.45} parent=0 // loop_header
    %s8 = sphi 0, %s12
    %p9 = scmp.ge.s32.totalorder %s8, 4
    %s15 = sphi 0, %s27
    %s16 = sphi 0, %s23
    %s17 = sphi 0, %s15
    %s18 = sphi 0, %s16
    %s19 = sphi 0, %s17
    %s20 = sphi 0, %s18
    %s32 = sphi 0, %s34
    %s35 = sphi 0, %s32
    %s36 = sphi 0, %s35
    %s52 = sphi 0, %s36
    %s58 = sphi 0, %s60
    %s61 = sphi 0, %s58
    %s62 = sphi 0, %s61
    %s78 = sphi 0, %s62
    %s86 = sphi 0, %s88
    %s89 = sphi 0, %s86
    %s90 = sphi 0, %s89
    %s106 = sphi 0, %s90
  $region4: #{_lambda_.45} parent=0 // loop_header_branch
    %11 = sbr.rel (%p9) target = $region8
  $region5: #{_lambda_.45} parent=0 // loop_body
    %s13 = ssub.s32 %s8, 1
    %s14 = ssub.s32 %s8, 2
    %s21 = sadd.s32 1, %s16
    %p22 = scmp.ge.s32.totalorder %s21, 1
    %s23 = scalar_select %p22, 0, %s21
    %s24 = sadd.s32 1, %s15
    %s25 = scalar_select %p22, %s24, %s15
    %p26 = scmp.ge.s32.totalorder %s25, 2
    %s27 = scalar_select %p26, 0, %s25
    %s28 = ssub.s32 %s15, %s27
    %s29 = ssub.s32 %s16, %s23
    %s30 = sor.u32 %s28, %s29
    %p31 = scmp.eq.s32.totalorder %s30, 0
    %s33 = sadd.s32 %s32, 1
    %s34 = scalar_select %p31, %s32, %s33
    %p37 = pneg %p31
    %p38 = scmp.eq.s32.totalorder %s8, 1
    %p39 = por %p37, %p38
    %p40 = scmp.ne.s32.totalorder %s32, %s35
    %p41 = scmp.eq.s32.totalorder %s8, 0
    %p42 = por %p40, %p41
    %p43 = scmp.ne.s32.totalorder %s32, %s35
    %p44 = scmp.eq.s32.totalorder %s13, 1
    %p45 = por %p43, %p44
    %p46 = scmp.ne.s32.totalorder %s35, %s36
    %p47 = scmp.eq.s32.totalorder %s13, 0
    %p48 = por %p46, %p47
    %p49 = scmp.ne.s32.totalorder %s35, %s36
    %p50 = scmp.eq.s32.totalorder %s14, 1
    %p51 = por %p49, %p50
    %p53 = scmp.ne.s32.totalorder %s36, %s52
    %p54 = scmp.eq.s32.totalorder %s14, 0
    %p55 = por %p53, %p54
    %s56 = ssub.s32 %s15, %s27
    %p57 = scmp.eq.s32.totalorder %s56, 0
    %s59 = sadd.s32 %s58, 1
    %s60 = scalar_select %p57, %s58, %s59
    %p63 = pneg %p57
    %p64 = scmp.eq.s32.totalorder %s8, 1
    %p65 = por %p63, %p64
    %p66 = scmp.ne.s32.totalorder %s58, %s61
    %p67 = scmp.eq.s32.totalorder %s8, 0
    %p68 = por %p66, %p67
    %p69 = scmp.ne.s32.totalorder %s58, %s61
    %p70 = scmp.eq.s32.totalorder %s13, 1
    %p71 = por %p69, %p70
    %p72 = scmp.ne.s32.totalorder %s61, %s62
    %p73 = scmp.eq.s32.totalorder %s13, 0
    %p74 = por %p72, %p73
    %p75 = scmp.ne.s32.totalorder %s61, %s62
    %p76 = scmp.eq.s32.totalorder %s14, 1
    %p77 = por %p75, %p76
    %p79 = scmp.ne.s32.totalorder %s62, %s78
    %p80 = scmp.eq.s32.totalorder %s14, 0
    %p81 = por %p79, %p80
    %s82 = ssub.s32 %s15, %s27
    %s83 = ssub.s32 %s16, %s23
    %s84 = sor.u32 %s82, %s83
    %p85 = scmp.eq.s32.totalorder %s84, 0
    %s87 = sadd.s32 %s86, 1
    %s88 = scalar_select %p85, %s86, %s87
    %p91 = pneg %p85
    %p92 = scmp.eq.s32.totalorder %s8, 1
    %p93 = por %p91, %p92
    %p94 = scmp.ne.s32.totalorder %s86, %s89
    %p95 = scmp.eq.s32.totalorder %s8, 0
    %p96 = por %p94, %p95
    %p97 = scmp.ne.s32.totalorder %s86, %s89
    %p98 = scmp.eq.s32.totalorder %s13, 1
    %p99 = por %p97, %p98
    %p100 = scmp.ne.s32.totalorder %s89, %s90
    %p101 = scmp.eq.s32.totalorder %s13, 0
    %p102 = por %p100, %p101
    %p103 = scmp.ne.s32.totalorder %s89, %s90
    %p104 = scmp.eq.s32.totalorder %s14, 1
    %p105 = por %p103, %p104
    %p107 = scmp.ne.s32.totalorder %s90, %s106
    %p108 = scmp.eq.s32.totalorder %s14, 0
    %p109 = por %p107, %p108
    %p110 = scmp.le.s32.totalorder 1, %s8
    %p111 = scmp.lt.s32.totalorder %s8, 3
    %p112 = pnand %p110, %p111
    %p113 = pneg %p112
    // Predicated region
    $region9: #{_lambda_.45} parent=5 // pred_check
      _
    $region10: #{_lambda_.45} parent=5 // pred_check_branch
      %115 = sbr.rel (%p112) target = $region12
    $region11: #{_lambda_.45} parent=5 // pred_region
      %s116 = ssub.s32 %s8, 1
    $region12: #{_lambda_.45} parent=5 // pred_fallthru
      _
    %p117 = scmp.lt.s32.totalorder %s8, 2
    // Predicated region
    $region13: #{_lambda_.45} parent=5 // pred_check
      %p118 = pneg %p117
    $region14: #{_lambda_.45} parent=5 // pred_check_branch
      %120 = sbr.rel (%p118) target = $region16
    $region15: #{_lambda_.45} parent=5 // pred_region
      // Predicated region
      $region17: #{_lambda_.45} parent=15 // pred_check
        %p121 = pneg %p42
      $region18: #{_lambda_.45} parent=15 // pred_check_branch
        %123 = sbr.rel (%p121) target = $region20
      $region19: #{_lambda_.45} parent=15 // pred_region
        %s124 = smul.u32 3, %s16
        %p125 = scmp.lt.s32.totalorder %s15, 1
        %s126 = scalar_select %p125, %s15, 1
        %p127 = scmp.lt.s32.totalorder %s124, 2
        %s128 = scalar_select %p127, %s124, 2
        %s129 = smul.addr %s126, 3
        %s130 = sadd.s32 %s128, %s129
        %s131 = smul.addr %s130, 4
        %s132 = scalar_lea.vmem %s0, %s131
        %s133 = smul.u32 3, %s16
      $region20: #{_lambda_.45} parent=15 // pred_fallthru
        _
      // Predicated region
      $region21: #{_lambda_.45} parent=15 // pred_check
        %p134 = pneg %p68
      $region22: #{_lambda_.45} parent=15 // pred_check_branch
        %136 = sbr.rel (%p134) target = $region24
      $region23: #{_lambda_.45} parent=15 // pred_region
        %p137 = scmp.lt.s32.totalorder %s15, 1
        %s138 = scalar_select %p137, %s15, 1
        %s139 = smul.addr %s138, 4
        %s140 = scalar_lea.vmem %s1, %s139
      $region24: #{_lambda_.45} parent=15 // pred_fallthru
        _
    $region16: #{_lambda_.45} parent=5 // pred_fallthru
      _
    %p141 = scmp.le.s32.totalorder 1, %s8
    %p142 = scmp.lt.s32.totalorder %s8, 3
    %p143 = pnand %p141, %p142
    %p144 = pneg %p143
    // Predicated region
    $region25: #{_lambda_.45} parent=5 // pred_check
      _
    $region26: #{_lambda_.45} parent=5 // pred_check_branch
      %146 = sbr.rel (%p143) target = $region28
    $region27: #{_lambda_.45} parent=5 // pred_region
      %s147 = ssub.s32 %s8, 1
      %s148 = smul.u32 3, %s18
      %p149 = scmp.lt.s32.totalorder %s17, 1
      %s150 = scalar_select %p149, %s17, 1
      %p151 = scmp.lt.s32.totalorder %s148, 2
      %s152 = scalar_select %p151, %s148, 2
      %s153 = smul.addr %s150, 3
      %s154 = sadd.s32 %s152, %s153
      %s155 = smul.addr %s154, 4
      %s156 = scalar_lea.vmem %s0, %s155
      %p157 = pneg %p48
      %p158 = pneg %p45
      %p159 = scmp.lt.s32.totalorder %s17, 1
      %s160 = scalar_select %p159, %s17, 1
      %s161 = smul.addr %s160, 4
      %s162 = scalar_lea.vmem %s1, %s161
      %p163 = pneg %p74
      %p164 = pneg %p71
      %p165 = pneg %p102
      %p166 = pneg %p99
      %s167 = smul.u32 3, %s18
      %p168 = scmp.lt.s32.totalorder %s17, 1
      %s169 = scalar_select %p168, %s17, 1
      %p170 = scmp.lt.s32.totalorder %s167, 2
      %s171 = scalar_select %p170, %s167, 2
      %s172 = smul.addr %s169, 3
      %s173 = sadd.s32 %s171, %s172
      %s174 = smul.addr %s173, 4
      %s175 = scalar_lea.vmem %s2, %s174
      %s176 = smul.u32 3, %s18
      %p177 = scmp.lt.s32.totalorder %s17, 1
      %s178 = scalar_select %p177, %s17, 1
      %p179 = scmp.lt.s32.totalorder %s176, 2
      %s180 = scalar_select %p179, %s176, 2
      %s181 = smul.addr %s178, 3
      %s182 = sadd.s32 %s180, %s181
      %s183 = smul.addr %s182, 4
      %s184 = scalar_lea.vmem %s0, %s183
      %s185 = smul.u32 3, %s18
      %p186 = scmp.lt.s32.totalorder %s17, 1
      %s187 = scalar_select %p186, %s17, 1
      %s188 = smul.addr %s187, 4
      %s189 = scalar_lea.vmem %s1, %s188
      %s190 = smul.u32 3, %s18
      %p191 = scmp.lt.s32.totalorder %s17, 1
      %s192 = scalar_select %p191, %s17, 1
      %p193 = scmp.lt.s32.totalorder %s190, 2
      %s194 = scalar_select %p193, %s190, 2
      %s195 = smul.addr %s192, 3
      %s196 = sadd.s32 %s194, %s195
      %s197 = smul.addr %s196, 4
      %s198 = scalar_lea.vmem %s2, %s197
      %s199 = smul.u32 3, %s18
      %v201 = vld [vmem:[%s184] sm:$0xf]
      %v202 = vld [vmem:[%s184 + $0x4] sm:$0xf]
      %v203 = vld [vmem:[%s184 + $0x8] sm:$0xf]
      %v204 = vld [vmem:[%s189] sm:$0x7]
      %v208 = vunpack.c.l.b16 %v201
      %v209 = vunpack.c.l.b16 %v202
      %v210 = vunpack.c.l.b16 %v203
      %v211 = vpack.c.b16 %v209, %v208
      %v212 = vpack.c.b16 %v210, %v210
      %vm213 = vcmask 64512
      %v215 = vsel %vm213, %v211, 0
      %v218 = vsel %vm213, %v212, 0
      %v221 = vsel %vm213, %v204, 0
      %223 = vmatprep.subr.bf16.mxu0 0
      %224 = vmatpush1.bf16.xpose.msra.mxu0 0
      %225 = vmatprep.subr.bf16.mxu0 0
      %226 = vmatpush1.bf16.xpose.msra.mxu0 0
      %227 = vmatprep.subr.bf16.mxu0 0
      %228 = vmatpush1.bf16.xpose.msra.mxu0 0
      %229 = vmatprep.subr.bf16.mxu0 0
      %230 = vmatpush1.bf16.xpose.msra.mxu0 0
      %231 = vmatprep.subr.bf16.mxu0 0
      %232 = vmatpush1.bf16.xpose.msra.mxu0 0
      %233 = vmatprep.subr.bf16.mxu0 0
      %234 = vmatpush1.bf16.xpose.msra.mxu0 0
      %235 = vmatprep.subr.bf16.mxu0 0
      %236 = vmatpush1.bf16.xpose.msra.mxu0 0
      %237 = vmatprep.subr.bf16.mxu0 0
      %238 = vmatpush1.bf16.xpose.msra.mxu0 %v221
      %239 = vmatprep.subr.bf16.mxu0 0
      %240 = vmatpush2.bf16.xpose.msra.mxu0 0
      %241 = vmatprep.subr.bf16.mxu0 0
      %242 = vmatpush2.bf16.xpose.msra.mxu0 0
      %243 = vmatprep.subr.bf16.mxu0 0
      %244 = vmatpush2.bf16.xpose.msra.mxu0 0
      %245 = vmatprep.subr.bf16.mxu0 0
      %246 = vmatpush2.bf16.xpose.msra.mxu0 0
      %247 = vmatprep.subr.bf16.mxu0 0
      %248 = vmatpush2.bf16.xpose.msra.mxu0 0
      %249 = vmatprep.subr.bf16.mxu0 0
      %250 = vmatpush2.bf16.xpose.msra.mxu0 0
      %251 = vmatprep.subr.bf16.mxu0 0
      %252 = vmatpush2.bf16.xpose.msra.mxu0 0
      %253 = vmatprep.subr.bf16.mxu0 0
      %254 = vmatpush2.bf16.xpose.msra.mxu0 0
      %255 = vmatprep.mubr.bf16.mxu0 0
      %256 = vmatmul.mubr.bf16.gmra.mxu0 %v215
      %v257 = vpop.f32.mrf.mxu0
      %v258 = vadd.f32 0.0, %v257
      %v259 = vpop.f32.mrf.mxu0
      %v260 = vpop.f32.mrf.mxu0
      %v261 = vadd.f32 0.0, %v260
      %v262 = vpop.f32.mrf.mxu0
      %263 = vmatprep.mubr.bf16.mxu0 0
      %264 = vmatmul.mubr.bf16.gmra.mxu0 %v218
      %v265 = vpop.f32.mrf.mxu0
      %v266 = vadd.f32 0.0, %v265
      %v267 = vpop.f32.mrf.mxu0
      %v268 = vpop.f32.mrf.mxu0
      %v269 = vpop.f32.mrf.mxu0
      %270 = vdwg.mxu0
      %v271 = vmul.f32 %v258, 0.35355338
      %v272 = vmul.f32 %v261, 0.35355338
      %v273 = vmul.f32 %v266, 0.35355338
      %vm274 = vcmask 39936
      %v275 = vsel %vm274, %v271, -inf
      %276 = vmax.xlane.f32.xlu0 %v275
      %v277 = vpop.xlane.xlu0 %276
      %v278 = vsel %vm274, %v272, -inf
      %279 = vmax.xlane.f32.xlu0 %v278
      %v280 = vpop.xlane.xlu0 %279
      %v281 = vsel %vm274, %v273, -inf
      %282 = vmax.xlane.f32.xlu0 %v281
      %v283 = vpop.xlane.xlu0 %282
      %v284 = vsub.f32 %v271, %v277
      %v285 = vsub.f32 %v272, %v280
      %v286 = vsub.f32 %v273, %v283
      %v287 = vmul.f32 %v284, 1.442695
      %v288 = vpow.pop %v287
      %v289 = vmul.f32 %v285, 1.442695
      %v290 = vpow.pop %v289
      %v291 = vmul.f32 %v286, 1.442695
      %v292 = vpow.pop %v291
      %v293 = vsel %vm274, %v288, 0.0
      %294 = vadd.xlane.f32.xlu0 %v293
      %v295 = vpop.xlane.xlu0 %294
      %v296 = vsel %vm274, %v290, 0.0
      %297 = vadd.xlane.f32.xlu0 %v296
      %v298 = vpop.xlane.xlu0 %297
      %v299 = vsel %vm274, %v292, 0.0
      %300 = vadd.xlane.f32.xlu0 %v299
      %v301 = vpop.xlane.xlu0 %300
      %v302 = vrcp.pop %v295
      %v303 = vrcp.pop %v298
      %v304 = vrcp.pop %v301
      %v305 = vmul.f32 %v288, %v302
      %v306 = vmul.f32 %v290, %v303
      %v307 = vmul.f32 %v292, %v304
      %v308 = vpack.c.bf16 %v306, %v305
      %v309 = vpack.c.bf16 %v307, %v307
      %v311 = vunpack.c.l.b16 %v204
      %v312 = vpack.c.b16 %v311, %v311
      %313 = vrot.lane.b32.xlu0 %v312, 96
      %v314 = vpop.permute.xlu0 %313
      %v316 = vsel %vm274, %v308, 0
      %v319 = vsel %vm274, %v309, 0
      %vm321 = vcmask 1041408
      %vm322 = vcmask 1042432
      %v323 = vsel %vm321, 4294967295, 65535
      %v324 = vsel %vm322, %v323, 0
      %v326 = vand.u32 %v314, %v324
      %328 = vmatprep.subr.bf16.mxu0 0
      %329 = vmatpush1.bf16.msra.mxu0 0
      %330 = vmatprep.subr.bf16.mxu0 0
      %331 = vmatpush1.bf16.msra.mxu0 0
      %332 = vmatprep.subr.bf16.mxu0 0
      %333 = vmatpush1.bf16.msra.mxu0 0
      %334 = vmatprep.subr.bf16.mxu0 0
      %335 = vmatpush1.bf16.msra.mxu0 0
      %336 = vmatprep.subr.bf16.mxu0 0
      %337 = vmatpush1.bf16.msra.mxu0 0
      %338 = vmatprep.subr.bf16.mxu0 0
      %339 = vmatpush1.bf16.msra.mxu0 0
      %340 = vmatprep.subr.bf16.mxu0 0
      %341 = vmatpush1.bf16.msra.mxu0 0
      %342 = vmatprep.subr.bf16.mxu0 0
      %343 = vmatpush1.bf16.msra.mxu0 %v326
      %344 = vmatprep.subr.bf16.mxu0 0
      %345 = vmatpush2.bf16.msra.mxu0 0
      %346 = vmatprep.subr.bf16.mxu0 0
      %347 = vmatpush2.bf16.msra.mxu0 0
      %348 = vmatprep.subr.bf16.mxu0 0
      %349 = vmatpush2.bf16.msra.mxu0 0
      %350 = vmatprep.subr.bf16.mxu0 0
      %351 = vmatpush2.bf16.msra.mxu0 0
      %352 = vmatprep.subr.bf16.mxu0 0
      %353 = vmatpush2.bf16.msra.mxu0 0
      %354 = vmatprep.subr.bf16.mxu0 0
      %355 = vmatpush2.bf16.msra.mxu0 0
      %356 = vmatprep.subr.bf16.mxu0 0
      %357 = vmatpush2.bf16.msra.mxu0 0
      %358 = vmatprep.subr.bf16.mxu0 0
      %359 = vmatpush2.bf16.msra.mxu0 0
      %360 = vmatprep.mubr.bf16.mxu0 0
      %361 = vmatmul.mubr.bf16.gmra.mxu0 %v316
      %v362 = vpop.f32.mrf.mxu0
      %v363 = vadd.f32 0.0, %v362
      %v364 = vpop.f32.mrf.mxu0
      %v365 = vpop.f32.mrf.mxu0
      %v366 = vadd.f32 0.0, %v365
      %v367 = vpop.f32.mrf.mxu0
      %368 = vmatprep.mubr.bf16.mxu0 0
      %369 = vmatmul.mubr.bf16.gmra.mxu0 %v319
      %v370 = vpop.f32.mrf.mxu0
      %v371 = vadd.f32 0.0, %v370
      %v372 = vpop.f32.mrf.mxu0
      %v373 = vpop.f32.mrf.mxu0
      %v374 = vpop.f32.mrf.mxu0
      %375 = vdwg.mxu0
      %v376 = vpack.c.bf16 %v366, %v363
      %v377 = vpack.c.bf16 %v371, %v371
      %v380 = vunpack.c.l.b16 %v376
      %v381 = vunpack.c.h.b16 %v376
      %v382 = vunpack.c.l.b16 %v377
      %v383 = vpack.c.b16 %v380, %v380
      %v384 = vpack.c.b16 %v381, %v381
      %v385 = vpack.c.b16 %v382, %v382
      %vm389 = vcmask 60416
      %390 = vst.msk [vmem:[%s198] sm:$0xf] %vm389, %v383
      %391 = vst.msk [vmem:[%s198 + $0x4] sm:$0xf] %vm389, %v384
      %392 = vst.msk [vmem:[%s198 + $0x8] sm:$0xf] %vm389, %v385
      %v393 = vld [vmem:[%s184] sm:$0xf]
      %v394 = vld [vmem:[%s184 + $0x4] sm:$0xf]
      %v395 = vld [vmem:[%s184 + $0x8] sm:$0xf]
      %v396 = vld [vmem:[%s189] sm:$0x7]
      %v400 = vunpack.c.l.b16 %v393
      %v401 = vunpack.c.l.b16 %v394
      %v402 = vunpack.c.l.b16 %v395
      %v403 = vpack.c.b16 %v401, %v400
      %v404 = vpack.c.b16 %v402, %v402
      %405 = vrot.lane.b32.xlu0 %v403, 120
      %v406 = vpop.permute.xlu0 %405
      %407 = vrot.lane.b32.xlu0 %v404, 120
      %v408 = vpop.permute.xlu0 %407
      %v410 = vunpack.c.l.b16 %v396
      %v411 = vpack.c.b16 %v410, %v410
      %412 = vrot.lane.b32.xlu0 %v411, 120
      %v413 = vpop.permute.xlu0 %412
      %v415 = vsel %vm213, %v406, 0
      %v418 = vsel %vm213, %v408, 0
      %v421 = vsel %vm213, %v413, 0
      %423 = vmatprep.subr.bf16.mxu0 0
      %424 = vmatpush1.bf16.xpose.msra.mxu0 0
      %425 = vmatprep.subr.bf16.mxu0 0
      %426 = vmatpush1.bf16.xpose.msra.mxu0 0
      %427 = vmatprep.subr.bf16.mxu0 0
      %428 = vmatpush1.bf16.xpose.msra.mxu0 0
      %429 = vmatprep.subr.bf16.mxu0 0
      %430 = vmatpush1.bf16.xpose.msra.mxu0 0
      %431 = vmatprep.subr.bf16.mxu0 0
      %432 = vmatpush1.bf16.xpose.msra.mxu0 0
      %433 = vmatprep.subr.bf16.mxu0 0
      %434 = vmatpush1.bf16.xpose.msra.mxu0 0
      %435 = vmatprep.subr.bf16.mxu0 0
      %436 = vmatpush1.bf16.xpose.msra.mxu0 0
      %437 = vmatprep.subr.bf16.mxu0 0
      %438 = vmatpush1.bf16.xpose.msra.mxu0 %v421
      %439 = vmatprep.subr.bf16.mxu0 0
      %440 = vmatpush2.bf16.xpose.msra.mxu0 0
      %441 = vmatprep.subr.bf16.mxu0 0
      %442 = vmatpush2.bf16.xpose.msra.mxu0 0
      %443 = vmatprep.subr.bf16.mxu0 0
      %444 = vmatpush2.bf16.xpose.msra.mxu0 0
      %445 = vmatprep.subr.bf16.mxu0 0
      %446 = vmatpush2.bf16.xpose.msra.mxu0 0
      %447 = vmatprep.subr.bf16.mxu0 0
      %448 = vmatpush2.bf16.xpose.msra.mxu0 0
      %449 = vmatprep.subr.bf16.mxu0 0
      %450 = vmatpush2.bf16.xpose.msra.mxu0 0
      %451 = vmatprep.subr.bf16.mxu0 0
      %452 = vmatpush2.bf16.xpose.msra.mxu0 0
      %453 = vmatprep.subr.bf16.mxu0 0
      %454 = vmatpush2.bf16.xpose.msra.mxu0 0
      %455 = vmatprep.mubr.bf16.mxu0 0
      %456 = vmatmul.mubr.bf16.gmra.mxu0 %v415
      %v457 = vpop.f32.mrf.mxu0
      %v458 = vadd.f32 0.0, %v457
      %v459 = vpop.f32.mrf.mxu0
      %v460 = vpop.f32.mrf.mxu0
      %v461 = vadd.f32 0.0, %v460
      %v462 = vpop.f32.mrf.mxu0
      %463 = vmatprep.mubr.bf16.mxu0 0
      %464 = vmatmul.mubr.bf16.gmra.mxu0 %v418
      %v465 = vpop.f32.mrf.mxu0
      %v466 = vadd.f32 0.0, %v465
      %v467 = vpop.f32.mrf.mxu0
      %v468 = vpop.f32.mrf.mxu0
      %v469 = vpop.f32.mrf.mxu0
      %470 = vdwg.mxu0
      %v471 = vmul.f32 %v458, 0.35355338
      %v472 = vmul.f32 %v461, 0.35355338
      %v473 = vmul.f32 %v466, 0.35355338
      %v474 = vsel %vm274, %v471, -inf
      %475 = vmax.xlane.f32.xlu0 %v474
      %v476 = vpop.xlane.xlu0 %475
      %v477 = vsel %vm274, %v472, -inf
      %478 = vmax.xlane.f32.xlu0 %v477
      %v479 = vpop.xlane.xlu0 %478
      %v480 = vsel %vm274, %v473, -inf
      %481 = vmax.xlane.f32.xlu0 %v480
      %v482 = vpop.xlane.xlu0 %481
      %v483 = vsub.f32 %v471, %v476
      %v484 = vsub.f32 %v472, %v479
      %v485 = vsub.f32 %v473, %v482
      %v486 = vmul.f32 %v483, 1.442695
      %v487 = vpow.pop %v486
      %v488 = vmul.f32 %v484, 1.442695
      %v489 = vpow.pop %v488
      %v490 = vmul.f32 %v485, 1.442695
      %v491 = vpow.pop %v490
      %v492 = vsel %vm274, %v487, 0.0
      %493 = vadd.xlane.f32.xlu0 %v492
      %v494 = vpop.xlane.xlu0 %493
      %v495 = vsel %vm274, %v489, 0.0
      %496 = vadd.xlane.f32.xlu0 %v495
      %v497 = vpop.xlane.xlu0 %496
      %v498 = vsel %vm274, %v491, 0.0
      %499 = vadd.xlane.f32.xlu0 %v498
      %v500 = vpop.xlane.xlu0 %499
      %v501 = vrcp.pop %v494
      %v502 = vrcp.pop %v497
      %v503 = vrcp.pop %v500
      %v504 = vmul.f32 %v487, %v501
      %v505 = vmul.f32 %v489, %v502
      %v506 = vmul.f32 %v491, %v503
      %v507 = vpack.c.bf16 %v505, %v504
      %v508 = vpack.c.bf16 %v506, %v506
      %509 = vrot.lane.b32.xlu0 %v411, 88
      %v510 = vpop.permute.xlu0 %509
      %v512 = vsel %vm274, %v507, 0
      %v515 = vsel %vm274, %v508, 0
      %v518 = vand.u32 %v510, %v324
      %520 = vmatprep.subr.bf16.mxu0 0
      %521 = vmatpush1.bf16.msra.mxu0 0
      %522 = vmatprep.subr.bf16.mxu0 0
      %523 = vmatpush1.bf16.msra.mxu0 0
      %524 = vmatprep.subr.bf16.mxu0 0
      %525 = vmatpush1.bf16.msra.mxu0 0
      %526 = vmatprep.subr.bf16.mxu0 0
      %527 = vmatpush1.bf16.msra.mxu0 0
      %528 = vmatprep.subr.bf16.mxu0 0
      %529 = vmatpush1.bf16.msra.mxu0 0
      %530 = vmatprep.subr.bf16.mxu0 0
      %531 = vmatpush1.bf16.msra.mxu0 0
      %532 = vmatprep.subr.bf16.mxu0 0
      %533 = vmatpush1.bf16.msra.mxu0 0
      %534 = vmatprep.subr.bf16.mxu0 0
      %535 = vmatpush1.bf16.msra.mxu0 %v518
      %536 = vmatprep.subr.bf16.mxu0 0
      %537 = vmatpush2.bf16.msra.mxu0 0
      %538 = vmatprep.subr.bf16.mxu0 0
      %539 = vmatpush2.bf16.msra.mxu0 0
      %540 = vmatprep.subr.bf16.mxu0 0
      %541 = vmatpush2.bf16.msra.mxu0 0
      %542 = vmatprep.subr.bf16.mxu0 0
      %543 = vmatpush2.bf16.msra.mxu0 0
      %544 = vmatprep.subr.bf16.mxu0 0
      %545 = vmatpush2.bf16.msra.mxu0 0
      %546 = vmatprep.subr.bf16.mxu0 0
      %547 = vmatpush2.bf16.msra.mxu0 0
      %548 = vmatprep.subr.bf16.mxu0 0
      %549 = vmatpush2.bf16.msra.mxu0 0
      %550 = vmatprep.subr.bf16.mxu0 0
      %551 = vmatpush2.bf16.msra.mxu0 0
      %552 = vmatprep.mubr.bf16.mxu0 0
      %553 = vmatmul.mubr.bf16.gmra.mxu0 %v512
      %v554 = vpop.f32.mrf.mxu0
      %v555 = vadd.f32 0.0, %v554
      %v556 = vpop.f32.mrf.mxu0
      %v557 = vpop.f32.mrf.mxu0
      %v558 = vadd.f32 0.0, %v557
      %v559 = vpop.f32.mrf.mxu0
      %560 = vmatprep.mubr.bf16.mxu0 0
      %561 = vmatmul.mubr.bf16.gmra.mxu0 %v515
      %v562 = vpop.f32.mrf.mxu0
      %v563 = vadd.f32 0.0, %v562
      %v564 = vpop.f32.mrf.mxu0
      %v565 = vpop.f32.mrf.mxu0
      %v566 = vpop.f32.mrf.mxu0
      %567 = vdwg.mxu0
      %v568 = vpack.c.bf16 %v558, %v555
      %v569 = vpack.c.bf16 %v563, %v563
      %v572 = vunpack.c.l.b16 %v568
      %v573 = vunpack.c.h.b16 %v568
      %v574 = vunpack.c.l.b16 %v569
      %v575 = vpack.c.b16 %v572, %v572
      %v576 = vpack.c.b16 %v573, %v573
      %v577 = vpack.c.b16 %v574, %v574
      %578 = vrot.lane.b32.xlu0 %v575, 8
      %v579 = vpop.permute.xlu0 %578
      %580 = vrot.lane.b32.xlu0 %v576, 8
      %v581 = vpop.permute.xlu0 %580
      %582 = vrot.lane.b32.xlu0 %v577, 8
      %v583 = vpop.permute.xlu0 %582
      %vm587 = vcmask 126016
      %588 = vst.msk [vmem:[%s198] sm:$0xf] %vm587, %v579
      %589 = vst.msk [vmem:[%s198 + $0x4] sm:$0xf] %vm587, %v581
      %590 = vst.msk [vmem:[%s198 + $0x8] sm:$0xf] %vm587, %v583
      %v591 = vld [vmem:[%s184] sm:$0xf]
      %v592 = vld [vmem:[%s184 + $0x4] sm:$0xf]
      %v593 = vld [vmem:[%s184 + $0x8] sm:$0xf]
      %v594 = vld [vmem:[%s189] sm:$0x7]
      %v598 = vunpack.c.l.b16 %v591
      %v599 = vunpack.c.l.b16 %v592
      %v600 = vunpack.c.l.b16 %v593
      %v601 = vpack.c.b16 %v599, %v598
      %v602 = vpack.c.b16 %v600, %v600
      %603 = vrot.lane.b32.xlu0 %v601, 112
      %v604 = vpop.permute.xlu0 %603
      %605 = vrot.lane.b32.xlu0 %v602, 112
      %v606 = vpop.permute.xlu0 %605
      %v608 = vunpack.c.l.b16 %v594
      %v609 = vpack.c.b16 %v608, %v608
      %610 = vrot.lane.b32.xlu0 %v609, 112
      %v611 = vpop.permute.xlu0 %610
      %v613 = vsel %vm213, %v604, 0
      %v616 = vsel %vm213, %v606, 0
      %v619 = vsel %vm213, %v611, 0
      %621 = vmatprep.subr.bf16.mxu0 0
      %622 = vmatpush1.bf16.xpose.msra.mxu0 0
      %623 = vmatprep.subr.bf16.mxu0 0
      %624 = vmatpush1.bf16.xpose.msra.mxu0 0
      %625 = vmatprep.subr.bf16.mxu0 0
      %626 = vmatpush1.bf16.xpose.msra.mxu0 0
      %627 = vmatprep.subr.bf16.mxu0 0
      %628 = vmatpush1.bf16.xpose.msra.mxu0 0
      %629 = vmatprep.subr.bf16.mxu0 0
      %630 = vmatpush1.bf16.xpose.msra.mxu0 0
      %631 = vmatprep.subr.bf16.mxu0 0
      %632 = vmatpush1.bf16.xpose.msra.mxu0 0
      %633 = vmatprep.subr.bf16.mxu0 0
      %634 = vmatpush1.bf16.xpose.msra.mxu0 0
      %635 = vmatprep.subr.bf16.mxu0 0
      %636 = vmatpush1.bf16.xpose.msra.mxu0 %v619
      %637 = vmatprep.subr.bf16.mxu0 0
      %638 = vmatpush2.bf16.xpose.msra.mxu0 0
      %639 = vmatprep.subr.bf16.mxu0 0
      %640 = vmatpush2.bf16.xpose.msra.mxu0 0
      %641 = vmatprep.subr.bf16.mxu0 0
      %642 = vmatpush2.bf16.xpose.msra.mxu0 0
      %643 = vmatprep.subr.bf16.mxu0 0
      %644 = vmatpush2.bf16.xpose.msra.mxu0 0
      %645 = vmatprep.subr.bf16.mxu0 0
      %646 = vmatpush2.bf16.xpose.msra.mxu0 0
      %647 = vmatprep.subr.bf16.mxu0 0
      %648 = vmatpush2.bf16.xpose.msra.mxu0 0
      %649 = vmatprep.subr.bf16.mxu0 0
      %650 = vmatpush2.bf16.xpose.msra.mxu0 0
      %651 = vmatprep.subr.bf16.mxu0 0
      %652 = vmatpush2.bf16.xpose.msra.mxu0 0
      %653 = vmatprep.mubr.bf16.mxu0 0
      %654 = vmatmul.mubr.bf16.gmra.mxu0 %v613
      %v655 = vpop.f32.mrf.mxu0
      %v656 = vadd.f32 0.0, %v655
      %v657 = vpop.f32.mrf.mxu0
      %v658 = vpop.f32.mrf.mxu0
      %v659 = vadd.f32 0.0, %v658
      %v660 = vpop.f32.mrf.mxu0
      %661 = vmatprep.mubr.bf16.mxu0 0
      %662 = vmatmul.mubr.bf16.gmra.mxu0 %v616
      %v663 = vpop.f32.mrf.mxu0
      %v664 = vadd.f32 0.0, %v663
      %v665 = vpop.f32.mrf.mxu0
      %v666 = vpop.f32.mrf.mxu0
      %v667 = vpop.f32.mrf.mxu0
      %668 = vdwg.mxu0
      %v669 = vmul.f32 %v656, 0.35355338
      %v670 = vmul.f32 %v659, 0.35355338
      %v671 = vmul.f32 %v664, 0.35355338
      %v672 = vsel %vm274, %v669, -inf
      %673 = vmax.xlane.f32.xlu0 %v672
      %v674 = vpop.xlane.xlu0 %673
      %v675 = vsel %vm274, %v670, -inf
      %676 = vmax.xlane.f32.xlu0 %v675
      %v677 = vpop.xlane.xlu0 %676
      %v678 = vsel %vm274, %v671, -inf
      %679 = vmax.xlane.f32.xlu0 %v678
      %v680 = vpop.xlane.xlu0 %679
      %v681 = vsub.f32 %v669, %v674
      %v682 = vsub.f32 %v670, %v677
      %v683 = vsub.f32 %v671, %v680
      %v684 = vmul.f32 %v681, 1.442695
      %v685 = vpow.pop %v684
      %v686 = vmul.f32 %v682, 1.442695
      %v687 = vpow.pop %v686
      %v688 = vmul.f32 %v683, 1.442695
      %v689 = vpow.pop %v688
      %v690 = vsel %vm274, %v685, 0.0
      %691 = vadd.xlane.f32.xlu0 %v690
      %v692 = vpop.xlane.xlu0 %691
      %v693 = vsel %vm274, %v687, 0.0
      %694 = vadd.xlane.f32.xlu0 %v693
      %v695 = vpop.xlane.xlu0 %694
      %v696 = vsel %vm274, %v689, 0.0
      %697 = vadd.xlane.f32.xlu0 %v696
      %v698 = vpop.xlane.xlu0 %697
      %v699 = vrcp.pop %v692
      %v700 = vrcp.pop %v695
      %v701 = vrcp.pop %v698
      %v702 = vmul.f32 %v685, %v699
      %v703 = vmul.f32 %v687, %v700
      %v704 = vmul.f32 %v689, %v701
      %v705 = vpack.c.bf16 %v703, %v702
      %v706 = vpack.c.bf16 %v704, %v704
      %707 = vrot.lane.b32.xlu0 %v609, 80
      %v708 = vpop.permute.xlu0 %707
      %v710 = vsel %vm274, %v705, 0
      %v713 = vsel %vm274, %v706, 0
      %v716 = vand.u32 %v708, %v324
      %718 = vmatprep.subr.bf16.mxu0 0
      %719 = vmatpush1.bf16.msra.mxu0 0
      %720 = vmatprep.subr.bf16.mxu0 0
      %721 = vmatpush1.bf16.msra.mxu0 0
      %722 = vmatprep.subr.bf16.mxu0 0
      %723 = vmatpush1.bf16.msra.mxu0 0
      %724 = vmatprep.subr.bf16.mxu0 0
      %725 = vmatpush1.bf16.msra.mxu0 0
      %726 = vmatprep.subr.bf16.mxu0 0
      %727 = vmatpush1.bf16.msra.mxu0 0
      %728 = vmatprep.subr.bf16.mxu0 0
      %729 = vmatpush1.bf16.msra.mxu0 0
      %730 = vmatprep.subr.bf16.mxu0 0
      %731 = vmatpush1.bf16.msra.mxu0 0
      %732 = vmatprep.subr.bf16.mxu0 0
      %733 = vmatpush1.bf16.msra.mxu0 %v716
      %734 = vmatprep.subr.bf16.mxu0 0
      %735 = vmatpush2.bf16.msra.mxu0 0
      %736 = vmatprep.subr.bf16.mxu0 0
      %737 = vmatpush2.bf16.msra.mxu0 0
      %738 = vmatprep.subr.bf16.mxu0 0
      %739 = vmatpush2.bf16.msra.mxu0 0
      %740 = vmatprep.subr.bf16.mxu0 0
      %741 = vmatpush2.bf16.msra.mxu0 0
      %742 = vmatprep.subr.bf16.mxu0 0
      %743 = vmatpush2.bf16.msra.mxu0 0
      %744 = vmatprep.subr.bf16.mxu0 0
      %745 = vmatpush2.bf16.msra.mxu0 0
      %746 = vmatprep.subr.bf16.mxu0 0
      %747 = vmatpush2.bf16.msra.mxu0 0
      %748 = vmatprep.subr.bf16.mxu0 0
      %749 = vmatpush2.bf16.msra.mxu0 0
      %750 = vmatprep.mubr.bf16.mxu0 0
      %751 = vmatmul.mubr.bf16.gmra.mxu0 %v710
      %v752 = vpop.f32.mrf.mxu0
      %v753 = vadd.f32 0.0, %v752
      %v754 = vpop.f32.mrf.mxu0
      %v755 = vpop.f32.mrf.mxu0
      %v756 = vadd.f32 0.0, %v755
      %v757 = vpop.f32.mrf.mxu0
      %758 = vmatprep.mubr.bf16.mxu0 0
      %759 = vmatmul.mubr.bf16.gmra.mxu0 %v713
      %v760 = vpop.f32.mrf.mxu0
      %v761 = vadd.f32 0.0, %v760
      %v762 = vpop.f32.mrf.mxu0
      %v763 = vpop.f32.mrf.mxu0
      %v764 = vpop.f32.mrf.mxu0
      %765 = vdwg.mxu0
      %v766 = vpack.c.bf16 %v756, %v753
      %v767 = vpack.c.bf16 %v761, %v761
      %v770 = vunpack.c.l.b16 %v766
      %v771 = vunpack.c.h.b16 %v766
      %v772 = vunpack.c.l.b16 %v767
      %v773 = vpack.c.b16 %v770, %v770
      %v774 = vpack.c.b16 %v771, %v771
      %v775 = vpack.c.b16 %v772, %v772
      %776 = vrot.lane.b32.xlu0 %v773, 16
      %v777 = vpop.permute.xlu0 %776
      %778 = vrot.lane.b32.xlu0 %v774, 16
      %v779 = vpop.permute.xlu0 %778
      %780 = vrot.lane.b32.xlu0 %v775, 16
      %v781 = vpop.permute.xlu0 %780
      %vm785 = vcmask 191616
      %786 = vst.msk [vmem:[%s198] sm:$0xf] %vm785, %v777
      %787 = vst.msk [vmem:[%s198 + $0x4] sm:$0xf] %vm785, %v779
      %788 = vst.msk [vmem:[%s198 + $0x8] sm:$0xf] %vm785, %v781
      %v789 = vld [vmem:[%s184] sm:$0xf]
      %v790 = vld [vmem:[%s184 + $0x4] sm:$0xf]
      %v791 = vld [vmem:[%s184 + $0x8] sm:$0xf]
      %v792 = vld [vmem:[%s189] sm:$0x7]
      %v796 = vunpack.c.l.b16 %v789
      %v797 = vunpack.c.l.b16 %v790
      %v798 = vunpack.c.l.b16 %v791
      %v799 = vpack.c.b16 %v797, %v796
      %v800 = vpack.c.b16 %v798, %v798
      %801 = vrot.lane.b32.xlu0 %v799, 104
      %v802 = vpop.permute.xlu0 %801
      %803 = vrot.lane.b32.xlu0 %v800, 104
      %v804 = vpop.permute.xlu0 %803
      %v806 = vunpack.c.l.b16 %v792
      %v807 = vpack.c.b16 %v806, %v806
      %808 = vrot.lane.b32.xlu0 %v807, 104
      %v809 = vpop.permute.xlu0 %808
      %v811 = vsel %vm213, %v802, 0
      %v814 = vsel %vm213, %v804, 0
      %v817 = vsel %vm213, %v809, 0
      %819 = vmatprep.subr.bf16.mxu0 0
      %820 = vmatpush1.bf16.xpose.msra.mxu0 0
      %821 = vmatprep.subr.bf16.mxu0 0
      %822 = vmatpush1.bf16.xpose.msra.mxu0 0
      %823 = vmatprep.subr.bf16.mxu0 0
      %824 = vmatpush1.bf16.xpose.msra.mxu0 0
      %825 = vmatprep.subr.bf16.mxu0 0
      %826 = vmatpush1.bf16.xpose.msra.mxu0 0
      %827 = vmatprep.subr.bf16.mxu0 0
      %828 = vmatpush1.bf16.xpose.msra.mxu0 0
      %829 = vmatprep.subr.bf16.mxu0 0
      %830 = vmatpush1.bf16.xpose.msra.mxu0 0
      %831 = vmatprep.subr.bf16.mxu0 0
      %832 = vmatpush1.bf16.xpose.msra.mxu0 0
      %833 = vmatprep.subr.bf16.mxu0 0
      %834 = vmatpush1.bf16.xpose.msra.mxu0 %v817
      %835 = vmatprep.subr.bf16.mxu0 0
      %836 = vmatpush2.bf16.xpose.msra.mxu0 0
      %837 = vmatprep.subr.bf16.mxu0 0
      %838 = vmatpush2.bf16.xpose.msra.mxu0 0
      %839 = vmatprep.subr.bf16.mxu0 0
      %840 = vmatpush2.bf16.xpose.msra.mxu0 0
      %841 = vmatprep.subr.bf16.mxu0 0
      %842 = vmatpush2.bf16.xpose.msra.mxu0 0
      %843 = vmatprep.subr.bf16.mxu0 0
      %844 = vmatpush2.bf16.xpose.msra.mxu0 0
      %845 = vmatprep.subr.bf16.mxu0 0
      %846 = vmatpush2.bf16.xpose.msra.mxu0 0
      %847 = vmatprep.subr.bf16.mxu0 0
      %848 = vmatpush2.bf16.xpose.msra.mxu0 0
      %849 = vmatprep.subr.bf16.mxu0 0
      %850 = vmatpush2.bf16.xpose.msra.mxu0 0
      %851 = vmatprep.mubr.bf16.mxu0 0
      %852 = vmatmul.mubr.bf16.gmra.mxu0 %v811
      %v853 = vpop.f32.mrf.mxu0
      %v854 = vadd.f32 0.0, %v853
      %v855 = vpop.f32.mrf.mxu0
      %v856 = vpop.f32.mrf.mxu0
      %v857 = vadd.f32 0.0, %v856
      %v858 = vpop.f32.mrf.mxu0
      %859 = vmatprep.mubr.bf16.mxu0 0
      %860 = vmatmul.mubr.bf16.gmra.mxu0 %v814
      %v861 = vpop.f32.mrf.mxu0
      %v862 = vadd.f32 0.0, %v861
      %v863 = vpop.f32.mrf.mxu0
      %v864 = vpop.f32.mrf.mxu0
      %v865 = vpop.f32.mrf.mxu0
      %866 = vdwg.mxu0
      %v867 = vmul.f32 %v854, 0.35355338
      %v868 = vmul.f32 %v857, 0.35355338
      %v869 = vmul.f32 %v862, 0.35355338
      %v870 = vsel %vm274, %v867, -inf
      %871 = vmax.xlane.f32.xlu0 %v870
      %v872 = vpop.xlane.xlu0 %871
      %v873 = vsel %vm274, %v868, -inf
      %874 = vmax.xlane.f32.xlu0 %v873
      %v875 = vpop.xlane.xlu0 %874
      %v876 = vsel %vm274, %v869, -inf
      %877 = vmax.xlane.f32.xlu0 %v876
      %v878 = vpop.xlane.xlu0 %877
      %v879 = vsub.f32 %v867, %v872
      %v880 = vsub.f32 %v868, %v875
      %v881 = vsub.f32 %v869, %v878
      %v882 = vmul.f32 %v879, 1.442695
      %v883 = vpow.pop %v882
      %v884 = vmul.f32 %v880, 1.442695
      %v885 = vpow.pop %v884
      %v886 = vmul.f32 %v881, 1.442695
      %v887 = vpow.pop %v886
      %v888 = vsel %vm274, %v883, 0.0
      %889 = vadd.xlane.f32.xlu0 %v888
      %v890 = vpop.xlane.xlu0 %889
      %v891 = vsel %vm274, %v885, 0.0
      %892 = vadd.xlane.f32.xlu0 %v891
      %v893 = vpop.xlane.xlu0 %892
      %v894 = vsel %vm274, %v887, 0.0
      %895 = vadd.xlane.f32.xlu0 %v894
      %v896 = vpop.xlane.xlu0 %895
      %v897 = vrcp.pop %v890
      %v898 = vrcp.pop %v893
      %v899 = vrcp.pop %v896
      %v900 = vmul.f32 %v883, %v897
      %v901 = vmul.f32 %v885, %v898
      %v902 = vmul.f32 %v887, %v899
      %v903 = vpack.c.bf16 %v901, %v900
      %v904 = vpack.c.bf16 %v902, %v902
      %905 = vrot.lane.b32.xlu0 %v807, 72
      %v906 = vpop.permute.xlu0 %905
      %v908 = vsel %vm274, %v903, 0
      %v911 = vsel %vm274, %v904, 0
      %v914 = vand.u32 %v906, %v324
      %916 = vmatprep.subr.bf16.mxu0 0
      %917 = vmatpush1.bf16.msra.mxu0 0
      %918 = vmatprep.subr.bf16.mxu0 0
      %919 = vmatpush1.bf16.msra.mxu0 0
      %920 = vmatprep.subr.bf16.mxu0 0
      %921 = vmatpush1.bf16.msra.mxu0 0
      %922 = vmatprep.subr.bf16.mxu0 0
      %923 = vmatpush1.bf16.msra.mxu0 0
      %924 = vmatprep.subr.bf16.mxu0 0
      %925 = vmatpush1.bf16.msra.mxu0 0
      %926 = vmatprep.subr.bf16.mxu0 0
      %927 = vmatpush1.bf16.msra.mxu0 0
      %928 = vmatprep.subr.bf16.mxu0 0
      %929 = vmatpush1.bf16.msra.mxu0 0
      %930 = vmatprep.subr.bf16.mxu0 0
      %931 = vmatpush1.bf16.msra.mxu0 %v914
      %932 = vmatprep.subr.bf16.mxu0 0
      %933 = vmatpush2.bf16.msra.mxu0 0
      %934 = vmatprep.subr.bf16.mxu0 0
      %935 = vmatpush2.bf16.msra.mxu0 0
      %936 = vmatprep.subr.bf16.mxu0 0
      %937 = vmatpush2.bf16.msra.mxu0 0
      %938 = vmatprep.subr.bf16.mxu0 0
      %939 = vmatpush2.bf16.msra.mxu0 0
      %940 = vmatprep.subr.bf16.mxu0 0
      %941 = vmatpush2.bf16.msra.mxu0 0
      %942 = vmatprep.subr.bf16.mxu0 0
      %943 = vmatpush2.bf16.msra.mxu0 0
      %944 = vmatprep.subr.bf16.mxu0 0
      %945 = vmatpush2.bf16.msra.mxu0 0
      %946 = vmatprep.subr.bf16.mxu0 0
      %947 = vmatpush2.bf16.msra.mxu0 0
      %948 = vmatprep.mubr.bf16.mxu0 0
      %949 = vmatmul.mubr.bf16.gmra.mxu0 %v908
      %v950 = vpop.f32.mrf.mxu0
      %v951 = vadd.f32 0.0, %v950
      %v952 = vpop.f32.mrf.mxu0
      %v953 = vpop.f32.mrf.mxu0
      %v954 = vadd.f32 0.0, %v953
      %v955 = vpop.f32.mrf.mxu0
      %956 = vmatprep.mubr.bf16.mxu0 0
      %957 = vmatmul.mubr.bf16.gmra.mxu0 %v911
      %v958 = vpop.f32.mrf.mxu0
      %v959 = vadd.f32 0.0, %v958
      %v960 = vpop.f32.mrf.mxu0
      %v961 = vpop.f32.mrf.mxu0
      %v962 = vpop.f32.mrf.mxu0
      %963 = vdwg.mxu0
      %v964 = vpack.c.bf16 %v954, %v951
      %v965 = vpack.c.bf16 %v959, %v959
      %v968 = vunpack.c.l.b16 %v964
      %v969 = vunpack.c.h.b16 %v964
      %v970 = vunpack.c.l.b16 %v965
      %v971 = vpack.c.b16 %v968, %v968
      %v972 = vpack.c.b16 %v969, %v969
      %v973 = vpack.c.b16 %v970, %v970
      %974 = vrot.lane.b32.xlu0 %v971, 24
      %v975 = vpop.permute.xlu0 %974
      %976 = vrot.lane.b32.xlu0 %v972, 24
      %v977 = vpop.permute.xlu0 %976
      %978 = vrot.lane.b32.xlu0 %v973, 24
      %v979 = vpop.permute.xlu0 %978
      %vm983 = vcmask 257216
      %984 = vst.msk [vmem:[%s198] sm:$0xf] %vm983, %v975
      %985 = vst.msk [vmem:[%s198 + $0x4] sm:$0xf] %vm983, %v977
      %986 = vst.msk [vmem:[%s198 + $0x8] sm:$0xf] %vm983, %v979
      %s987 = smul.u32 3, %s18
      %p988 = scmp.lt.s32.totalorder %s17, 1
      %s989 = scalar_select %p988, %s17, 1
      %p990 = scmp.lt.s32.totalorder %s987, 2
      %s991 = scalar_select %p990, %s987, 2
      %s992 = smul.addr %s989, 3
      %s993 = sadd.s32 %s991, %s992
      %s994 = smul.addr %s993, 4
      %s995 = scalar_lea.vmem %s2, %s994
      // Predicated region
      $region29: #{_lambda_.45} parent=27 // pred_check
        %p996 = pneg %p99
      $region30: #{_lambda_.45} parent=27 // pred_check_branch
        %998 = sbr.rel (%p996) target = $region32
      $region31: #{_lambda_.45} parent=27 // pred_region
        %s999 = smul.u32 3, %s18
      $region32: #{_lambda_.45} parent=27 // pred_fallthru
        _
    $region28: #{_lambda_.45} parent=5 // pred_fallthru
      _
    %p1000 = scmp.le.s32.totalorder 2, %s8
    // Predicated region
    $region33: #{_lambda_.45} parent=5 // pred_check
      %p1001 = pneg %p1000
    $region34: #{_lambda_.45} parent=5 // pred_check_branch
      %1003 = sbr.rel (%p1001) target = $region36
    $region35: #{_lambda_.45} parent=5 // pred_region
      %s1004 = ssub.s32 %s8, 2
      // Predicated region
      $region37: #{_lambda_.45} parent=35 // pred_check
        %p1005 = pneg %p105
      $region38: #{_lambda_.45} parent=35 // pred_check_branch
        %1007 = sbr.rel (%p1005) target = $region40
      $region39: #{_lambda_.45} parent=35 // pred_region
        %s1008 = smul.u32 3, %s20
        %p1009 = scmp.lt.s32.totalorder %s19, 1
        %s1010 = scalar_select %p1009, %s19, 1
        %p1011 = scmp.lt.s32.totalorder %s1008, 2
        %s1012 = scalar_select %p1011, %s1008, 2
        %s1013 = smul.addr %s1010, 3
        %s1014 = sadd.s32 %s1012, %s1013
        %s1015 = smul.addr %s1014, 4
        %s1016 = scalar_lea.vmem %s2, %s1015
      $region40: #{_lambda_.45} parent=35 // pred_fallthru
        _
    $region36: #{_lambda_.45} parent=5 // pred_fallthru
      _
  $region6: #{_lambda_.45} parent=0 // loop_footer
    %s12 = sadd.s32 1, %s8
  $region7: #{_lambda_.45} parent=0 // loop_footer_branch
    %7 = sbr.rel target = $region3
  $region8: #{_lambda_.45} parent=0 // loop_exit
    _

// kernel: _lambda_.64
$region0: #{_lambda_.64}
  #allocation0 [shape = 'u32[]', space=smem, size = 0x4, offset = 0x4, fixed_abs, tag = 'smem constant byte address 0x4 - core index']
  #allocation1 [shape = 'u32[144,128]{1,0:T(1,128)}', space=vmem, size = 0x12000, scoped, tag = 'internal scratch']
  #allocation2 [shape = 'f32[4,128]{1,0:T(4,128)}', space=vmem, size = 0x800, scoped, tag = 'scratch operand']
  %s0 = inlined_call_operand.vmem [shape: bf16[2,6,6,32], index: 0, kind: input, shape index: {}]
  %s1 = inlined_call_operand.vmem [shape: bf16[3,3,32,128], index: 1, kind: input, shape index: {}]
  %s2 = inlined_call_operand.vmem [shape: bf16[2,4,4,128], index: 2, kind: output, shape index: {}]
  %s3 = sld [smem:[#allocation0]]
  $region53: #{_lambda_.64} parent=0
    _
  %s5 = ssub.s32 1, %s3
  %s6 = scalar_select 0, %s5, %s3
  loop: start=0, step=1, limit=26
  $region2: #{_lambda_.64} parent=0 // loop_pre_header
    _
  $region3: #{_lambda_.64} parent=0 // loop_header
    %s8 = sphi 0, %s12
    %p9 = scmp.ge.s32.totalorder %s8, 26
    %s15 = sphi 0, %s34
    %s16 = sphi 0, %s30
    %s17 = sphi 0, %s26
    %s18 = sphi 0, %s15
    %s19 = sphi 0, %s16
    %s20 = sphi 0, %s17
    %s21 = sphi 0, %s18
    %s22 = sphi 0, %s19
    %s23 = sphi 0, %s20
    %s41 = sphi 0, %s43
    %s44 = sphi 0, %s41
    %s45 = sphi 0, %s44
    %s61 = sphi 0, %s45
    %s67 = sphi 0, %s69
    %s70 = sphi 0, %s67
    %s71 = sphi 0, %s70
    %s87 = sphi 0, %s71
    %s95 = sphi 0, %s97
    %s98 = sphi 0, %s95
    %s99 = sphi 0, %s98
    %s115 = sphi 0, %s99
  $region4: #{_lambda_.64} parent=0 // loop_header_branch
    %11 = sbr.rel (%p9) target = $region8
  $region5: #{_lambda_.64} parent=0 // loop_body
    %s13 = ssub.s32 %s8, 1
    %s14 = ssub.s32 %s8, 2
    %s24 = sadd.s32 1, %s17
    %p25 = scmp.ge.s32.totalorder %s24, 3
    %s26 = scalar_select %p25, 0, %s24
    %s27 = sadd.s32 1, %s16
    %s28 = scalar_select %p25, %s27, %s16
    %p29 = scmp.ge.s32.totalorder %s28, 4
    %s30 = scalar_select %p29, 0, %s28
    %s31 = sadd.s32 1, %s15
    %s32 = scalar_select %p29, %s31, %s15
    %p33 = scmp.ge.s32.totalorder %s32, 2
    %s34 = scalar_select %p33, 0, %s32
    %s35 = sadd.s32 %s16, %s17
    %s36 = sadd.s32 %s30, %s26
    %s37 = ssub.s32 %s15, %s34
    %s38 = ssub.s32 %s35, %s36
    %s39 = sor.u32 %s37, %s38
    %p40 = scmp.eq.s32.totalorder %s39, 0
    %s42 = sadd.s32 %s41, 1
    %s43 = scalar_select %p40, %s41, %s42
    %p46 = pneg %p40
    %p47 = scmp.eq.s32.totalorder %s8, 23
    %p48 = por %p46, %p47
    %p49 = scmp.ne.s32.totalorder %s41, %s44
    %p50 = scmp.eq.s32.totalorder %s8, 0
    %p51 = por %p49, %p50
    %p52 = scmp.ne.s32.totalorder %s41, %s44
    %p53 = scmp.eq.s32.totalorder %s13, 23
    %p54 = por %p52, %p53
    %p55 = scmp.ne.s32.totalorder %s44, %s45
    %p56 = scmp.eq.s32.totalorder %s13, 0
    %p57 = por %p55, %p56
    %p58 = scmp.ne.s32.totalorder %s44, %s45
    %p59 = scmp.eq.s32.totalorder %s14, 23
    %p60 = por %p58, %p59
    %p62 = scmp.ne.s32.totalorder %s45, %s61
    %p63 = scmp.eq.s32.totalorder %s14, 0
    %p64 = por %p62, %p63
    %s65 = ssub.s32 %s17, %s26
    %p66 = scmp.eq.s32.totalorder %s65, 0
    %s68 = sadd.s32 %s67, 1
    %s69 = scalar_select %p66, %s67, %s68
    %p72 = pneg %p66
    %p73 = scmp.eq.s32.totalorder %s8, 23
    %p74 = por %p72, %p73
    %p75 = scmp.ne.s32.totalorder %s67, %s70
    %p76 = scmp.eq.s32.totalorder %s8, 0
    %p77 = por %p75, %p76
    %p78 = scmp.ne.s32.totalorder %s67, %s70
    %p79 = scmp.eq.s32.totalorder %s13, 23
    %p80 = por %p78, %p79
    %p81 = scmp.ne.s32.totalorder %s70, %s71
    %p82 = scmp.eq.s32.totalorder %s13, 0
    %p83 = por %p81, %p82
    %p84 = scmp.ne.s32.totalorder %s70, %s71
    %p85 = scmp.eq.s32.totalorder %s14, 23
    %p86 = por %p84, %p85
    %p88 = scmp.ne.s32.totalorder %s71, %s87
    %p89 = scmp.eq.s32.totalorder %s14, 0
    %p90 = por %p88, %p89
    %s91 = ssub.s32 %s15, %s34
    %s92 = ssub.s32 %s16, %s30
    %s93 = sor.u32 %s91, %s92
    %p94 = scmp.eq.s32.totalorder %s93, 0
    %s96 = sadd.s32 %s95, 1
    %s97 = scalar_select %p94, %s95, %s96
    %p100 = pneg %p94
    %p101 = scmp.eq.s32.totalorder %s8, 23
    %p102 = por %p100, %p101
    %p103 = scmp.ne.s32.totalorder %s95, %s98
    %p104 = scmp.eq.s32.totalorder %s8, 0
    %p105 = por %p103, %p104
    %p106 = scmp.ne.s32.totalorder %s95, %s98
    %p107 = scmp.eq.s32.totalorder %s13, 23
    %p108 = por %p106, %p107
    %p109 = scmp.ne.s32.totalorder %s98, %s99
    %p110 = scmp.eq.s32.totalorder %s13, 0
    %p111 = por %p109, %p110
    %p112 = scmp.ne.s32.totalorder %s98, %s99
    %p113 = scmp.eq.s32.totalorder %s14, 23
    %p114 = por %p112, %p113
    %p116 = scmp.ne.s32.totalorder %s99, %s115
    %p117 = scmp.eq.s32.totalorder %s14, 0
    %p118 = por %p116, %p117
    %p119 = scmp.le.s32.totalorder 1, %s8
    %p120 = scmp.lt.s32.totalorder %s8, 25
    %p121 = pnand %p119, %p120
    %p122 = pneg %p121
    // Predicated region
    $region9: #{_lambda_.64} parent=5 // pred_check
      _
    $region10: #{_lambda_.64} parent=5 // pred_check_branch
      %124 = sbr.rel (%p121) target = $region12
    $region11: #{_lambda_.64} parent=5 // pred_region
      %s125 = ssub.s32 %s8, 1
    $region12: #{_lambda_.64} parent=5 // pred_fallthru
      _
    %p126 = scmp.lt.s32.totalorder %s8, 24
    // Predicated region
    $region13: #{_lambda_.64} parent=5 // pred_check
      %p127 = pneg %p126
    $region14: #{_lambda_.64} parent=5 // pred_check_branch
      %129 = sbr.rel (%p127) target = $region16
    $region15: #{_lambda_.64} parent=5 // pred_region
      // Predicated region
      $region17: #{_lambda_.64} parent=15 // pred_check
        %p130 = pneg %p51
      $region18: #{_lambda_.64} parent=15 // pred_check_branch
        %132 = sbr.rel (%p130) target = $region20
      $region19: #{_lambda_.64} parent=15 // pred_region
        %s133 = sadd.s32 %s16, %s17
        %p134 = scmp.lt.s32.totalorder %s15, 1
        %s135 = scalar_select %p134, %s15, 1
        %p136 = scmp.lt.s32.totalorder %s133, 5
        %s137 = scalar_select %p136, %s133, 5
        %s138 = smul.addr %s135, 6
        %s139 = sadd.s32 %s137, %s138
        %s140 = smul.addr %s139, 4
        %s141 = scalar_lea.vmem %s0, %s140
        %s142 = sadd.s32 %s16, %s17
      $region20: #{_lambda_.64} parent=15 // pred_fallthru
        _
      // Predicated region
      $region21: #{_lambda_.64} parent=15 // pred_check
        %p143 = pneg %p77
      $region22: #{_lambda_.64} parent=15 // pred_check_branch
        %145 = sbr.rel (%p143) target = $region24
      $region23: #{_lambda_.64} parent=15 // pred_region
        %p146 = scmp.lt.s32.totalorder %s17, 2
        %s147 = scalar_select %p146, %s17, 2
        %s148 = smul.addr %s147, 12
        %s149 = smul.addr %s148, 4
        %s150 = scalar_lea.vmem %s1, %s149
      $region24: #{_lambda_.64} parent=15 // pred_fallthru
        _
    $region16: #{_lambda_.64} parent=5 // pred_fallthru
      _
    %p151 = scmp.le.s32.totalorder 1, %s8
    %p152 = scmp.lt.s32.totalorder %s8, 25
    %p153 = pnand %p151, %p152
    %p154 = pneg %p153
    // Predicated region
    $region25: #{_lambda_.64} parent=5 // pred_check
      _
    $region26: #{_lambda_.64} parent=5 // pred_check_branch
      %156 = sbr.rel (%p153) target = $region28
    $region27: #{_lambda_.64} parent=5 // pred_region
      %s157 = ssub.s32 %s8, 1
      %s158 = sadd.s32 %s19, %s20
      %p159 = scmp.lt.s32.totalorder %s18, 1
      %s160 = scalar_select %p159, %s18, 1
      %p161 = scmp.lt.s32.totalorder %s158, 5
      %s162 = scalar_select %p161, %s158, 5
      %s163 = smul.addr %s160, 6
      %s164 = sadd.s32 %s162, %s163
      %s165 = smul.addr %s164, 4
      %s166 = scalar_lea.vmem %s0, %s165
      %p167 = pneg %p57
      %p168 = pneg %p54
      %p169 = scmp.lt.s32.totalorder %s20, 2
      %s170 = scalar_select %p169, %s20, 2
      %s171 = smul.addr %s170, 12
      %s172 = smul.addr %s171, 4
      %s173 = scalar_lea.vmem %s1, %s172
      %p174 = pneg %p83
      %p175 = pneg %p80
      %p176 = pneg %p111
      %p177 = pneg %p108
      %p178 = scmp.lt.s32.totalorder %s18, 1
      %s179 = scalar_select %p178, %s18, 1
      %p180 = scmp.lt.s32.totalorder %s19, 3
      %s181 = scalar_select %p180, %s19, 3
      %s182 = smul.addr %s179, 4
      %s183 = sadd.s32 %s181, %s182
      %s184 = smul.addr %s183, 2
      %s185 = scalar_lea.vmem %s2, %s184
      %s186 = sadd.s32 %s19, %s20
      %p187 = scmp.lt.s32.totalorder %s18, 1
      %s188 = scalar_select %p187, %s18, 1
      %p189 = scmp.lt.s32.totalorder %s186, 5
      %s190 = scalar_select %p189, %s186, 5
      %s191 = smul.addr %s188, 6
      %s192 = sadd.s32 %s190, %s191
      %s193 = smul.addr %s192, 4
      %s194 = scalar_lea.vmem %s0, %s193
      %s195 = sadd.s32 %s19, %s20
      %p196 = scmp.lt.s32.totalorder %s20, 2
      %s197 = scalar_select %p196, %s20, 2
      %s198 = smul.addr %s197, 12
      %s199 = smul.addr %s198, 4
      %s200 = scalar_lea.vmem %s1, %s199
      %p201 = scmp.lt.s32.totalorder %s18, 1
      %s202 = scalar_select %p201, %s18, 1
      %p203 = scmp.lt.s32.totalorder %s19, 3
      %s204 = scalar_select %p203, %s19, 3
      %s205 = smul.addr %s202, 4
      %s206 = sadd.s32 %s204, %s205
      %s207 = smul.addr %s206, 2
      %s208 = scalar_lea.vmem %s2, %s207
      %v210 = vld [vmem:[%s194] sm:$0x3]
      %v211 = vld [vmem:[%s200] sm:$0xf]
      %v212 = vld [vmem:[%s200 + $0x4] sm:$0xf]
      %v213 = vld [vmem:[%s200 + $0x8] sm:$0xf]
      %v214 = vld [vmem:[%s200 + $0xc] sm:$0xf]
      %v215 = vld [vmem:[%s194] sm:$0x7]
      %s216 = scalar_lea.vmem %s200, 16
      %v217 = vld [vmem:[%s216] sm:$0xf]
      %v218 = vld [vmem:[%s216 + $0x4] sm:$0xf]
      %v219 = vld [vmem:[%s216 + $0x8] sm:$0xf]
      %v220 = vld [vmem:[%s216 + $0xc] sm:$0xf]
      %v222 = vunpack.c.l.b16 %v215
      %v223 = vpack.c.b16 %v222, %v222
      %v225 = vshrl.u32 %v223, 16
      %v227 = vshll.u32 %v223, 16
      %v229 = vrot.slane %v227, 1
      %v230 = vor.u32 %v225, %v229
      %v235 = vunpack.c.l.b16 %v217
      %v236 = vunpack.c.l.b16 %v218
      %v237 = vunpack.c.l.b16 %v219
      %v238 = vunpack.c.l.b16 %v220
      %v239 = vpack.c.b16 %v236, %v235
      %v240 = vpack.c.b16 %v238, %v237
      %vm243 = vcmask 261120
      %v245 = vsel %vm243, %v230, 0
      %247 = vmatprep.subr.bf16.mxu0 0
      %248 = vmatpush1.bf16.msra.mxu0 0
      %249 = vmatprep.subr.bf16.mxu0 0
      %250 = vmatpush1.bf16.msra.mxu0 0
      %251 = vmatprep.subr.bf16.mxu0 0
      %252 = vmatpush1.bf16.msra.mxu0 0
      %253 = vmatprep.subr.bf16.mxu0 0
      %254 = vmatpush1.bf16.msra.mxu0 0
      %255 = vmatprep.subr.bf16.mxu0 0
      %256 = vmatpush1.bf16.msra.mxu0 0
      %257 = vmatprep.subr.bf16.mxu0 0
      %258 = vmatpush1.bf16.msra.mxu0 0
      %259 = vmatprep.subr.bf16.mxu0 0
      %260 = vmatpush1.bf16.msra.mxu0 %v240
      %261 = vmatprep.subr.bf16.mxu0 0
      %262 = vmatpush1.bf16.msra.mxu0 %v239
      %263 = vmatprep.subr.bf16.mxu0 0
      %264 = vmatpush2.bf16.msra.mxu0 0
      %265 = vmatprep.subr.bf16.mxu0 0
      %266 = vmatpush2.bf16.msra.mxu0 0
      %267 = vmatprep.subr.bf16.mxu0 0
      %268 = vmatpush2.bf16.msra.mxu0 0
      %269 = vmatprep.subr.bf16.mxu0 0
      %270 = vmatpush2.bf16.msra.mxu0 0
      %271 = vmatprep.subr.bf16.mxu0 0
      %272 = vmatpush2.bf16.msra.mxu0 0
      %273 = vmatprep.subr.bf16.mxu0 0
      %274 = vmatpush2.bf16.msra.mxu0 0
      %275 = vmatprep.subr.bf16.mxu0 0
      %276 = vmatpush2.bf16.msra.mxu0 0
      %277 = vmatprep.subr.bf16.mxu0 0
      %278 = vmatpush2.bf16.msra.mxu0 0
      %279 = vmatprep.mubr.bf16.mxu0 0
      %280 = vmatmul.mubr.bf16.gmra.mxu0 %v245
      %v281 = vpop.f32.mrf.mxu0
      %v282 = vadd.f32 0.0, %v281
      %v283 = vpop.f32.mrf.mxu0
      %v284 = vpop.f32.mrf.mxu0
      %v285 = vpop.f32.mrf.mxu0
      %286 = vdwg.mxu0
      %v291 = vunpack.c.l.b16 %v211
      %v292 = vunpack.c.l.b16 %v212
      %v293 = vunpack.c.l.b16 %v213
      %v294 = vunpack.c.l.b16 %v214
      %v295 = vpack.c.b16 %v292, %v291
      %v296 = vpack.c.b16 %v294, %v293
      %v300 = vsel %vm243, %v210, 0
      %302 = vmatprep.subr.bf16.mxu0 0
      %303 = vmatpush1.bf16.msra.mxu0 0
      %304 = vmatprep.subr.bf16.mxu0 0
      %305 = vmatpush1.bf16.msra.mxu0 0
      %306 = vmatprep.subr.bf16.mxu0 0
      %307 = vmatpush1.bf16.msra.mxu0 0
      %308 = vmatprep.subr.bf16.mxu0 0
      %309 = vmatpush1.bf16.msra.mxu0 0
      %310 = vmatprep.subr.bf16.mxu0 0
      %311 = vmatpush1.bf16.msra.mxu0 0
      %312 = vmatprep.subr.bf16.mxu0 0
      %313 = vmatpush1.bf16.msra.mxu0 0
      %314 = vmatprep.subr.bf16.mxu0 0
      %315 = vmatpush1.bf16.msra.mxu0 %v296
      %316 = vmatprep.subr.bf16.mxu0 0
      %317 = vmatpush1.bf16.msra.mxu0 %v295
      %318 = vmatprep.subr.bf16.mxu0 0
      %319 = vmatpush2.bf16.msra.mxu0 0
      %320 = vmatprep.subr.bf16.mxu0 0
      %321 = vmatpush2.bf16.msra.mxu0 0
      %322 = vmatprep.subr.bf16.mxu0 0
      %323 = vmatpush2.bf16.msra.mxu0 0
      %324 = vmatprep.subr.bf16.mxu0 0
      %325 = vmatpush2.bf16.msra.mxu0 0
      %326 = vmatprep.subr.bf16.mxu0 0
      %327 = vmatpush2.bf16.msra.mxu0 0
      %328 = vmatprep.subr.bf16.mxu0 0
      %329 = vmatpush2.bf16.msra.mxu0 0
      %330 = vmatprep.subr.bf16.mxu0 0
      %331 = vmatpush2.bf16.msra.mxu0 0
      %332 = vmatprep.subr.bf16.mxu0 0
      %333 = vmatpush2.bf16.msra.mxu0 0
      %334 = vmatprep.mubr.bf16.mxu0 0
      %335 = vmatmul.mubr.bf16.gmra.mxu0 %v300
      %v336 = vpop.f32.mrf.mxu0
      %v337 = vadd.f32 %v282, %v336
      %v338 = vpop.f32.mrf.mxu0
      %v339 = vpop.f32.mrf.mxu0
      %v340 = vpop.f32.mrf.mxu0
      %341 = vdwg.mxu0
      %v342 = vld [vmem:[%s194] sm:$0x6]
      %s343 = scalar_lea.vmem %s200, 32
      %v344 = vld [vmem:[%s343] sm:$0xf]
      %v345 = vld [vmem:[%s343 + $0x4] sm:$0xf]
      %v346 = vld [vmem:[%s343 + $0x8] sm:$0xf]
      %v347 = vld [vmem:[%s343 + $0xc] sm:$0xf]
      %v349 = vunpack.c.l.b16 %v342
      %v350 = vpack.c.b16 %v349, %v349
      %v351 = vrot.slane %v350, 1
      %v356 = vunpack.c.l.b16 %v344
      %v357 = vunpack.c.l.b16 %v345
      %v358 = vunpack.c.l.b16 %v346
      %v359 = vunpack.c.l.b16 %v347
      %v360 = vpack.c.b16 %v357, %v356
      %v361 = vpack.c.b16 %v359, %v358
      %v365 = vsel %vm243, %v351, 0
      %367 = vmatprep.subr.bf16.mxu0 0
      %368 = vmatpush1.bf16.msra.mxu0 0
      %369 = vmatprep.subr.bf16.mxu0 0
      %370 = vmatpush1.bf16.msra.mxu0 0
      %371 = vmatprep.subr.bf16.mxu0 0
      %372 = vmatpush1.bf16.msra.mxu0 0
      %373 = vmatprep.subr.bf16.mxu0 0
      %374 = vmatpush1.bf16.msra.mxu0 0
      %375 = vmatprep.subr.bf16.mxu0 0
      %376 = vmatpush1.bf16.msra.mxu0 0
      %377 = vmatprep.subr.bf16.mxu0 0
      %378 = vmatpush1.bf16.msra.mxu0 0
      %379 = vmatprep.subr.bf16.mxu0 0
      %380 = vmatpush1.bf16.msra.mxu0 %v361
      %381 = vmatprep.subr.bf16.mxu0 0
      %382 = vmatpush1.bf16.msra.mxu0 %v360
      %383 = vmatprep.subr.bf16.mxu0 0
      %384 = vmatpush2.bf16.msra.mxu0 0
      %385 = vmatprep.subr.bf16.mxu0 0
      %386 = vmatpush2.bf16.msra.mxu0 0
      %387 = vmatprep.subr.bf16.mxu0 0
      %388 = vmatpush2.bf16.msra.mxu0 0
      %389 = vmatprep.subr.bf16.mxu0 0
      %390 = vmatpush2.bf16.msra.mxu0 0
      %391 = vmatprep.subr.bf16.mxu0 0
      %392 = vmatpush2.bf16.msra.mxu0 0
      %393 = vmatprep.subr.bf16.mxu0 0
      %394 = vmatpush2.bf16.msra.mxu0 0
      %395 = vmatprep.subr.bf16.mxu0 0
      %396 = vmatpush2.bf16.msra.mxu0 0
      %397 = vmatprep.subr.bf16.mxu0 0
      %398 = vmatpush2.bf16.msra.mxu0 0
      %399 = vmatprep.mubr.bf16.mxu0 0
      %400 = vmatmul.mubr.bf16.gmra.mxu0 %v365
      %v401 = vpop.f32.mrf.mxu0
      %v402 = vadd.f32 0.0, %v401
      %v403 = vpop.f32.mrf.mxu0
      %v404 = vpop.f32.mrf.mxu0
      %v405 = vpop.f32.mrf.mxu0
      %406 = vdwg.mxu0
      %v407 = vadd.f32 %v337, %v402
      %p408 = scmp.eq.s32.totalorder %s20, 0
      // Predicated region
      $region29: #{_lambda_.64} parent=27 // pred_check
        %p409 = pneg %p408
      $region30: #{_lambda_.64} parent=27 // pred_check_branch
        %411 = sbr.rel (%p409) target = $region32
      $region31: #{_lambda_.64} parent=27 // pred_region
        %412 = vst [vmem:[#allocation2] sm:$0xf] %v407
      $region32: #{_lambda_.64} parent=27 // pred_fallthru
        _
      %p413 = scmp.gt.s32.totalorder %s20, 0
      // Predicated region
      $region33: #{_lambda_.64} parent=27 // pred_check
        %p414 = pneg %p413
      $region34: #{_lambda_.64} parent=27 // pred_check_branch
        %416 = sbr.rel (%p414) target = $region36
      $region35: #{_lambda_.64} parent=27 // pred_region
        %v417 = vld [vmem:[#allocation2] sm:$0xf]
        %v418 = vadd.f32 %v417, %v407
        %419 = vst [vmem:[#allocation2] sm:$0xf] %v418
      $region36: #{_lambda_.64} parent=27 // pred_fallthru
        _
      %p420 = scmp.eq.s32.totalorder %s20, 2
      // Predicated region
      $region37: #{_lambda_.64} parent=27 // pred_check
        %p421 = pneg %p420
      $region38: #{_lambda_.64} parent=27 // pred_check_branch
        %423 = sbr.rel (%p421) target = $region40
      $region39: #{_lambda_.64} parent=27 // pred_region
        %v424 = vld [vmem:[#allocation2] sm:$0xf]
        %v425 = vpack.c.bf16 %v424, %v424
        %426 = vst [vmem:[%s208] sm:$0x3] %v425
      $region40: #{_lambda_.64} parent=27 // pred_fallthru
        _
      %p427 = scmp.lt.s32.totalorder %s18, 1
      %s428 = scalar_select %p427, %s18, 1
      %p429 = scmp.lt.s32.totalorder %s19, 3
      %s430 = scalar_select %p429, %s19, 3
      %s431 = smul.addr %s428, 4
      %s432 = sadd.s32 %s430, %s431
      %s433 = smul.addr %s432, 2
      %s434 = scalar_lea.vmem %s2, %s433
      // Predicated region
      $region41: #{_lambda_.64} parent=27 // pred_check
        %p435 = pneg %p108
      $region42: #{_lambda_.64} parent=27 // pred_check_branch
        %437 = sbr.rel (%p435) target = $region44
      $region43: #{_lambda_.64} parent=27 // pred_region
        _
      $region44: #{_lambda_.64} parent=27 // pred_fallthru
        _
    $region28: #{_lambda_.64} parent=5 // pred_fallthru
      _
    %p438 = scmp.le.s32.totalorder 2, %s8
    // Predicated region
    $region45: #{_lambda_.64} parent=5 // pred_check
      %p439 = pneg %p438
    $region46: #{_lambda_.64} parent=5 // pred_check_branch
      %441 = sbr.rel (%p439) target = $region48
    $region47: #{_lambda_.64} parent=5 // pred_region
      %s442 = ssub.s32 %s8, 2
      // Predicated region
      $region49: #{_lambda_.64} parent=47 // pred_check
        %p443 = pneg %p114
      $region50: #{_lambda_.64} parent=47 // pred_check_branch
        %445 = sbr.rel (%p443) target = $region52
      $region51: #{_lambda_.64} parent=47 // pred_region
        %p446 = scmp.lt.s32.totalorder %s21, 1
        %s447 = scalar_select %p446, %s21, 1
        %p448 = scmp.lt.s32.totalorder %s22, 3
        %s449 = scalar_select %p448, %s22, 3
        %s450 = smul.addr %s447, 4
        %s451 = sadd.s32 %s449, %s450
        %s452 = smul.addr %s451, 2
        %s453 = scalar_lea.vmem %s2, %s452
      $region52: #{_lambda_.64} parent=47 // pred_fallthru
        _
    $region48: #{_lambda_.64} parent=5 // pred_fallthru
      _
  $region6: #{_lambda_.64} parent=0 // loop_footer
    %s12 = sadd.s32 1, %s8
  $region7: #{_lambda_.64} parent=0 // loop_footer_branch
    %7 = sbr.rel target = $region3
  $region8: #{_lambda_.64} parent=0 // loop_exit
    _

// kernel: _lambda_.65
$region0: #{_lambda_.65}
  #allocation0 [shape = 'u32[]', space=smem, size = 0x4, offset = 0x4, fixed_abs, tag = 'smem constant byte address 0x4 - core index']
  #allocation1 [shape = 'u32[144,128]{1,0:T(1,128)}', space=vmem, size = 0x12000, scoped, tag = 'internal scratch']
  #allocation2 [shape = 'f32[8,4]{1,0:T(8,128)}', space=vmem, size = 0x1000, scoped, tag = 'scratch operand']
  %s0 = inlined_call_operand.vmem [shape: bf16[2,12,12,32], index: 0, kind: input, shape index: {}]
  %s1 = inlined_call_operand.vmem [shape: bf16[5,5,32,4], index: 1, kind: input, shape index: {}]
  %s2 = inlined_call_operand.vmem [shape: f32[2,8,8,4], index: 2, kind: output, shape index: {}]
  %s3 = sld [smem:[#allocation0]]
  $region53: #{_lambda_.65} parent=0
    _
  %s5 = ssub.s32 1, %s3
  %s6 = scalar_select 0, %s5, %s3
  loop: start=0, step=1, limit=82
  $region2: #{_lambda_.65} parent=0 // loop_pre_header
    _
  $region3: #{_lambda_.65} parent=0 // loop_header
    %s8 = sphi 0, %s12
    %p9 = scmp.ge.s32.totalorder %s8, 82
    %s15 = sphi 0, %s34
    %s16 = sphi 0, %s30
    %s17 = sphi 0, %s26
    %s18 = sphi 0, %s15
    %s19 = sphi 0, %s16
    %s20 = sphi 0, %s17
    %s21 = sphi 0, %s18
    %s22 = sphi 0, %s19
    %s23 = sphi 0, %s20
    %s41 = sphi 0, %s43
    %s44 = sphi 0, %s41
    %s45 = sphi 0, %s44
    %s61 = sphi 0, %s45
    %s67 = sphi 0, %s69
    %s70 = sphi 0, %s67
    %s71 = sphi 0, %s70
    %s87 = sphi 0, %s71
    %s95 = sphi 0, %s97
    %s98 = sphi 0, %s95
    %s99 = sphi 0, %s98
    %s115 = sphi 0, %s99
  $region4: #{_lambda_.65} parent=0 // loop_header_branch
    %11 = sbr.rel (%p9) target = $region8
  $region5: #{_lambda_.65} parent=0 // loop_body
    %s13 = ssub.s32 %s8, 1
    %s14 = ssub.s32 %s8, 2
    %s24 = sadd.s32 1, %s17
    %p25 = scmp.ge.s32.totalorder %s24, 5
    %s26 = scalar_select %p25, 0, %s24
    %s27 = sadd.s32 1, %s16
    %s28 = scalar_select %p25, %s27, %s16
    %p29 = scmp.ge.s32.totalorder %s28, 8
    %s30 = scalar_select %p29, 0, %s28
    %s31 = sadd.s32 1, %s15
    %s32 = scalar_select %p29, %s31, %s15
    %p33 = scmp.ge.s32.totalorder %s32, 2
    %s34 = scalar_select %p33, 0, %s32
    %s35 = sadd.s32 %s16, %s17
    %s36 = sadd.s32 %s30, %s26
    %s37 = ssub.s32 %s15, %s34
    %s38 = ssub.s32 %s35, %s36
    %s39 = sor.u32 %s37, %s38
    %p40 = scmp.eq.s32.totalorder %s39, 0
    %s42 = sadd.s32 %s41, 1
    %s43 = scalar_select %p40, %s41, %s42
    %p46 = pneg %p40
    %p47 = scmp.eq.s32.totalorder %s8, 79
    %p48 = por %p46, %p47
    %p49 = scmp.ne.s32.totalorder %s41, %s44
    %p50 = scmp.eq.s32.totalorder %s8, 0
    %p51 = por %p49, %p50
    %p52 = scmp.ne.s32.totalorder %s41, %s44
    %p53 = scmp.eq.s32.totalorder %s13, 79
    %p54 = por %p52, %p53
    %p55 = scmp.ne.s32.totalorder %s44, %s45
    %p56 = scmp.eq.s32.totalorder %s13, 0
    %p57 = por %p55, %p56
    %p58 = scmp.ne.s32.totalorder %s44, %s45
    %p59 = scmp.eq.s32.totalorder %s14, 79
    %p60 = por %p58, %p59
    %p62 = scmp.ne.s32.totalorder %s45, %s61
    %p63 = scmp.eq.s32.totalorder %s14, 0
    %p64 = por %p62, %p63
    %s65 = ssub.s32 %s17, %s26
    %p66 = scmp.eq.s32.totalorder %s65, 0
    %s68 = sadd.s32 %s67, 1
    %s69 = scalar_select %p66, %s67, %s68
    %p72 = pneg %p66
    %p73 = scmp.eq.s32.totalorder %s8, 79
    %p74 = por %p72, %p73
    %p75 = scmp.ne.s32.totalorder %s67, %s70
    %p76 = scmp.eq.s32.totalorder %s8, 0
    %p77 = por %p75, %p76
    %p78 = scmp.ne.s32.totalorder %s67, %s70
    %p79 = scmp.eq.s32.totalorder %s13, 79
    %p80 = por %p78, %p79
    %p81 = scmp.ne.s32.totalorder %s70, %s71
    %p82 = scmp.eq.s32.totalorder %s13, 0
    %p83 = por %p81, %p82
    %p84 = scmp.ne.s32.totalorder %s70, %s71
    %p85 = scmp.eq.s32.totalorder %s14, 79
    %p86 = por %p84, %p85
    %p88 = scmp.ne.s32.totalorder %s71, %s87
    %p89 = scmp.eq.s32.totalorder %s14, 0
    %p90 = por %p88, %p89
    %s91 = ssub.s32 %s15, %s34
    %s92 = ssub.s32 %s16, %s30
    %s93 = sor.u32 %s91, %s92
    %p94 = scmp.eq.s32.totalorder %s93, 0
    %s96 = sadd.s32 %s95, 1
    %s97 = scalar_select %p94, %s95, %s96
    %p100 = pneg %p94
    %p101 = scmp.eq.s32.totalorder %s8, 79
    %p102 = por %p100, %p101
    %p103 = scmp.ne.s32.totalorder %s95, %s98
    %p104 = scmp.eq.s32.totalorder %s8, 0
    %p105 = por %p103, %p104
    %p106 = scmp.ne.s32.totalorder %s95, %s98
    %p107 = scmp.eq.s32.totalorder %s13, 79
    %p108 = por %p106, %p107
    %p109 = scmp.ne.s32.totalorder %s98, %s99
    %p110 = scmp.eq.s32.totalorder %s13, 0
    %p111 = por %p109, %p110
    %p112 = scmp.ne.s32.totalorder %s98, %s99
    %p113 = scmp.eq.s32.totalorder %s14, 79
    %p114 = por %p112, %p113
    %p116 = scmp.ne.s32.totalorder %s99, %s115
    %p117 = scmp.eq.s32.totalorder %s14, 0
    %p118 = por %p116, %p117
    %p119 = scmp.le.s32.totalorder 1, %s8
    %p120 = scmp.lt.s32.totalorder %s8, 81
    %p121 = pnand %p119, %p120
    %p122 = pneg %p121
    // Predicated region
    $region9: #{_lambda_.65} parent=5 // pred_check
      _
    $region10: #{_lambda_.65} parent=5 // pred_check_branch
      %124 = sbr.rel (%p121) target = $region12
    $region11: #{_lambda_.65} parent=5 // pred_region
      %s125 = ssub.s32 %s8, 1
    $region12: #{_lambda_.65} parent=5 // pred_fallthru
      _
    %p126 = scmp.lt.s32.totalorder %s8, 80
    // Predicated region
    $region13: #{_lambda_.65} parent=5 // pred_check
      %p127 = pneg %p126
    $region14: #{_lambda_.65} parent=5 // pred_check_branch
      %129 = sbr.rel (%p127) target = $region16
    $region15: #{_lambda_.65} parent=5 // pred_region
      // Predicated region
      $region17: #{_lambda_.65} parent=15 // pred_check
        %p130 = pneg %p51
      $region18: #{_lambda_.65} parent=15 // pred_check_branch
        %132 = sbr.rel (%p130) target = $region20
      $region19: #{_lambda_.65} parent=15 // pred_region
        %s133 = sadd.s32 %s16, %s17
        %p134 = scmp.lt.s32.totalorder %s15, 1
        %s135 = scalar_select %p134, %s15, 1
        %p136 = scmp.lt.s32.totalorder %s133, 11
        %s137 = scalar_select %p136, %s133, 11
        %s138 = smul.addr %s137, 2
        %s139 = smul.addr %s135, 24
        %s140 = sadd.s32 %s138, %s139
        %s141 = smul.addr %s140, 4
        %s142 = scalar_lea.vmem %s0, %s141
        %s143 = sadd.s32 %s16, %s17
      $region20: #{_lambda_.65} parent=15 // pred_fallthru
        _
      // Predicated region
      $region21: #{_lambda_.65} parent=15 // pred_check
        %p144 = pneg %p77
      $region22: #{_lambda_.65} parent=15 // pred_check_branch
        %146 = sbr.rel (%p144) target = $region24
      $region23: #{_lambda_.65} parent=15 // pred_region
        %p147 = scmp.lt.s32.totalorder %s17, 4
        %s148 = scalar_select %p147, %s17, 4
        %s149 = smul.addr %s148, 20
        %s150 = smul.addr %s149, 4
        %s151 = scalar_lea.vmem %s1, %s150
      $region24: #{_lambda_.65} parent=15 // pred_fallthru
        _
    $region16: #{_lambda_.65} parent=5 // pred_fallthru
      _
    %p152 = scmp.le.s32.totalorder 1, %s8
    %p153 = scmp.lt.s32.totalorder %s8, 81
    %p154 = pnand %p152, %p153
    %p155 = pneg %p154
    // Predicated region
    $region25: #{_lambda_.65} parent=5 // pred_check
      _
    $region26: #{_lambda_.65} parent=5 // pred_check_branch
      %157 = sbr.rel (%p154) target = $region28
    $region27: #{_lambda_.65} parent=5 // pred_region
      %s158 = ssub.s32 %s8, 1
      %s159 = sadd.s32 %s19, %s20
      %p160 = scmp.lt.s32.totalorder %s18, 1
      %s161 = scalar_select %p160, %s18, 1
      %p162 = scmp.lt.s32.totalorder %s159, 11
      %s163 = scalar_select %p162, %s159, 11
      %s164 = smul.addr %s163, 2
      %s165 = smul.addr %s161, 24
      %s166 = sadd.s32 %s164, %s165
      %s167 = smul.addr %s166, 4
      %s168 = scalar_lea.vmem %s0, %s167
      %p169 = pneg %p57
      %p170 = pneg %p54
      %p171 = scmp.lt.s32.totalorder %s20, 4
      %s172 = scalar_select %p171, %s20, 4
      %s173 = smul.addr %s172, 20
      %s174 = smul.addr %s173, 4
      %s175 = scalar_lea.vmem %s1, %s174
      %p176 = pneg %p83
      %p177 = pneg %p80
      %p178 = pneg %p111
      %p179 = pneg %p108
      %p180 = scmp.lt.s32.totalorder %s18, 1
      %s181 = scalar_select %p180, %s18, 1
      %p182 = scmp.lt.s32.totalorder %s19, 7
      %s183 = scalar_select %p182, %s19, 7
      %s184 = smul.addr %s181, 8
      %s185 = sadd.s32 %s183, %s184
      %s186 = smul.addr %s185, 8
      %s187 = scalar_lea.vmem %s2, %s186
      %s188 = sadd.s32 %s19, %s20
      %p189 = scmp.lt.s32.totalorder %s18, 1
      %s190 = scalar_select %p189, %s18, 1
      %p191 = scmp.lt.s32.totalorder %s188, 11
      %s192 = scalar_select %p191, %s188, 11
      %s193 = smul.addr %s192, 2
      %s194 = smul.addr %s190, 24
      %s195 = sadd.s32 %s193, %s194
      %s196 = smul.addr %s195, 4
      %s197 = scalar_lea.vmem %s0, %s196
      %s198 = sadd.s32 %s19, %s20
      %p199 = scmp.lt.s32.totalorder %s20, 4
      %s200 = scalar_select %p199, %s20, 4
      %s201 = smul.addr %s200, 20
      %s202 = smul.addr %s201, 4
      %s203 = scalar_lea.vmem %s1, %s202
      %p204 = scmp.lt.s32.totalorder %s18, 1
      %s205 = scalar_select %p204, %s18, 1
      %p206 = scmp.lt.s32.totalorder %s19, 7
      %s207 = scalar_select %p206, %s19, 7
      %s208 = smul.addr %s205, 8
      %s209 = sadd.s32 %s207, %s208
      %s210 = smul.addr %s209, 8
      %s211 = scalar_lea.vmem %s2, %s210
      %v213 = vld [vmem:[%s197] sm:$0xf]
      %v214 = vld [vmem:[%s203] sm:$0xf]
      %v215 = vld [vmem:[%s203 + $0x4] sm:$0xf]
      %v216 = vld [vmem:[%s203 + $0x8] sm:$0xf]
      %v217 = vld [vmem:[%s203 + $0xc] sm:$0xf]
      %v218 = vld [vmem:[%s197 + $0x4] sm:$0x1]
      %s219 = scalar_lea.vmem %s203, 16
      %v220 = vld [vmem:[%s219] sm:$0xf]
      %v221 = vld [vmem:[%s219 + $0x4] sm:$0xf]
      %v222 = vld [vmem:[%s219 + $0x8] sm:$0xf]
      %v223 = vld [vmem:[%s219 + $0xc] sm:$0xf]
      %v226 = vunpack.c.l.b16 %v213
      %v227 = vunpack.c.l.b16 %v218
      %v228 = vpack.c.b16 %v227, %v226
      %v230 = vshrl.u32 %v228, 16
      %v232 = vshll.u32 %v228, 16
      %v234 = vrot.slane %v232, 1
      %v235 = vor.u32 %v230, %v234
      %v240 = vunpack.c.l.b16 %v220
      %v241 = vunpack.c.l.b16 %v221
      %v242 = vunpack.c.l.b16 %v222
      %v243 = vunpack.c.l.b16 %v223
      %v244 = vpack.c.b16 %v241, %v240
      %v245 = vpack.c.b16 %v243, %v242
      %vm248 = vcmask 261120
      %v250 = vsel %vm248, %v235, 0
      %252 = vmatprep.subr.bf16.mxu0 0
      %253 = vmatpush1.bf16.msra.mxu0 0
      %254 = vmatprep.subr.bf16.mxu0 0
      %255 = vmatpush1.bf16.msra.mxu0 0
      %256 = vmatprep.subr.bf16.mxu0 0
      %257 = vmatpush1.bf16.msra.mxu0 0
      %258 = vmatprep.subr.bf16.mxu0 0
      %259 = vmatpush1.bf16.msra.mxu0 0
      %260 = vmatprep.subr.bf16.mxu0 0
      %261 = vmatpush1.bf16.msra.mxu0 0
      %262 = vmatprep.subr.bf16.mxu0 0
      %263 = vmatpush1.bf16.msra.mxu0 0
      %264 = vmatprep.subr.bf16.mxu0 0
      %265 = vmatpush1.bf16.msra.mxu0 %v245
      %266 = vmatprep.subr.bf16.mxu0 0
      %267 = vmatpush1.bf16.msra.mxu0 %v244
      %268 = vmatprep.subr.bf16.mxu0 0
      %269 = vmatpush2.bf16.msra.mxu0 0
      %270 = vmatprep.subr.bf16.mxu0 0
      %271 = vmatpush2.bf16.msra.mxu0 0
      %272 = vmatprep.subr.bf16.mxu0 0
      %273 = vmatpush2.bf16.msra.mxu0 0
      %274 = vmatprep.subr.bf16.mxu0 0
      %275 = vmatpush2.bf16.msra.mxu0 0
      %276 = vmatprep.subr.bf16.mxu0 0
      %277 = vmatpush2.bf16.msra.mxu0 0
      %278 = vmatprep.subr.bf16.mxu0 0
      %279 = vmatpush2.bf16.msra.mxu0 0
      %280 = vmatprep.subr.bf16.mxu0 0
      %281 = vmatpush2.bf16.msra.mxu0 0
      %282 = vmatprep.subr.bf16.mxu0 0
      %283 = vmatpush2.bf16.msra.mxu0 0
      %284 = vmatprep.mubr.bf16.mxu0 0
      %285 = vmatmul.mubr.bf16.gmra.mxu0 %v250
      %v286 = vpop.f32.mrf.mxu0
      %v287 = vadd.f32 0.0, %v286
      %v288 = vpop.f32.mrf.mxu0
      %v289 = vpop.f32.mrf.mxu0
      %v290 = vpop.f32.mrf.mxu0
      %291 = vdwg.mxu0
      %v296 = vunpack.c.l.b16 %v214
      %v297 = vunpack.c.l.b16 %v215
      %v298 = vunpack.c.l.b16 %v216
      %v299 = vunpack.c.l.b16 %v217
      %v300 = vpack.c.b16 %v297, %v296
      %v301 = vpack.c.b16 %v299, %v298
      %v305 = vsel %vm248, %v213, 0
      %307 = vmatprep.subr.bf16.mxu0 0
      %308 = vmatpush1.bf16.msra.mxu0 0
      %309 = vmatprep.subr.bf16.mxu0 0
      %310 = vmatpush1.bf16.msra.mxu0 0
      %311 = vmatprep.subr.bf16.mxu0 0
      %312 = vmatpush1.bf16.msra.mxu0 0
      %313 = vmatprep.subr.bf16.mxu0 0
      %314 = vmatpush1.bf16.msra.mxu0 0
      %315 = vmatprep.subr.bf16.mxu0 0
      %316 = vmatpush1.bf16.msra.mxu0 0
      %317 = vmatprep.subr.bf16.mxu0 0
      %318 = vmatpush1.bf16.msra.mxu0 0
      %319 = vmatprep.subr.bf16.mxu0 0
      %320 = vmatpush1.bf16.msra.mxu0 %v301
      %321 = vmatprep.subr.bf16.mxu0 0
      %322 = vmatpush1.bf16.msra.mxu0 %v300
      %323 = vmatprep.subr.bf16.mxu0 0
      %324 = vmatpush2.bf16.msra.mxu0 0
      %325 = vmatprep.subr.bf16.mxu0 0
      %326 = vmatpush2.bf16.msra.mxu0 0
      %327 = vmatprep.subr.bf16.mxu0 0
      %328 = vmatpush2.bf16.msra.mxu0 0
      %329 = vmatprep.subr.bf16.mxu0 0
      %330 = vmatpush2.bf16.msra.mxu0 0
      %331 = vmatprep.subr.bf16.mxu0 0
      %332 = vmatpush2.bf16.msra.mxu0 0
      %333 = vmatprep.subr.bf16.mxu0 0
      %334 = vmatpush2.bf16.msra.mxu0 0
      %335 = vmatprep.subr.bf16.mxu0 0
      %336 = vmatpush2.bf16.msra.mxu0 0
      %337 = vmatprep.subr.bf16.mxu0 0
      %338 = vmatpush2.bf16.msra.mxu0 0
      %339 = vmatprep.mubr.bf16.mxu0 0
      %340 = vmatmul.mubr.bf16.gmra.mxu0 %v305
      %v341 = vpop.f32.mrf.mxu0
      %v342 = vadd.f32 %v287, %v341
      %v343 = vpop.f32.mrf.mxu0
      %v344 = vpop.f32.mrf.mxu0
      %v345 = vpop.f32.mrf.mxu0
      %346 = vdwg.mxu0
      %v347 = vld [vmem:[%s197] sm:$0xe]
      %s348 = scalar_lea.vmem %s203, 32
      %v349 = vld [vmem:[%s348] sm:$0xf]
      %v350 = vld [vmem:[%s348 + $0x4] sm:$0xf]
      %v351 = vld [vmem:[%s348 + $0x8] sm:$0xf]
      %v352 = vld [vmem:[%s348 + $0xc] sm:$0xf]
      %v354 = vunpack.c.l.b16 %v347
      %v355 = vpack.c.b16 %v227, %v354
      %v356 = vrot.slane %v355, 1
      %v361 = vunpack.c.l.b16 %v349
      %v362 = vunpack.c.l.b16 %v350
      %v363 = vunpack.c.l.b16 %v351
      %v364 = vunpack.c.l.b16 %v352
      %v365 = vpack.c.b16 %v362, %v361
      %v366 = vpack.c.b16 %v364, %v363
      %v370 = vsel %vm248, %v356, 0
      %372 = vmatprep.subr.bf16.mxu0 0
      %373 = vmatpush1.bf16.msra.mxu0 0
      %374 = vmatprep.subr.bf16.mxu0 0
      %375 = vmatpush1.bf16.msra.mxu0 0
      %376 = vmatprep.subr.bf16.mxu0 0
      %377 = vmatpush1.bf16.msra.mxu0 0
      %378 = vmatprep.subr.bf16.mxu0 0
      %379 = vmatpush1.bf16.msra.mxu0 0
      %380 = vmatprep.subr.bf16.mxu0 0
      %381 = vmatpush1.bf16.msra.mxu0 0
      %382 = vmatprep.subr.bf16.mxu0 0
      %383 = vmatpush1.bf16.msra.mxu0 0
      %384 = vmatprep.subr.bf16.mxu0 0
      %385 = vmatpush1.bf16.msra.mxu0 %v366
      %386 = vmatprep.subr.bf16.mxu0 0
      %387 = vmatpush1.bf16.msra.mxu0 %v365
      %388 = vmatprep.subr.bf16.mxu0 0
      %389 = vmatpush2.bf16.msra.mxu0 0
      %390 = vmatprep.subr.bf16.mxu0 0
      %391 = vmatpush2.bf16.msra.mxu0 0
      %392 = vmatprep.subr.bf16.mxu0 0
      %393 = vmatpush2.bf16.msra.mxu0 0
      %394 = vmatprep.subr.bf16.mxu0 0
      %395 = vmatpush2.bf16.msra.mxu0 0
      %396 = vmatprep.subr.bf16.mxu0 0
      %397 = vmatpush2.bf16.msra.mxu0 0
      %398 = vmatprep.subr.bf16.mxu0 0
      %399 = vmatpush2.bf16.msra.mxu0 0
      %400 = vmatprep.subr.bf16.mxu0 0
      %401 = vmatpush2.bf16.msra.mxu0 0
      %402 = vmatprep.subr.bf16.mxu0 0
      %403 = vmatpush2.bf16.msra.mxu0 0
      %404 = vmatprep.mubr.bf16.mxu0 0
      %405 = vmatmul.mubr.bf16.gmra.mxu0 %v370
      %v406 = vpop.f32.mrf.mxu0
      %v407 = vadd.f32 0.0, %v406
      %v408 = vpop.f32.mrf.mxu0
      %v409 = vpop.f32.mrf.mxu0
      %v410 = vpop.f32.mrf.mxu0
      %411 = vdwg.mxu0
      %v412 = vadd.f32 %v342, %v407
      %v413 = vld [vmem:[%s197 + $0x4] sm:$0x3]
      %s414 = scalar_lea.vmem %s203, 48
      %v415 = vld [vmem:[%s414] sm:$0xf]
      %v416 = vld [vmem:[%s414 + $0x4] sm:$0xf]
      %v417 = vld [vmem:[%s414 + $0x8] sm:$0xf]
      %v418 = vld [vmem:[%s414 + $0xc] sm:$0xf]
      %v420 = vunpack.c.l.b16 %v413
      %v421 = vpack.c.b16 %v420, %v354
      %v423 = vshrl.u32 %v421, 16
      %v425 = vrot.slane %v423, 1
      %v426 = vshll.u32 %v421, 16
      %v428 = vrot.slane %v426, 2
      %v429 = vor.u32 %v425, %v428
      %v434 = vunpack.c.l.b16 %v415
      %v435 = vunpack.c.l.b16 %v416
      %v436 = vunpack.c.l.b16 %v417
      %v437 = vunpack.c.l.b16 %v418
      %v438 = vpack.c.b16 %v435, %v434
      %v439 = vpack.c.b16 %v437, %v436
      %v443 = vsel %vm248, %v429, 0
      %445 = vmatprep.subr.bf16.mxu0 0
      %446 = vmatpush1.bf16.msra.mxu0 0
      %447 = vmatprep.subr.bf16.mxu0 0
      %448 = vmatpush1.bf16.msra.mxu0 0
      %449 = vmatprep.subr.bf16.mxu0 0
      %450 = vmatpush1.bf16.msra.mxu0 0
      %451 = vmatprep.subr.bf16.mxu0 0
      %452 = vmatpush1.bf16.msra.mxu0 0
      %453 = vmatprep.subr.bf16.mxu0 0
      %454 = vmatpush1.bf16.msra.mxu0 0
      %455 = vmatprep.subr.bf16.mxu0 0
      %456 = vmatpush1.bf16.msra.mxu0 0
      %457 = vmatprep.subr.bf16.mxu0 0
      %458 = vmatpush1.bf16.msra.mxu0 %v439
      %459 = vmatprep.subr.bf16.mxu0 0
      %460 = vmatpush1.bf16.msra.mxu0 %v438
      %461 = vmatprep.subr.bf16.mxu0 0
      %462 = vmatpush2.bf16.msra.mxu0 0
      %463 = vmatprep.subr.bf16.mxu0 0
      %464 = vmatpush2.bf16.msra.mxu0 0
      %465 = vmatprep.subr.bf16.mxu0 0
      %466 = vmatpush2.bf16.msra.mxu0 0
      %467 = vmatprep.subr.bf16.mxu0 0
      %468 = vmatpush2.bf16.msra.mxu0 0
      %469 = vmatprep.subr.bf16.mxu0 0
      %470 = vmatpush2.bf16.msra.mxu0 0
      %471 = vmatprep.subr.bf16.mxu0 0
      %472 = vmatpush2.bf16.msra.mxu0 0
      %473 = vmatprep.subr.bf16.mxu0 0
      %474 = vmatpush2.bf16.msra.mxu0 0
      %475 = vmatprep.subr.bf16.mxu0 0
      %476 = vmatpush2.bf16.msra.mxu0 0
      %477 = vmatprep.mubr.bf16.mxu0 0
      %478 = vmatmul.mubr.bf16.gmra.mxu0 %v443
      %v479 = vpop.f32.mrf.mxu0
      %v480 = vadd.f32 0.0, %v479
      %v481 = vpop.f32.mrf.mxu0
      %v482 = vpop.f32.mrf.mxu0
      %v483 = vpop.f32.mrf.mxu0
      %484 = vdwg.mxu0
      %v485 = vadd.f32 %v412, %v480
      %v486 = vld [vmem:[%s197] sm:$0xc]
      %s487 = scalar_lea.vmem %s203, 64
      %v488 = vld [vmem:[%s487] sm:$0xf]
      %v489 = vld [vmem:[%s487 + $0x4] sm:$0xf]
      %v490 = vld [vmem:[%s487 + $0x8] sm:$0xf]
      %v491 = vld [vmem:[%s487 + $0xc] sm:$0xf]
      %v493 = vunpack.c.l.b16 %v486
      %v494 = vpack.c.b16 %v420, %v493
      %v495 = vrot.slane %v494, 2
      %v500 = vunpack.c.l.b16 %v488
      %v501 = vunpack.c.l.b16 %v489
      %v502 = vunpack.c.l.b16 %v490
      %v503 = vunpack.c.l.b16 %v491
      %v504 = vpack.c.b16 %v501, %v500
      %v505 = vpack.c.b16 %v503, %v502
      %v509 = vsel %vm248, %v495, 0
      %511 = vmatprep.subr.bf16.mxu0 0
      %512 = vmatpush1.bf16.msra.mxu0 0
      %513 = vmatprep.subr.bf16.mxu0 0
      %514 = vmatpush1.bf16.msra.mxu0 0
      %515 = vmatprep.subr.bf16.mxu0 0
      %516 = vmatpush1.bf16.msra.mxu0 0
      %517 = vmatprep.subr.bf16.mxu0 0
      %518 = vmatpush1.bf16.msra.mxu0 0
      %519 = vmatprep.subr.bf16.mxu0 0
      %520 = vmatpush1.bf16.msra.mxu0 0
      %521 = vmatprep.subr.bf16.mxu0 0
      %522 = vmatpush1.bf16.msra.mxu0 0
      %523 = vmatprep.subr.bf16.mxu0 0
      %524 = vmatpush1.bf16.msra.mxu0 %v505
      %525 = vmatprep.subr.bf16.mxu0 0
      %526 = vmatpush1.bf16.msra.mxu0 %v504
      %527 = vmatprep.subr.bf16.mxu0 0
      %528 = vmatpush2.bf16.msra.mxu0 0
      %529 = vmatprep.subr.bf16.mxu0 0
      %530 = vmatpush2.bf16.msra.mxu0 0
      %531 = vmatprep.subr.bf16.mxu0 0
      %532 = vmatpush2.bf16.msra.mxu0 0
      %533 = vmatprep.subr.bf16.mxu0 0
      %534 = vmatpush2.bf16.msra.mxu0 0
      %535 = vmatprep.subr.bf16.mxu0 0
      %536 = vmatpush2.bf16.msra.mxu0 0
      %537 = vmatprep.subr.bf16.mxu0 0
      %538 = vmatpush2.bf16.msra.mxu0 0
      %539 = vmatprep.subr.bf16.mxu0 0
      %540 = vmatpush2.bf16.msra.mxu0 0
      %541 = vmatprep.subr.bf16.mxu0 0
      %542 = vmatpush2.bf16.msra.mxu0 0
      %543 = vmatprep.mubr.bf16.mxu0 0
      %544 = vmatmul.mubr.bf16.gmra.mxu0 %v509
      %v545 = vpop.f32.mrf.mxu0
      %v546 = vadd.f32 0.0, %v545
      %v547 = vpop.f32.mrf.mxu0
      %v548 = vpop.f32.mrf.mxu0
      %v549 = vpop.f32.mrf.mxu0
      %550 = vdwg.mxu0
      %v551 = vadd.f32 %v485, %v546
      %p552 = scmp.eq.s32.totalorder %s20, 0
      // Predicated region
      $region29: #{_lambda_.65} parent=27 // pred_check
        %p553 = pneg %p552
      $region30: #{_lambda_.65} parent=27 // pred_check_branch
        %555 = sbr.rel (%p553) target = $region32
      $region31: #{_lambda_.65} parent=27 // pred_region
        %vm556 = vcmask 31744
        %557 = vst.msk [vmem:[#allocation2] sm:$0xff] %vm556, %v551
      $region32: #{_lambda_.65} parent=27 // pred_fallthru
        _
      %p558 = scmp.gt.s32.totalorder %s20, 0
      // Predicated region
      $region33: #{_lambda_.65} parent=27 // pred_check
        %p559 = pneg %p558
      $region34: #{_lambda_.65} parent=27 // pred_check_branch
        %561 = sbr.rel (%p559) target = $region36
      $region35: #{_lambda_.65} parent=27 // pred_region
        %v562 = vld [vmem:[#allocation2] sm:$0xff]
        %v563 = vadd.f32 %v562, %v551
        %vm564 = vcmask 31744
        %565 = vst.msk [vmem:[#allocation2] sm:$0xff] %vm564, %v563
      $region36: #{_lambda_.65} parent=27 // pred_fallthru
        _
      %p566 = scmp.eq.s32.totalorder %s20, 4
      // Predicated region
      $region37: #{_lambda_.65} parent=27 // pred_check
        %p567 = pneg %p566
      $region38: #{_lambda_.65} parent=27 // pred_check_branch
        %569 = sbr.rel (%p567) target = $region40
      $region39: #{_lambda_.65} parent=27 // pred_region
        %v570 = vld [vmem:[#allocation2] sm:$0xff]
        %vm571 = vcmask 31744
        %572 = vst.msk [vmem:[%s211] sm:$0xff] %vm571, %v570
      $region40: #{_lambda_.65} parent=27 // pred_fallthru
        _
      %p573 = scmp.lt.s32.totalorder %s18, 1
      %s574 = scalar_select %p573, %s18, 1
      %p575 = scmp.lt.s32.totalorder %s19, 7
      %s576 = scalar_select %p575, %s19, 7
      %s577 = smul.addr %s574, 8
      %s578 = sadd.s32 %s576, %s577
      %s579 = smul.addr %s578, 8
      %s580 = scalar_lea.vmem %s2, %s579
      // Predicated region
      $region41: #{_lambda_.65} parent=27 // pred_check
        %p581 = pneg %p108
      $region42: #{_lambda_.65} parent=27 // pred_check_branch
        %583 = sbr.rel (%p581) target = $region44
      $region43: #{_lambda_.65} parent=27 // pred_region
        _
      $region44: #{_lambda_.65} parent=27 // pred_fallthru
        _
    $region28: #{_lambda_.65} parent=5 // pred_fallthru
      _
    %p584 = scmp.le.s32.totalorder 2, %s8
    // Predicated region
    $region45: #{_lambda_.65} parent=5 // pred_check
      %p585 = pneg %p584
    $region46: #{_lambda_.65} parent=5 // pred_check_branch
      %587 = sbr.rel (%p585) target = $region48
    $region47: #{_lambda_.65} parent=5 // pred_region
      %s588 = ssub.s32 %s8, 2
      // Predicated region
      $region49: #{_lambda_.65} parent=47 // pred_check
        %p589 = pneg %p114
      $region50: #{_lambda_.65} parent=47 // pred_check_branch
        %591 = sbr.rel (%p589) target = $region52
      $region51: #{_lambda_.65} parent=47 // pred_region
        %p592 = scmp.lt.s32.totalorder %s21, 1
        %s593 = scalar_select %p592, %s21, 1
        %p594 = scmp.lt.s32.totalorder %s22, 7
        %s595 = scalar_select %p594, %s22, 7
        %s596 = smul.addr %s593, 8
        %s597 = sadd.s32 %s595, %s596
        %s598 = smul.addr %s597, 8
        %s599 = scalar_lea.vmem %s2, %s598
      $region52: #{_lambda_.65} parent=47 // pred_fallthru
        _
    $region48: #{_lambda_.65} parent=5 // pred_fallthru
      _
  $region6: #{_lambda_.65} parent=0 // loop_footer
    %s12 = sadd.s32 1, %s8
  $region7: #{_lambda_.65} parent=0 // loop_footer_branch
    %7 = sbr.rel target = $region3
  $region8: #{_lambda_.65} parent=0 // loop_exit
    _

</llo_original>
